<compile_context>
chip_gen: v5e
topology: v5e:2x2
jax: 0.10.0
libtpu: 0.0.40
codegen_flags: <defaults>
</compile_context>

<pallas_src>
import numpy as np

import jax
import jax.numpy as jnp
from jax.experimental import pallas as pl
from jax.experimental.pallas import tpu as pltpu


# MXU operand dtype (accumulation is always f32).  Set to jnp.float32 for
# bit-exact f32 matmuls; bf16 is the native MXU dtype on v6e/v7x.
MXU_DTYPE = jnp.bfloat16


# ----------------------------------------------------------------------------
# Pallas kernel: whole VAE forward, one batch element per grid step.
# ----------------------------------------------------------------------------
def _dot(a, b):
    return jnp.dot(a.astype(MXU_DTYPE), b.astype(MXU_DTYPE),
                   preferred_element_type=jnp.float32)


def _conv_block(a, rh_ref, m_ref, b_ref, act):
    """One conv / conv-transpose layer on a (H, W*C) activation matrix.

    y = act( sum_t rh_ref[t] @ a @ m_ref[t] + bias )
      rh_ref: (k*k, Hout, Hin)           0/1 row-selection per tap
      m_ref : (k*k, Win*Cin, Wout*Cout)  kron(col-selection, weight tap)
      b_ref : (1, Wout*Cout)             f32 bias row (bias tiled over Wout)
    """
    n_taps = rh_ref.shape[0]
    h_out = rh_ref.shape[1]
    n_out = m_ref.shape[2]
    a_c = a.astype(MXU_DTYPE)
    acc = jnp.zeros((h_out, n_out), jnp.float32)
    for t in range(n_taps):
        rows = _dot(rh_ref[t], a_c)          # (Hout, Win*Cin)  exact row gather
        acc = acc + _dot(rows, m_ref[t])     # (Hout, Wout*Cout)
    y = acc + b_ref[...]
    if act == "relu":
        y = jnp.maximum(y, 0.0)
    elif act == "sigmoid":
        y = jax.nn.sigmoid(y)
    return y


def _vae_kernel(x_ref, eps_ref,
                c1_rh, c1_m, c1_b, c2_rh, c2_m, c2_b, c3_rh, c3_m, c3_b,
                wh_ref, b1_ref, wmu_ref, bmu_ref, wlv_ref, blv_ref,
                d1w_ref, d1b_ref, w2d_ref, b2d_ref,
                t1_rh, t1_m, t1_b, t2_rh, t2_m, t2_b, t3_rh, t3_m, t3_b,
                out_ref):
    # -------- encoder CNN (activations stay as (H, W*C) VMEM values) --------
    a = x_ref[0].astype(jnp.float32)                  # (28, 28), C = 1
    a = _conv_block(a, c1_rh, c1_m, c1_b, "relu")     # (14, 14*8)
    a = _conv_block(a, c2_rh, c2_m, c2_b, "relu")     # (7,  7*16)
    a = _conv_block(a, c3_rh, c3_m, c3_b, "relu")     # (3,  3*32)

    # -------- merged mu | logvar heads (lane-dense N=128 hidden) --------
    a_c = a.astype(MXU_DTYPE)
    hid = jnp.zeros((1, wh_ref.shape[2]), jnp.float32)
    for h in range(wh_ref.shape[0]):
        hid = hid + _dot(a_c[h:h + 1, :], wh_ref[h])  # fold of NCHW flatten
    hid = jnp.maximum(hid + b1_ref[...], 0.0)         # (1, 128)
    mu = _dot(hid, wmu_ref[...]) + bmu_ref[...]       # (1, zdim)
    logvar = _dot(hid, wlv_ref[...]) + blv_ref[...]   # (1, zdim)

    # -------- reparameterization (fused, f32 elementwise) --------
    # eps ~ N(0,1) is supplied as an input (torch draws it inside forward).
    z = mu + eps_ref[0] * jnp.exp(0.5 * logvar)       # (1, zdim)

    # -------- decoder linears (second one folded to the conv layout) --------
    dh = jnp.maximum(_dot(z, d1w_ref[...]) + d1b_ref[...], 0.0)   # (1, 64)
    dh_c = dh.astype(MXU_DTYPE)
    h_dec = w2d_ref.shape[0]
    n_dec = w2d_ref.shape[2]
    row_ids = jax.lax.broadcasted_iota(jnp.int32, (h_dec, 1), 0)
    a = jnp.zeros((h_dec, n_dec), jnp.float32)
    for h in range(h_dec):
        row = jnp.maximum(_dot(dh_c, w2d_ref[h]) + b2d_ref[h], 0.0)  # (1, 96)
        a = a + row * (row_ids == h).astype(jnp.float32)             # place row h
    # a: (3, 3*32)

    # -------- decoder transposed convs (no zero-dilation anywhere) --------
    a = _conv_block(a, t1_rh, t1_m, t1_b, "relu")     # (7,  7*16)
    a = _conv_block(a, t2_rh, t2_m, t2_b, "relu")     # (14, 14*8)
    a = _conv_block(a, t3_rh, t3_m, t3_b, "sigmoid")  # (28, 28)
    out_ref[0] = a.astype(out_ref.dtype)


# ----------------------------------------------------------------------------
# Parameter preparation: fold all weights ONCE into kernel operator matrices.
# ----------------------------------------------------------------------------
def _conv_sel(n_in, k, stride, pad):
    """S_d (n_out, n_in): S_d[o, i] = 1 iff i == stride*o - pad + d."""
    n_out = (n_in + 2 * pad - k) // stride + 1
    mats = []
    for d in range(k):
        m = np.zeros((n_out, n_in), np.float32)
        for o in range(n_out):
            i = stride * o - pad + d
            if 0 <= i < n_in:
                m[o, i] = 1.0
        mats.append(m)
    return mats, n_out


def _tconv_sel(n_in, k, stride, pad, out_pad):
    """S_d (n_out, n_in): S_d[o, i] = 1 iff o == stride*i - pad + d."""
    n_out = (n_in - 1) * stride - 2 * pad + k + out_pad
    mats = []
    for d in range(k):
        m = np.zeros((n_out, n_in), np.float32)
        for i in range(n_in):
            o = stride * i - pad + d
            if 0 <= o < n_out:
                m[o, i] = 1.0
        mats.append(m)
    return mats, n_out


def _prep_conv(w, b, h_in, w_in, stride, pad, transposed=False, out_pad=0):
    """Fold a Conv2d / ConvTranspose2d into per-tap (RH, kron(RW, Wtap), bias)."""
    k = int(w.shape[-1])
    if transposed:
        ci, co = int(w.shape[0]), int(w.shape[1])
        rh, h_out = _tconv_sel(h_in, k, stride, pad, out_pad)
        rw, w_out = _tconv_sel(w_in, k, stride, pad, out_pad)
    else:
        co, ci = int(w.shape[0]), int(w.shape[1])
        rh, h_out = _conv_sel(h_in, k, stride, pad)
        rw, w_out = _conv_sel(w_in, k, stride, pad)
    rh_l, m_l = [], []
    for dy in range(k):
        for dx in range(k):
            if transposed:
                tap = w[:, :, dy, dx].astype(jnp.float32)      # (ci, co)
            else:
                tap = w[:, :, dy, dx].T.astype(jnp.float32)    # (ci, co)
            rh_l.append(jnp.asarray(rh[dy], jnp.float32))
            m_l.append(jnp.kron(jnp.asarray(rw[dx].T, jnp.float32), tap))
    rh_stack = jnp.stack(rh_l).astype(MXU_DTYPE)               # (k*k, Hout, Hin)
    m_stack = jnp.stack(m_l).astype(MXU_DTYPE)                 # (k*k, Win*ci, Wout*co)
    bias_row = jnp.tile(b.astype(jnp.float32), w_out).reshape(1, w_out * co)
    return [rh_stack, m_stack, bias_row], h_out, w_out


def prepare_params(params):
    """Fold/reshape all weights once (outside the jitted forward)."""
    zdim = int(params["m2_w"].shape[1])
    c1, h, w = _prep_conv(params["ec1_w"], params["ec1_b"], 28, 28, 2, 1)
    c2, h, w = _prep_conv(params["ec2_w"], params["ec2_b"], h, w, 2, 1)
    c3, h, w = _prep_conv(params["ec3_w"], params["ec3_b"], h, w, 2, 0)
    ops = c1 + c2 + c3
    C3, H3, W3 = 32, h, w                                          # (32, 3, 3)

    # merged mu|logvar first linear, re-indexed from the NCHW flatten order
    # (c*9 + h*3 + w) to the kernel's (w*C + c) column layout, split per row h.
    w1 = jnp.concatenate([params["m1_w"], params["v1_w"]], axis=1)  # (288, 128)
    b1 = jnp.concatenate([params["m1_b"], params["v1_b"]], axis=0)  # (128,)
    nh = int(w1.shape[1])
    w1r = w1.reshape(C3, H3, W3, nh)
    wh = jnp.stack([w1r[:, hh, :, :].transpose(1, 0, 2).reshape(W3 * C3, nh)
                    for hh in range(H3)])                           # (3, 96, 128)
    hid64 = int(params["m1_w"].shape[1])
    zero64 = jnp.zeros((hid64, zdim), jnp.float32)
    wmu = jnp.concatenate([params["m2_w"], zero64], axis=0)         # (128, zdim)
    wlv = jnp.concatenate([zero64, params["v2_w"]], axis=0)         # (128, zdim)
    ops += [wh.astype(MXU_DTYPE),
            b1.reshape(1, -1).astype(jnp.float32),
            wmu.astype(MXU_DTYPE),
            params["m2_b"].reshape(1, -1).astype(jnp.float32),
            wlv.astype(MXU_DTYPE),
            params["v2_b"].reshape(1, -1).astype(jnp.float32)]

    # decoder linears; d2 folded to the conv layout, split per output row h.
    w2 = params["d2_w"]                                             # (64, 288)
    b2 = params["d2_b"]                                             # (288,)
    kdim = int(w2.shape[0])
    w2r = w2.reshape(kdim, C3, H3, W3)
    w2d = jnp.stack([w2r[:, :, hh, :].transpose(0, 2, 1).reshape(kdim, W3 * C3)
                     for hh in range(H3)])                          # (3, 64, 96)
    b2r = b2.reshape(C3, H3, W3)
    b2d = jnp.stack([b2r[:, hh, :].T.reshape(1, W3 * C3) for hh in range(H3)])
    ops += [params["d1_w"].astype(MXU_DTYPE),
            params["d1_b"].reshape(1, -1).astype(jnp.float32),
            w2d.astype(MXU_DTYPE),
            b2d.astype(jnp.float32)]

    t1, h, w = _prep_conv(params["dc1_w"], params["dc1_b"], H3, W3, 2, 0,
                          transposed=True, out_pad=0)
    t2, h, w = _prep_conv(params["dc2_w"], params["dc2_b"], h, w, 2, 1,
                          transposed=True, out_pad=1)
    t3, h, w = _prep_conv(params["dc3_w"], params["dc3_b"], h, w, 2, 1,
                          transposed=True, out_pad=1)
    ops += t1 + t2 + t3
    return ops


# ----------------------------------------------------------------------------
# Forward pass: a single pallas_call, batch sharded over the grid.
# ----------------------------------------------------------------------------
def _full_spec(shape):
    nd = len(shape)
    return pl.BlockSpec(tuple(shape), lambda b, _n=nd: (0,) * _n)


def _batched_spec(shape):
    nd = len(shape)
    return pl.BlockSpec((1,) + tuple(shape[1:]),
                        lambda b, _n=nd: (b,) + (0,) * (_n - 1))


def vae_forward(prep_ops, x, eps):
    """x: (B, 1, 28, 28) NCHW, eps: (B, zdim) ~ N(0,1) -> (B, 1, 28, 28)."""
    B, _, H, W = x.shape
    assert (H, W) == (28, 28)
    x2 = x.reshape(B, H, W).astype(jnp.float32)                 # C = 1
    eps3 = eps.reshape(B, 1, eps.shape[-1]).astype(jnp.float32)

    in_specs = ([_batched_spec(x2.shape), _batched_spec(eps3.shape)] +
                [_full_spec(o.shape) for o in prep_ops])
    out = pl.pallas_call(
        _vae_kernel,
        grid=(B,),
        in_specs=in_specs,
        out_specs=pl.BlockSpec((1, H, W), lambda b: (b, 0, 0)),
        out_shape=jax.ShapeDtypeStruct((B, H, W), jnp.float32),
        compiler_params=pltpu.CompilerParams(
            dimension_semantics=("parallel",)),     # megacore split on v7x
    )(x2, eps3, *prep_ops)
    return out.reshape(B, 1, H, W)


# ----------------------------------------------------------------------------
# Parameters (deterministic synthetic init, shapes from the PyTorch module)
# ----------------------------------------------------------------------------
def init_params(key, encoded_space_dim):
    def uni(key, shape, fan_in):
        bound = 1.0 / jnp.sqrt(float(fan_in))
        return jax.random.uniform(key, shape, jnp.float32, -bound, bound)

    keys = jax.random.split(key, 32)
    ki = iter(range(32))
    p = {}
    # encoder convs: (out, in, 3, 3)
    p["ec1_w"] = uni(keys[next(ki)], (8, 1, 3, 3), 1 * 9)
    p["ec1_b"] = uni(keys[next(ki)], (8,), 1 * 9)
    p["ec2_w"] = uni(keys[next(ki)], (16, 8, 3, 3), 8 * 9)
    p["ec2_b"] = uni(keys[next(ki)], (16,), 8 * 9)
    p["ec3_w"] = uni(keys[next(ki)], (32, 16, 3, 3), 16 * 9)
    p["ec3_b"] = uni(keys[next(ki)], (32,), 16 * 9)
    # encoder_mean linears, stored (in, out)
    p["m1_w"] = uni(keys[next(ki)], (288, 64), 288)
    p["m1_b"] = uni(keys[next(ki)], (64,), 288)
    p["m2_w"] = uni(keys[next(ki)], (64, encoded_space_dim), 64)
    p["m2_b"] = uni(keys[next(ki)], (encoded_space_dim,), 64)
    # encoder_logvar linears
    p["v1_w"] = uni(keys[next(ki)], (288, 64), 288)
    p["v1_b"] = uni(keys[next(ki)], (64,), 288)
    p["v2_w"] = uni(keys[next(ki)], (64, encoded_space_dim), 64)
    p["v2_b"] = uni(keys[next(ki)], (encoded_space_dim,), 64)
    # decoder linears
    p["d1_w"] = uni(keys[next(ki)], (encoded_space_dim, 64), encoded_space_dim)
    p["d1_b"] = uni(keys[next(ki)], (64,), encoded_space_dim)
    p["d2_w"] = uni(keys[next(ki)], (64, 288), 64)
    p["d2_b"] = uni(keys[next(ki)], (288,), 64)
    # decoder conv-transposes: (in, out, 3, 3)
    p["dc1_w"] = uni(keys[next(ki)], (32, 16, 3, 3), 32 * 9)
    p["dc1_b"] = uni(keys[next(ki)], (16,), 32 * 9)
    p["dc2_w"] = uni(keys[next(ki)], (16, 8, 3, 3), 16 * 9)
    p["dc2_b"] = uni(keys[next(ki)], (8,), 16 * 9)
    p["dc3_w"] = uni(keys[next(ki)], (8, 1, 3, 3), 8 * 9)
    p["dc3_b"] = uni(keys[next(ki)], (1,), 8 * 9)
    return p


# ----------------------------------------------------------------------------
# Plain-JAX (XLA) reference of the same module, for a numeric cross-check.
# ----------------------------------------------------------------------------
def _ref_conv(x, w, b, stride, pad):
    y = jax.lax.conv_general_dilated(
        x, w, (stride, stride), ((pad, pad), (pad, pad)),
        dimension_numbers=("NCHW", "OIHW", "NCHW"))
    return y + b.reshape(1, -1, 1, 1)


def _ref_tconv(x, w, b, stride, pad, out_pad):
    k = w.shape[-1]
    wf = jnp.flip(w, (2, 3)).transpose(1, 0, 2, 3)     # (Co, Ci, k, k)
    lo = k - 1 - pad
    hi = k - 1 - pad + out_pad
    y = jax.lax.conv_general_dilated(
        x, wf, (1, 1), ((lo, hi), (lo, hi)), lhs_dilation=(stride, stride),
        dimension_numbers=("NCHW", "OIHW", "NCHW"))
    return y + b.reshape(1, -1, 1, 1)


def vae_reference(params, x, eps):
    h = jax.nn.relu(_ref_conv(x, params["ec1_w"], params["ec1_b"], 2, 1))
    h = jax.nn.relu(_ref_conv(h, params["ec2_w"], params["ec2_b"], 2, 1))
    h = jax.nn.relu(_ref_conv(h, params["ec3_w"], params["ec3_b"], 2, 0))
    B = h.shape[0]
    f = h.reshape(B, -1)                               # NCHW flatten
    m = jax.nn.relu(f @ params["m1_w"] + params["m1_b"])
    mu = m @ params["m2_w"] + params["m2_b"]
    v = jax.nn.relu(f @ params["v1_w"] + params["v1_b"])
    logvar = v @ params["v2_w"] + params["v2_b"]
    z = mu + eps * jnp.exp(0.5 * logvar)
    d = jax.nn.relu(z @ params["d1_w"] + params["d1_b"])
    d = jax.nn.relu(d @ params["d2_w"] + params["d2_b"]).reshape(B, 32, 3, 3)
    d = jax.nn.relu(_ref_tconv(d, params["dc1_w"], params["dc1_b"], 2, 0, 0))
    d = jax.nn.relu(_ref_tconv(d, params["dc2_w"], params["dc2_b"], 2, 1, 1))
    d = jax.nn.sigmoid(_ref_tconv(d, params["dc3_w"], params["dc3_b"], 2, 1, 1))
    return d


# ----------------------------------------------------------------------------
if __name__ == "__main__":
    encoded_space_dim = 8
    batch = 2

    key = jax.random.PRNGKey(0)
    k_param, k_x, k_eps = jax.random.split(key, 3)

    params = init_params(k_param, encoded_space_dim)
    x = jax.random.normal(k_x, (batch, 1, 28, 28), dtype=jnp.float32)
    # eps ~ N(0,1) for the reparameterization trick (PyTorch draws it in forward)
    eps = jax.random.normal(k_eps, (batch, encoded_space_dim), dtype=jnp.float32)

    prep_ops = prepare_params(params)        # one-time weight folding, not jitted
    fwd = jax.jit(vae_forward)
    out = jax.block_until_ready(fwd(prep_ops, x, eps))

    assert out.shape == (batch, 1, 28, 28), out.shape
    assert out.dtype == jnp.float32
    assert bool(jnp.all(jnp.isfinite(out)))
    assert bool(jnp.all((out >= 0.0) & (out <= 1.0)))   # sigmoid output range

    # Cross-check the fused kernel against a plain-JAX reference (bf16 MXU
    # operands with f32 accumulation -> loose tolerance).
    ref = jax.block_until_ready(jax.jit(vae_reference)(params, x, eps))
    max_err = float(jnp.max(jnp.abs(out - ref)))
    assert max_err < 6e-2, f"mismatch vs reference, max abs err = {max_err}"

    print("KERNEL_OK")
</pallas_src>

<mosaic_0001>
module attributes {stable_mosaic.version = 11 : i64} {
  func.func @_vae_kernel(%arg0: i32, %arg1: memref<1x28x28xf32, #tpu.memory_space<vmem>>, %arg2: memref<1x1x8xf32, #tpu.memory_space<vmem>>, %arg3: memref<9x14x28xbf16, #tpu.memory_space<vmem>>, %arg4: memref<9x28x112xbf16, #tpu.memory_space<vmem>>, %arg5: memref<1x112xf32, #tpu.memory_space<vmem>>, %arg6: memref<9x7x14xbf16, #tpu.memory_space<vmem>>, %arg7: memref<9x112x112xbf16, #tpu.memory_space<vmem>>, %arg8: memref<1x112xf32, #tpu.memory_space<vmem>>, %arg9: memref<9x3x7xbf16, #tpu.memory_space<vmem>>, %arg10: memref<9x112x96xbf16, #tpu.memory_space<vmem>>, %arg11: memref<1x96xf32, #tpu.memory_space<vmem>>, %arg12: memref<3x96x128xbf16, #tpu.memory_space<vmem>>, %arg13: memref<1x128xf32, #tpu.memory_space<vmem>>, %arg14: memref<128x8xbf16, #tpu.memory_space<vmem>>, %arg15: memref<1x8xf32, #tpu.memory_space<vmem>>, %arg16: memref<128x8xbf16, #tpu.memory_space<vmem>>, %arg17: memref<1x8xf32, #tpu.memory_space<vmem>>, %arg18: memref<8x64xbf16, #tpu.memory_space<vmem>>, %arg19: memref<1x64xf32, #tpu.memory_space<vmem>>, %arg20: memref<3x64x96xbf16, #tpu.memory_space<vmem>>, %arg21: memref<3x1x96xf32, #tpu.memory_space<vmem>>, %arg22: memref<9x7x3xbf16, #tpu.memory_space<vmem>>, %arg23: memref<9x96x112xbf16, #tpu.memory_space<vmem>>, %arg24: memref<1x112xf32, #tpu.memory_space<vmem>>, %arg25: memref<9x14x7xbf16, #tpu.memory_space<vmem>>, %arg26: memref<9x112x112xbf16, #tpu.memory_space<vmem>>, %arg27: memref<1x112xf32, #tpu.memory_space<vmem>>, %arg28: memref<9x28x14xbf16, #tpu.memory_space<vmem>>, %arg29: memref<9x112x28xbf16, #tpu.memory_space<vmem>>, %arg30: memref<1x28xf32, #tpu.memory_space<vmem>>, %arg31: memref<1x28x28xf32, #tpu.memory_space<vmem>>) attributes {dimension_semantics = [#tpu.dimension_semantics<parallel>], iteration_bounds = array<i64: 2>, scalar_prefetch = 0 : i64, scratch_operands = 0 : i64, tpu.core_type = #tpu.core_type<tc>, window_params = [{transform_indices = @transform_0, window_bounds = array<i64: 1, 28, 28>}, {transform_indices = @transform_1, window_bounds = array<i64: 1, 1, 8>}, {pipeline_mode = #tpu.pipeline_mode<synchronous>, transform_indices = @transform_2, window_bounds = array<i64: 9, 14, 28>}, {pipeline_mode = #tpu.pipeline_mode<synchronous>, transform_indices = @transform_3, window_bounds = array<i64: 9, 28, 112>}, {pipeline_mode = #tpu.pipeline_mode<synchronous>, transform_indices = @transform_4, window_bounds = array<i64: 1, 112>}, {pipeline_mode = #tpu.pipeline_mode<synchronous>, transform_indices = @transform_5, window_bounds = array<i64: 9, 7, 14>}, {pipeline_mode = #tpu.pipeline_mode<synchronous>, transform_indices = @transform_6, window_bounds = array<i64: 9, 112, 112>}, {pipeline_mode = #tpu.pipeline_mode<synchronous>, transform_indices = @transform_7, window_bounds = array<i64: 1, 112>}, {pipeline_mode = #tpu.pipeline_mode<synchronous>, transform_indices = @transform_8, window_bounds = array<i64: 9, 3, 7>}, {pipeline_mode = #tpu.pipeline_mode<synchronous>, transform_indices = @transform_9, window_bounds = array<i64: 9, 112, 96>}, {pipeline_mode = #tpu.pipeline_mode<synchronous>, transform_indices = @transform_10, window_bounds = array<i64: 1, 96>}, {pipeline_mode = #tpu.pipeline_mode<synchronous>, transform_indices = @transform_11, window_bounds = array<i64: 3, 96, 128>}, {pipeline_mode = #tpu.pipeline_mode<synchronous>, transform_indices = @transform_12, window_bounds = array<i64: 1, 128>}, {pipeline_mode = #tpu.pipeline_mode<synchronous>, transform_indices = @transform_13, window_bounds = array<i64: 128, 8>}, {pipeline_mode = #tpu.pipeline_mode<synchronous>, transform_indices = @transform_14, window_bounds = array<i64: 1, 8>}, {pipeline_mode = #tpu.pipeline_mode<synchronous>, transform_indices = @transform_15, window_bounds = array<i64: 128, 8>}, {pipeline_mode = #tpu.pipeline_mode<synchronous>, transform_indices = @transform_16, window_bounds = array<i64: 1, 8>}, {pipeline_mode = #tpu.pipeline_mode<synchronous>, transform_indices = @transform_17, window_bounds = array<i64: 8, 64>}, {pipeline_mode = #tpu.pipeline_mode<synchronous>, transform_indices = @transform_18, window_bounds = array<i64: 1, 64>}, {pipeline_mode = #tpu.pipeline_mode<synchronous>, transform_indices = @transform_19, window_bounds = array<i64: 3, 64, 96>}, {pipeline_mode = #tpu.pipeline_mode<synchronous>, transform_indices = @transform_20, window_bounds = array<i64: 3, 1, 96>}, {pipeline_mode = #tpu.pipeline_mode<synchronous>, transform_indices = @transform_21, window_bounds = array<i64: 9, 7, 3>}, {pipeline_mode = #tpu.pipeline_mode<synchronous>, transform_indices = @transform_22, window_bounds = array<i64: 9, 96, 112>}, {pipeline_mode = #tpu.pipeline_mode<synchronous>, transform_indices = @transform_23, window_bounds = array<i64: 1, 112>}, {pipeline_mode = #tpu.pipeline_mode<synchronous>, transform_indices = @transform_24, window_bounds = array<i64: 9, 14, 7>}, {pipeline_mode = #tpu.pipeline_mode<synchronous>, transform_indices = @transform_25, window_bounds = array<i64: 9, 112, 112>}, {pipeline_mode = #tpu.pipeline_mode<synchronous>, transform_indices = @transform_26, window_bounds = array<i64: 1, 112>}, {pipeline_mode = #tpu.pipeline_mode<synchronous>, transform_indices = @transform_27, window_bounds = array<i64: 9, 28, 14>}, {pipeline_mode = #tpu.pipeline_mode<synchronous>, transform_indices = @transform_28, window_bounds = array<i64: 9, 112, 28>}, {pipeline_mode = #tpu.pipeline_mode<synchronous>, transform_indices = @transform_29, window_bounds = array<i64: 1, 28>}, {transform_indices = @transform_30, window_bounds = array<i64: 1, 28, 28>}]} {
    %c0 = arith.constant 0 : index
    %c0_0 = arith.constant 0 : index
    %c0_1 = arith.constant 0 : index
    %0 = vector.load %arg1[%c0, %c0_0, %c0_1] : memref<1x28x28xf32, #tpu.memory_space<vmem>>, vector<1x28x28xf32>
    %1 = vector.shape_cast %0 : vector<1x28x28xf32> to vector<28x28xf32>
    %2 = arith.truncf %1 : vector<28x28xf32> to vector<28x28xbf16>
    %cst = arith.constant 0.000000e+00 : f32
    %3 = vector.broadcast %cst : f32 to vector<14x112xf32>
    %c0_2 = arith.constant 0 : index
    %c0_3 = arith.constant 0 : index
    %c0_4 = arith.constant 0 : index
    %4 = vector.load %arg3[%c0_2, %c0_3, %c0_4] : memref<9x14x28xbf16, #tpu.memory_space<vmem>>, vector<1x14x28xbf16>
    %5 = vector.shape_cast %4 : vector<1x14x28xbf16> to vector<14x28xbf16>
    %cst_5 = arith.constant dense<0.000000e+00> : vector<14x28xf32>
    %6 = tpu.matmul %5, %2, %cst_5 {dimension_numbers = #tpu.dot_dimension_numbers<[1], [0], [0], [1], [0, 0, 1, 1], [], []>} : vector<14x28xbf16>, vector<28x28xbf16>, vector<14x28xf32> -> vector<14x28xf32>
    %c0_6 = arith.constant 0 : index
    %c0_7 = arith.constant 0 : index
    %c0_8 = arith.constant 0 : index
    %7 = vector.load %arg4[%c0_6, %c0_7, %c0_8] : memref<9x28x112xbf16, #tpu.memory_space<vmem>>, vector<1x28x112xbf16>
    %8 = vector.shape_cast %7 : vector<1x28x112xbf16> to vector<28x112xbf16>
    %9 = arith.truncf %6 : vector<14x28xf32> to vector<14x28xbf16>
    %cst_9 = arith.constant dense<0.000000e+00> : vector<14x112xf32>
    %10 = tpu.matmul %9, %8, %cst_9 {dimension_numbers = #tpu.dot_dimension_numbers<[1], [0], [0], [1], [0, 0, 1, 1], [], []>} : vector<14x28xbf16>, vector<28x112xbf16>, vector<14x112xf32> -> vector<14x112xf32>
    %11 = arith.addf %3, %10 : vector<14x112xf32>
    %c1 = arith.constant 1 : index
    %c0_10 = arith.constant 0 : index
    %c0_11 = arith.constant 0 : index
    %12 = vector.load %arg3[%c1, %c0_10, %c0_11] : memref<9x14x28xbf16, #tpu.memory_space<vmem>>, vector<1x14x28xbf16>
    %13 = vector.shape_cast %12 : vector<1x14x28xbf16> to vector<14x28xbf16>
    %cst_12 = arith.constant dense<0.000000e+00> : vector<14x28xf32>
    %14 = tpu.matmul %13, %2, %cst_12 {dimension_numbers = #tpu.dot_dimension_numbers<[1], [0], [0], [1], [0, 0, 1, 1], [], []>} : vector<14x28xbf16>, vector<28x28xbf16>, vector<14x28xf32> -> vector<14x28xf32>
    %c1_13 = arith.constant 1 : index
    %c0_14 = arith.constant 0 : index
    %c0_15 = arith.constant 0 : index
    %15 = vector.load %arg4[%c1_13, %c0_14, %c0_15] : memref<9x28x112xbf16, #tpu.memory_space<vmem>>, vector<1x28x112xbf16>
    %16 = vector.shape_cast %15 : vector<1x28x112xbf16> to vector<28x112xbf16>
    %17 = arith.truncf %14 : vector<14x28xf32> to vector<14x28xbf16>
    %cst_16 = arith.constant dense<0.000000e+00> : vector<14x112xf32>
    %18 = tpu.matmul %17, %16, %cst_16 {dimension_numbers = #tpu.dot_dimension_numbers<[1], [0], [0], [1], [0, 0, 1, 1], [], []>} : vector<14x28xbf16>, vector<28x112xbf16>, vector<14x112xf32> -> vector<14x112xf32>
    %19 = arith.addf %11, %18 : vector<14x112xf32>
    %c2 = arith.constant 2 : index
    %c0_17 = arith.constant 0 : index
    %c0_18 = arith.constant 0 : index
    %20 = vector.load %arg3[%c2, %c0_17, %c0_18] : memref<9x14x28xbf16, #tpu.memory_space<vmem>>, vector<1x14x28xbf16>
    %21 = vector.shape_cast %20 : vector<1x14x28xbf16> to vector<14x28xbf16>
    %cst_19 = arith.constant dense<0.000000e+00> : vector<14x28xf32>
    %22 = tpu.matmul %21, %2, %cst_19 {dimension_numbers = #tpu.dot_dimension_numbers<[1], [0], [0], [1], [0, 0, 1, 1], [], []>} : vector<14x28xbf16>, vector<28x28xbf16>, vector<14x28xf32> -> vector<14x28xf32>
    %c2_20 = arith.constant 2 : index
    %c0_21 = arith.constant 0 : index
    %c0_22 = arith.constant 0 : index
    %23 = vector.load %arg4[%c2_20, %c0_21, %c0_22] : memref<9x28x112xbf16, #tpu.memory_space<vmem>>, vector<1x28x112xbf16>
    %24 = vector.shape_cast %23 : vector<1x28x112xbf16> to vector<28x112xbf16>
    %25 = arith.truncf %22 : vector<14x28xf32> to vector<14x28xbf16>
    %cst_23 = arith.constant dense<0.000000e+00> : vector<14x112xf32>
    %26 = tpu.matmul %25, %24, %cst_23 {dimension_numbers = #tpu.dot_dimension_numbers<[1], [0], [0], [1], [0, 0, 1, 1], [], []>} : vector<14x28xbf16>, vector<28x112xbf16>, vector<14x112xf32> -> vector<14x112xf32>
    %27 = arith.addf %19, %26 : vector<14x112xf32>
    %c3 = arith.constant 3 : index
    %c0_24 = arith.constant 0 : index
    %c0_25 = arith.constant 0 : index
    %28 = vector.load %arg3[%c3, %c0_24, %c0_25] : memref<9x14x28xbf16, #tpu.memory_space<vmem>>, vector<1x14x28xbf16>
    %29 = vector.shape_cast %28 : vector<1x14x28xbf16> to vector<14x28xbf16>
    %cst_26 = arith.constant dense<0.000000e+00> : vector<14x28xf32>
    %30 = tpu.matmul %29, %2, %cst_26 {dimension_numbers = #tpu.dot_dimension_numbers<[1], [0], [0], [1], [0, 0, 1, 1], [], []>} : vector<14x28xbf16>, vector<28x28xbf16>, vector<14x28xf32> -> vector<14x28xf32>
    %c3_27 = arith.constant 3 : index
    %c0_28 = arith.constant 0 : index
    %c0_29 = arith.constant 0 : index
    %31 = vector.load %arg4[%c3_27, %c0_28, %c0_29] : memref<9x28x112xbf16, #tpu.memory_space<vmem>>, vector<1x28x112xbf16>
    %32 = vector.shape_cast %31 : vector<1x28x112xbf16> to vector<28x112xbf16>
    %33 = arith.truncf %30 : vector<14x28xf32> to vector<14x28xbf16>
    %cst_30 = arith.constant dense<0.000000e+00> : vector<14x112xf32>
    %34 = tpu.matmul %33, %32, %cst_30 {dimension_numbers = #tpu.dot_dimension_numbers<[1], [0], [0], [1], [0, 0, 1, 1], [], []>} : vector<14x28xbf16>, vector<28x112xbf16>, vector<14x112xf32> -> vector<14x112xf32>
    %35 = arith.addf %27, %34 : vector<14x112xf32>
    %c4 = arith.constant 4 : index
    %c0_31 = arith.constant 0 : index
    %c0_32 = arith.constant 0 : index
    %36 = vector.load %arg3[%c4, %c0_31, %c0_32] : memref<9x14x28xbf16, #tpu.memory_space<vmem>>, vector<1x14x28xbf16>
    %37 = vector.shape_cast %36 : vector<1x14x28xbf16> to vector<14x28xbf16>
    %cst_33 = arith.constant dense<0.000000e+00> : vector<14x28xf32>
    %38 = tpu.matmul %37, %2, %cst_33 {dimension_numbers = #tpu.dot_dimension_numbers<[1], [0], [0], [1], [0, 0, 1, 1], [], []>} : vector<14x28xbf16>, vector<28x28xbf16>, vector<14x28xf32> -> vector<14x28xf32>
    %c4_34 = arith.constant 4 : index
    %c0_35 = arith.constant 0 : index
    %c0_36 = arith.constant 0 : index
    %39 = vector.load %arg4[%c4_34, %c0_35, %c0_36] : memref<9x28x112xbf16, #tpu.memory_space<vmem>>, vector<1x28x112xbf16>
    %40 = vector.shape_cast %39 : vector<1x28x112xbf16> to vector<28x112xbf16>
    %41 = arith.truncf %38 : vector<14x28xf32> to vector<14x28xbf16>
    %cst_37 = arith.constant dense<0.000000e+00> : vector<14x112xf32>
    %42 = tpu.matmul %41, %40, %cst_37 {dimension_numbers = #tpu.dot_dimension_numbers<[1], [0], [0], [1], [0, 0, 1, 1], [], []>} : vector<14x28xbf16>, vector<28x112xbf16>, vector<14x112xf32> -> vector<14x112xf32>
    %43 = arith.addf %35, %42 : vector<14x112xf32>
    %c5 = arith.constant 5 : index
    %c0_38 = arith.constant 0 : index
    %c0_39 = arith.constant 0 : index
    %44 = vector.load %arg3[%c5, %c0_38, %c0_39] : memref<9x14x28xbf16, #tpu.memory_space<vmem>>, vector<1x14x28xbf16>
    %45 = vector.shape_cast %44 : vector<1x14x28xbf16> to vector<14x28xbf16>
    %cst_40 = arith.constant dense<0.000000e+00> : vector<14x28xf32>
    %46 = tpu.matmul %45, %2, %cst_40 {dimension_numbers = #tpu.dot_dimension_numbers<[1], [0], [0], [1], [0, 0, 1, 1], [], []>} : vector<14x28xbf16>, vector<28x28xbf16>, vector<14x28xf32> -> vector<14x28xf32>
    %c5_41 = arith.constant 5 : index
    %c0_42 = arith.constant 0 : index
    %c0_43 = arith.constant 0 : index
    %47 = vector.load %arg4[%c5_41, %c0_42, %c0_43] : memref<9x28x112xbf16, #tpu.memory_space<vmem>>, vector<1x28x112xbf16>
    %48 = vector.shape_cast %47 : vector<1x28x112xbf16> to vector<28x112xbf16>
    %49 = arith.truncf %46 : vector<14x28xf32> to vector<14x28xbf16>
    %cst_44 = arith.constant dense<0.000000e+00> : vector<14x112xf32>
    %50 = tpu.matmul %49, %48, %cst_44 {dimension_numbers = #tpu.dot_dimension_numbers<[1], [0], [0], [1], [0, 0, 1, 1], [], []>} : vector<14x28xbf16>, vector<28x112xbf16>, vector<14x112xf32> -> vector<14x112xf32>
    %51 = arith.addf %43, %50 : vector<14x112xf32>
    %c6 = arith.constant 6 : index
    %c0_45 = arith.constant 0 : index
    %c0_46 = arith.constant 0 : index
    %52 = vector.load %arg3[%c6, %c0_45, %c0_46] : memref<9x14x28xbf16, #tpu.memory_space<vmem>>, vector<1x14x28xbf16>
    %53 = vector.shape_cast %52 : vector<1x14x28xbf16> to vector<14x28xbf16>
    %cst_47 = arith.constant dense<0.000000e+00> : vector<14x28xf32>
    %54 = tpu.matmul %53, %2, %cst_47 {dimension_numbers = #tpu.dot_dimension_numbers<[1], [0], [0], [1], [0, 0, 1, 1], [], []>} : vector<14x28xbf16>, vector<28x28xbf16>, vector<14x28xf32> -> vector<14x28xf32>
    %c6_48 = arith.constant 6 : index
    %c0_49 = arith.constant 0 : index
    %c0_50 = arith.constant 0 : index
    %55 = vector.load %arg4[%c6_48, %c0_49, %c0_50] : memref<9x28x112xbf16, #tpu.memory_space<vmem>>, vector<1x28x112xbf16>
    %56 = vector.shape_cast %55 : vector<1x28x112xbf16> to vector<28x112xbf16>
    %57 = arith.truncf %54 : vector<14x28xf32> to vector<14x28xbf16>
    %cst_51 = arith.constant dense<0.000000e+00> : vector<14x112xf32>
    %58 = tpu.matmul %57, %56, %cst_51 {dimension_numbers = #tpu.dot_dimension_numbers<[1], [0], [0], [1], [0, 0, 1, 1], [], []>} : vector<14x28xbf16>, vector<28x112xbf16>, vector<14x112xf32> -> vector<14x112xf32>
    %59 = arith.addf %51, %58 : vector<14x112xf32>
    %c7 = arith.constant 7 : index
    %c0_52 = arith.constant 0 : index
    %c0_53 = arith.constant 0 : index
    %60 = vector.load %arg3[%c7, %c0_52, %c0_53] : memref<9x14x28xbf16, #tpu.memory_space<vmem>>, vector<1x14x28xbf16>
    %61 = vector.shape_cast %60 : vector<1x14x28xbf16> to vector<14x28xbf16>
    %cst_54 = arith.constant dense<0.000000e+00> : vector<14x28xf32>
    %62 = tpu.matmul %61, %2, %cst_54 {dimension_numbers = #tpu.dot_dimension_numbers<[1], [0], [0], [1], [0, 0, 1, 1], [], []>} : vector<14x28xbf16>, vector<28x28xbf16>, vector<14x28xf32> -> vector<14x28xf32>
    %c7_55 = arith.constant 7 : index
    %c0_56 = arith.constant 0 : index
    %c0_57 = arith.constant 0 : index
    %63 = vector.load %arg4[%c7_55, %c0_56, %c0_57] : memref<9x28x112xbf16, #tpu.memory_space<vmem>>, vector<1x28x112xbf16>
    %64 = vector.shape_cast %63 : vector<1x28x112xbf16> to vector<28x112xbf16>
    %65 = arith.truncf %62 : vector<14x28xf32> to vector<14x28xbf16>
    %cst_58 = arith.constant dense<0.000000e+00> : vector<14x112xf32>
    %66 = tpu.matmul %65, %64, %cst_58 {dimension_numbers = #tpu.dot_dimension_numbers<[1], [0], [0], [1], [0, 0, 1, 1], [], []>} : vector<14x28xbf16>, vector<28x112xbf16>, vector<14x112xf32> -> vector<14x112xf32>
    %67 = arith.addf %59, %66 : vector<14x112xf32>
    %c8 = arith.constant 8 : index
    %c0_59 = arith.constant 0 : index
    %c0_60 = arith.constant 0 : index
    %68 = vector.load %arg3[%c8, %c0_59, %c0_60] : memref<9x14x28xbf16, #tpu.memory_space<vmem>>, vector<1x14x28xbf16>
    %69 = vector.shape_cast %68 : vector<1x14x28xbf16> to vector<14x28xbf16>
    %cst_61 = arith.constant dense<0.000000e+00> : vector<14x28xf32>
    %70 = tpu.matmul %69, %2, %cst_61 {dimension_numbers = #tpu.dot_dimension_numbers<[1], [0], [0], [1], [0, 0, 1, 1], [], []>} : vector<14x28xbf16>, vector<28x28xbf16>, vector<14x28xf32> -> vector<14x28xf32>
    %c8_62 = arith.constant 8 : index
    %c0_63 = arith.constant 0 : index
    %c0_64 = arith.constant 0 : index
    %71 = vector.load %arg4[%c8_62, %c0_63, %c0_64] : memref<9x28x112xbf16, #tpu.memory_space<vmem>>, vector<1x28x112xbf16>
    %72 = vector.shape_cast %71 : vector<1x28x112xbf16> to vector<28x112xbf16>
    %73 = arith.truncf %70 : vector<14x28xf32> to vector<14x28xbf16>
    %cst_65 = arith.constant dense<0.000000e+00> : vector<14x112xf32>
    %74 = tpu.matmul %73, %72, %cst_65 {dimension_numbers = #tpu.dot_dimension_numbers<[1], [0], [0], [1], [0, 0, 1, 1], [], []>} : vector<14x28xbf16>, vector<28x112xbf16>, vector<14x112xf32> -> vector<14x112xf32>
    %75 = arith.addf %67, %74 : vector<14x112xf32>
    %c0_66 = arith.constant 0 : index
    %c0_67 = arith.constant 0 : index
    %76 = vector.load %arg5[%c0_66, %c0_67] : memref<1x112xf32, #tpu.memory_space<vmem>>, vector<1x112xf32>
    %77 = vector.broadcast %76 : vector<1x112xf32> to vector<14x112xf32>
    %78 = arith.addf %75, %77 : vector<14x112xf32>
    %cst_68 = arith.constant 0.000000e+00 : f32
    %79 = vector.broadcast %cst_68 : f32 to vector<14x112xf32>
    %80 = arith.maximumf %78, %79 : vector<14x112xf32>
    %81 = arith.truncf %80 : vector<14x112xf32> to vector<14x112xbf16>
    %cst_69 = arith.constant 0.000000e+00 : f32
    %82 = vector.broadcast %cst_69 : f32 to vector<7x112xf32>
    %c0_70 = arith.constant 0 : index
    %c0_71 = arith.constant 0 : index
    %c0_72 = arith.constant 0 : index
    %83 = vector.load %arg6[%c0_70, %c0_71, %c0_72] : memref<9x7x14xbf16, #tpu.memory_space<vmem>>, vector<1x7x14xbf16>
    %84 = vector.shape_cast %83 : vector<1x7x14xbf16> to vector<7x14xbf16>
    %cst_73 = arith.constant dense<0.000000e+00> : vector<7x112xf32>
    %85 = tpu.matmul %84, %81, %cst_73 {dimension_numbers = #tpu.dot_dimension_numbers<[1], [0], [0], [1], [0, 0, 1, 1], [], []>} : vector<7x14xbf16>, vector<14x112xbf16>, vector<7x112xf32> -> vector<7x112xf32>
    %c0_74 = arith.constant 0 : index
    %c0_75 = arith.constant 0 : index
    %c0_76 = arith.constant 0 : index
    %86 = vector.load %arg7[%c0_74, %c0_75, %c0_76] : memref<9x112x112xbf16, #tpu.memory_space<vmem>>, vector<1x112x112xbf16>
    %87 = vector.shape_cast %86 : vector<1x112x112xbf16> to vector<112x112xbf16>
    %88 = arith.truncf %85 : vector<7x112xf32> to vector<7x112xbf16>
    %cst_77 = arith.constant dense<0.000000e+00> : vector<7x112xf32>
    %89 = tpu.matmul %88, %87, %cst_77 {dimension_numbers = #tpu.dot_dimension_numbers<[1], [0], [0], [1], [0, 0, 1, 1], [], []>} : vector<7x112xbf16>, vector<112x112xbf16>, vector<7x112xf32> -> vector<7x112xf32>
    %90 = arith.addf %82, %89 : vector<7x112xf32>
    %c1_78 = arith.constant 1 : index
    %c0_79 = arith.constant 0 : index
    %c0_80 = arith.constant 0 : index
    %91 = vector.load %arg6[%c1_78, %c0_79, %c0_80] : memref<9x7x14xbf16, #tpu.memory_space<vmem>>, vector<1x7x14xbf16>
    %92 = vector.shape_cast %91 : vector<1x7x14xbf16> to vector<7x14xbf16>
    %cst_81 = arith.constant dense<0.000000e+00> : vector<7x112xf32>
    %93 = tpu.matmul %92, %81, %cst_81 {dimension_numbers = #tpu.dot_dimension_numbers<[1], [0], [0], [1], [0, 0, 1, 1], [], []>} : vector<7x14xbf16>, vector<14x112xbf16>, vector<7x112xf32> -> vector<7x112xf32>
    %c1_82 = arith.constant 1 : index
    %c0_83 = arith.constant 0 : index
    %c0_84 = arith.constant 0 : index
    %94 = vector.load %arg7[%c1_82, %c0_83, %c0_84] : memref<9x112x112xbf16, #tpu.memory_space<vmem>>, vector<1x112x112xbf16>
    %95 = vector.shape_cast %94 : vector<1x112x112xbf16> to vector<112x112xbf16>
    %96 = arith.truncf %93 : vector<7x112xf32> to vector<7x112xbf16>
    %cst_85 = arith.constant dense<0.000000e+00> : vector<7x112xf32>
    %97 = tpu.matmul %96, %95, %cst_85 {dimension_numbers = #tpu.dot_dimension_numbers<[1], [0], [0], [1], [0, 0, 1, 1], [], []>} : vector<7x112xbf16>, vector<112x112xbf16>, vector<7x112xf32> -> vector<7x112xf32>
    %98 = arith.addf %90, %97 : vector<7x112xf32>
    %c2_86 = arith.constant 2 : index
    %c0_87 = arith.constant 0 : index
    %c0_88 = arith.constant 0 : index
    %99 = vector.load %arg6[%c2_86, %c0_87, %c0_88] : memref<9x7x14xbf16, #tpu.memory_space<vmem>>, vector<1x7x14xbf16>
    %100 = vector.shape_cast %99 : vector<1x7x14xbf16> to vector<7x14xbf16>
    %cst_89 = arith.constant dense<0.000000e+00> : vector<7x112xf32>
    %101 = tpu.matmul %100, %81, %cst_89 {dimension_numbers = #tpu.dot_dimension_numbers<[1], [0], [0], [1], [0, 0, 1, 1], [], []>} : vector<7x14xbf16>, vector<14x112xbf16>, vector<7x112xf32> -> vector<7x112xf32>
    %c2_90 = arith.constant 2 : index
    %c0_91 = arith.constant 0 : index
    %c0_92 = arith.constant 0 : index
    %102 = vector.load %arg7[%c2_90, %c0_91, %c0_92] : memref<9x112x112xbf16, #tpu.memory_space<vmem>>, vector<1x112x112xbf16>
    %103 = vector.shape_cast %102 : vector<1x112x112xbf16> to vector<112x112xbf16>
    %104 = arith.truncf %101 : vector<7x112xf32> to vector<7x112xbf16>
    %cst_93 = arith.constant dense<0.000000e+00> : vector<7x112xf32>
    %105 = tpu.matmul %104, %103, %cst_93 {dimension_numbers = #tpu.dot_dimension_numbers<[1], [0], [0], [1], [0, 0, 1, 1], [], []>} : vector<7x112xbf16>, vector<112x112xbf16>, vector<7x112xf32> -> vector<7x112xf32>
    %106 = arith.addf %98, %105 : vector<7x112xf32>
    %c3_94 = arith.constant 3 : index
    %c0_95 = arith.constant 0 : index
    %c0_96 = arith.constant 0 : index
    %107 = vector.load %arg6[%c3_94, %c0_95, %c0_96] : memref<9x7x14xbf16, #tpu.memory_space<vmem>>, vector<1x7x14xbf16>
    %108 = vector.shape_cast %107 : vector<1x7x14xbf16> to vector<7x14xbf16>
    %cst_97 = arith.constant dense<0.000000e+00> : vector<7x112xf32>
    %109 = tpu.matmul %108, %81, %cst_97 {dimension_numbers = #tpu.dot_dimension_numbers<[1], [0], [0], [1], [0, 0, 1, 1], [], []>} : vector<7x14xbf16>, vector<14x112xbf16>, vector<7x112xf32> -> vector<7x112xf32>
    %c3_98 = arith.constant 3 : index
    %c0_99 = arith.constant 0 : index
    %c0_100 = arith.constant 0 : index
    %110 = vector.load %arg7[%c3_98, %c0_99, %c0_100] : memref<9x112x112xbf16, #tpu.memory_space<vmem>>, vector<1x112x112xbf16>
    %111 = vector.shape_cast %110 : vector<1x112x112xbf16> to vector<112x112xbf16>
    %112 = arith.truncf %109 : vector<7x112xf32> to vector<7x112xbf16>
    %cst_101 = arith.constant dense<0.000000e+00> : vector<7x112xf32>
    %113 = tpu.matmul %112, %111, %cst_101 {dimension_numbers = #tpu.dot_dimension_numbers<[1], [0], [0], [1], [0, 0, 1, 1], [], []>} : vector<7x112xbf16>, vector<112x112xbf16>, vector<7x112xf32> -> vector<7x112xf32>
    %114 = arith.addf %106, %113 : vector<7x112xf32>
    %c4_102 = arith.constant 4 : index
    %c0_103 = arith.constant 0 : index
    %c0_104 = arith.constant 0 : index
    %115 = vector.load %arg6[%c4_102, %c0_103, %c0_104] : memref<9x7x14xbf16, #tpu.memory_space<vmem>>, vector<1x7x14xbf16>
    %116 = vector.shape_cast %115 : vector<1x7x14xbf16> to vector<7x14xbf16>
    %cst_105 = arith.constant dense<0.000000e+00> : vector<7x112xf32>
    %117 = tpu.matmul %116, %81, %cst_105 {dimension_numbers = #tpu.dot_dimension_numbers<[1], [0], [0], [1], [0, 0, 1, 1], [], []>} : vector<7x14xbf16>, vector<14x112xbf16>, vector<7x112xf32> -> vector<7x112xf32>
    %c4_106 = arith.constant 4 : index
    %c0_107 = arith.constant 0 : index
    %c0_108 = arith.constant 0 : index
    %118 = vector.load %arg7[%c4_106, %c0_107, %c0_108] : memref<9x112x112xbf16, #tpu.memory_space<vmem>>, vector<1x112x112xbf16>
    %119 = vector.shape_cast %118 : vector<1x112x112xbf16> to vector<112x112xbf16>
    %120 = arith.truncf %117 : vector<7x112xf32> to vector<7x112xbf16>
    %cst_109 = arith.constant dense<0.000000e+00> : vector<7x112xf32>
    %121 = tpu.matmul %120, %119, %cst_109 {dimension_numbers = #tpu.dot_dimension_numbers<[1], [0], [0], [1], [0, 0, 1, 1], [], []>} : vector<7x112xbf16>, vector<112x112xbf16>, vector<7x112xf32> -> vector<7x112xf32>
    %122 = arith.addf %114, %121 : vector<7x112xf32>
    %c5_110 = arith.constant 5 : index
    %c0_111 = arith.constant 0 : index
    %c0_112 = arith.constant 0 : index
    %123 = vector.load %arg6[%c5_110, %c0_111, %c0_112] : memref<9x7x14xbf16, #tpu.memory_space<vmem>>, vector<1x7x14xbf16>
    %124 = vector.shape_cast %123 : vector<1x7x14xbf16> to vector<7x14xbf16>
    %cst_113 = arith.constant dense<0.000000e+00> : vector<7x112xf32>
    %125 = tpu.matmul %124, %81, %cst_113 {dimension_numbers = #tpu.dot_dimension_numbers<[1], [0], [0], [1], [0, 0, 1, 1], [], []>} : vector<7x14xbf16>, vector<14x112xbf16>, vector<7x112xf32> -> vector<7x112xf32>
    %c5_114 = arith.constant 5 : index
    %c0_115 = arith.constant 0 : index
    %c0_116 = arith.constant 0 : index
    %126 = vector.load %arg7[%c5_114, %c0_115, %c0_116] : memref<9x112x112xbf16, #tpu.memory_space<vmem>>, vector<1x112x112xbf16>
    %127 = vector.shape_cast %126 : vector<1x112x112xbf16> to vector<112x112xbf16>
    %128 = arith.truncf %125 : vector<7x112xf32> to vector<7x112xbf16>
    %cst_117 = arith.constant dense<0.000000e+00> : vector<7x112xf32>
    %129 = tpu.matmul %128, %127, %cst_117 {dimension_numbers = #tpu.dot_dimension_numbers<[1], [0], [0], [1], [0, 0, 1, 1], [], []>} : vector<7x112xbf16>, vector<112x112xbf16>, vector<7x112xf32> -> vector<7x112xf32>
    %130 = arith.addf %122, %129 : vector<7x112xf32>
    %c6_118 = arith.constant 6 : index
    %c0_119 = arith.constant 0 : index
    %c0_120 = arith.constant 0 : index
    %131 = vector.load %arg6[%c6_118, %c0_119, %c0_120] : memref<9x7x14xbf16, #tpu.memory_space<vmem>>, vector<1x7x14xbf16>
    %132 = vector.shape_cast %131 : vector<1x7x14xbf16> to vector<7x14xbf16>
    %cst_121 = arith.constant dense<0.000000e+00> : vector<7x112xf32>
    %133 = tpu.matmul %132, %81, %cst_121 {dimension_numbers = #tpu.dot_dimension_numbers<[1], [0], [0], [1], [0, 0, 1, 1], [], []>} : vector<7x14xbf16>, vector<14x112xbf16>, vector<7x112xf32> -> vector<7x112xf32>
    %c6_122 = arith.constant 6 : index
    %c0_123 = arith.constant 0 : index
    %c0_124 = arith.constant 0 : index
    %134 = vector.load %arg7[%c6_122, %c0_123, %c0_124] : memref<9x112x112xbf16, #tpu.memory_space<vmem>>, vector<1x112x112xbf16>
    %135 = vector.shape_cast %134 : vector<1x112x112xbf16> to vector<112x112xbf16>
    %136 = arith.truncf %133 : vector<7x112xf32> to vector<7x112xbf16>
    %cst_125 = arith.constant dense<0.000000e+00> : vector<7x112xf32>
    %137 = tpu.matmul %136, %135, %cst_125 {dimension_numbers = #tpu.dot_dimension_numbers<[1], [0], [0], [1], [0, 0, 1, 1], [], []>} : vector<7x112xbf16>, vector<112x112xbf16>, vector<7x112xf32> -> vector<7x112xf32>
    %138 = arith.addf %130, %137 : vector<7x112xf32>
    %c7_126 = arith.constant 7 : index
    %c0_127 = arith.constant 0 : index
    %c0_128 = arith.constant 0 : index
    %139 = vector.load %arg6[%c7_126, %c0_127, %c0_128] : memref<9x7x14xbf16, #tpu.memory_space<vmem>>, vector<1x7x14xbf16>
    %140 = vector.shape_cast %139 : vector<1x7x14xbf16> to vector<7x14xbf16>
    %cst_129 = arith.constant dense<0.000000e+00> : vector<7x112xf32>
    %141 = tpu.matmul %140, %81, %cst_129 {dimension_numbers = #tpu.dot_dimension_numbers<[1], [0], [0], [1], [0, 0, 1, 1], [], []>} : vector<7x14xbf16>, vector<14x112xbf16>, vector<7x112xf32> -> vector<7x112xf32>
    %c7_130 = arith.constant 7 : index
    %c0_131 = arith.constant 0 : index
    %c0_132 = arith.constant 0 : index
    %142 = vector.load %arg7[%c7_130, %c0_131, %c0_132] : memref<9x112x112xbf16, #tpu.memory_space<vmem>>, vector<1x112x112xbf16>
    %143 = vector.shape_cast %142 : vector<1x112x112xbf16> to vector<112x112xbf16>
    %144 = arith.truncf %141 : vector<7x112xf32> to vector<7x112xbf16>
    %cst_133 = arith.constant dense<0.000000e+00> : vector<7x112xf32>
    %145 = tpu.matmul %144, %143, %cst_133 {dimension_numbers = #tpu.dot_dimension_numbers<[1], [0], [0], [1], [0, 0, 1, 1], [], []>} : vector<7x112xbf16>, vector<112x112xbf16>, vector<7x112xf32> -> vector<7x112xf32>
    %146 = arith.addf %138, %145 : vector<7x112xf32>
    %c8_134 = arith.constant 8 : index
    %c0_135 = arith.constant 0 : index
    %c0_136 = arith.constant 0 : index
    %147 = vector.load %arg6[%c8_134, %c0_135, %c0_136] : memref<9x7x14xbf16, #tpu.memory_space<vmem>>, vector<1x7x14xbf16>
    %148 = vector.shape_cast %147 : vector<1x7x14xbf16> to vector<7x14xbf16>
    %cst_137 = arith.constant dense<0.000000e+00> : vector<7x112xf32>
    %149 = tpu.matmul %148, %81, %cst_137 {dimension_numbers = #tpu.dot_dimension_numbers<[1], [0], [0], [1], [0, 0, 1, 1], [], []>} : vector<7x14xbf16>, vector<14x112xbf16>, vector<7x112xf32> -> vector<7x112xf32>
    %c8_138 = arith.constant 8 : index
    %c0_139 = arith.constant 0 : index
    %c0_140 = arith.constant 0 : index
    %150 = vector.load %arg7[%c8_138, %c0_139, %c0_140] : memref<9x112x112xbf16, #tpu.memory_space<vmem>>, vector<1x112x112xbf16>
    %151 = vector.shape_cast %150 : vector<1x112x112xbf16> to vector<112x112xbf16>
    %152 = arith.truncf %149 : vector<7x112xf32> to vector<7x112xbf16>
    %cst_141 = arith.constant dense<0.000000e+00> : vector<7x112xf32>
    %153 = tpu.matmul %152, %151, %cst_141 {dimension_numbers = #tpu.dot_dimension_numbers<[1], [0], [0], [1], [0, 0, 1, 1], [], []>} : vector<7x112xbf16>, vector<112x112xbf16>, vector<7x112xf32> -> vector<7x112xf32>
    %154 = arith.addf %146, %153 : vector<7x112xf32>
    %c0_142 = arith.constant 0 : index
    %c0_143 = arith.constant 0 : index
    %155 = vector.load %arg8[%c0_142, %c0_143] : memref<1x112xf32, #tpu.memory_space<vmem>>, vector<1x112xf32>
    %156 = vector.broadcast %155 : vector<1x112xf32> to vector<7x112xf32>
    %157 = arith.addf %154, %156 : vector<7x112xf32>
    %cst_144 = arith.constant 0.000000e+00 : f32
    %158 = vector.broadcast %cst_144 : f32 to vector<7x112xf32>
    %159 = arith.maximumf %157, %158 : vector<7x112xf32>
    %160 = arith.truncf %159 : vector<7x112xf32> to vector<7x112xbf16>
    %cst_145 = arith.constant 0.000000e+00 : f32
    %161 = vector.broadcast %cst_145 : f32 to vector<3x96xf32>
    %c0_146 = arith.constant 0 : index
    %c0_147 = arith.constant 0 : index
    %c0_148 = arith.constant 0 : index
    %162 = vector.load %arg9[%c0_146, %c0_147, %c0_148] : memref<9x3x7xbf16, #tpu.memory_space<vmem>>, vector<1x3x7xbf16>
    %163 = vector.shape_cast %162 : vector<1x3x7xbf16> to vector<3x7xbf16>
    %cst_149 = arith.constant dense<0.000000e+00> : vector<3x112xf32>
    %164 = tpu.matmul %163, %160, %cst_149 {dimension_numbers = #tpu.dot_dimension_numbers<[1], [0], [0], [1], [0, 0, 1, 1], [], []>} : vector<3x7xbf16>, vector<7x112xbf16>, vector<3x112xf32> -> vector<3x112xf32>
    %c0_150 = arith.constant 0 : index
    %c0_151 = arith.constant 0 : index
    %c0_152 = arith.constant 0 : index
    %165 = vector.load %arg10[%c0_150, %c0_151, %c0_152] : memref<9x112x96xbf16, #tpu.memory_space<vmem>>, vector<1x112x96xbf16>
    %166 = vector.shape_cast %165 : vector<1x112x96xbf16> to vector<112x96xbf16>
    %167 = arith.truncf %164 : vector<3x112xf32> to vector<3x112xbf16>
    %cst_153 = arith.constant dense<0.000000e+00> : vector<3x96xf32>
    %168 = tpu.matmul %167, %166, %cst_153 {dimension_numbers = #tpu.dot_dimension_numbers<[1], [0], [0], [1], [0, 0, 1, 1], [], []>} : vector<3x112xbf16>, vector<112x96xbf16>, vector<3x96xf32> -> vector<3x96xf32>
    %169 = arith.addf %161, %168 : vector<3x96xf32>
    %c1_154 = arith.constant 1 : index
    %c0_155 = arith.constant 0 : index
    %c0_156 = arith.constant 0 : index
    %170 = vector.load %arg9[%c1_154, %c0_155, %c0_156] : memref<9x3x7xbf16, #tpu.memory_space<vmem>>, vector<1x3x7xbf16>
    %171 = vector.shape_cast %170 : vector<1x3x7xbf16> to vector<3x7xbf16>
    %cst_157 = arith.constant dense<0.000000e+00> : vector<3x112xf32>
    %172 = tpu.matmul %171, %160, %cst_157 {dimension_numbers = #tpu.dot_dimension_numbers<[1], [0], [0], [1], [0, 0, 1, 1], [], []>} : vector<3x7xbf16>, vector<7x112xbf16>, vector<3x112xf32> -> vector<3x112xf32>
    %c1_158 = arith.constant 1 : index
    %c0_159 = arith.constant 0 : index
    %c0_160 = arith.constant 0 : index
    %173 = vector.load %arg10[%c1_158, %c0_159, %c0_160] : memref<9x112x96xbf16, #tpu.memory_space<vmem>>, vector<1x112x96xbf16>
    %174 = vector.shape_cast %173 : vector<1x112x96xbf16> to vector<112x96xbf16>
    %175 = arith.truncf %172 : vector<3x112xf32> to vector<3x112xbf16>
    %cst_161 = arith.constant dense<0.000000e+00> : vector<3x96xf32>
    %176 = tpu.matmul %175, %174, %cst_161 {dimension_numbers = #tpu.dot_dimension_numbers<[1], [0], [0], [1], [0, 0, 1, 1], [], []>} : vector<3x112xbf16>, vector<112x96xbf16>, vector<3x96xf32> -> vector<3x96xf32>
    %177 = arith.addf %169, %176 : vector<3x96xf32>
    %c2_162 = arith.constant 2 : index
    %c0_163 = arith.constant 0 : index
    %c0_164 = arith.constant 0 : index
    %178 = vector.load %arg9[%c2_162, %c0_163, %c0_164] : memref<9x3x7xbf16, #tpu.memory_space<vmem>>, vector<1x3x7xbf16>
    %179 = vector.shape_cast %178 : vector<1x3x7xbf16> to vector<3x7xbf16>
    %cst_165 = arith.constant dense<0.000000e+00> : vector<3x112xf32>
    %180 = tpu.matmul %179, %160, %cst_165 {dimension_numbers = #tpu.dot_dimension_numbers<[1], [0], [0], [1], [0, 0, 1, 1], [], []>} : vector<3x7xbf16>, vector<7x112xbf16>, vector<3x112xf32> -> vector<3x112xf32>
    %c2_166 = arith.constant 2 : index
    %c0_167 = arith.constant 0 : index
    %c0_168 = arith.constant 0 : index
    %181 = vector.load %arg10[%c2_166, %c0_167, %c0_168] : memref<9x112x96xbf16, #tpu.memory_space<vmem>>, vector<1x112x96xbf16>
    %182 = vector.shape_cast %181 : vector<1x112x96xbf16> to vector<112x96xbf16>
    %183 = arith.truncf %180 : vector<3x112xf32> to vector<3x112xbf16>
    %cst_169 = arith.constant dense<0.000000e+00> : vector<3x96xf32>
    %184 = tpu.matmul %183, %182, %cst_169 {dimension_numbers = #tpu.dot_dimension_numbers<[1], [0], [0], [1], [0, 0, 1, 1], [], []>} : vector<3x112xbf16>, vector<112x96xbf16>, vector<3x96xf32> -> vector<3x96xf32>
    %185 = arith.addf %177, %184 : vector<3x96xf32>
    %c3_170 = arith.constant 3 : index
    %c0_171 = arith.constant 0 : index
    %c0_172 = arith.constant 0 : index
    %186 = vector.load %arg9[%c3_170, %c0_171, %c0_172] : memref<9x3x7xbf16, #tpu.memory_space<vmem>>, vector<1x3x7xbf16>
    %187 = vector.shape_cast %186 : vector<1x3x7xbf16> to vector<3x7xbf16>
    %cst_173 = arith.constant dense<0.000000e+00> : vector<3x112xf32>
    %188 = tpu.matmul %187, %160, %cst_173 {dimension_numbers = #tpu.dot_dimension_numbers<[1], [0], [0], [1], [0, 0, 1, 1], [], []>} : vector<3x7xbf16>, vector<7x112xbf16>, vector<3x112xf32> -> vector<3x112xf32>
    %c3_174 = arith.constant 3 : index
    %c0_175 = arith.constant 0 : index
    %c0_176 = arith.constant 0 : index
    %189 = vector.load %arg10[%c3_174, %c0_175, %c0_176] : memref<9x112x96xbf16, #tpu.memory_space<vmem>>, vector<1x112x96xbf16>
    %190 = vector.shape_cast %189 : vector<1x112x96xbf16> to vector<112x96xbf16>
    %191 = arith.truncf %188 : vector<3x112xf32> to vector<3x112xbf16>
    %cst_177 = arith.constant dense<0.000000e+00> : vector<3x96xf32>
    %192 = tpu.matmul %191, %190, %cst_177 {dimension_numbers = #tpu.dot_dimension_numbers<[1], [0], [0], [1], [0, 0, 1, 1], [], []>} : vector<3x112xbf16>, vector<112x96xbf16>, vector<3x96xf32> -> vector<3x96xf32>
    %193 = arith.addf %185, %192 : vector<3x96xf32>
    %c4_178 = arith.constant 4 : index
    %c0_179 = arith.constant 0 : index
    %c0_180 = arith.constant 0 : index
    %194 = vector.load %arg9[%c4_178, %c0_179, %c0_180] : memref<9x3x7xbf16, #tpu.memory_space<vmem>>, vector<1x3x7xbf16>
    %195 = vector.shape_cast %194 : vector<1x3x7xbf16> to vector<3x7xbf16>
    %cst_181 = arith.constant dense<0.000000e+00> : vector<3x112xf32>
    %196 = tpu.matmul %195, %160, %cst_181 {dimension_numbers = #tpu.dot_dimension_numbers<[1], [0], [0], [1], [0, 0, 1, 1], [], []>} : vector<3x7xbf16>, vector<7x112xbf16>, vector<3x112xf32> -> vector<3x112xf32>
    %c4_182 = arith.constant 4 : index
    %c0_183 = arith.constant 0 : index
    %c0_184 = arith.constant 0 : index
    %197 = vector.load %arg10[%c4_182, %c0_183, %c0_184] : memref<9x112x96xbf16, #tpu.memory_space<vmem>>, vector<1x112x96xbf16>
    %198 = vector.shape_cast %197 : vector<1x112x96xbf16> to vector<112x96xbf16>
    %199 = arith.truncf %196 : vector<3x112xf32> to vector<3x112xbf16>
    %cst_185 = arith.constant dense<0.000000e+00> : vector<3x96xf32>
    %200 = tpu.matmul %199, %198, %cst_185 {dimension_numbers = #tpu.dot_dimension_numbers<[1], [0], [0], [1], [0, 0, 1, 1], [], []>} : vector<3x112xbf16>, vector<112x96xbf16>, vector<3x96xf32> -> vector<3x96xf32>
    %201 = arith.addf %193, %200 : vector<3x96xf32>
    %c5_186 = arith.constant 5 : index
    %c0_187 = arith.constant 0 : index
    %c0_188 = arith.constant 0 : index
    %202 = vector.load %arg9[%c5_186, %c0_187, %c0_188] : memref<9x3x7xbf16, #tpu.memory_space<vmem>>, vector<1x3x7xbf16>
    %203 = vector.shape_cast %202 : vector<1x3x7xbf16> to vector<3x7xbf16>
    %cst_189 = arith.constant dense<0.000000e+00> : vector<3x112xf32>
    %204 = tpu.matmul %203, %160, %cst_189 {dimension_numbers = #tpu.dot_dimension_numbers<[1], [0], [0], [1], [0, 0, 1, 1], [], []>} : vector<3x7xbf16>, vector<7x112xbf16>, vector<3x112xf32> -> vector<3x112xf32>
    %c5_190 = arith.constant 5 : index
    %c0_191 = arith.constant 0 : index
    %c0_192 = arith.constant 0 : index
    %205 = vector.load %arg10[%c5_190, %c0_191, %c0_192] : memref<9x112x96xbf16, #tpu.memory_space<vmem>>, vector<1x112x96xbf16>
    %206 = vector.shape_cast %205 : vector<1x112x96xbf16> to vector<112x96xbf16>
    %207 = arith.truncf %204 : vector<3x112xf32> to vector<3x112xbf16>
    %cst_193 = arith.constant dense<0.000000e+00> : vector<3x96xf32>
    %208 = tpu.matmul %207, %206, %cst_193 {dimension_numbers = #tpu.dot_dimension_numbers<[1], [0], [0], [1], [0, 0, 1, 1], [], []>} : vector<3x112xbf16>, vector<112x96xbf16>, vector<3x96xf32> -> vector<3x96xf32>
    %209 = arith.addf %201, %208 : vector<3x96xf32>
    %c6_194 = arith.constant 6 : index
    %c0_195 = arith.constant 0 : index
    %c0_196 = arith.constant 0 : index
    %210 = vector.load %arg9[%c6_194, %c0_195, %c0_196] : memref<9x3x7xbf16, #tpu.memory_space<vmem>>, vector<1x3x7xbf16>
    %211 = vector.shape_cast %210 : vector<1x3x7xbf16> to vector<3x7xbf16>
    %cst_197 = arith.constant dense<0.000000e+00> : vector<3x112xf32>
    %212 = tpu.matmul %211, %160, %cst_197 {dimension_numbers = #tpu.dot_dimension_numbers<[1], [0], [0], [1], [0, 0, 1, 1], [], []>} : vector<3x7xbf16>, vector<7x112xbf16>, vector<3x112xf32> -> vector<3x112xf32>
    %c6_198 = arith.constant 6 : index
    %c0_199 = arith.constant 0 : index
    %c0_200 = arith.constant 0 : index
    %213 = vector.load %arg10[%c6_198, %c0_199, %c0_200] : memref<9x112x96xbf16, #tpu.memory_space<vmem>>, vector<1x112x96xbf16>
    %214 = vector.shape_cast %213 : vector<1x112x96xbf16> to vector<112x96xbf16>
    %215 = arith.truncf %212 : vector<3x112xf32> to vector<3x112xbf16>
    %cst_201 = arith.constant dense<0.000000e+00> : vector<3x96xf32>
    %216 = tpu.matmul %215, %214, %cst_201 {dimension_numbers = #tpu.dot_dimension_numbers<[1], [0], [0], [1], [0, 0, 1, 1], [], []>} : vector<3x112xbf16>, vector<112x96xbf16>, vector<3x96xf32> -> vector<3x96xf32>
    %217 = arith.addf %209, %216 : vector<3x96xf32>
    %c7_202 = arith.constant 7 : index
    %c0_203 = arith.constant 0 : index
    %c0_204 = arith.constant 0 : index
    %218 = vector.load %arg9[%c7_202, %c0_203, %c0_204] : memref<9x3x7xbf16, #tpu.memory_space<vmem>>, vector<1x3x7xbf16>
    %219 = vector.shape_cast %218 : vector<1x3x7xbf16> to vector<3x7xbf16>
    %cst_205 = arith.constant dense<0.000000e+00> : vector<3x112xf32>
    %220 = tpu.matmul %219, %160, %cst_205 {dimension_numbers = #tpu.dot_dimension_numbers<[1], [0], [0], [1], [0, 0, 1, 1], [], []>} : vector<3x7xbf16>, vector<7x112xbf16>, vector<3x112xf32> -> vector<3x112xf32>
    %c7_206 = arith.constant 7 : index
    %c0_207 = arith.constant 0 : index
    %c0_208 = arith.constant 0 : index
    %221 = vector.load %arg10[%c7_206, %c0_207, %c0_208] : memref<9x112x96xbf16, #tpu.memory_space<vmem>>, vector<1x112x96xbf16>
    %222 = vector.shape_cast %221 : vector<1x112x96xbf16> to vector<112x96xbf16>
    %223 = arith.truncf %220 : vector<3x112xf32> to vector<3x112xbf16>
    %cst_209 = arith.constant dense<0.000000e+00> : vector<3x96xf32>
    %224 = tpu.matmul %223, %222, %cst_209 {dimension_numbers = #tpu.dot_dimension_numbers<[1], [0], [0], [1], [0, 0, 1, 1], [], []>} : vector<3x112xbf16>, vector<112x96xbf16>, vector<3x96xf32> -> vector<3x96xf32>
    %225 = arith.addf %217, %224 : vector<3x96xf32>
    %c8_210 = arith.constant 8 : index
    %c0_211 = arith.constant 0 : index
    %c0_212 = arith.constant 0 : index
    %226 = vector.load %arg9[%c8_210, %c0_211, %c0_212] : memref<9x3x7xbf16, #tpu.memory_space<vmem>>, vector<1x3x7xbf16>
    %227 = vector.shape_cast %226 : vector<1x3x7xbf16> to vector<3x7xbf16>
    %cst_213 = arith.constant dense<0.000000e+00> : vector<3x112xf32>
    %228 = tpu.matmul %227, %160, %cst_213 {dimension_numbers = #tpu.dot_dimension_numbers<[1], [0], [0], [1], [0, 0, 1, 1], [], []>} : vector<3x7xbf16>, vector<7x112xbf16>, vector<3x112xf32> -> vector<3x112xf32>
    %c8_214 = arith.constant 8 : index
    %c0_215 = arith.constant 0 : index
    %c0_216 = arith.constant 0 : index
    %229 = vector.load %arg10[%c8_214, %c0_215, %c0_216] : memref<9x112x96xbf16, #tpu.memory_space<vmem>>, vector<1x112x96xbf16>
    %230 = vector.shape_cast %229 : vector<1x112x96xbf16> to vector<112x96xbf16>
    %231 = arith.truncf %228 : vector<3x112xf32> to vector<3x112xbf16>
    %cst_217 = arith.constant dense<0.000000e+00> : vector<3x96xf32>
    %232 = tpu.matmul %231, %230, %cst_217 {dimension_numbers = #tpu.dot_dimension_numbers<[1], [0], [0], [1], [0, 0, 1, 1], [], []>} : vector<3x112xbf16>, vector<112x96xbf16>, vector<3x96xf32> -> vector<3x96xf32>
    %233 = arith.addf %225, %232 : vector<3x96xf32>
    %c0_218 = arith.constant 0 : index
    %c0_219 = arith.constant 0 : index
    %234 = vector.load %arg11[%c0_218, %c0_219] : memref<1x96xf32, #tpu.memory_space<vmem>>, vector<1x96xf32>
    %235 = vector.broadcast %234 : vector<1x96xf32> to vector<3x96xf32>
    %236 = arith.addf %233, %235 : vector<3x96xf32>
    %cst_220 = arith.constant 0.000000e+00 : f32
    %237 = vector.broadcast %cst_220 : f32 to vector<3x96xf32>
    %238 = arith.maximumf %236, %237 : vector<3x96xf32>
    %239 = arith.truncf %238 : vector<3x96xf32> to vector<3x96xbf16>
    %cst_221 = arith.constant 0.000000e+00 : f32
    %240 = vector.broadcast %cst_221 : f32 to vector<1x128xf32>
    %241 = vector.extract_strided_slice %239 {offsets = [0, 0], sizes = [1, 96], strides = [1, 1]} : vector<3x96xbf16> to vector<1x96xbf16>
    %c0_222 = arith.constant 0 : index
    %c0_223 = arith.constant 0 : index
    %c0_224 = arith.constant 0 : index
    %242 = vector.load %arg12[%c0_222, %c0_223, %c0_224] : memref<3x96x128xbf16, #tpu.memory_space<vmem>>, vector<1x96x128xbf16>
    %243 = vector.shape_cast %242 : vector<1x96x128xbf16> to vector<96x128xbf16>
    %cst_225 = arith.constant dense<0.000000e+00> : vector<1x128xf32>
    %244 = tpu.matmul %241, %243, %cst_225 {dimension_numbers = #tpu.dot_dimension_numbers<[1], [0], [0], [1], [0, 0, 1, 1], [], []>} : vector<1x96xbf16>, vector<96x128xbf16>, vector<1x128xf32> -> vector<1x128xf32>
    %245 = arith.addf %240, %244 : vector<1x128xf32>
    %246 = vector.extract_strided_slice %239 {offsets = [1, 0], sizes = [1, 96], strides = [1, 1]} : vector<3x96xbf16> to vector<1x96xbf16>
    %c1_226 = arith.constant 1 : index
    %c0_227 = arith.constant 0 : index
    %c0_228 = arith.constant 0 : index
    %247 = vector.load %arg12[%c1_226, %c0_227, %c0_228] : memref<3x96x128xbf16, #tpu.memory_space<vmem>>, vector<1x96x128xbf16>
    %248 = vector.shape_cast %247 : vector<1x96x128xbf16> to vector<96x128xbf16>
    %cst_229 = arith.constant dense<0.000000e+00> : vector<1x128xf32>
    %249 = tpu.matmul %246, %248, %cst_229 {dimension_numbers = #tpu.dot_dimension_numbers<[1], [0], [0], [1], [0, 0, 1, 1], [], []>} : vector<1x96xbf16>, vector<96x128xbf16>, vector<1x128xf32> -> vector<1x128xf32>
    %250 = arith.addf %245, %249 : vector<1x128xf32>
    %251 = vector.extract_strided_slice %239 {offsets = [2, 0], sizes = [1, 96], strides = [1, 1]} : vector<3x96xbf16> to vector<1x96xbf16>
    %c2_230 = arith.constant 2 : index
    %c0_231 = arith.constant 0 : index
    %c0_232 = arith.constant 0 : index
    %252 = vector.load %arg12[%c2_230, %c0_231, %c0_232] : memref<3x96x128xbf16, #tpu.memory_space<vmem>>, vector<1x96x128xbf16>
    %253 = vector.shape_cast %252 : vector<1x96x128xbf16> to vector<96x128xbf16>
    %cst_233 = arith.constant dense<0.000000e+00> : vector<1x128xf32>
    %254 = tpu.matmul %251, %253, %cst_233 {dimension_numbers = #tpu.dot_dimension_numbers<[1], [0], [0], [1], [0, 0, 1, 1], [], []>} : vector<1x96xbf16>, vector<96x128xbf16>, vector<1x128xf32> -> vector<1x128xf32>
    %255 = arith.addf %250, %254 : vector<1x128xf32>
    %c0_234 = arith.constant 0 : index
    %c0_235 = arith.constant 0 : index
    %256 = vector.load %arg13[%c0_234, %c0_235] : memref<1x128xf32, #tpu.memory_space<vmem>>, vector<1x128xf32>
    %257 = arith.addf %255, %256 : vector<1x128xf32>
    %cst_236 = arith.constant 0.000000e+00 : f32
    %258 = vector.broadcast %cst_236 : f32 to vector<1x128xf32>
    %259 = arith.maximumf %257, %258 : vector<1x128xf32>
    %c0_237 = arith.constant 0 : index
    %c0_238 = arith.constant 0 : index
    %260 = vector.load %arg14[%c0_237, %c0_238] : memref<128x8xbf16, #tpu.memory_space<vmem>>, vector<128x8xbf16>
    %261 = arith.truncf %259 : vector<1x128xf32> to vector<1x128xbf16>
    %cst_239 = arith.constant dense<0.000000e+00> : vector<1x8xf32>
    %262 = tpu.matmul %261, %260, %cst_239 {dimension_numbers = #tpu.dot_dimension_numbers<[1], [0], [0], [1], [0, 0, 1, 1], [], []>} : vector<1x128xbf16>, vector<128x8xbf16>, vector<1x8xf32> -> vector<1x8xf32>
    %c0_240 = arith.constant 0 : index
    %c0_241 = arith.constant 0 : index
    %263 = vector.load %arg15[%c0_240, %c0_241] : memref<1x8xf32, #tpu.memory_space<vmem>>, vector<1x8xf32>
    %264 = arith.addf %262, %263 : vector<1x8xf32>
    %c0_242 = arith.constant 0 : index
    %c0_243 = arith.constant 0 : index
    %265 = vector.load %arg16[%c0_242, %c0_243] : memref<128x8xbf16, #tpu.memory_space<vmem>>, vector<128x8xbf16>
    %266 = arith.truncf %259 : vector<1x128xf32> to vector<1x128xbf16>
    %cst_244 = arith.constant dense<0.000000e+00> : vector<1x8xf32>
    %267 = tpu.matmul %266, %265, %cst_244 {dimension_numbers = #tpu.dot_dimension_numbers<[1], [0], [0], [1], [0, 0, 1, 1], [], []>} : vector<1x128xbf16>, vector<128x8xbf16>, vector<1x8xf32> -> vector<1x8xf32>
    %c0_245 = arith.constant 0 : index
    %c0_246 = arith.constant 0 : index
    %268 = vector.load %arg17[%c0_245, %c0_246] : memref<1x8xf32, #tpu.memory_space<vmem>>, vector<1x8xf32>
    %269 = arith.addf %267, %268 : vector<1x8xf32>
    %c0_247 = arith.constant 0 : index
    %c0_248 = arith.constant 0 : index
    %c0_249 = arith.constant 0 : index
    %270 = vector.load %arg2[%c0_247, %c0_248, %c0_249] : memref<1x1x8xf32, #tpu.memory_space<vmem>>, vector<1x1x8xf32>
    %271 = vector.shape_cast %270 : vector<1x1x8xf32> to vector<1x8xf32>
    %cst_250 = arith.constant 5.000000e-01 : f32
    %272 = vector.broadcast %cst_250 : f32 to vector<1x8xf32>
    %273 = arith.mulf %272, %269 : vector<1x8xf32>
    %274 = math.exp %273 : vector<1x8xf32>
    %275 = arith.mulf %271, %274 : vector<1x8xf32>
    %276 = arith.addf %264, %275 : vector<1x8xf32>
    %c0_251 = arith.constant 0 : index
    %c0_252 = arith.constant 0 : index
    %277 = vector.load %arg18[%c0_251, %c0_252] : memref<8x64xbf16, #tpu.memory_space<vmem>>, vector<8x64xbf16>
    %278 = arith.truncf %276 : vector<1x8xf32> to vector<1x8xbf16>
    %cst_253 = arith.constant dense<0.000000e+00> : vector<1x64xf32>
    %279 = tpu.matmul %278, %277, %cst_253 {dimension_numbers = #tpu.dot_dimension_numbers<[1], [0], [0], [1], [0, 0, 1, 1], [], []>} : vector<1x8xbf16>, vector<8x64xbf16>, vector<1x64xf32> -> vector<1x64xf32>
    %c0_254 = arith.constant 0 : index
    %c0_255 = arith.constant 0 : index
    %280 = vector.load %arg19[%c0_254, %c0_255] : memref<1x64xf32, #tpu.memory_space<vmem>>, vector<1x64xf32>
    %281 = arith.addf %279, %280 : vector<1x64xf32>
    %cst_256 = arith.constant 0.000000e+00 : f32
    %282 = vector.broadcast %cst_256 : f32 to vector<1x64xf32>
    %283 = arith.maximumf %281, %282 : vector<1x64xf32>
    %284 = arith.truncf %283 : vector<1x64xf32> to vector<1x64xbf16>
    %285 = tpu.iota {dimensions = array<i32: 0>} : vector<3x1xi32>
    %cst_257 = arith.constant 0.000000e+00 : f32
    %286 = vector.broadcast %cst_257 : f32 to vector<3x96xf32>
    %c0_258 = arith.constant 0 : index
    %c0_259 = arith.constant 0 : index
    %c0_260 = arith.constant 0 : index
    %287 = vector.load %arg20[%c0_258, %c0_259, %c0_260] : memref<3x64x96xbf16, #tpu.memory_space<vmem>>, vector<1x64x96xbf16>
    %288 = vector.shape_cast %287 : vector<1x64x96xbf16> to vector<64x96xbf16>
    %cst_261 = arith.constant dense<0.000000e+00> : vector<1x96xf32>
    %289 = tpu.matmul %284, %288, %cst_261 {dimension_numbers = #tpu.dot_dimension_numbers<[1], [0], [0], [1], [0, 0, 1, 1], [], []>} : vector<1x64xbf16>, vector<64x96xbf16>, vector<1x96xf32> -> vector<1x96xf32>
    %c0_262 = arith.constant 0 : index
    %c0_263 = arith.constant 0 : index
    %c0_264 = arith.constant 0 : index
    %290 = vector.load %arg21[%c0_262, %c0_263, %c0_264] : memref<3x1x96xf32, #tpu.memory_space<vmem>>, vector<1x1x96xf32>
    %291 = vector.shape_cast %290 : vector<1x1x96xf32> to vector<1x96xf32>
    %292 = arith.addf %289, %291 : vector<1x96xf32>
    %cst_265 = arith.constant 0.000000e+00 : f32
    %293 = vector.broadcast %cst_265 : f32 to vector<1x96xf32>
    %294 = arith.maximumf %292, %293 : vector<1x96xf32>
    %c0_i32 = arith.constant 0 : i32
    %295 = vector.broadcast %c0_i32 : i32 to vector<3x1xi32>
    %296 = arith.cmpi eq, %285, %295 : vector<3x1xi32>
    %297 = arith.extui %296 : vector<3x1xi1> to vector<3x1xi32>
    %298 = arith.sitofp %297 : vector<3x1xi32> to vector<3x1xf32>
    %299 = vector.broadcast %294 : vector<1x96xf32> to vector<3x96xf32>
    %300 = vector.broadcast %298 : vector<3x1xf32> to vector<3x96xf32>
    %301 = arith.mulf %299, %300 : vector<3x96xf32>
    %302 = arith.addf %286, %301 : vector<3x96xf32>
    %c1_266 = arith.constant 1 : index
    %c0_267 = arith.constant 0 : index
    %c0_268 = arith.constant 0 : index
    %303 = vector.load %arg20[%c1_266, %c0_267, %c0_268] : memref<3x64x96xbf16, #tpu.memory_space<vmem>>, vector<1x64x96xbf16>
    %304 = vector.shape_cast %303 : vector<1x64x96xbf16> to vector<64x96xbf16>
    %cst_269 = arith.constant dense<0.000000e+00> : vector<1x96xf32>
    %305 = tpu.matmul %284, %304, %cst_269 {dimension_numbers = #tpu.dot_dimension_numbers<[1], [0], [0], [1], [0, 0, 1, 1], [], []>} : vector<1x64xbf16>, vector<64x96xbf16>, vector<1x96xf32> -> vector<1x96xf32>
    %c1_270 = arith.constant 1 : index
    %c0_271 = arith.constant 0 : index
    %c0_272 = arith.constant 0 : index
    %306 = vector.load %arg21[%c1_270, %c0_271, %c0_272] : memref<3x1x96xf32, #tpu.memory_space<vmem>>, vector<1x1x96xf32>
    %307 = vector.shape_cast %306 : vector<1x1x96xf32> to vector<1x96xf32>
    %308 = arith.addf %305, %307 : vector<1x96xf32>
    %cst_273 = arith.constant 0.000000e+00 : f32
    %309 = vector.broadcast %cst_273 : f32 to vector<1x96xf32>
    %310 = arith.maximumf %308, %309 : vector<1x96xf32>
    %c1_i32 = arith.constant 1 : i32
    %311 = vector.broadcast %c1_i32 : i32 to vector<3x1xi32>
    %312 = arith.cmpi eq, %285, %311 : vector<3x1xi32>
    %313 = arith.extui %312 : vector<3x1xi1> to vector<3x1xi32>
    %314 = arith.sitofp %313 : vector<3x1xi32> to vector<3x1xf32>
    %315 = vector.broadcast %310 : vector<1x96xf32> to vector<3x96xf32>
    %316 = vector.broadcast %314 : vector<3x1xf32> to vector<3x96xf32>
    %317 = arith.mulf %315, %316 : vector<3x96xf32>
    %318 = arith.addf %302, %317 : vector<3x96xf32>
    %c2_274 = arith.constant 2 : index
    %c0_275 = arith.constant 0 : index
    %c0_276 = arith.constant 0 : index
    %319 = vector.load %arg20[%c2_274, %c0_275, %c0_276] : memref<3x64x96xbf16, #tpu.memory_space<vmem>>, vector<1x64x96xbf16>
    %320 = vector.shape_cast %319 : vector<1x64x96xbf16> to vector<64x96xbf16>
    %cst_277 = arith.constant dense<0.000000e+00> : vector<1x96xf32>
    %321 = tpu.matmul %284, %320, %cst_277 {dimension_numbers = #tpu.dot_dimension_numbers<[1], [0], [0], [1], [0, 0, 1, 1], [], []>} : vector<1x64xbf16>, vector<64x96xbf16>, vector<1x96xf32> -> vector<1x96xf32>
    %c2_278 = arith.constant 2 : index
    %c0_279 = arith.constant 0 : index
    %c0_280 = arith.constant 0 : index
    %322 = vector.load %arg21[%c2_278, %c0_279, %c0_280] : memref<3x1x96xf32, #tpu.memory_space<vmem>>, vector<1x1x96xf32>
    %323 = vector.shape_cast %322 : vector<1x1x96xf32> to vector<1x96xf32>
    %324 = arith.addf %321, %323 : vector<1x96xf32>
    %cst_281 = arith.constant 0.000000e+00 : f32
    %325 = vector.broadcast %cst_281 : f32 to vector<1x96xf32>
    %326 = arith.maximumf %324, %325 : vector<1x96xf32>
    %c2_i32 = arith.constant 2 : i32
    %327 = vector.broadcast %c2_i32 : i32 to vector<3x1xi32>
    %328 = arith.cmpi eq, %285, %327 : vector<3x1xi32>
    %329 = arith.extui %328 : vector<3x1xi1> to vector<3x1xi32>
    %330 = arith.sitofp %329 : vector<3x1xi32> to vector<3x1xf32>
    %331 = vector.broadcast %326 : vector<1x96xf32> to vector<3x96xf32>
    %332 = vector.broadcast %330 : vector<3x1xf32> to vector<3x96xf32>
    %333 = arith.mulf %331, %332 : vector<3x96xf32>
    %334 = arith.addf %318, %333 : vector<3x96xf32>
    %335 = arith.truncf %334 : vector<3x96xf32> to vector<3x96xbf16>
    %cst_282 = arith.constant 0.000000e+00 : f32
    %336 = vector.broadcast %cst_282 : f32 to vector<7x112xf32>
    %c0_283 = arith.constant 0 : index
    %c0_284 = arith.constant 0 : index
    %c0_285 = arith.constant 0 : index
    %337 = vector.load %arg22[%c0_283, %c0_284, %c0_285] : memref<9x7x3xbf16, #tpu.memory_space<vmem>>, vector<1x7x3xbf16>
    %338 = vector.shape_cast %337 : vector<1x7x3xbf16> to vector<7x3xbf16>
    %cst_286 = arith.constant dense<0.000000e+00> : vector<7x96xf32>
    %339 = tpu.matmul %338, %335, %cst_286 {dimension_numbers = #tpu.dot_dimension_numbers<[1], [0], [0], [1], [0, 0, 1, 1], [], []>} : vector<7x3xbf16>, vector<3x96xbf16>, vector<7x96xf32> -> vector<7x96xf32>
    %c0_287 = arith.constant 0 : index
    %c0_288 = arith.constant 0 : index
    %c0_289 = arith.constant 0 : index
    %340 = vector.load %arg23[%c0_287, %c0_288, %c0_289] : memref<9x96x112xbf16, #tpu.memory_space<vmem>>, vector<1x96x112xbf16>
    %341 = vector.shape_cast %340 : vector<1x96x112xbf16> to vector<96x112xbf16>
    %342 = arith.truncf %339 : vector<7x96xf32> to vector<7x96xbf16>
    %cst_290 = arith.constant dense<0.000000e+00> : vector<7x112xf32>
    %343 = tpu.matmul %342, %341, %cst_290 {dimension_numbers = #tpu.dot_dimension_numbers<[1], [0], [0], [1], [0, 0, 1, 1], [], []>} : vector<7x96xbf16>, vector<96x112xbf16>, vector<7x112xf32> -> vector<7x112xf32>
    %344 = arith.addf %336, %343 : vector<7x112xf32>
    %c1_291 = arith.constant 1 : index
    %c0_292 = arith.constant 0 : index
    %c0_293 = arith.constant 0 : index
    %345 = vector.load %arg22[%c1_291, %c0_292, %c0_293] : memref<9x7x3xbf16, #tpu.memory_space<vmem>>, vector<1x7x3xbf16>
    %346 = vector.shape_cast %345 : vector<1x7x3xbf16> to vector<7x3xbf16>
    %cst_294 = arith.constant dense<0.000000e+00> : vector<7x96xf32>
    %347 = tpu.matmul %346, %335, %cst_294 {dimension_numbers = #tpu.dot_dimension_numbers<[1], [0], [0], [1], [0, 0, 1, 1], [], []>} : vector<7x3xbf16>, vector<3x96xbf16>, vector<7x96xf32> -> vector<7x96xf32>
    %c1_295 = arith.constant 1 : index
    %c0_296 = arith.constant 0 : index
    %c0_297 = arith.constant 0 : index
    %348 = vector.load %arg23[%c1_295, %c0_296, %c0_297] : memref<9x96x112xbf16, #tpu.memory_space<vmem>>, vector<1x96x112xbf16>
    %349 = vector.shape_cast %348 : vector<1x96x112xbf16> to vector<96x112xbf16>
    %350 = arith.truncf %347 : vector<7x96xf32> to vector<7x96xbf16>
    %cst_298 = arith.constant dense<0.000000e+00> : vector<7x112xf32>
    %351 = tpu.matmul %350, %349, %cst_298 {dimension_numbers = #tpu.dot_dimension_numbers<[1], [0], [0], [1], [0, 0, 1, 1], [], []>} : vector<7x96xbf16>, vector<96x112xbf16>, vector<7x112xf32> -> vector<7x112xf32>
    %352 = arith.addf %344, %351 : vector<7x112xf32>
    %c2_299 = arith.constant 2 : index
    %c0_300 = arith.constant 0 : index
    %c0_301 = arith.constant 0 : index
    %353 = vector.load %arg22[%c2_299, %c0_300, %c0_301] : memref<9x7x3xbf16, #tpu.memory_space<vmem>>, vector<1x7x3xbf16>
    %354 = vector.shape_cast %353 : vector<1x7x3xbf16> to vector<7x3xbf16>
    %cst_302 = arith.constant dense<0.000000e+00> : vector<7x96xf32>
    %355 = tpu.matmul %354, %335, %cst_302 {dimension_numbers = #tpu.dot_dimension_numbers<[1], [0], [0], [1], [0, 0, 1, 1], [], []>} : vector<7x3xbf16>, vector<3x96xbf16>, vector<7x96xf32> -> vector<7x96xf32>
    %c2_303 = arith.constant 2 : index
    %c0_304 = arith.constant 0 : index
    %c0_305 = arith.constant 0 : index
    %356 = vector.load %arg23[%c2_303, %c0_304, %c0_305] : memref<9x96x112xbf16, #tpu.memory_space<vmem>>, vector<1x96x112xbf16>
    %357 = vector.shape_cast %356 : vector<1x96x112xbf16> to vector<96x112xbf16>
    %358 = arith.truncf %355 : vector<7x96xf32> to vector<7x96xbf16>
    %cst_306 = arith.constant dense<0.000000e+00> : vector<7x112xf32>
    %359 = tpu.matmul %358, %357, %cst_306 {dimension_numbers = #tpu.dot_dimension_numbers<[1], [0], [0], [1], [0, 0, 1, 1], [], []>} : vector<7x96xbf16>, vector<96x112xbf16>, vector<7x112xf32> -> vector<7x112xf32>
    %360 = arith.addf %352, %359 : vector<7x112xf32>
    %c3_307 = arith.constant 3 : index
    %c0_308 = arith.constant 0 : index
    %c0_309 = arith.constant 0 : index
    %361 = vector.load %arg22[%c3_307, %c0_308, %c0_309] : memref<9x7x3xbf16, #tpu.memory_space<vmem>>, vector<1x7x3xbf16>
    %362 = vector.shape_cast %361 : vector<1x7x3xbf16> to vector<7x3xbf16>
    %cst_310 = arith.constant dense<0.000000e+00> : vector<7x96xf32>
    %363 = tpu.matmul %362, %335, %cst_310 {dimension_numbers = #tpu.dot_dimension_numbers<[1], [0], [0], [1], [0, 0, 1, 1], [], []>} : vector<7x3xbf16>, vector<3x96xbf16>, vector<7x96xf32> -> vector<7x96xf32>
    %c3_311 = arith.constant 3 : index
    %c0_312 = arith.constant 0 : index
    %c0_313 = arith.constant 0 : index
    %364 = vector.load %arg23[%c3_311, %c0_312, %c0_313] : memref<9x96x112xbf16, #tpu.memory_space<vmem>>, vector<1x96x112xbf16>
    %365 = vector.shape_cast %364 : vector<1x96x112xbf16> to vector<96x112xbf16>
    %366 = arith.truncf %363 : vector<7x96xf32> to vector<7x96xbf16>
    %cst_314 = arith.constant dense<0.000000e+00> : vector<7x112xf32>
    %367 = tpu.matmul %366, %365, %cst_314 {dimension_numbers = #tpu.dot_dimension_numbers<[1], [0], [0], [1], [0, 0, 1, 1], [], []>} : vector<7x96xbf16>, vector<96x112xbf16>, vector<7x112xf32> -> vector<7x112xf32>
    %368 = arith.addf %360, %367 : vector<7x112xf32>
    %c4_315 = arith.constant 4 : index
    %c0_316 = arith.constant 0 : index
    %c0_317 = arith.constant 0 : index
    %369 = vector.load %arg22[%c4_315, %c0_316, %c0_317] : memref<9x7x3xbf16, #tpu.memory_space<vmem>>, vector<1x7x3xbf16>
    %370 = vector.shape_cast %369 : vector<1x7x3xbf16> to vector<7x3xbf16>
    %cst_318 = arith.constant dense<0.000000e+00> : vector<7x96xf32>
    %371 = tpu.matmul %370, %335, %cst_318 {dimension_numbers = #tpu.dot_dimension_numbers<[1], [0], [0], [1], [0, 0, 1, 1], [], []>} : vector<7x3xbf16>, vector<3x96xbf16>, vector<7x96xf32> -> vector<7x96xf32>
    %c4_319 = arith.constant 4 : index
    %c0_320 = arith.constant 0 : index
    %c0_321 = arith.constant 0 : index
    %372 = vector.load %arg23[%c4_319, %c0_320, %c0_321] : memref<9x96x112xbf16, #tpu.memory_space<vmem>>, vector<1x96x112xbf16>
    %373 = vector.shape_cast %372 : vector<1x96x112xbf16> to vector<96x112xbf16>
    %374 = arith.truncf %371 : vector<7x96xf32> to vector<7x96xbf16>
    %cst_322 = arith.constant dense<0.000000e+00> : vector<7x112xf32>
    %375 = tpu.matmul %374, %373, %cst_322 {dimension_numbers = #tpu.dot_dimension_numbers<[1], [0], [0], [1], [0, 0, 1, 1], [], []>} : vector<7x96xbf16>, vector<96x112xbf16>, vector<7x112xf32> -> vector<7x112xf32>
    %376 = arith.addf %368, %375 : vector<7x112xf32>
    %c5_323 = arith.constant 5 : index
    %c0_324 = arith.constant 0 : index
    %c0_325 = arith.constant 0 : index
    %377 = vector.load %arg22[%c5_323, %c0_324, %c0_325] : memref<9x7x3xbf16, #tpu.memory_space<vmem>>, vector<1x7x3xbf16>
    %378 = vector.shape_cast %377 : vector<1x7x3xbf16> to vector<7x3xbf16>
    %cst_326 = arith.constant dense<0.000000e+00> : vector<7x96xf32>
    %379 = tpu.matmul %378, %335, %cst_326 {dimension_numbers = #tpu.dot_dimension_numbers<[1], [0], [0], [1], [0, 0, 1, 1], [], []>} : vector<7x3xbf16>, vector<3x96xbf16>, vector<7x96xf32> -> vector<7x96xf32>
    %c5_327 = arith.constant 5 : index
    %c0_328 = arith.constant 0 : index
    %c0_329 = arith.constant 0 : index
    %380 = vector.load %arg23[%c5_327, %c0_328, %c0_329] : memref<9x96x112xbf16, #tpu.memory_space<vmem>>, vector<1x96x112xbf16>
    %381 = vector.shape_cast %380 : vector<1x96x112xbf16> to vector<96x112xbf16>
    %382 = arith.truncf %379 : vector<7x96xf32> to vector<7x96xbf16>
    %cst_330 = arith.constant dense<0.000000e+00> : vector<7x112xf32>
    %383 = tpu.matmul %382, %381, %cst_330 {dimension_numbers = #tpu.dot_dimension_numbers<[1], [0], [0], [1], [0, 0, 1, 1], [], []>} : vector<7x96xbf16>, vector<96x112xbf16>, vector<7x112xf32> -> vector<7x112xf32>
    %384 = arith.addf %376, %383 : vector<7x112xf32>
    %c6_331 = arith.constant 6 : index
    %c0_332 = arith.constant 0 : index
    %c0_333 = arith.constant 0 : index
    %385 = vector.load %arg22[%c6_331, %c0_332, %c0_333] : memref<9x7x3xbf16, #tpu.memory_space<vmem>>, vector<1x7x3xbf16>
    %386 = vector.shape_cast %385 : vector<1x7x3xbf16> to vector<7x3xbf16>
    %cst_334 = arith.constant dense<0.000000e+00> : vector<7x96xf32>
    %387 = tpu.matmul %386, %335, %cst_334 {dimension_numbers = #tpu.dot_dimension_numbers<[1], [0], [0], [1], [0, 0, 1, 1], [], []>} : vector<7x3xbf16>, vector<3x96xbf16>, vector<7x96xf32> -> vector<7x96xf32>
    %c6_335 = arith.constant 6 : index
    %c0_336 = arith.constant 0 : index
    %c0_337 = arith.constant 0 : index
    %388 = vector.load %arg23[%c6_335, %c0_336, %c0_337] : memref<9x96x112xbf16, #tpu.memory_space<vmem>>, vector<1x96x112xbf16>
    %389 = vector.shape_cast %388 : vector<1x96x112xbf16> to vector<96x112xbf16>
    %390 = arith.truncf %387 : vector<7x96xf32> to vector<7x96xbf16>
    %cst_338 = arith.constant dense<0.000000e+00> : vector<7x112xf32>
    %391 = tpu.matmul %390, %389, %cst_338 {dimension_numbers = #tpu.dot_dimension_numbers<[1], [0], [0], [1], [0, 0, 1, 1], [], []>} : vector<7x96xbf16>, vector<96x112xbf16>, vector<7x112xf32> -> vector<7x112xf32>
    %392 = arith.addf %384, %391 : vector<7x112xf32>
    %c7_339 = arith.constant 7 : index
    %c0_340 = arith.constant 0 : index
    %c0_341 = arith.constant 0 : index
    %393 = vector.load %arg22[%c7_339, %c0_340, %c0_341] : memref<9x7x3xbf16, #tpu.memory_space<vmem>>, vector<1x7x3xbf16>
    %394 = vector.shape_cast %393 : vector<1x7x3xbf16> to vector<7x3xbf16>
    %cst_342 = arith.constant dense<0.000000e+00> : vector<7x96xf32>
    %395 = tpu.matmul %394, %335, %cst_342 {dimension_numbers = #tpu.dot_dimension_numbers<[1], [0], [0], [1], [0, 0, 1, 1], [], []>} : vector<7x3xbf16>, vector<3x96xbf16>, vector<7x96xf32> -> vector<7x96xf32>
    %c7_343 = arith.constant 7 : index
    %c0_344 = arith.constant 0 : index
    %c0_345 = arith.constant 0 : index
    %396 = vector.load %arg23[%c7_343, %c0_344, %c0_345] : memref<9x96x112xbf16, #tpu.memory_space<vmem>>, vector<1x96x112xbf16>
    %397 = vector.shape_cast %396 : vector<1x96x112xbf16> to vector<96x112xbf16>
    %398 = arith.truncf %395 : vector<7x96xf32> to vector<7x96xbf16>
    %cst_346 = arith.constant dense<0.000000e+00> : vector<7x112xf32>
    %399 = tpu.matmul %398, %397, %cst_346 {dimension_numbers = #tpu.dot_dimension_numbers<[1], [0], [0], [1], [0, 0, 1, 1], [], []>} : vector<7x96xbf16>, vector<96x112xbf16>, vector<7x112xf32> -> vector<7x112xf32>
    %400 = arith.addf %392, %399 : vector<7x112xf32>
    %c8_347 = arith.constant 8 : index
    %c0_348 = arith.constant 0 : index
    %c0_349 = arith.constant 0 : index
    %401 = vector.load %arg22[%c8_347, %c0_348, %c0_349] : memref<9x7x3xbf16, #tpu.memory_space<vmem>>, vector<1x7x3xbf16>
    %402 = vector.shape_cast %401 : vector<1x7x3xbf16> to vector<7x3xbf16>
    %cst_350 = arith.constant dense<0.000000e+00> : vector<7x96xf32>
    %403 = tpu.matmul %402, %335, %cst_350 {dimension_numbers = #tpu.dot_dimension_numbers<[1], [0], [0], [1], [0, 0, 1, 1], [], []>} : vector<7x3xbf16>, vector<3x96xbf16>, vector<7x96xf32> -> vector<7x96xf32>
    %c8_351 = arith.constant 8 : index
    %c0_352 = arith.constant 0 : index
    %c0_353 = arith.constant 0 : index
    %404 = vector.load %arg23[%c8_351, %c0_352, %c0_353] : memref<9x96x112xbf16, #tpu.memory_space<vmem>>, vector<1x96x112xbf16>
    %405 = vector.shape_cast %404 : vector<1x96x112xbf16> to vector<96x112xbf16>
    %406 = arith.truncf %403 : vector<7x96xf32> to vector<7x96xbf16>
    %cst_354 = arith.constant dense<0.000000e+00> : vector<7x112xf32>
    %407 = tpu.matmul %406, %405, %cst_354 {dimension_numbers = #tpu.dot_dimension_numbers<[1], [0], [0], [1], [0, 0, 1, 1], [], []>} : vector<7x96xbf16>, vector<96x112xbf16>, vector<7x112xf32> -> vector<7x112xf32>
    %408 = arith.addf %400, %407 : vector<7x112xf32>
    %c0_355 = arith.constant 0 : index
    %c0_356 = arith.constant 0 : index
    %409 = vector.load %arg24[%c0_355, %c0_356] : memref<1x112xf32, #tpu.memory_space<vmem>>, vector<1x112xf32>
    %410 = vector.broadcast %409 : vector<1x112xf32> to vector<7x112xf32>
    %411 = arith.addf %408, %410 : vector<7x112xf32>
    %cst_357 = arith.constant 0.000000e+00 : f32
    %412 = vector.broadcast %cst_357 : f32 to vector<7x112xf32>
    %413 = arith.maximumf %411, %412 : vector<7x112xf32>
    %414 = arith.truncf %413 : vector<7x112xf32> to vector<7x112xbf16>
    %cst_358 = arith.constant 0.000000e+00 : f32
    %415 = vector.broadcast %cst_358 : f32 to vector<14x112xf32>
    %c0_359 = arith.constant 0 : index
    %c0_360 = arith.constant 0 : index
    %c0_361 = arith.constant 0 : index
    %416 = vector.load %arg25[%c0_359, %c0_360, %c0_361] : memref<9x14x7xbf16, #tpu.memory_space<vmem>>, vector<1x14x7xbf16>
    %417 = vector.shape_cast %416 : vector<1x14x7xbf16> to vector<14x7xbf16>
    %cst_362 = arith.constant dense<0.000000e+00> : vector<14x112xf32>
    %418 = tpu.matmul %417, %414, %cst_362 {dimension_numbers = #tpu.dot_dimension_numbers<[1], [0], [0], [1], [0, 0, 1, 1], [], []>} : vector<14x7xbf16>, vector<7x112xbf16>, vector<14x112xf32> -> vector<14x112xf32>
    %c0_363 = arith.constant 0 : index
    %c0_364 = arith.constant 0 : index
    %c0_365 = arith.constant 0 : index
    %419 = vector.load %arg26[%c0_363, %c0_364, %c0_365] : memref<9x112x112xbf16, #tpu.memory_space<vmem>>, vector<1x112x112xbf16>
    %420 = vector.shape_cast %419 : vector<1x112x112xbf16> to vector<112x112xbf16>
    %421 = arith.truncf %418 : vector<14x112xf32> to vector<14x112xbf16>
    %cst_366 = arith.constant dense<0.000000e+00> : vector<14x112xf32>
    %422 = tpu.matmul %421, %420, %cst_366 {dimension_numbers = #tpu.dot_dimension_numbers<[1], [0], [0], [1], [0, 0, 1, 1], [], []>} : vector<14x112xbf16>, vector<112x112xbf16>, vector<14x112xf32> -> vector<14x112xf32>
    %423 = arith.addf %415, %422 : vector<14x112xf32>
    %c1_367 = arith.constant 1 : index
    %c0_368 = arith.constant 0 : index
    %c0_369 = arith.constant 0 : index
    %424 = vector.load %arg25[%c1_367, %c0_368, %c0_369] : memref<9x14x7xbf16, #tpu.memory_space<vmem>>, vector<1x14x7xbf16>
    %425 = vector.shape_cast %424 : vector<1x14x7xbf16> to vector<14x7xbf16>
    %cst_370 = arith.constant dense<0.000000e+00> : vector<14x112xf32>
    %426 = tpu.matmul %425, %414, %cst_370 {dimension_numbers = #tpu.dot_dimension_numbers<[1], [0], [0], [1], [0, 0, 1, 1], [], []>} : vector<14x7xbf16>, vector<7x112xbf16>, vector<14x112xf32> -> vector<14x112xf32>
    %c1_371 = arith.constant 1 : index
    %c0_372 = arith.constant 0 : index
    %c0_373 = arith.constant 0 : index
    %427 = vector.load %arg26[%c1_371, %c0_372, %c0_373] : memref<9x112x112xbf16, #tpu.memory_space<vmem>>, vector<1x112x112xbf16>
    %428 = vector.shape_cast %427 : vector<1x112x112xbf16> to vector<112x112xbf16>
    %429 = arith.truncf %426 : vector<14x112xf32> to vector<14x112xbf16>
    %cst_374 = arith.constant dense<0.000000e+00> : vector<14x112xf32>
    %430 = tpu.matmul %429, %428, %cst_374 {dimension_numbers = #tpu.dot_dimension_numbers<[1], [0], [0], [1], [0, 0, 1, 1], [], []>} : vector<14x112xbf16>, vector<112x112xbf16>, vector<14x112xf32> -> vector<14x112xf32>
    %431 = arith.addf %423, %430 : vector<14x112xf32>
    %c2_375 = arith.constant 2 : index
    %c0_376 = arith.constant 0 : index
    %c0_377 = arith.constant 0 : index
    %432 = vector.load %arg25[%c2_375, %c0_376, %c0_377] : memref<9x14x7xbf16, #tpu.memory_space<vmem>>, vector<1x14x7xbf16>
    %433 = vector.shape_cast %432 : vector<1x14x7xbf16> to vector<14x7xbf16>
    %cst_378 = arith.constant dense<0.000000e+00> : vector<14x112xf32>
    %434 = tpu.matmul %433, %414, %cst_378 {dimension_numbers = #tpu.dot_dimension_numbers<[1], [0], [0], [1], [0, 0, 1, 1], [], []>} : vector<14x7xbf16>, vector<7x112xbf16>, vector<14x112xf32> -> vector<14x112xf32>
    %c2_379 = arith.constant 2 : index
    %c0_380 = arith.constant 0 : index
    %c0_381 = arith.constant 0 : index
    %435 = vector.load %arg26[%c2_379, %c0_380, %c0_381] : memref<9x112x112xbf16, #tpu.memory_space<vmem>>, vector<1x112x112xbf16>
    %436 = vector.shape_cast %435 : vector<1x112x112xbf16> to vector<112x112xbf16>
    %437 = arith.truncf %434 : vector<14x112xf32> to vector<14x112xbf16>
    %cst_382 = arith.constant dense<0.000000e+00> : vector<14x112xf32>
    %438 = tpu.matmul %437, %436, %cst_382 {dimension_numbers = #tpu.dot_dimension_numbers<[1], [0], [0], [1], [0, 0, 1, 1], [], []>} : vector<14x112xbf16>, vector<112x112xbf16>, vector<14x112xf32> -> vector<14x112xf32>
    %439 = arith.addf %431, %438 : vector<14x112xf32>
    %c3_383 = arith.constant 3 : index
    %c0_384 = arith.constant 0 : index
    %c0_385 = arith.constant 0 : index
    %440 = vector.load %arg25[%c3_383, %c0_384, %c0_385] : memref<9x14x7xbf16, #tpu.memory_space<vmem>>, vector<1x14x7xbf16>
    %441 = vector.shape_cast %440 : vector<1x14x7xbf16> to vector<14x7xbf16>
    %cst_386 = arith.constant dense<0.000000e+00> : vector<14x112xf32>
    %442 = tpu.matmul %441, %414, %cst_386 {dimension_numbers = #tpu.dot_dimension_numbers<[1], [0], [0], [1], [0, 0, 1, 1], [], []>} : vector<14x7xbf16>, vector<7x112xbf16>, vector<14x112xf32> -> vector<14x112xf32>
    %c3_387 = arith.constant 3 : index
    %c0_388 = arith.constant 0 : index
    %c0_389 = arith.constant 0 : index
    %443 = vector.load %arg26[%c3_387, %c0_388, %c0_389] : memref<9x112x112xbf16, #tpu.memory_space<vmem>>, vector<1x112x112xbf16>
    %444 = vector.shape_cast %443 : vector<1x112x112xbf16> to vector<112x112xbf16>
    %445 = arith.truncf %442 : vector<14x112xf32> to vector<14x112xbf16>
    %cst_390 = arith.constant dense<0.000000e+00> : vector<14x112xf32>
    %446 = tpu.matmul %445, %444, %cst_390 {dimension_numbers = #tpu.dot_dimension_numbers<[1], [0], [0], [1], [0, 0, 1, 1], [], []>} : vector<14x112xbf16>, vector<112x112xbf16>, vector<14x112xf32> -> vector<14x112xf32>
    %447 = arith.addf %439, %446 : vector<14x112xf32>
    %c4_391 = arith.constant 4 : index
    %c0_392 = arith.constant 0 : index
    %c0_393 = arith.constant 0 : index
    %448 = vector.load %arg25[%c4_391, %c0_392, %c0_393] : memref<9x14x7xbf16, #tpu.memory_space<vmem>>, vector<1x14x7xbf16>
    %449 = vector.shape_cast %448 : vector<1x14x7xbf16> to vector<14x7xbf16>
    %cst_394 = arith.constant dense<0.000000e+00> : vector<14x112xf32>
    %450 = tpu.matmul %449, %414, %cst_394 {dimension_numbers = #tpu.dot_dimension_numbers<[1], [0], [0], [1], [0, 0, 1, 1], [], []>} : vector<14x7xbf16>, vector<7x112xbf16>, vector<14x112xf32> -> vector<14x112xf32>
    %c4_395 = arith.constant 4 : index
    %c0_396 = arith.constant 0 : index
    %c0_397 = arith.constant 0 : index
    %451 = vector.load %arg26[%c4_395, %c0_396, %c0_397] : memref<9x112x112xbf16, #tpu.memory_space<vmem>>, vector<1x112x112xbf16>
    %452 = vector.shape_cast %451 : vector<1x112x112xbf16> to vector<112x112xbf16>
    %453 = arith.truncf %450 : vector<14x112xf32> to vector<14x112xbf16>
    %cst_398 = arith.constant dense<0.000000e+00> : vector<14x112xf32>
    %454 = tpu.matmul %453, %452, %cst_398 {dimension_numbers = #tpu.dot_dimension_numbers<[1], [0], [0], [1], [0, 0, 1, 1], [], []>} : vector<14x112xbf16>, vector<112x112xbf16>, vector<14x112xf32> -> vector<14x112xf32>
    %455 = arith.addf %447, %454 : vector<14x112xf32>
    %c5_399 = arith.constant 5 : index
    %c0_400 = arith.constant 0 : index
    %c0_401 = arith.constant 0 : index
    %456 = vector.load %arg25[%c5_399, %c0_400, %c0_401] : memref<9x14x7xbf16, #tpu.memory_space<vmem>>, vector<1x14x7xbf16>
    %457 = vector.shape_cast %456 : vector<1x14x7xbf16> to vector<14x7xbf16>
    %cst_402 = arith.constant dense<0.000000e+00> : vector<14x112xf32>
    %458 = tpu.matmul %457, %414, %cst_402 {dimension_numbers = #tpu.dot_dimension_numbers<[1], [0], [0], [1], [0, 0, 1, 1], [], []>} : vector<14x7xbf16>, vector<7x112xbf16>, vector<14x112xf32> -> vector<14x112xf32>
    %c5_403 = arith.constant 5 : index
    %c0_404 = arith.constant 0 : index
    %c0_405 = arith.constant 0 : index
    %459 = vector.load %arg26[%c5_403, %c0_404, %c0_405] : memref<9x112x112xbf16, #tpu.memory_space<vmem>>, vector<1x112x112xbf16>
    %460 = vector.shape_cast %459 : vector<1x112x112xbf16> to vector<112x112xbf16>
    %461 = arith.truncf %458 : vector<14x112xf32> to vector<14x112xbf16>
    %cst_406 = arith.constant dense<0.000000e+00> : vector<14x112xf32>
    %462 = tpu.matmul %461, %460, %cst_406 {dimension_numbers = #tpu.dot_dimension_numbers<[1], [0], [0], [1], [0, 0, 1, 1], [], []>} : vector<14x112xbf16>, vector<112x112xbf16>, vector<14x112xf32> -> vector<14x112xf32>
    %463 = arith.addf %455, %462 : vector<14x112xf32>
    %c6_407 = arith.constant 6 : index
    %c0_408 = arith.constant 0 : index
    %c0_409 = arith.constant 0 : index
    %464 = vector.load %arg25[%c6_407, %c0_408, %c0_409] : memref<9x14x7xbf16, #tpu.memory_space<vmem>>, vector<1x14x7xbf16>
    %465 = vector.shape_cast %464 : vector<1x14x7xbf16> to vector<14x7xbf16>
    %cst_410 = arith.constant dense<0.000000e+00> : vector<14x112xf32>
    %466 = tpu.matmul %465, %414, %cst_410 {dimension_numbers = #tpu.dot_dimension_numbers<[1], [0], [0], [1], [0, 0, 1, 1], [], []>} : vector<14x7xbf16>, vector<7x112xbf16>, vector<14x112xf32> -> vector<14x112xf32>
    %c6_411 = arith.constant 6 : index
    %c0_412 = arith.constant 0 : index
    %c0_413 = arith.constant 0 : index
    %467 = vector.load %arg26[%c6_411, %c0_412, %c0_413] : memref<9x112x112xbf16, #tpu.memory_space<vmem>>, vector<1x112x112xbf16>
    %468 = vector.shape_cast %467 : vector<1x112x112xbf16> to vector<112x112xbf16>
    %469 = arith.truncf %466 : vector<14x112xf32> to vector<14x112xbf16>
    %cst_414 = arith.constant dense<0.000000e+00> : vector<14x112xf32>
    %470 = tpu.matmul %469, %468, %cst_414 {dimension_numbers = #tpu.dot_dimension_numbers<[1], [0], [0], [1], [0, 0, 1, 1], [], []>} : vector<14x112xbf16>, vector<112x112xbf16>, vector<14x112xf32> -> vector<14x112xf32>
    %471 = arith.addf %463, %470 : vector<14x112xf32>
    %c7_415 = arith.constant 7 : index
    %c0_416 = arith.constant 0 : index
    %c0_417 = arith.constant 0 : index
    %472 = vector.load %arg25[%c7_415, %c0_416, %c0_417] : memref<9x14x7xbf16, #tpu.memory_space<vmem>>, vector<1x14x7xbf16>
    %473 = vector.shape_cast %472 : vector<1x14x7xbf16> to vector<14x7xbf16>
    %cst_418 = arith.constant dense<0.000000e+00> : vector<14x112xf32>
    %474 = tpu.matmul %473, %414, %cst_418 {dimension_numbers = #tpu.dot_dimension_numbers<[1], [0], [0], [1], [0, 0, 1, 1], [], []>} : vector<14x7xbf16>, vector<7x112xbf16>, vector<14x112xf32> -> vector<14x112xf32>
    %c7_419 = arith.constant 7 : index
    %c0_420 = arith.constant 0 : index
    %c0_421 = arith.constant 0 : index
    %475 = vector.load %arg26[%c7_419, %c0_420, %c0_421] : memref<9x112x112xbf16, #tpu.memory_space<vmem>>, vector<1x112x112xbf16>
    %476 = vector.shape_cast %475 : vector<1x112x112xbf16> to vector<112x112xbf16>
    %477 = arith.truncf %474 : vector<14x112xf32> to vector<14x112xbf16>
    %cst_422 = arith.constant dense<0.000000e+00> : vector<14x112xf32>
    %478 = tpu.matmul %477, %476, %cst_422 {dimension_numbers = #tpu.dot_dimension_numbers<[1], [0], [0], [1], [0, 0, 1, 1], [], []>} : vector<14x112xbf16>, vector<112x112xbf16>, vector<14x112xf32> -> vector<14x112xf32>
    %479 = arith.addf %471, %478 : vector<14x112xf32>
    %c8_423 = arith.constant 8 : index
    %c0_424 = arith.constant 0 : index
    %c0_425 = arith.constant 0 : index
    %480 = vector.load %arg25[%c8_423, %c0_424, %c0_425] : memref<9x14x7xbf16, #tpu.memory_space<vmem>>, vector<1x14x7xbf16>
    %481 = vector.shape_cast %480 : vector<1x14x7xbf16> to vector<14x7xbf16>
    %cst_426 = arith.constant dense<0.000000e+00> : vector<14x112xf32>
    %482 = tpu.matmul %481, %414, %cst_426 {dimension_numbers = #tpu.dot_dimension_numbers<[1], [0], [0], [1], [0, 0, 1, 1], [], []>} : vector<14x7xbf16>, vector<7x112xbf16>, vector<14x112xf32> -> vector<14x112xf32>
    %c8_427 = arith.constant 8 : index
    %c0_428 = arith.constant 0 : index
    %c0_429 = arith.constant 0 : index
    %483 = vector.load %arg26[%c8_427, %c0_428, %c0_429] : memref<9x112x112xbf16, #tpu.memory_space<vmem>>, vector<1x112x112xbf16>
    %484 = vector.shape_cast %483 : vector<1x112x112xbf16> to vector<112x112xbf16>
    %485 = arith.truncf %482 : vector<14x112xf32> to vector<14x112xbf16>
    %cst_430 = arith.constant dense<0.000000e+00> : vector<14x112xf32>
    %486 = tpu.matmul %485, %484, %cst_430 {dimension_numbers = #tpu.dot_dimension_numbers<[1], [0], [0], [1], [0, 0, 1, 1], [], []>} : vector<14x112xbf16>, vector<112x112xbf16>, vector<14x112xf32> -> vector<14x112xf32>
    %487 = arith.addf %479, %486 : vector<14x112xf32>
    %c0_431 = arith.constant 0 : index
    %c0_432 = arith.constant 0 : index
    %488 = vector.load %arg27[%c0_431, %c0_432] : memref<1x112xf32, #tpu.memory_space<vmem>>, vector<1x112xf32>
    %489 = vector.broadcast %488 : vector<1x112xf32> to vector<14x112xf32>
    %490 = arith.addf %487, %489 : vector<14x112xf32>
    %cst_433 = arith.constant 0.000000e+00 : f32
    %491 = vector.broadcast %cst_433 : f32 to vector<14x112xf32>
    %492 = arith.maximumf %490, %491 : vector<14x112xf32>
    %493 = arith.truncf %492 : vector<14x112xf32> to vector<14x112xbf16>
    %cst_434 = arith.constant 0.000000e+00 : f32
    %494 = vector.broadcast %cst_434 : f32 to vector<28x28xf32>
    %c0_435 = arith.constant 0 : index
    %c0_436 = arith.constant 0 : index
    %c0_437 = arith.constant 0 : index
    %495 = vector.load %arg28[%c0_435, %c0_436, %c0_437] : memref<9x28x14xbf16, #tpu.memory_space<vmem>>, vector<1x28x14xbf16>
    %496 = vector.shape_cast %495 : vector<1x28x14xbf16> to vector<28x14xbf16>
    %cst_438 = arith.constant dense<0.000000e+00> : vector<28x112xf32>
    %497 = tpu.matmul %496, %493, %cst_438 {dimension_numbers = #tpu.dot_dimension_numbers<[1], [0], [0], [1], [0, 0, 1, 1], [], []>} : vector<28x14xbf16>, vector<14x112xbf16>, vector<28x112xf32> -> vector<28x112xf32>
    %c0_439 = arith.constant 0 : index
    %c0_440 = arith.constant 0 : index
    %c0_441 = arith.constant 0 : index
    %498 = vector.load %arg29[%c0_439, %c0_440, %c0_441] : memref<9x112x28xbf16, #tpu.memory_space<vmem>>, vector<1x112x28xbf16>
    %499 = vector.shape_cast %498 : vector<1x112x28xbf16> to vector<112x28xbf16>
    %500 = arith.truncf %497 : vector<28x112xf32> to vector<28x112xbf16>
    %cst_442 = arith.constant dense<0.000000e+00> : vector<28x28xf32>
    %501 = tpu.matmul %500, %499, %cst_442 {dimension_numbers = #tpu.dot_dimension_numbers<[1], [0], [0], [1], [0, 0, 1, 1], [], []>} : vector<28x112xbf16>, vector<112x28xbf16>, vector<28x28xf32> -> vector<28x28xf32>
    %502 = arith.addf %494, %501 : vector<28x28xf32>
    %c1_443 = arith.constant 1 : index
    %c0_444 = arith.constant 0 : index
    %c0_445 = arith.constant 0 : index
    %503 = vector.load %arg28[%c1_443, %c0_444, %c0_445] : memref<9x28x14xbf16, #tpu.memory_space<vmem>>, vector<1x28x14xbf16>
    %504 = vector.shape_cast %503 : vector<1x28x14xbf16> to vector<28x14xbf16>
    %cst_446 = arith.constant dense<0.000000e+00> : vector<28x112xf32>
    %505 = tpu.matmul %504, %493, %cst_446 {dimension_numbers = #tpu.dot_dimension_numbers<[1], [0], [0], [1], [0, 0, 1, 1], [], []>} : vector<28x14xbf16>, vector<14x112xbf16>, vector<28x112xf32> -> vector<28x112xf32>
    %c1_447 = arith.constant 1 : index
    %c0_448 = arith.constant 0 : index
    %c0_449 = arith.constant 0 : index
    %506 = vector.load %arg29[%c1_447, %c0_448, %c0_449] : memref<9x112x28xbf16, #tpu.memory_space<vmem>>, vector<1x112x28xbf16>
    %507 = vector.shape_cast %506 : vector<1x112x28xbf16> to vector<112x28xbf16>
    %508 = arith.truncf %505 : vector<28x112xf32> to vector<28x112xbf16>
    %cst_450 = arith.constant dense<0.000000e+00> : vector<28x28xf32>
    %509 = tpu.matmul %508, %507, %cst_450 {dimension_numbers = #tpu.dot_dimension_numbers<[1], [0], [0], [1], [0, 0, 1, 1], [], []>} : vector<28x112xbf16>, vector<112x28xbf16>, vector<28x28xf32> -> vector<28x28xf32>
    %510 = arith.addf %502, %509 : vector<28x28xf32>
    %c2_451 = arith.constant 2 : index
    %c0_452 = arith.constant 0 : index
    %c0_453 = arith.constant 0 : index
    %511 = vector.load %arg28[%c2_451, %c0_452, %c0_453] : memref<9x28x14xbf16, #tpu.memory_space<vmem>>, vector<1x28x14xbf16>
    %512 = vector.shape_cast %511 : vector<1x28x14xbf16> to vector<28x14xbf16>
    %cst_454 = arith.constant dense<0.000000e+00> : vector<28x112xf32>
    %513 = tpu.matmul %512, %493, %cst_454 {dimension_numbers = #tpu.dot_dimension_numbers<[1], [0], [0], [1], [0, 0, 1, 1], [], []>} : vector<28x14xbf16>, vector<14x112xbf16>, vector<28x112xf32> -> vector<28x112xf32>
    %c2_455 = arith.constant 2 : index
    %c0_456 = arith.constant 0 : index
    %c0_457 = arith.constant 0 : index
    %514 = vector.load %arg29[%c2_455, %c0_456, %c0_457] : memref<9x112x28xbf16, #tpu.memory_space<vmem>>, vector<1x112x28xbf16>
    %515 = vector.shape_cast %514 : vector<1x112x28xbf16> to vector<112x28xbf16>
    %516 = arith.truncf %513 : vector<28x112xf32> to vector<28x112xbf16>
    %cst_458 = arith.constant dense<0.000000e+00> : vector<28x28xf32>
    %517 = tpu.matmul %516, %515, %cst_458 {dimension_numbers = #tpu.dot_dimension_numbers<[1], [0], [0], [1], [0, 0, 1, 1], [], []>} : vector<28x112xbf16>, vector<112x28xbf16>, vector<28x28xf32> -> vector<28x28xf32>
    %518 = arith.addf %510, %517 : vector<28x28xf32>
    %c3_459 = arith.constant 3 : index
    %c0_460 = arith.constant 0 : index
    %c0_461 = arith.constant 0 : index
    %519 = vector.load %arg28[%c3_459, %c0_460, %c0_461] : memref<9x28x14xbf16, #tpu.memory_space<vmem>>, vector<1x28x14xbf16>
    %520 = vector.shape_cast %519 : vector<1x28x14xbf16> to vector<28x14xbf16>
    %cst_462 = arith.constant dense<0.000000e+00> : vector<28x112xf32>
    %521 = tpu.matmul %520, %493, %cst_462 {dimension_numbers = #tpu.dot_dimension_numbers<[1], [0], [0], [1], [0, 0, 1, 1], [], []>} : vector<28x14xbf16>, vector<14x112xbf16>, vector<28x112xf32> -> vector<28x112xf32>
    %c3_463 = arith.constant 3 : index
    %c0_464 = arith.constant 0 : index
    %c0_465 = arith.constant 0 : index
    %522 = vector.load %arg29[%c3_463, %c0_464, %c0_465] : memref<9x112x28xbf16, #tpu.memory_space<vmem>>, vector<1x112x28xbf16>
    %523 = vector.shape_cast %522 : vector<1x112x28xbf16> to vector<112x28xbf16>
    %524 = arith.truncf %521 : vector<28x112xf32> to vector<28x112xbf16>
    %cst_466 = arith.constant dense<0.000000e+00> : vector<28x28xf32>
    %525 = tpu.matmul %524, %523, %cst_466 {dimension_numbers = #tpu.dot_dimension_numbers<[1], [0], [0], [1], [0, 0, 1, 1], [], []>} : vector<28x112xbf16>, vector<112x28xbf16>, vector<28x28xf32> -> vector<28x28xf32>
    %526 = arith.addf %518, %525 : vector<28x28xf32>
    %c4_467 = arith.constant 4 : index
    %c0_468 = arith.constant 0 : index
    %c0_469 = arith.constant 0 : index
    %527 = vector.load %arg28[%c4_467, %c0_468, %c0_469] : memref<9x28x14xbf16, #tpu.memory_space<vmem>>, vector<1x28x14xbf16>
    %528 = vector.shape_cast %527 : vector<1x28x14xbf16> to vector<28x14xbf16>
    %cst_470 = arith.constant dense<0.000000e+00> : vector<28x112xf32>
    %529 = tpu.matmul %528, %493, %cst_470 {dimension_numbers = #tpu.dot_dimension_numbers<[1], [0], [0], [1], [0, 0, 1, 1], [], []>} : vector<28x14xbf16>, vector<14x112xbf16>, vector<28x112xf32> -> vector<28x112xf32>
    %c4_471 = arith.constant 4 : index
    %c0_472 = arith.constant 0 : index
    %c0_473 = arith.constant 0 : index
    %530 = vector.load %arg29[%c4_471, %c0_472, %c0_473] : memref<9x112x28xbf16, #tpu.memory_space<vmem>>, vector<1x112x28xbf16>
    %531 = vector.shape_cast %530 : vector<1x112x28xbf16> to vector<112x28xbf16>
    %532 = arith.truncf %529 : vector<28x112xf32> to vector<28x112xbf16>
    %cst_474 = arith.constant dense<0.000000e+00> : vector<28x28xf32>
    %533 = tpu.matmul %532, %531, %cst_474 {dimension_numbers = #tpu.dot_dimension_numbers<[1], [0], [0], [1], [0, 0, 1, 1], [], []>} : vector<28x112xbf16>, vector<112x28xbf16>, vector<28x28xf32> -> vector<28x28xf32>
    %534 = arith.addf %526, %533 : vector<28x28xf32>
    %c5_475 = arith.constant 5 : index
    %c0_476 = arith.constant 0 : index
    %c0_477 = arith.constant 0 : index
    %535 = vector.load %arg28[%c5_475, %c0_476, %c0_477] : memref<9x28x14xbf16, #tpu.memory_space<vmem>>, vector<1x28x14xbf16>
    %536 = vector.shape_cast %535 : vector<1x28x14xbf16> to vector<28x14xbf16>
    %cst_478 = arith.constant dense<0.000000e+00> : vector<28x112xf32>
    %537 = tpu.matmul %536, %493, %cst_478 {dimension_numbers = #tpu.dot_dimension_numbers<[1], [0], [0], [1], [0, 0, 1, 1], [], []>} : vector<28x14xbf16>, vector<14x112xbf16>, vector<28x112xf32> -> vector<28x112xf32>
    %c5_479 = arith.constant 5 : index
    %c0_480 = arith.constant 0 : index
    %c0_481 = arith.constant 0 : index
    %538 = vector.load %arg29[%c5_479, %c0_480, %c0_481] : memref<9x112x28xbf16, #tpu.memory_space<vmem>>, vector<1x112x28xbf16>
    %539 = vector.shape_cast %538 : vector<1x112x28xbf16> to vector<112x28xbf16>
    %540 = arith.truncf %537 : vector<28x112xf32> to vector<28x112xbf16>
    %cst_482 = arith.constant dense<0.000000e+00> : vector<28x28xf32>
    %541 = tpu.matmul %540, %539, %cst_482 {dimension_numbers = #tpu.dot_dimension_numbers<[1], [0], [0], [1], [0, 0, 1, 1], [], []>} : vector<28x112xbf16>, vector<112x28xbf16>, vector<28x28xf32> -> vector<28x28xf32>
    %542 = arith.addf %534, %541 : vector<28x28xf32>
    %c6_483 = arith.constant 6 : index
    %c0_484 = arith.constant 0 : index
    %c0_485 = arith.constant 0 : index
    %543 = vector.load %arg28[%c6_483, %c0_484, %c0_485] : memref<9x28x14xbf16, #tpu.memory_space<vmem>>, vector<1x28x14xbf16>
    %544 = vector.shape_cast %543 : vector<1x28x14xbf16> to vector<28x14xbf16>
    %cst_486 = arith.constant dense<0.000000e+00> : vector<28x112xf32>
    %545 = tpu.matmul %544, %493, %cst_486 {dimension_numbers = #tpu.dot_dimension_numbers<[1], [0], [0], [1], [0, 0, 1, 1], [], []>} : vector<28x14xbf16>, vector<14x112xbf16>, vector<28x112xf32> -> vector<28x112xf32>
    %c6_487 = arith.constant 6 : index
    %c0_488 = arith.constant 0 : index
    %c0_489 = arith.constant 0 : index
    %546 = vector.load %arg29[%c6_487, %c0_488, %c0_489] : memref<9x112x28xbf16, #tpu.memory_space<vmem>>, vector<1x112x28xbf16>
    %547 = vector.shape_cast %546 : vector<1x112x28xbf16> to vector<112x28xbf16>
    %548 = arith.truncf %545 : vector<28x112xf32> to vector<28x112xbf16>
    %cst_490 = arith.constant dense<0.000000e+00> : vector<28x28xf32>
    %549 = tpu.matmul %548, %547, %cst_490 {dimension_numbers = #tpu.dot_dimension_numbers<[1], [0], [0], [1], [0, 0, 1, 1], [], []>} : vector<28x112xbf16>, vector<112x28xbf16>, vector<28x28xf32> -> vector<28x28xf32>
    %550 = arith.addf %542, %549 : vector<28x28xf32>
    %c7_491 = arith.constant 7 : index
    %c0_492 = arith.constant 0 : index
    %c0_493 = arith.constant 0 : index
    %551 = vector.load %arg28[%c7_491, %c0_492, %c0_493] : memref<9x28x14xbf16, #tpu.memory_space<vmem>>, vector<1x28x14xbf16>
    %552 = vector.shape_cast %551 : vector<1x28x14xbf16> to vector<28x14xbf16>
    %cst_494 = arith.constant dense<0.000000e+00> : vector<28x112xf32>
    %553 = tpu.matmul %552, %493, %cst_494 {dimension_numbers = #tpu.dot_dimension_numbers<[1], [0], [0], [1], [0, 0, 1, 1], [], []>} : vector<28x14xbf16>, vector<14x112xbf16>, vector<28x112xf32> -> vector<28x112xf32>
    %c7_495 = arith.constant 7 : index
    %c0_496 = arith.constant 0 : index
    %c0_497 = arith.constant 0 : index
    %554 = vector.load %arg29[%c7_495, %c0_496, %c0_497] : memref<9x112x28xbf16, #tpu.memory_space<vmem>>, vector<1x112x28xbf16>
    %555 = vector.shape_cast %554 : vector<1x112x28xbf16> to vector<112x28xbf16>
    %556 = arith.truncf %553 : vector<28x112xf32> to vector<28x112xbf16>
    %cst_498 = arith.constant dense<0.000000e+00> : vector<28x28xf32>
    %557 = tpu.matmul %556, %555, %cst_498 {dimension_numbers = #tpu.dot_dimension_numbers<[1], [0], [0], [1], [0, 0, 1, 1], [], []>} : vector<28x112xbf16>, vector<112x28xbf16>, vector<28x28xf32> -> vector<28x28xf32>
    %558 = arith.addf %550, %557 : vector<28x28xf32>
    %c8_499 = arith.constant 8 : index
    %c0_500 = arith.constant 0 : index
    %c0_501 = arith.constant 0 : index
    %559 = vector.load %arg28[%c8_499, %c0_500, %c0_501] : memref<9x28x14xbf16, #tpu.memory_space<vmem>>, vector<1x28x14xbf16>
    %560 = vector.shape_cast %559 : vector<1x28x14xbf16> to vector<28x14xbf16>
    %cst_502 = arith.constant dense<0.000000e+00> : vector<28x112xf32>
    %561 = tpu.matmul %560, %493, %cst_502 {dimension_numbers = #tpu.dot_dimension_numbers<[1], [0], [0], [1], [0, 0, 1, 1], [], []>} : vector<28x14xbf16>, vector<14x112xbf16>, vector<28x112xf32> -> vector<28x112xf32>
    %c8_503 = arith.constant 8 : index
    %c0_504 = arith.constant 0 : index
    %c0_505 = arith.constant 0 : index
    %562 = vector.load %arg29[%c8_503, %c0_504, %c0_505] : memref<9x112x28xbf16, #tpu.memory_space<vmem>>, vector<1x112x28xbf16>
    %563 = vector.shape_cast %562 : vector<1x112x28xbf16> to vector<112x28xbf16>
    %564 = arith.truncf %561 : vector<28x112xf32> to vector<28x112xbf16>
    %cst_506 = arith.constant dense<0.000000e+00> : vector<28x28xf32>
    %565 = tpu.matmul %564, %563, %cst_506 {dimension_numbers = #tpu.dot_dimension_numbers<[1], [0], [0], [1], [0, 0, 1, 1], [], []>} : vector<28x112xbf16>, vector<112x28xbf16>, vector<28x28xf32> -> vector<28x28xf32>
    %566 = arith.addf %558, %565 : vector<28x28xf32>
    %c0_507 = arith.constant 0 : index
    %c0_508 = arith.constant 0 : index
    %567 = vector.load %arg30[%c0_507, %c0_508] : memref<1x28xf32, #tpu.memory_space<vmem>>, vector<1x28xf32>
    %568 = vector.broadcast %567 : vector<1x28xf32> to vector<28x28xf32>
    %569 = arith.addf %566, %568 : vector<28x28xf32>
    %570 = arith.negf %569 : vector<28x28xf32>
    %571 = math.exp %570 : vector<28x28xf32>
    %cst_509 = arith.constant 1.000000e+00 : f32
    %572 = vector.broadcast %cst_509 : f32 to vector<28x28xf32>
    %573 = arith.addf %572, %571 : vector<28x28xf32>
    %574 = arith.divf %572, %573 : vector<28x28xf32>
    %c0_510 = arith.constant 0 : index
    %c0_511 = arith.constant 0 : index
    %c0_512 = arith.constant 0 : index
    %575 = vector.load %arg31[%c0_510, %c0_511, %c0_512] : memref<1x28x28xf32, #tpu.memory_space<vmem>>, vector<1x28x28xf32>
    %576 = vector.shape_cast %575 : vector<1x28x28xf32> to vector<28x28xf32>
    %577 = vector.shape_cast %574 : vector<28x28xf32> to vector<1x28x28xf32>
    tpu.vector_store %arg31[%c0_510, %c0_511, %c0_512], %577 {strides = array<i32>} : memref<1x28x28xf32, #tpu.memory_space<vmem>>, vector<1x28x28xf32>,
    return
  }
  func.func @transform_0(%arg0: i32) -> (i32, i32, i32) {
    %c0_i32 = arith.constant 0 : i32
    %c0_i32_0 = arith.constant 0 : i32
    %c0_i32_1 = arith.constant 0 : i32
    return %arg0, %c0_i32, %c0_i32_0 : i32, i32, i32
  }
  func.func @transform_1(%arg0: i32) -> (i32, i32, i32) {
    %c0_i32 = arith.constant 0 : i32
    %c0_i32_0 = arith.constant 0 : i32
    %c0_i32_1 = arith.constant 0 : i32
    return %arg0, %c0_i32, %c0_i32_0 : i32, i32, i32
  }
  func.func @transform_2(%arg0: i32) -> (i32, i32, i32) {
    %c0_i32 = arith.constant 0 : i32
    %c0_i32_0 = arith.constant 0 : i32
    %c0_i32_1 = arith.constant 0 : i32
    %c0_i32_2 = arith.constant 0 : i32
    return %c0_i32, %c0_i32_0, %c0_i32_1 : i32, i32, i32
  }
  func.func @transform_3(%arg0: i32) -> (i32, i32, i32) {
    %c0_i32 = arith.constant 0 : i32
    %c0_i32_0 = arith.constant 0 : i32
    %c0_i32_1 = arith.constant 0 : i32
    %c0_i32_2 = arith.constant 0 : i32
    return %c0_i32, %c0_i32_0, %c0_i32_1 : i32, i32, i32
  }
  func.func @transform_4(%arg0: i32) -> (i32, i32) {
    %c0_i32 = arith.constant 0 : i32
    %c0_i32_0 = arith.constant 0 : i32
    %c0_i32_1 = arith.constant 0 : i32
    return %c0_i32, %c0_i32_0 : i32, i32
  }
  func.func @transform_5(%arg0: i32) -> (i32, i32, i32) {
    %c0_i32 = arith.constant 0 : i32
    %c0_i32_0 = arith.constant 0 : i32
    %c0_i32_1 = arith.constant 0 : i32
    %c0_i32_2 = arith.constant 0 : i32
    return %c0_i32, %c0_i32_0, %c0_i32_1 : i32, i32, i32
  }
  func.func @transform_6(%arg0: i32) -> (i32, i32, i32) {
    %c0_i32 = arith.constant 0 : i32
    %c0_i32_0 = arith.constant 0 : i32
    %c0_i32_1 = arith.constant 0 : i32
    %c0_i32_2 = arith.constant 0 : i32
    return %c0_i32, %c0_i32_0, %c0_i32_1 : i32, i32, i32
  }
  func.func @transform_7(%arg0: i32) -> (i32, i32) {
    %c0_i32 = arith.constant 0 : i32
    %c0_i32_0 = arith.constant 0 : i32
    %c0_i32_1 = arith.constant 0 : i32
    return %c0_i32, %c0_i32_0 : i32, i32
  }
  func.func @transform_8(%arg0: i32) -> (i32, i32, i32) {
    %c0_i32 = arith.constant 0 : i32
    %c0_i32_0 = arith.constant 0 : i32
    %c0_i32_1 = arith.constant 0 : i32
    %c0_i32_2 = arith.constant 0 : i32
    return %c0_i32, %c0_i32_0, %c0_i32_1 : i32, i32, i32
  }
  func.func @transform_9(%arg0: i32) -> (i32, i32, i32) {
    %c0_i32 = arith.constant 0 : i32
    %c0_i32_0 = arith.constant 0 : i32
    %c0_i32_1 = arith.constant 0 : i32
    %c0_i32_2 = arith.constant 0 : i32
    return %c0_i32, %c0_i32_0, %c0_i32_1 : i32, i32, i32
  }
  func.func @transform_10(%arg0: i32) -> (i32, i32) {
    %c0_i32 = arith.constant 0 : i32
    %c0_i32_0 = arith.constant 0 : i32
    %c0_i32_1 = arith.constant 0 : i32
    return %c0_i32, %c0_i32_0 : i32, i32
  }
  func.func @transform_11(%arg0: i32) -> (i32, i32, i32) {
    %c0_i32 = arith.constant 0 : i32
    %c0_i32_0 = arith.constant 0 : i32
    %c0_i32_1 = arith.constant 0 : i32
    %c0_i32_2 = arith.constant 0 : i32
    return %c0_i32, %c0_i32_0, %c0_i32_1 : i32, i32, i32
  }
  func.func @transform_12(%arg0: i32) -> (i32, i32) {
    %c0_i32 = arith.constant 0 : i32
    %c0_i32_0 = arith.constant 0 : i32
    %c0_i32_1 = arith.constant 0 : i32
    return %c0_i32, %c0_i32_0 : i32, i32
  }
  func.func @transform_13(%arg0: i32) -> (i32, i32) {
    %c0_i32 = arith.constant 0 : i32
    %c0_i32_0 = arith.constant 0 : i32
    %c0_i32_1 = arith.constant 0 : i32
    return %c0_i32, %c0_i32_0 : i32, i32
  }
  func.func @transform_14(%arg0: i32) -> (i32, i32) {
    %c0_i32 = arith.constant 0 : i32
    %c0_i32_0 = arith.constant 0 : i32
    %c0_i32_1 = arith.constant 0 : i32
    return %c0_i32, %c0_i32_0 : i32, i32
  }
  func.func @transform_15(%arg0: i32) -> (i32, i32) {
    %c0_i32 = arith.constant 0 : i32
    %c0_i32_0 = arith.constant 0 : i32
    %c0_i32_1 = arith.constant 0 : i32
    return %c0_i32, %c0_i32_0 : i32, i32
  }
  func.func @transform_16(%arg0: i32) -> (i32, i32) {
    %c0_i32 = arith.constant 0 : i32
    %c0_i32_0 = arith.constant 0 : i32
    %c0_i32_1 = arith.constant 0 : i32
    return %c0_i32, %c0_i32_0 : i32, i32
  }
  func.func @transform_17(%arg0: i32) -> (i32, i32) {
    %c0_i32 = arith.constant 0 : i32
    %c0_i32_0 = arith.constant 0 : i32
    %c0_i32_1 = arith.constant 0 : i32
    return %c0_i32, %c0_i32_0 : i32, i32
  }
  func.func @transform_18(%arg0: i32) -> (i32, i32) {
    %c0_i32 = arith.constant 0 : i32
    %c0_i32_0 = arith.constant 0 : i32
    %c0_i32_1 = arith.constant 0 : i32
    return %c0_i32, %c0_i32_0 : i32, i32
  }
  func.func @transform_19(%arg0: i32) -> (i32, i32, i32) {
    %c0_i32 = arith.constant 0 : i32
    %c0_i32_0 = arith.constant 0 : i32
    %c0_i32_1 = arith.constant 0 : i32
    %c0_i32_2 = arith.constant 0 : i32
    return %c0_i32, %c0_i32_0, %c0_i32_1 : i32, i32, i32
  }
  func.func @transform_20(%arg0: i32) -> (i32, i32, i32) {
    %c0_i32 = arith.constant 0 : i32
    %c0_i32_0 = arith.constant 0 : i32
    %c0_i32_1 = arith.constant 0 : i32
    %c0_i32_2 = arith.constant 0 : i32
    return %c0_i32, %c0_i32_0, %c0_i32_1 : i32, i32, i32
  }
  func.func @transform_21(%arg0: i32) -> (i32, i32, i32) {
    %c0_i32 = arith.constant 0 : i32
    %c0_i32_0 = arith.constant 0 : i32
    %c0_i32_1 = arith.constant 0 : i32
    %c0_i32_2 = arith.constant 0 : i32
    return %c0_i32, %c0_i32_0, %c0_i32_1 : i32, i32, i32
  }
  func.func @transform_22(%arg0: i32) -> (i32, i32, i32) {
    %c0_i32 = arith.constant 0 : i32
    %c0_i32_0 = arith.constant 0 : i32
    %c0_i32_1 = arith.constant 0 : i32
    %c0_i32_2 = arith.constant 0 : i32
    return %c0_i32, %c0_i32_0, %c0_i32_1 : i32, i32, i32
  }
  func.func @transform_23(%arg0: i32) -> (i32, i32) {
    %c0_i32 = arith.constant 0 : i32
    %c0_i32_0 = arith.constant 0 : i32
    %c0_i32_1 = arith.constant 0 : i32
    return %c0_i32, %c0_i32_0 : i32, i32
  }
  func.func @transform_24(%arg0: i32) -> (i32, i32, i32) {
    %c0_i32 = arith.constant 0 : i32
    %c0_i32_0 = arith.constant 0 : i32
    %c0_i32_1 = arith.constant 0 : i32
    %c0_i32_2 = arith.constant 0 : i32
    return %c0_i32, %c0_i32_0, %c0_i32_1 : i32, i32, i32
  }
  func.func @transform_25(%arg0: i32) -> (i32, i32, i32) {
    %c0_i32 = arith.constant 0 : i32
    %c0_i32_0 = arith.constant 0 : i32
    %c0_i32_1 = arith.constant 0 : i32
    %c0_i32_2 = arith.constant 0 : i32
    return %c0_i32, %c0_i32_0, %c0_i32_1 : i32, i32, i32
  }
  func.func @transform_26(%arg0: i32) -> (i32, i32) {
    %c0_i32 = arith.constant 0 : i32
    %c0_i32_0 = arith.constant 0 : i32
    %c0_i32_1 = arith.constant 0 : i32
    return %c0_i32, %c0_i32_0 : i32, i32
  }
  func.func @transform_27(%arg0: i32) -> (i32, i32, i32) {
    %c0_i32 = arith.constant 0 : i32
    %c0_i32_0 = arith.constant 0 : i32
    %c0_i32_1 = arith.constant 0 : i32
    %c0_i32_2 = arith.constant 0 : i32
    return %c0_i32, %c0_i32_0, %c0_i32_1 : i32, i32, i32
  }
  func.func @transform_28(%arg0: i32) -> (i32, i32, i32) {
    %c0_i32 = arith.constant 0 : i32
    %c0_i32_0 = arith.constant 0 : i32
    %c0_i32_1 = arith.constant 0 : i32
    %c0_i32_2 = arith.constant 0 : i32
    return %c0_i32, %c0_i32_0, %c0_i32_1 : i32, i32, i32
  }
  func.func @transform_29(%arg0: i32) -> (i32, i32) {
    %c0_i32 = arith.constant 0 : i32
    %c0_i32_0 = arith.constant 0 : i32
    %c0_i32_1 = arith.constant 0 : i32
    return %c0_i32, %c0_i32_0 : i32, i32
  }
  func.func @transform_30(%arg0: i32) -> (i32, i32, i32) {
    %c0_i32 = arith.constant 0 : i32
    %c0_i32_0 = arith.constant 0 : i32
    %c0_i32_1 = arith.constant 0 : i32
    return %arg0, %c0_i32, %c0_i32_0 : i32, i32, i32
  }
}

</mosaic_0001>

<llo_original>
// kernel: vae_forward.1
$region0: #{vae_forward.1}
  #allocation0 [shape = 'u32[]', space=smem, size = 0x4, offset = 0x4, fixed_abs, tag = 'smem constant byte address 0x4 - core index']
  #allocation1 [shape = 'u32[72,128]{1,0:T(1,128)}', space=vmem, size = 0x9000, scoped, tag = 'internal scratch']
  %s0 = inlined_call_operand.smem [shape: u32[31], index: -1, kind: input, shape index: {}]
  %s1 = sld [smem:[%s0]]
  %s2 = scalar_lea.smem %s0, 1
  %s3 = sld [smem:[%s2]]
  %s4 = scalar_lea.smem %s0, 2
  %s5 = sld [smem:[%s4]]
  %s6 = scalar_lea.smem %s0, 3
  %s7 = sld [smem:[%s6]]
  %s8 = scalar_lea.smem %s0, 4
  %s9 = sld [smem:[%s8]]
  %s10 = scalar_lea.smem %s0, 5
  %s11 = sld [smem:[%s10]]
  %s12 = scalar_lea.smem %s0, 6
  %s13 = sld [smem:[%s12]]
  %s14 = scalar_lea.smem %s0, 7
  %s15 = sld [smem:[%s14]]
  %s16 = scalar_lea.smem %s0, 8
  %s17 = sld [smem:[%s16]]
  %s18 = scalar_lea.smem %s0, 9
  %s19 = sld [smem:[%s18]]
  %s20 = scalar_lea.smem %s0, 10
  %s21 = sld [smem:[%s20]]
  %s22 = scalar_lea.smem %s0, 11
  %s23 = sld [smem:[%s22]]
  %s24 = scalar_lea.smem %s0, 12
  %s25 = sld [smem:[%s24]]
  %s26 = scalar_lea.smem %s0, 13
  %s27 = sld [smem:[%s26]]
  %s28 = scalar_lea.smem %s0, 14
  %s29 = sld [smem:[%s28]]
  %s30 = scalar_lea.smem %s0, 15
  %s31 = sld [smem:[%s30]]
  %s32 = scalar_lea.smem %s0, 16
  %s33 = sld [smem:[%s32]]
  %s34 = scalar_lea.smem %s0, 17
  %s35 = sld [smem:[%s34]]
  %s36 = scalar_lea.smem %s0, 18
  %s37 = sld [smem:[%s36]]
  %s38 = scalar_lea.smem %s0, 19
  %s39 = sld [smem:[%s38]]
  %s40 = scalar_lea.smem %s0, 20
  %s41 = sld [smem:[%s40]]
  %s42 = scalar_lea.smem %s0, 21
  %s43 = sld [smem:[%s42]]
  %s44 = scalar_lea.smem %s0, 22
  %s45 = sld [smem:[%s44]]
  %s46 = scalar_lea.smem %s0, 23
  %s47 = sld [smem:[%s46]]
  %s48 = scalar_lea.smem %s0, 24
  %s49 = sld [smem:[%s48]]
  %s50 = scalar_lea.smem %s0, 25
  %s51 = sld [smem:[%s50]]
  %s52 = scalar_lea.smem %s0, 26
  %s53 = sld [smem:[%s52]]
  %s54 = scalar_lea.smem %s0, 27
  %s55 = sld [smem:[%s54]]
  %s56 = scalar_lea.smem %s0, 28
  %s57 = sld [smem:[%s56]]
  %s58 = scalar_lea.smem %s0, 29
  %s59 = sld [smem:[%s58]]
  %s60 = scalar_lea.smem %s0, 30
  %s61 = sld [smem:[%s60]]
  %s62 = sld [smem:[#allocation0]]
  $region189: #{vae_forward.1} parent=0
    _
  %s64 = ssub.s32 1, %s62
  %s65 = scalar_select 0, %s64, %s62
  $region1: #{vae_forward.1} parent=0
    #allocation2 [shape = 'u8[18432]{0}', space=vmem, size = 0x4800, scoped, tag = 'input window, operand 5, single buffered']
    #allocation3 [shape = 's32[2]{0}', space=sflag, size = 0x8, scoped, tag = 'scoped memory for vae_forward.1']
    #allocation4 [shape = 'u8[73728]{0}', space=vmem, size = 0x12000, scoped, tag = 'input window, operand 11, single buffered']
    #allocation5 [shape = 's32[1]{0}', space=sflag, size = 0x4, scoped, tag = 'scoped memory for vae_forward.1']
    #allocation6 [shape = 'u8[512]{0}', space=vmem, size = 0x400, scoped, tag = 'input window, operand 14, single buffered']
    #allocation7 [shape = 'u8[512]{0}', space=vmem, size = 0x400, scoped, tag = 'input window, operand 16, single buffered']
    #allocation8 [shape = 's32[1]{0}', space=sflag, size = 0x4, scoped, tag = 'scoped memory for vae_forward.1']
    #allocation9 [shape = 'u8[512]{0}', space=vmem, size = 0x400, scoped, tag = 'input window, operand 18, single buffered']
    #allocation10 [shape = 'u8[49152]{0}', space=vmem, size = 0xc000, scoped, tag = 'input window, operand 19, single buffered']
    #allocation11 [shape = 's32[1]{0}', space=sflag, size = 0x4, scoped, tag = 'scoped memory for vae_forward.1']
    #allocation12 [shape = 'u8[512]{0}', space=vmem, size = 0x400, scoped, tag = 'input window, operand 23, single buffered']
    #allocation13 [shape = 'u8[512]{0}', space=vmem, size = 0x400, scoped, tag = 'input window, operand 26, single buffered']
    #allocation14 [shape = 's32[1]{0}', space=sflag, size = 0x4, scoped, tag = 'scoped memory for vae_forward.1']
    #allocation15 [shape = 'u8[512]{0}', space=vmem, size = 0x400, scoped, tag = 'input window, operand 29, single buffered']
    %66 = vsyncpa [#allocation3], 0
    %67 = vsyncpa [#allocation5], 0
    %68 = vsyncpa [#allocation8], 0
    %69 = vsyncpa [#allocation11], 0
    %70 = vsyncpa [#allocation14], 0
    loop: start=0, step=1, limit=4
    $region2: #{vae_forward.1} parent=1 // loop_pre_header
      _
    $region3: #{vae_forward.1} parent=1 // loop_header
      %s72 = sphi 0, %s76
      %p73 = scmp.ge.s32.totalorder %s72, 4
      %s82 = sphi 0, %s84
      %s85 = sphi 0, %s82
      %s86 = sphi 0, %s85
      %s102 = sphi 0, %s86
      %s108 = sphi 0, %s110
      %s111 = sphi 0, %s108
      %s112 = sphi 0, %s111
      %s128 = sphi 0, %s112
      %s132 = sphi 0, %s132
      %s134 = sphi 0, %s132
      %s135 = sphi 0, %s134
      %s149 = sphi 0, %s135
      %s153 = sphi 0, %s153
      %s155 = sphi 0, %s153
      %s156 = sphi 0, %s155
      %s170 = sphi 0, %s156
      %s174 = sphi 0, %s174
      %s176 = sphi 0, %s174
      %s177 = sphi 0, %s176
      %s191 = sphi 0, %s177
      %s195 = sphi 0, %s195
      %s197 = sphi 0, %s195
      %s198 = sphi 0, %s197
      %s212 = sphi 0, %s198
      %s216 = sphi 0, %s216
      %s218 = sphi 0, %s216
      %s219 = sphi 0, %s218
      %s233 = sphi 0, %s219
      %s237 = sphi 0, %s237
      %s239 = sphi 0, %s237
      %s240 = sphi 0, %s239
      %s254 = sphi 0, %s240
      %s258 = sphi 0, %s258
      %s260 = sphi 0, %s258
      %s261 = sphi 0, %s260
      %s275 = sphi 0, %s261
      %s279 = sphi 0, %s279
      %s281 = sphi 0, %s279
      %s282 = sphi 0, %s281
      %s296 = sphi 0, %s282
      %s300 = sphi 0, %s300
      %s302 = sphi 0, %s300
      %s303 = sphi 0, %s302
      %s317 = sphi 0, %s303
      %s321 = sphi 0, %s321
      %s323 = sphi 0, %s321
      %s324 = sphi 0, %s323
      %s338 = sphi 0, %s324
      %s342 = sphi 0, %s342
      %s344 = sphi 0, %s342
      %s345 = sphi 0, %s344
      %s359 = sphi 0, %s345
      %s363 = sphi 0, %s363
      %s365 = sphi 0, %s363
      %s366 = sphi 0, %s365
      %s380 = sphi 0, %s366
      %s384 = sphi 0, %s384
      %s386 = sphi 0, %s384
      %s387 = sphi 0, %s386
      %s401 = sphi 0, %s387
      %s405 = sphi 0, %s405
      %s407 = sphi 0, %s405
      %s408 = sphi 0, %s407
      %s422 = sphi 0, %s408
      %s426 = sphi 0, %s426
      %s428 = sphi 0, %s426
      %s429 = sphi 0, %s428
      %s443 = sphi 0, %s429
      %s447 = sphi 0, %s447
      %s449 = sphi 0, %s447
      %s450 = sphi 0, %s449
      %s464 = sphi 0, %s450
      %s468 = sphi 0, %s468
      %s470 = sphi 0, %s468
      %s471 = sphi 0, %s470
      %s485 = sphi 0, %s471
      %s489 = sphi 0, %s489
      %s491 = sphi 0, %s489
      %s492 = sphi 0, %s491
      %s506 = sphi 0, %s492
      %s510 = sphi 0, %s510
      %s512 = sphi 0, %s510
      %s513 = sphi 0, %s512
      %s527 = sphi 0, %s513
      %s531 = sphi 0, %s531
      %s533 = sphi 0, %s531
      %s534 = sphi 0, %s533
      %s548 = sphi 0, %s534
      %s552 = sphi 0, %s552
      %s554 = sphi 0, %s552
      %s555 = sphi 0, %s554
      %s569 = sphi 0, %s555
      %s573 = sphi 0, %s573
      %s575 = sphi 0, %s573
      %s576 = sphi 0, %s575
      %s590 = sphi 0, %s576
      %s594 = sphi 0, %s594
      %s596 = sphi 0, %s594
      %s597 = sphi 0, %s596
      %s611 = sphi 0, %s597
      %s615 = sphi 0, %s615
      %s617 = sphi 0, %s615
      %s618 = sphi 0, %s617
      %s632 = sphi 0, %s618
      %s636 = sphi 0, %s636
      %s638 = sphi 0, %s636
      %s639 = sphi 0, %s638
      %s653 = sphi 0, %s639
      %s657 = sphi 0, %s657
      %s659 = sphi 0, %s657
      %s660 = sphi 0, %s659
      %s674 = sphi 0, %s660
      %s678 = sphi 0, %s678
      %s680 = sphi 0, %s678
      %s681 = sphi 0, %s680
      %s695 = sphi 0, %s681
      %s699 = sphi 0, %s699
      %s701 = sphi 0, %s699
      %s702 = sphi 0, %s701
      %s716 = sphi 0, %s702
      %s722 = sphi 0, %s724
      %s725 = sphi 0, %s722
      %s726 = sphi 0, %s725
      %s742 = sphi 0, %s726
    $region4: #{vae_forward.1} parent=1 // loop_header_branch
      %75 = sbr.rel (%p73) target = $region8
    $region5: #{vae_forward.1} parent=1 // loop_body
      %s77 = ssub.s32 %s72, 1
      %s78 = ssub.s32 %s72, 2
      %s79 = sadd.s32 %s72, 1
      %s80 = ssub.s32 %s72, %s79
      %p81 = scmp.eq.s32.totalorder %s80, 0
      %s83 = sadd.s32 %s82, 1
      %s84 = scalar_select %p81, %s82, %s83
      %p87 = pneg %p81
      %p88 = scmp.eq.s32.totalorder %s72, 1
      %p89 = por %p87, %p88
      %p90 = scmp.ne.s32.totalorder %s82, %s85
      %p91 = scmp.eq.s32.totalorder %s72, 0
      %p92 = por %p90, %p91
      %p93 = scmp.ne.s32.totalorder %s82, %s85
      %p94 = scmp.eq.s32.totalorder %s77, 1
      %p95 = por %p93, %p94
      %p96 = scmp.ne.s32.totalorder %s85, %s86
      %p97 = scmp.eq.s32.totalorder %s77, 0
      %p98 = por %p96, %p97
      %p99 = scmp.ne.s32.totalorder %s85, %s86
      %p100 = scmp.eq.s32.totalorder %s78, 1
      %p101 = por %p99, %p100
      %p103 = scmp.ne.s32.totalorder %s86, %s102
      %p104 = scmp.eq.s32.totalorder %s78, 0
      %p105 = por %p103, %p104
      %s106 = ssub.s32 %s72, %s79
      %p107 = scmp.eq.s32.totalorder %s106, 0
      %s109 = sadd.s32 %s108, 1
      %s110 = scalar_select %p107, %s108, %s109
      %p113 = pneg %p107
      %p114 = scmp.eq.s32.totalorder %s72, 1
      %p115 = por %p113, %p114
      %p116 = scmp.ne.s32.totalorder %s108, %s111
      %p117 = scmp.eq.s32.totalorder %s72, 0
      %p118 = por %p116, %p117
      %p119 = scmp.ne.s32.totalorder %s108, %s111
      %p120 = scmp.eq.s32.totalorder %s77, 1
      %p121 = por %p119, %p120
      %p122 = scmp.ne.s32.totalorder %s111, %s112
      %p123 = scmp.eq.s32.totalorder %s77, 0
      %p124 = por %p122, %p123
      %p125 = scmp.ne.s32.totalorder %s111, %s112
      %p126 = scmp.eq.s32.totalorder %s78, 1
      %p127 = por %p125, %p126
      %p129 = scmp.ne.s32.totalorder %s112, %s128
      %p130 = scmp.eq.s32.totalorder %s78, 0
      %p131 = por %p129, %p130
      %s133 = sadd.s32 %s132, 1
      %p136 = scmp.eq.s32.totalorder %s72, 1
      %p137 = scmp.ne.s32.totalorder %s132, %s134
      %p138 = scmp.eq.s32.totalorder %s72, 0
      %p139 = por %p137, %p138
      %p140 = scmp.ne.s32.totalorder %s132, %s134
      %p141 = scmp.eq.s32.totalorder %s77, 1
      %p142 = por %p140, %p141
      %p143 = scmp.ne.s32.totalorder %s134, %s135
      %p144 = scmp.eq.s32.totalorder %s77, 0
      %p145 = por %p143, %p144
      %p146 = scmp.ne.s32.totalorder %s134, %s135
      %p147 = scmp.eq.s32.totalorder %s78, 1
      %p148 = por %p146, %p147
      %p150 = scmp.ne.s32.totalorder %s135, %s149
      %p151 = scmp.eq.s32.totalorder %s78, 0
      %p152 = por %p150, %p151
      %s154 = sadd.s32 %s153, 1
      %p157 = scmp.eq.s32.totalorder %s72, 1
      %p158 = scmp.ne.s32.totalorder %s153, %s155
      %p159 = scmp.eq.s32.totalorder %s72, 0
      %p160 = por %p158, %p159
      %p161 = scmp.ne.s32.totalorder %s153, %s155
      %p162 = scmp.eq.s32.totalorder %s77, 1
      %p163 = por %p161, %p162
      %p164 = scmp.ne.s32.totalorder %s155, %s156
      %p165 = scmp.eq.s32.totalorder %s77, 0
      %p166 = por %p164, %p165
      %p167 = scmp.ne.s32.totalorder %s155, %s156
      %p168 = scmp.eq.s32.totalorder %s78, 1
      %p169 = por %p167, %p168
      %p171 = scmp.ne.s32.totalorder %s156, %s170
      %p172 = scmp.eq.s32.totalorder %s78, 0
      %p173 = por %p171, %p172
      %s175 = sadd.s32 %s174, 1
      %p178 = scmp.eq.s32.totalorder %s72, 1
      %p179 = scmp.ne.s32.totalorder %s174, %s176
      %p180 = scmp.eq.s32.totalorder %s72, 0
      %p181 = por %p179, %p180
      %p182 = scmp.ne.s32.totalorder %s174, %s176
      %p183 = scmp.eq.s32.totalorder %s77, 1
      %p184 = por %p182, %p183
      %p185 = scmp.ne.s32.totalorder %s176, %s177
      %p186 = scmp.eq.s32.totalorder %s77, 0
      %p187 = por %p185, %p186
      %p188 = scmp.ne.s32.totalorder %s176, %s177
      %p189 = scmp.eq.s32.totalorder %s78, 1
      %p190 = por %p188, %p189
      %p192 = scmp.ne.s32.totalorder %s177, %s191
      %p193 = scmp.eq.s32.totalorder %s78, 0
      %p194 = por %p192, %p193
      %s196 = sadd.s32 %s195, 1
      %p199 = scmp.eq.s32.totalorder %s72, 1
      %p200 = scmp.ne.s32.totalorder %s195, %s197
      %p201 = scmp.eq.s32.totalorder %s72, 0
      %p202 = por %p200, %p201
      %p203 = scmp.ne.s32.totalorder %s195, %s197
      %p204 = scmp.eq.s32.totalorder %s77, 1
      %p205 = por %p203, %p204
      %p206 = scmp.ne.s32.totalorder %s197, %s198
      %p207 = scmp.eq.s32.totalorder %s77, 0
      %p208 = por %p206, %p207
      %p209 = scmp.ne.s32.totalorder %s197, %s198
      %p210 = scmp.eq.s32.totalorder %s78, 1
      %p211 = por %p209, %p210
      %p213 = scmp.ne.s32.totalorder %s198, %s212
      %p214 = scmp.eq.s32.totalorder %s78, 0
      %p215 = por %p213, %p214
      %s217 = sadd.s32 %s216, 1
      %p220 = scmp.eq.s32.totalorder %s72, 1
      %p221 = scmp.ne.s32.totalorder %s216, %s218
      %p222 = scmp.eq.s32.totalorder %s72, 0
      %p223 = por %p221, %p222
      %p224 = scmp.ne.s32.totalorder %s216, %s218
      %p225 = scmp.eq.s32.totalorder %s77, 1
      %p226 = por %p224, %p225
      %p227 = scmp.ne.s32.totalorder %s218, %s219
      %p228 = scmp.eq.s32.totalorder %s77, 0
      %p229 = por %p227, %p228
      %p230 = scmp.ne.s32.totalorder %s218, %s219
      %p231 = scmp.eq.s32.totalorder %s78, 1
      %p232 = por %p230, %p231
      %p234 = scmp.ne.s32.totalorder %s219, %s233
      %p235 = scmp.eq.s32.totalorder %s78, 0
      %p236 = por %p234, %p235
      %s238 = sadd.s32 %s237, 1
      %p241 = scmp.eq.s32.totalorder %s72, 1
      %p242 = scmp.ne.s32.totalorder %s237, %s239
      %p243 = scmp.eq.s32.totalorder %s72, 0
      %p244 = por %p242, %p243
      %p245 = scmp.ne.s32.totalorder %s237, %s239
      %p246 = scmp.eq.s32.totalorder %s77, 1
      %p247 = por %p245, %p246
      %p248 = scmp.ne.s32.totalorder %s239, %s240
      %p249 = scmp.eq.s32.totalorder %s77, 0
      %p250 = por %p248, %p249
      %p251 = scmp.ne.s32.totalorder %s239, %s240
      %p252 = scmp.eq.s32.totalorder %s78, 1
      %p253 = por %p251, %p252
      %p255 = scmp.ne.s32.totalorder %s240, %s254
      %p256 = scmp.eq.s32.totalorder %s78, 0
      %p257 = por %p255, %p256
      %s259 = sadd.s32 %s258, 1
      %p262 = scmp.eq.s32.totalorder %s72, 1
      %p263 = scmp.ne.s32.totalorder %s258, %s260
      %p264 = scmp.eq.s32.totalorder %s72, 0
      %p265 = por %p263, %p264
      %p266 = scmp.ne.s32.totalorder %s258, %s260
      %p267 = scmp.eq.s32.totalorder %s77, 1
      %p268 = por %p266, %p267
      %p269 = scmp.ne.s32.totalorder %s260, %s261
      %p270 = scmp.eq.s32.totalorder %s77, 0
      %p271 = por %p269, %p270
      %p272 = scmp.ne.s32.totalorder %s260, %s261
      %p273 = scmp.eq.s32.totalorder %s78, 1
      %p274 = por %p272, %p273
      %p276 = scmp.ne.s32.totalorder %s261, %s275
      %p277 = scmp.eq.s32.totalorder %s78, 0
      %p278 = por %p276, %p277
      %s280 = sadd.s32 %s279, 1
      %p283 = scmp.eq.s32.totalorder %s72, 1
      %p284 = scmp.ne.s32.totalorder %s279, %s281
      %p285 = scmp.eq.s32.totalorder %s72, 0
      %p286 = por %p284, %p285
      %p287 = scmp.ne.s32.totalorder %s279, %s281
      %p288 = scmp.eq.s32.totalorder %s77, 1
      %p289 = por %p287, %p288
      %p290 = scmp.ne.s32.totalorder %s281, %s282
      %p291 = scmp.eq.s32.totalorder %s77, 0
      %p292 = por %p290, %p291
      %p293 = scmp.ne.s32.totalorder %s281, %s282
      %p294 = scmp.eq.s32.totalorder %s78, 1
      %p295 = por %p293, %p294
      %p297 = scmp.ne.s32.totalorder %s282, %s296
      %p298 = scmp.eq.s32.totalorder %s78, 0
      %p299 = por %p297, %p298
      %s301 = sadd.s32 %s300, 1
      %p304 = scmp.eq.s32.totalorder %s72, 1
      %p305 = scmp.ne.s32.totalorder %s300, %s302
      %p306 = scmp.eq.s32.totalorder %s72, 0
      %p307 = por %p305, %p306
      %p308 = scmp.ne.s32.totalorder %s300, %s302
      %p309 = scmp.eq.s32.totalorder %s77, 1
      %p310 = por %p308, %p309
      %p311 = scmp.ne.s32.totalorder %s302, %s303
      %p312 = scmp.eq.s32.totalorder %s77, 0
      %p313 = por %p311, %p312
      %p314 = scmp.ne.s32.totalorder %s302, %s303
      %p315 = scmp.eq.s32.totalorder %s78, 1
      %p316 = por %p314, %p315
      %p318 = scmp.ne.s32.totalorder %s303, %s317
      %p319 = scmp.eq.s32.totalorder %s78, 0
      %p320 = por %p318, %p319
      %s322 = sadd.s32 %s321, 1
      %p325 = scmp.eq.s32.totalorder %s72, 1
      %p326 = scmp.ne.s32.totalorder %s321, %s323
      %p327 = scmp.eq.s32.totalorder %s72, 0
      %p328 = por %p326, %p327
      %p329 = scmp.ne.s32.totalorder %s321, %s323
      %p330 = scmp.eq.s32.totalorder %s77, 1
      %p331 = por %p329, %p330
      %p332 = scmp.ne.s32.totalorder %s323, %s324
      %p333 = scmp.eq.s32.totalorder %s77, 0
      %p334 = por %p332, %p333
      %p335 = scmp.ne.s32.totalorder %s323, %s324
      %p336 = scmp.eq.s32.totalorder %s78, 1
      %p337 = por %p335, %p336
      %p339 = scmp.ne.s32.totalorder %s324, %s338
      %p340 = scmp.eq.s32.totalorder %s78, 0
      %p341 = por %p339, %p340
      %s343 = sadd.s32 %s342, 1
      %p346 = scmp.eq.s32.totalorder %s72, 1
      %p347 = scmp.ne.s32.totalorder %s342, %s344
      %p348 = scmp.eq.s32.totalorder %s72, 0
      %p349 = por %p347, %p348
      %p350 = scmp.ne.s32.totalorder %s342, %s344
      %p351 = scmp.eq.s32.totalorder %s77, 1
      %p352 = por %p350, %p351
      %p353 = scmp.ne.s32.totalorder %s344, %s345
      %p354 = scmp.eq.s32.totalorder %s77, 0
      %p355 = por %p353, %p354
      %p356 = scmp.ne.s32.totalorder %s344, %s345
      %p357 = scmp.eq.s32.totalorder %s78, 1
      %p358 = por %p356, %p357
      %p360 = scmp.ne.s32.totalorder %s345, %s359
      %p361 = scmp.eq.s32.totalorder %s78, 0
      %p362 = por %p360, %p361
      %s364 = sadd.s32 %s363, 1
      %p367 = scmp.eq.s32.totalorder %s72, 1
      %p368 = scmp.ne.s32.totalorder %s363, %s365
      %p369 = scmp.eq.s32.totalorder %s72, 0
      %p370 = por %p368, %p369
      %p371 = scmp.ne.s32.totalorder %s363, %s365
      %p372 = scmp.eq.s32.totalorder %s77, 1
      %p373 = por %p371, %p372
      %p374 = scmp.ne.s32.totalorder %s365, %s366
      %p375 = scmp.eq.s32.totalorder %s77, 0
      %p376 = por %p374, %p375
      %p377 = scmp.ne.s32.totalorder %s365, %s366
      %p378 = scmp.eq.s32.totalorder %s78, 1
      %p379 = por %p377, %p378
      %p381 = scmp.ne.s32.totalorder %s366, %s380
      %p382 = scmp.eq.s32.totalorder %s78, 0
      %p383 = por %p381, %p382
      %s385 = sadd.s32 %s384, 1
      %p388 = scmp.eq.s32.totalorder %s72, 1
      %p389 = scmp.ne.s32.totalorder %s384, %s386
      %p390 = scmp.eq.s32.totalorder %s72, 0
      %p391 = por %p389, %p390
      %p392 = scmp.ne.s32.totalorder %s384, %s386
      %p393 = scmp.eq.s32.totalorder %s77, 1
      %p394 = por %p392, %p393
      %p395 = scmp.ne.s32.totalorder %s386, %s387
      %p396 = scmp.eq.s32.totalorder %s77, 0
      %p397 = por %p395, %p396
      %p398 = scmp.ne.s32.totalorder %s386, %s387
      %p399 = scmp.eq.s32.totalorder %s78, 1
      %p400 = por %p398, %p399
      %p402 = scmp.ne.s32.totalorder %s387, %s401
      %p403 = scmp.eq.s32.totalorder %s78, 0
      %p404 = por %p402, %p403
      %s406 = sadd.s32 %s405, 1
      %p409 = scmp.eq.s32.totalorder %s72, 1
      %p410 = scmp.ne.s32.totalorder %s405, %s407
      %p411 = scmp.eq.s32.totalorder %s72, 0
      %p412 = por %p410, %p411
      %p413 = scmp.ne.s32.totalorder %s405, %s407
      %p414 = scmp.eq.s32.totalorder %s77, 1
      %p415 = por %p413, %p414
      %p416 = scmp.ne.s32.totalorder %s407, %s408
      %p417 = scmp.eq.s32.totalorder %s77, 0
      %p418 = por %p416, %p417
      %p419 = scmp.ne.s32.totalorder %s407, %s408
      %p420 = scmp.eq.s32.totalorder %s78, 1
      %p421 = por %p419, %p420
      %p423 = scmp.ne.s32.totalorder %s408, %s422
      %p424 = scmp.eq.s32.totalorder %s78, 0
      %p425 = por %p423, %p424
      %s427 = sadd.s32 %s426, 1
      %p430 = scmp.eq.s32.totalorder %s72, 1
      %p431 = scmp.ne.s32.totalorder %s426, %s428
      %p432 = scmp.eq.s32.totalorder %s72, 0
      %p433 = por %p431, %p432
      %p434 = scmp.ne.s32.totalorder %s426, %s428
      %p435 = scmp.eq.s32.totalorder %s77, 1
      %p436 = por %p434, %p435
      %p437 = scmp.ne.s32.totalorder %s428, %s429
      %p438 = scmp.eq.s32.totalorder %s77, 0
      %p439 = por %p437, %p438
      %p440 = scmp.ne.s32.totalorder %s428, %s429
      %p441 = scmp.eq.s32.totalorder %s78, 1
      %p442 = por %p440, %p441
      %p444 = scmp.ne.s32.totalorder %s429, %s443
      %p445 = scmp.eq.s32.totalorder %s78, 0
      %p446 = por %p444, %p445
      %s448 = sadd.s32 %s447, 1
      %p451 = scmp.eq.s32.totalorder %s72, 1
      %p452 = scmp.ne.s32.totalorder %s447, %s449
      %p453 = scmp.eq.s32.totalorder %s72, 0
      %p454 = por %p452, %p453
      %p455 = scmp.ne.s32.totalorder %s447, %s449
      %p456 = scmp.eq.s32.totalorder %s77, 1
      %p457 = por %p455, %p456
      %p458 = scmp.ne.s32.totalorder %s449, %s450
      %p459 = scmp.eq.s32.totalorder %s77, 0
      %p460 = por %p458, %p459
      %p461 = scmp.ne.s32.totalorder %s449, %s450
      %p462 = scmp.eq.s32.totalorder %s78, 1
      %p463 = por %p461, %p462
      %p465 = scmp.ne.s32.totalorder %s450, %s464
      %p466 = scmp.eq.s32.totalorder %s78, 0
      %p467 = por %p465, %p466
      %s469 = sadd.s32 %s468, 1
      %p472 = scmp.eq.s32.totalorder %s72, 1
      %p473 = scmp.ne.s32.totalorder %s468, %s470
      %p474 = scmp.eq.s32.totalorder %s72, 0
      %p475 = por %p473, %p474
      %p476 = scmp.ne.s32.totalorder %s468, %s470
      %p477 = scmp.eq.s32.totalorder %s77, 1
      %p478 = por %p476, %p477
      %p479 = scmp.ne.s32.totalorder %s470, %s471
      %p480 = scmp.eq.s32.totalorder %s77, 0
      %p481 = por %p479, %p480
      %p482 = scmp.ne.s32.totalorder %s470, %s471
      %p483 = scmp.eq.s32.totalorder %s78, 1
      %p484 = por %p482, %p483
      %p486 = scmp.ne.s32.totalorder %s471, %s485
      %p487 = scmp.eq.s32.totalorder %s78, 0
      %p488 = por %p486, %p487
      %s490 = sadd.s32 %s489, 1
      %p493 = scmp.eq.s32.totalorder %s72, 1
      %p494 = scmp.ne.s32.totalorder %s489, %s491
      %p495 = scmp.eq.s32.totalorder %s72, 0
      %p496 = por %p494, %p495
      %p497 = scmp.ne.s32.totalorder %s489, %s491
      %p498 = scmp.eq.s32.totalorder %s77, 1
      %p499 = por %p497, %p498
      %p500 = scmp.ne.s32.totalorder %s491, %s492
      %p501 = scmp.eq.s32.totalorder %s77, 0
      %p502 = por %p500, %p501
      %p503 = scmp.ne.s32.totalorder %s491, %s492
      %p504 = scmp.eq.s32.totalorder %s78, 1
      %p505 = por %p503, %p504
      %p507 = scmp.ne.s32.totalorder %s492, %s506
      %p508 = scmp.eq.s32.totalorder %s78, 0
      %p509 = por %p507, %p508
      %s511 = sadd.s32 %s510, 1
      %p514 = scmp.eq.s32.totalorder %s72, 1
      %p515 = scmp.ne.s32.totalorder %s510, %s512
      %p516 = scmp.eq.s32.totalorder %s72, 0
      %p517 = por %p515, %p516
      %p518 = scmp.ne.s32.totalorder %s510, %s512
      %p519 = scmp.eq.s32.totalorder %s77, 1
      %p520 = por %p518, %p519
      %p521 = scmp.ne.s32.totalorder %s512, %s513
      %p522 = scmp.eq.s32.totalorder %s77, 0
      %p523 = por %p521, %p522
      %p524 = scmp.ne.s32.totalorder %s512, %s513
      %p525 = scmp.eq.s32.totalorder %s78, 1
      %p526 = por %p524, %p525
      %p528 = scmp.ne.s32.totalorder %s513, %s527
      %p529 = scmp.eq.s32.totalorder %s78, 0
      %p530 = por %p528, %p529
      %s532 = sadd.s32 %s531, 1
      %p535 = scmp.eq.s32.totalorder %s72, 1
      %p536 = scmp.ne.s32.totalorder %s531, %s533
      %p537 = scmp.eq.s32.totalorder %s72, 0
      %p538 = por %p536, %p537
      %p539 = scmp.ne.s32.totalorder %s531, %s533
      %p540 = scmp.eq.s32.totalorder %s77, 1
      %p541 = por %p539, %p540
      %p542 = scmp.ne.s32.totalorder %s533, %s534
      %p543 = scmp.eq.s32.totalorder %s77, 0
      %p544 = por %p542, %p543
      %p545 = scmp.ne.s32.totalorder %s533, %s534
      %p546 = scmp.eq.s32.totalorder %s78, 1
      %p547 = por %p545, %p546
      %p549 = scmp.ne.s32.totalorder %s534, %s548
      %p550 = scmp.eq.s32.totalorder %s78, 0
      %p551 = por %p549, %p550
      %s553 = sadd.s32 %s552, 1
      %p556 = scmp.eq.s32.totalorder %s72, 1
      %p557 = scmp.ne.s32.totalorder %s552, %s554
      %p558 = scmp.eq.s32.totalorder %s72, 0
      %p559 = por %p557, %p558
      %p560 = scmp.ne.s32.totalorder %s552, %s554
      %p561 = scmp.eq.s32.totalorder %s77, 1
      %p562 = por %p560, %p561
      %p563 = scmp.ne.s32.totalorder %s554, %s555
      %p564 = scmp.eq.s32.totalorder %s77, 0
      %p565 = por %p563, %p564
      %p566 = scmp.ne.s32.totalorder %s554, %s555
      %p567 = scmp.eq.s32.totalorder %s78, 1
      %p568 = por %p566, %p567
      %p570 = scmp.ne.s32.totalorder %s555, %s569
      %p571 = scmp.eq.s32.totalorder %s78, 0
      %p572 = por %p570, %p571
      %s574 = sadd.s32 %s573, 1
      %p577 = scmp.eq.s32.totalorder %s72, 1
      %p578 = scmp.ne.s32.totalorder %s573, %s575
      %p579 = scmp.eq.s32.totalorder %s72, 0
      %p580 = por %p578, %p579
      %p581 = scmp.ne.s32.totalorder %s573, %s575
      %p582 = scmp.eq.s32.totalorder %s77, 1
      %p583 = por %p581, %p582
      %p584 = scmp.ne.s32.totalorder %s575, %s576
      %p585 = scmp.eq.s32.totalorder %s77, 0
      %p586 = por %p584, %p585
      %p587 = scmp.ne.s32.totalorder %s575, %s576
      %p588 = scmp.eq.s32.totalorder %s78, 1
      %p589 = por %p587, %p588
      %p591 = scmp.ne.s32.totalorder %s576, %s590
      %p592 = scmp.eq.s32.totalorder %s78, 0
      %p593 = por %p591, %p592
      %s595 = sadd.s32 %s594, 1
      %p598 = scmp.eq.s32.totalorder %s72, 1
      %p599 = scmp.ne.s32.totalorder %s594, %s596
      %p600 = scmp.eq.s32.totalorder %s72, 0
      %p601 = por %p599, %p600
      %p602 = scmp.ne.s32.totalorder %s594, %s596
      %p603 = scmp.eq.s32.totalorder %s77, 1
      %p604 = por %p602, %p603
      %p605 = scmp.ne.s32.totalorder %s596, %s597
      %p606 = scmp.eq.s32.totalorder %s77, 0
      %p607 = por %p605, %p606
      %p608 = scmp.ne.s32.totalorder %s596, %s597
      %p609 = scmp.eq.s32.totalorder %s78, 1
      %p610 = por %p608, %p609
      %p612 = scmp.ne.s32.totalorder %s597, %s611
      %p613 = scmp.eq.s32.totalorder %s78, 0
      %p614 = por %p612, %p613
      %s616 = sadd.s32 %s615, 1
      %p619 = scmp.eq.s32.totalorder %s72, 1
      %p620 = scmp.ne.s32.totalorder %s615, %s617
      %p621 = scmp.eq.s32.totalorder %s72, 0
      %p622 = por %p620, %p621
      %p623 = scmp.ne.s32.totalorder %s615, %s617
      %p624 = scmp.eq.s32.totalorder %s77, 1
      %p625 = por %p623, %p624
      %p626 = scmp.ne.s32.totalorder %s617, %s618
      %p627 = scmp.eq.s32.totalorder %s77, 0
      %p628 = por %p626, %p627
      %p629 = scmp.ne.s32.totalorder %s617, %s618
      %p630 = scmp.eq.s32.totalorder %s78, 1
      %p631 = por %p629, %p630
      %p633 = scmp.ne.s32.totalorder %s618, %s632
      %p634 = scmp.eq.s32.totalorder %s78, 0
      %p635 = por %p633, %p634
      %s637 = sadd.s32 %s636, 1
      %p640 = scmp.eq.s32.totalorder %s72, 1
      %p641 = scmp.ne.s32.totalorder %s636, %s638
      %p642 = scmp.eq.s32.totalorder %s72, 0
      %p643 = por %p641, %p642
      %p644 = scmp.ne.s32.totalorder %s636, %s638
      %p645 = scmp.eq.s32.totalorder %s77, 1
      %p646 = por %p644, %p645
      %p647 = scmp.ne.s32.totalorder %s638, %s639
      %p648 = scmp.eq.s32.totalorder %s77, 0
      %p649 = por %p647, %p648
      %p650 = scmp.ne.s32.totalorder %s638, %s639
      %p651 = scmp.eq.s32.totalorder %s78, 1
      %p652 = por %p650, %p651
      %p654 = scmp.ne.s32.totalorder %s639, %s653
      %p655 = scmp.eq.s32.totalorder %s78, 0
      %p656 = por %p654, %p655
      %s658 = sadd.s32 %s657, 1
      %p661 = scmp.eq.s32.totalorder %s72, 1
      %p662 = scmp.ne.s32.totalorder %s657, %s659
      %p663 = scmp.eq.s32.totalorder %s72, 0
      %p664 = por %p662, %p663
      %p665 = scmp.ne.s32.totalorder %s657, %s659
      %p666 = scmp.eq.s32.totalorder %s77, 1
      %p667 = por %p665, %p666
      %p668 = scmp.ne.s32.totalorder %s659, %s660
      %p669 = scmp.eq.s32.totalorder %s77, 0
      %p670 = por %p668, %p669
      %p671 = scmp.ne.s32.totalorder %s659, %s660
      %p672 = scmp.eq.s32.totalorder %s78, 1
      %p673 = por %p671, %p672
      %p675 = scmp.ne.s32.totalorder %s660, %s674
      %p676 = scmp.eq.s32.totalorder %s78, 0
      %p677 = por %p675, %p676
      %s679 = sadd.s32 %s678, 1
      %p682 = scmp.eq.s32.totalorder %s72, 1
      %p683 = scmp.ne.s32.totalorder %s678, %s680
      %p684 = scmp.eq.s32.totalorder %s72, 0
      %p685 = por %p683, %p684
      %p686 = scmp.ne.s32.totalorder %s678, %s680
      %p687 = scmp.eq.s32.totalorder %s77, 1
      %p688 = por %p686, %p687
      %p689 = scmp.ne.s32.totalorder %s680, %s681
      %p690 = scmp.eq.s32.totalorder %s77, 0
      %p691 = por %p689, %p690
      %p692 = scmp.ne.s32.totalorder %s680, %s681
      %p693 = scmp.eq.s32.totalorder %s78, 1
      %p694 = por %p692, %p693
      %p696 = scmp.ne.s32.totalorder %s681, %s695
      %p697 = scmp.eq.s32.totalorder %s78, 0
      %p698 = por %p696, %p697
      %s700 = sadd.s32 %s699, 1
      %p703 = scmp.eq.s32.totalorder %s72, 1
      %p704 = scmp.ne.s32.totalorder %s699, %s701
      %p705 = scmp.eq.s32.totalorder %s72, 0
      %p706 = por %p704, %p705
      %p707 = scmp.ne.s32.totalorder %s699, %s701
      %p708 = scmp.eq.s32.totalorder %s77, 1
      %p709 = por %p707, %p708
      %p710 = scmp.ne.s32.totalorder %s701, %s702
      %p711 = scmp.eq.s32.totalorder %s77, 0
      %p712 = por %p710, %p711
      %p713 = scmp.ne.s32.totalorder %s701, %s702
      %p714 = scmp.eq.s32.totalorder %s78, 1
      %p715 = por %p713, %p714
      %p717 = scmp.ne.s32.totalorder %s702, %s716
      %p718 = scmp.eq.s32.totalorder %s78, 0
      %p719 = por %p717, %p718
      %s720 = ssub.s32 %s72, %s79
      %p721 = scmp.eq.s32.totalorder %s720, 0
      %s723 = sadd.s32 %s722, 1
      %s724 = scalar_select %p721, %s722, %s723
      %p727 = pneg %p721
      %p728 = scmp.eq.s32.totalorder %s72, 1
      %p729 = por %p727, %p728
      %p730 = scmp.ne.s32.totalorder %s722, %s725
      %p731 = scmp.eq.s32.totalorder %s72, 0
      %p732 = por %p730, %p731
      %p733 = scmp.ne.s32.totalorder %s722, %s725
      %p734 = scmp.eq.s32.totalorder %s77, 1
      %p735 = por %p733, %p734
      %p736 = scmp.ne.s32.totalorder %s725, %s726
      %p737 = scmp.eq.s32.totalorder %s77, 0
      %p738 = por %p736, %p737
      %p739 = scmp.ne.s32.totalorder %s725, %s726
      %p740 = scmp.eq.s32.totalorder %s78, 1
      %p741 = por %p739, %p740
      %p743 = scmp.ne.s32.totalorder %s726, %s742
      %p744 = scmp.eq.s32.totalorder %s78, 0
      %p745 = por %p743, %p744
      %p746 = scmp.le.s32.totalorder 1, %s72
      %p747 = scmp.lt.s32.totalorder %s72, 3
      %p748 = pnand %p746, %p747
      %p749 = pneg %p748
      // Predicated region
      $region9: #{vae_forward.1} parent=5 // pred_check
        _
      $region10: #{vae_forward.1} parent=5 // pred_check_branch
        %751 = sbr.rel (%p748) target = $region12
      $region11: #{vae_forward.1} parent=5 // pred_region
        %s752 = ssub.s32 %s72, 1
        // Predicated region
        $region13: #{vae_forward.1} parent=11 // pred_check
          %p753 = pneg %p145
        $region14: #{vae_forward.1} parent=11 // pred_check_branch
          %755 = sbr.rel (%p753) target = $region16
        $region15: #{vae_forward.1} parent=11 // pred_region
          _
        $region16: #{vae_forward.1} parent=11 // pred_fallthru
          _
        // Predicated region
        $region17: #{vae_forward.1} parent=11 // pred_check
          %p756 = pneg %p166
        $region18: #{vae_forward.1} parent=11 // pred_check_branch
          %758 = sbr.rel (%p756) target = $region20
        $region19: #{vae_forward.1} parent=11 // pred_region
          _
        $region20: #{vae_forward.1} parent=11 // pred_fallthru
          _
        // Predicated region
        $region21: #{vae_forward.1} parent=11 // pred_check
          %p759 = pneg %p187
        $region22: #{vae_forward.1} parent=11 // pred_check_branch
          %761 = sbr.rel (%p759) target = $region24
        $region23: #{vae_forward.1} parent=11 // pred_region
          _
        $region24: #{vae_forward.1} parent=11 // pred_fallthru
          _
        // Predicated region
        $region25: #{vae_forward.1} parent=11 // pred_check
          %p762 = pneg %p208
        $region26: #{vae_forward.1} parent=11 // pred_check_branch
          %764 = sbr.rel (%p762) target = $region28
        $region27: #{vae_forward.1} parent=11 // pred_region
          %766 = vsyncadd [#allocation3], 0
          %s767 = sshll.u32 %s11, 4
          %s768 = int_to_ptr.hbm [resolvable:$true] %s767
          %s769 = sshll.u32 [#allocation2], 4
          %s770 = int_to_ptr.vmem [resolvable:$true] %s769
          %775 = dma.hbm_to_vmem [thread:$0]  %s768, 576, %s770, [#allocation3], 64, 64, 4
        $region28: #{vae_forward.1} parent=11 // pred_fallthru
          _
        // Predicated region
        $region29: #{vae_forward.1} parent=11 // pred_check
          %p776 = pneg %p229
        $region30: #{vae_forward.1} parent=11 // pred_check_branch
          %778 = sbr.rel (%p776) target = $region32
        $region31: #{vae_forward.1} parent=11 // pred_region
          _
        $region32: #{vae_forward.1} parent=11 // pred_fallthru
          _
        // Predicated region
        $region33: #{vae_forward.1} parent=11 // pred_check
          %p779 = pneg %p250
        $region34: #{vae_forward.1} parent=11 // pred_check_branch
          %781 = sbr.rel (%p779) target = $region36
        $region35: #{vae_forward.1} parent=11 // pred_region
          _
        $region36: #{vae_forward.1} parent=11 // pred_fallthru
          _
        // Predicated region
        $region37: #{vae_forward.1} parent=11 // pred_check
          %p782 = pneg %p271
        $region38: #{vae_forward.1} parent=11 // pred_check_branch
          %784 = sbr.rel (%p782) target = $region40
        $region39: #{vae_forward.1} parent=11 // pred_region
          _
        $region40: #{vae_forward.1} parent=11 // pred_fallthru
          _
        // Predicated region
        $region41: #{vae_forward.1} parent=11 // pred_check
          %p785 = pneg %p292
        $region42: #{vae_forward.1} parent=11 // pred_check_branch
          %787 = sbr.rel (%p785) target = $region44
        $region43: #{vae_forward.1} parent=11 // pred_region
          _
        $region44: #{vae_forward.1} parent=11 // pred_fallthru
          _
        // Predicated region
        $region45: #{vae_forward.1} parent=11 // pred_check
          %p788 = pneg %p313
        $region46: #{vae_forward.1} parent=11 // pred_check_branch
          %790 = sbr.rel (%p788) target = $region48
        $region47: #{vae_forward.1} parent=11 // pred_region
          _
        $region48: #{vae_forward.1} parent=11 // pred_fallthru
          _
        // Predicated region
        $region49: #{vae_forward.1} parent=11 // pred_check
          %p791 = pneg %p334
        $region50: #{vae_forward.1} parent=11 // pred_check_branch
          %793 = sbr.rel (%p791) target = $region52
        $region51: #{vae_forward.1} parent=11 // pred_region
          %795 = vsyncadd [#allocation5], 0
          %s796 = sshll.u32 %s23, 4
          %s797 = int_to_ptr.hbm [resolvable:$true] %s796
          %s798 = sshll.u32 [#allocation4], 4
          %s799 = int_to_ptr.vmem [resolvable:$true] %s798
          %804 = dma.hbm_to_vmem [thread:$0]  %s797, 2304, %s799, [#allocation5], 64, 64, 4
        $region52: #{vae_forward.1} parent=11 // pred_fallthru
          _
        // Predicated region
        $region53: #{vae_forward.1} parent=11 // pred_check
          %p805 = pneg %p355
        $region54: #{vae_forward.1} parent=11 // pred_check_branch
          %807 = sbr.rel (%p805) target = $region56
        $region55: #{vae_forward.1} parent=11 // pred_region
          _
        $region56: #{vae_forward.1} parent=11 // pred_fallthru
          _
        // Predicated region
        $region57: #{vae_forward.1} parent=11 // pred_check
          %p808 = pneg %p376
        $region58: #{vae_forward.1} parent=11 // pred_check_branch
          %810 = sbr.rel (%p808) target = $region60
        $region59: #{vae_forward.1} parent=11 // pred_region
          _
        $region60: #{vae_forward.1} parent=11 // pred_fallthru
          _
        // Predicated region
        $region61: #{vae_forward.1} parent=11 // pred_check
          %p811 = pneg %p397
        $region62: #{vae_forward.1} parent=11 // pred_check_branch
          %813 = sbr.rel (%p811) target = $region64
        $region63: #{vae_forward.1} parent=11 // pred_region
          %815 = vsyncadd [#allocation5], 0
          %s817 = sshll.u32 %s29, 4
          %s818 = int_to_ptr.hbm [resolvable:$true] %s817
          %s819 = sshll.u32 [#allocation6], 4
          %s820 = int_to_ptr.vmem [resolvable:$true] %s819
          %822 = dma.hbm_to_vmem [thread:$0]  %s818, 16, %s820, [#allocation5]
        $region64: #{vae_forward.1} parent=11 // pred_fallthru
          _
        // Predicated region
        $region65: #{vae_forward.1} parent=11 // pred_check
          %p823 = pneg %p418
        $region66: #{vae_forward.1} parent=11 // pred_check_branch
          %825 = sbr.rel (%p823) target = $region68
        $region67: #{vae_forward.1} parent=11 // pred_region
          _
        $region68: #{vae_forward.1} parent=11 // pred_fallthru
          _
        // Predicated region
        $region69: #{vae_forward.1} parent=11 // pred_check
          %p826 = pneg %p439
        $region70: #{vae_forward.1} parent=11 // pred_check_branch
          %828 = sbr.rel (%p826) target = $region72
        $region71: #{vae_forward.1} parent=11 // pred_region
          %830 = vsyncadd [#allocation8], 0
          %s832 = sshll.u32 %s33, 4
          %s833 = int_to_ptr.hbm [resolvable:$true] %s832
          %s834 = sshll.u32 [#allocation7], 4
          %s835 = int_to_ptr.vmem [resolvable:$true] %s834
          %837 = dma.hbm_to_vmem [thread:$0]  %s833, 16, %s835, [#allocation8]
        $region72: #{vae_forward.1} parent=11 // pred_fallthru
          _
        // Predicated region
        $region73: #{vae_forward.1} parent=11 // pred_check
          %p838 = pneg %p460
        $region74: #{vae_forward.1} parent=11 // pred_check_branch
          %840 = sbr.rel (%p838) target = $region76
        $region75: #{vae_forward.1} parent=11 // pred_region
          _
        $region76: #{vae_forward.1} parent=11 // pred_fallthru
          _
        // Predicated region
        $region77: #{vae_forward.1} parent=11 // pred_check
          %p841 = pneg %p481
        $region78: #{vae_forward.1} parent=11 // pred_check_branch
          %843 = sbr.rel (%p841) target = $region80
        $region79: #{vae_forward.1} parent=11 // pred_region
          %845 = vsyncadd [#allocation8], 0
          %s847 = sshll.u32 %s37, 4
          %s848 = int_to_ptr.hbm [resolvable:$true] %s847
          %s849 = sshll.u32 [#allocation9], 4
          %s850 = int_to_ptr.vmem [resolvable:$true] %s849
          %852 = dma.hbm_to_vmem [thread:$0]  %s848, 16, %s850, [#allocation8]
        $region80: #{vae_forward.1} parent=11 // pred_fallthru
          _
        // Predicated region
        $region81: #{vae_forward.1} parent=11 // pred_check
          %p853 = pneg %p502
        $region82: #{vae_forward.1} parent=11 // pred_check_branch
          %855 = sbr.rel (%p853) target = $region84
        $region83: #{vae_forward.1} parent=11 // pred_region
          %857 = vsyncadd [#allocation11], 0
          %s858 = sshll.u32 %s39, 4
          %s859 = int_to_ptr.hbm [resolvable:$true] %s858
          %s860 = sshll.u32 [#allocation10], 4
          %s861 = int_to_ptr.vmem [resolvable:$true] %s860
          %866 = dma.hbm_to_vmem [thread:$0]  %s859, 1536, %s861, [#allocation11], 64, 64, 4
        $region84: #{vae_forward.1} parent=11 // pred_fallthru
          _
        // Predicated region
        $region85: #{vae_forward.1} parent=11 // pred_check
          %p867 = pneg %p523
        $region86: #{vae_forward.1} parent=11 // pred_check_branch
          %869 = sbr.rel (%p867) target = $region88
        $region87: #{vae_forward.1} parent=11 // pred_region
          _
        $region88: #{vae_forward.1} parent=11 // pred_fallthru
          _
        // Predicated region
        $region89: #{vae_forward.1} parent=11 // pred_check
          %p870 = pneg %p544
        $region90: #{vae_forward.1} parent=11 // pred_check_branch
          %872 = sbr.rel (%p870) target = $region92
        $region91: #{vae_forward.1} parent=11 // pred_region
          _
        $region92: #{vae_forward.1} parent=11 // pred_fallthru
          _
        // Predicated region
        $region93: #{vae_forward.1} parent=11 // pred_check
          %p873 = pneg %p565
        $region94: #{vae_forward.1} parent=11 // pred_check_branch
          %875 = sbr.rel (%p873) target = $region96
        $region95: #{vae_forward.1} parent=11 // pred_region
          _
        $region96: #{vae_forward.1} parent=11 // pred_fallthru
          _
        // Predicated region
        $region97: #{vae_forward.1} parent=11 // pred_check
          %p876 = pneg %p586
        $region98: #{vae_forward.1} parent=11 // pred_check_branch
          %878 = sbr.rel (%p876) target = $region100
        $region99: #{vae_forward.1} parent=11 // pred_region
          %880 = vsyncadd [#allocation11], 0
          %s882 = sshll.u32 %s47, 4
          %s883 = int_to_ptr.hbm [resolvable:$true] %s882
          %s884 = sshll.u32 [#allocation12], 4
          %s885 = int_to_ptr.vmem [resolvable:$true] %s884
          %887 = dma.hbm_to_vmem [thread:$0]  %s883, 16, %s885, [#allocation11]
        $region100: #{vae_forward.1} parent=11 // pred_fallthru
          _
        // Predicated region
        $region101: #{vae_forward.1} parent=11 // pred_check
          %p888 = pneg %p607
        $region102: #{vae_forward.1} parent=11 // pred_check_branch
          %890 = sbr.rel (%p888) target = $region104
        $region103: #{vae_forward.1} parent=11 // pred_region
          _
        $region104: #{vae_forward.1} parent=11 // pred_fallthru
          _
        // Predicated region
        $region105: #{vae_forward.1} parent=11 // pred_check
          %p891 = pneg %p628
        $region106: #{vae_forward.1} parent=11 // pred_check_branch
          %893 = sbr.rel (%p891) target = $region108
        $region107: #{vae_forward.1} parent=11 // pred_region
          _
        $region108: #{vae_forward.1} parent=11 // pred_fallthru
          _
        // Predicated region
        $region109: #{vae_forward.1} parent=11 // pred_check
          %p894 = pneg %p649
        $region110: #{vae_forward.1} parent=11 // pred_check_branch
          %896 = sbr.rel (%p894) target = $region112
        $region111: #{vae_forward.1} parent=11 // pred_region
          %898 = vsyncadd [#allocation14], 0
          %s900 = sshll.u32 %s53, 4
          %s901 = int_to_ptr.hbm [resolvable:$true] %s900
          %s902 = sshll.u32 [#allocation13], 4
          %s903 = int_to_ptr.vmem [resolvable:$true] %s902
          %905 = dma.hbm_to_vmem [thread:$0]  %s901, 16, %s903, [#allocation14]
        $region112: #{vae_forward.1} parent=11 // pred_fallthru
          _
        // Predicated region
        $region113: #{vae_forward.1} parent=11 // pred_check
          %p906 = pneg %p670
        $region114: #{vae_forward.1} parent=11 // pred_check_branch
          %908 = sbr.rel (%p906) target = $region116
        $region115: #{vae_forward.1} parent=11 // pred_region
          _
        $region116: #{vae_forward.1} parent=11 // pred_fallthru
          _
        // Predicated region
        $region117: #{vae_forward.1} parent=11 // pred_check
          %p909 = pneg %p691
        $region118: #{vae_forward.1} parent=11 // pred_check_branch
          %911 = sbr.rel (%p909) target = $region120
        $region119: #{vae_forward.1} parent=11 // pred_region
          _
        $region120: #{vae_forward.1} parent=11 // pred_fallthru
          _
        // Predicated region
        $region121: #{vae_forward.1} parent=11 // pred_check
          %p912 = pneg %p712
        $region122: #{vae_forward.1} parent=11 // pred_check_branch
          %914 = sbr.rel (%p912) target = $region124
        $region123: #{vae_forward.1} parent=11 // pred_region
          %916 = vsyncadd [#allocation14], 0
          %s918 = sshll.u32 %s59, 4
          %s919 = int_to_ptr.hbm [resolvable:$true] %s918
          %s920 = sshll.u32 [#allocation15], 4
          %s921 = int_to_ptr.vmem [resolvable:$true] %s920
          %923 = dma.hbm_to_vmem [thread:$0]  %s919, 16, %s921, [#allocation14]
        $region124: #{vae_forward.1} parent=11 // pred_fallthru
          _
      $region12: #{vae_forward.1} parent=5 // pred_fallthru
        _
      %p924 = scmp.lt.s32.totalorder %s72, 2
      // Predicated region
      $region125: #{vae_forward.1} parent=5 // pred_check
        %p925 = pneg %p924
      $region126: #{vae_forward.1} parent=5 // pred_check_branch
        %927 = sbr.rel (%p925) target = $region128
      $region127: #{vae_forward.1} parent=5 // pred_region
        // Predicated region
        $region129: #{vae_forward.1} parent=127 // pred_check
          %p928 = pneg %p92
        $region130: #{vae_forward.1} parent=127 // pred_check_branch
          %930 = sbr.rel (%p928) target = $region132
        $region131: #{vae_forward.1} parent=127 // pred_region
          %p931 = scmp.lt.s32.totalorder %s72, 1
          %s932 = scalar_select %p931, %s72, 1
          %s933 = smul.addr %s932, 4
          %s934 = smul.addr %s933, 8
          %s935 = scalar_lea.vmem %s1, %s934
        $region132: #{vae_forward.1} parent=127 // pred_fallthru
          _
        // Predicated region
        $region133: #{vae_forward.1} parent=127 // pred_check
          %p936 = pneg %p118
        $region134: #{vae_forward.1} parent=127 // pred_check_branch
          %938 = sbr.rel (%p936) target = $region136
        $region135: #{vae_forward.1} parent=127 // pred_region
          %p939 = scmp.lt.s32.totalorder %s72, 1
          %s940 = scalar_select %p939, %s72, 1
          %s941 = scalar_lea.vmem %s3, %s940
        $region136: #{vae_forward.1} parent=127 // pred_fallthru
          _
      $region128: #{vae_forward.1} parent=5 // pred_fallthru
        _
      %p942 = scmp.le.s32.totalorder 1, %s72
      %p943 = scmp.lt.s32.totalorder %s72, 3
      %p944 = pnand %p942, %p943
      %p945 = pneg %p944
      // Predicated region
      $region137: #{vae_forward.1} parent=5 // pred_check
        _
      $region138: #{vae_forward.1} parent=5 // pred_check_branch
        %947 = sbr.rel (%p944) target = $region140
      $region139: #{vae_forward.1} parent=5 // pred_region
        %s948 = ssub.s32 %s72, 1
        // Predicated region
        $region141: #{vae_forward.1} parent=139 // pred_check
          %p949 = pneg %p208
        $region142: #{vae_forward.1} parent=139 // pred_check_branch
          %951 = sbr.rel (%p949) target = $region144
        $region143: #{vae_forward.1} parent=139 // pred_region
          %953 = dma.done [#allocation3], 576
        $region144: #{vae_forward.1} parent=139 // pred_fallthru
          _
        // Predicated region
        $region145: #{vae_forward.1} parent=139 // pred_check
          %p954 = pneg %p334
        $region146: #{vae_forward.1} parent=139 // pred_check_branch
          %956 = sbr.rel (%p954) target = $region148
        $region147: #{vae_forward.1} parent=139 // pred_region
          %958 = dma.done [#allocation5], 2304
        $region148: #{vae_forward.1} parent=139 // pred_fallthru
          _
        // Predicated region
        $region149: #{vae_forward.1} parent=139 // pred_check
          %p959 = pneg %p397
        $region150: #{vae_forward.1} parent=139 // pred_check_branch
          %961 = sbr.rel (%p959) target = $region152
        $region151: #{vae_forward.1} parent=139 // pred_region
          %963 = dma.done [#allocation5], 16
        $region152: #{vae_forward.1} parent=139 // pred_fallthru
          _
        // Predicated region
        $region153: #{vae_forward.1} parent=139 // pred_check
          %p964 = pneg %p439
        $region154: #{vae_forward.1} parent=139 // pred_check_branch
          %966 = sbr.rel (%p964) target = $region156
        $region155: #{vae_forward.1} parent=139 // pred_region
          %968 = dma.done [#allocation8], 16
        $region156: #{vae_forward.1} parent=139 // pred_fallthru
          _
        // Predicated region
        $region157: #{vae_forward.1} parent=139 // pred_check
          %p969 = pneg %p481
        $region158: #{vae_forward.1} parent=139 // pred_check_branch
          %971 = sbr.rel (%p969) target = $region160
        $region159: #{vae_forward.1} parent=139 // pred_region
          %973 = dma.done [#allocation8], 16
        $region160: #{vae_forward.1} parent=139 // pred_fallthru
          _
        // Predicated region
        $region161: #{vae_forward.1} parent=139 // pred_check
          %p974 = pneg %p502
        $region162: #{vae_forward.1} parent=139 // pred_check_branch
          %976 = sbr.rel (%p974) target = $region164
        $region163: #{vae_forward.1} parent=139 // pred_region
          %978 = dma.done [#allocation11], 1536
        $region164: #{vae_forward.1} parent=139 // pred_fallthru
          _
        // Predicated region
        $region165: #{vae_forward.1} parent=139 // pred_check
          %p979 = pneg %p586
        $region166: #{vae_forward.1} parent=139 // pred_check_branch
          %981 = sbr.rel (%p979) target = $region168
        $region167: #{vae_forward.1} parent=139 // pred_region
          %983 = dma.done [#allocation11], 16
        $region168: #{vae_forward.1} parent=139 // pred_fallthru
          _
        // Predicated region
        $region169: #{vae_forward.1} parent=139 // pred_check
          %p984 = pneg %p649
        $region170: #{vae_forward.1} parent=139 // pred_check_branch
          %986 = sbr.rel (%p984) target = $region172
        $region171: #{vae_forward.1} parent=139 // pred_region
          %988 = dma.done [#allocation14], 16
        $region172: #{vae_forward.1} parent=139 // pred_fallthru
          _
        // Predicated region
        $region173: #{vae_forward.1} parent=139 // pred_check
          %p989 = pneg %p712
        $region174: #{vae_forward.1} parent=139 // pred_check_branch
          %991 = sbr.rel (%p989) target = $region176
        $region175: #{vae_forward.1} parent=139 // pred_region
          %993 = dma.done [#allocation14], 16
        $region176: #{vae_forward.1} parent=139 // pred_fallthru
          _
        %p994 = scmp.lt.s32.totalorder %s77, 1
        %s995 = scalar_select %p994, %s77, 1
        %s996 = smul.addr %s995, 4
        %s997 = smul.addr %s996, 8
        %s998 = scalar_lea.vmem %s1, %s997
        %p999 = pneg %p98
        %p1000 = pneg %p95
        %p1001 = scmp.lt.s32.totalorder %s77, 1
        %s1002 = scalar_select %p1001, %s77, 1
        %s1003 = scalar_lea.vmem %s3, %s1002
        %p1004 = pneg %p124
        %p1005 = pneg %p121
        %p1006 = pneg %p145
        %p1007 = pneg %p142
        %p1008 = pneg %p166
        %p1009 = pneg %p163
        %p1010 = pneg %p187
        %p1011 = pneg %p184
        %p1012 = pneg %p208
        %p1013 = pneg %p205
        %p1014 = pneg %p229
        %p1015 = pneg %p226
        %p1016 = pneg %p250
        %p1017 = pneg %p247
        %p1018 = pneg %p271
        %p1019 = pneg %p268
        %p1020 = pneg %p292
        %p1021 = pneg %p289
        %p1022 = pneg %p313
        %p1023 = pneg %p310
        %p1024 = pneg %p334
        %p1025 = pneg %p331
        %p1026 = pneg %p355
        %p1027 = pneg %p352
        %p1028 = pneg %p376
        %p1029 = pneg %p373
        %p1030 = pneg %p397
        %p1031 = pneg %p394
        %p1032 = pneg %p418
        %p1033 = pneg %p415
        %p1034 = pneg %p439
        %p1035 = pneg %p436
        %p1036 = pneg %p460
        %p1037 = pneg %p457
        %p1038 = pneg %p481
        %p1039 = pneg %p478
        %p1040 = pneg %p502
        %p1041 = pneg %p499
        %p1042 = pneg %p523
        %p1043 = pneg %p520
        %p1044 = pneg %p544
        %p1045 = pneg %p541
        %p1046 = pneg %p565
        %p1047 = pneg %p562
        %p1048 = pneg %p586
        %p1049 = pneg %p583
        %p1050 = pneg %p607
        %p1051 = pneg %p604
        %p1052 = pneg %p628
        %p1053 = pneg %p625
        %p1054 = pneg %p649
        %p1055 = pneg %p646
        %p1056 = pneg %p670
        %p1057 = pneg %p667
        %p1058 = pneg %p691
        %p1059 = pneg %p688
        %p1060 = pneg %p712
        %p1061 = pneg %p709
        %p1062 = pneg %p738
        %p1063 = pneg %p735
        %p1064 = scmp.lt.s32.totalorder %s77, 1
        %s1065 = scalar_select %p1064, %s77, 1
        %s1066 = smul.addr %s1065, 4
        %s1067 = smul.addr %s1066, 8
        %s1068 = scalar_lea.vmem %s61, %s1067
        %p1069 = scmp.lt.s32.totalorder %s77, 1
        %s1070 = scalar_select %p1069, %s77, 1
        %s1071 = smul.addr %s1070, 4
        %s1072 = smul.addr %s1071, 8
        %s1073 = scalar_lea.vmem %s1, %s1072
        %p1074 = scmp.lt.s32.totalorder %s77, 1
        %s1075 = scalar_select %p1074, %s77, 1
        %s1076 = scalar_lea.vmem %s3, %s1075
        %p1077 = scmp.lt.s32.totalorder %s77, 1
        %s1078 = scalar_select %p1077, %s77, 1
        %s1079 = smul.addr %s1078, 4
        %s1080 = smul.addr %s1079, 8
        %s1081 = scalar_lea.vmem %s61, %s1080
        %v1083 = vld [vmem:[%s1073] sm:$0xff]
        %v1084 = vld [vmem:[%s1073 + $0x8] sm:$0xff]
        %v1085 = vld [vmem:[%s1073 + $0x10] sm:$0xff]
        %v1086 = vld [vmem:[%s1073 + $0x18] sm:$0xf]
        %v1087 = vpack.c.bf16 %v1084, %v1083
        %v1088 = vpack.c.bf16 %v1086, %v1085
        %v1089 = vld [vmem:[%s5] sm:$0xf]
        %v1090 = vld [vmem:[%s5 + $0x4] sm:$0x7]
        %v1093 = vunpack.c.l.b16 %v1089
        %v1094 = vunpack.c.l.b16 %v1090
        %v1095 = vpack.c.b16 %v1094, %v1093
        %vm1096 = vcmask 228352
        %v1098 = vsel %vm1096, %v1095, 0
        %vm1100 = vcmask 1045504
        %v1102 = vsel %vm1100, %v1088, 0
        %1104 = vmatpush.bf16.msra.mxu0 0
        %1105 = vmatpush.bf16.msra.mxu0 0
        %1106 = vmatpush.bf16.msra.mxu0 0
        %1107 = vmatpush.bf16.msra.mxu0 0
        %1108 = vmatpush.bf16.msra.mxu0 0
        %1109 = vmatpush.bf16.msra.mxu0 0
        %1110 = vmatpush.bf16.msra.mxu0 %v1102
        %1111 = vmatpush.bf16.msra.mxu0 %v1087
        %1112 = vmatmul.bf16.gmra.mxu0 %v1098
        %v1113 = vpop.f32.mrf.mxu0
        %v1114 = vadd.f32 0.0, %v1113
        %v1115 = vpop.f32.mrf.mxu0
        %v1116 = vadd.f32 0.0, %v1115
        %1117 = vdwg.mxu0
        %v1118 = vld [vmem:[%s7] sm:$0xf]
        %v1119 = vld [vmem:[%s7 + $0x4] sm:$0xf]
        %v1120 = vld [vmem:[%s7 + $0x8] sm:$0xf]
        %v1121 = vld [vmem:[%s7 + $0xc] sm:$0x3]
        %v1122 = vpack.c.bf16 %v1116, %v1114
        %s1123 = scalar_lea.vmem %s5, 8
        %v1124 = vld [vmem:[%s1123] sm:$0xf]
        %v1125 = vld [vmem:[%s1123 + $0x4] sm:$0x7]
        %v1128 = vunpack.c.l.b16 %v1124
        %v1129 = vunpack.c.l.b16 %v1125
        %v1130 = vpack.c.b16 %v1129, %v1128
        %v1132 = vsel %vm1096, %v1130, 0
        %1134 = vmatpush.bf16.msra.mxu0 0
        %1135 = vmatpush.bf16.msra.mxu0 0
        %1136 = vmatpush.bf16.msra.mxu0 0
        %1137 = vmatpush.bf16.msra.mxu0 0
        %1138 = vmatpush.bf16.msra.mxu0 0
        %1139 = vmatpush.bf16.msra.mxu0 0
        %1140 = vmatpush.bf16.msra.mxu0 %v1102
        %1141 = vmatpush.bf16.msra.mxu0 %v1087
        %1142 = vmatmul.bf16.gmra.mxu0 %v1132
        %v1143 = vpop.f32.mrf.mxu0
        %v1144 = vadd.f32 0.0, %v1143
        %v1145 = vpop.f32.mrf.mxu0
        %v1146 = vadd.f32 0.0, %v1145
        %1147 = vdwg.mxu0
        %s1148 = scalar_lea.vmem %s7, 16
        %v1149 = vld [vmem:[%s1148] sm:$0xf]
        %v1150 = vld [vmem:[%s1148 + $0x4] sm:$0xf]
        %v1151 = vld [vmem:[%s1148 + $0x8] sm:$0xf]
        %v1152 = vld [vmem:[%s1148 + $0xc] sm:$0x3]
        %v1153 = vpack.c.bf16 %v1146, %v1144
        %v1158 = vunpack.c.l.b16 %v1149
        %v1159 = vunpack.c.l.b16 %v1150
        %v1160 = vunpack.c.l.b16 %v1151
        %v1161 = vunpack.c.l.b16 %v1152
        %v1162 = vpack.c.b16 %v1159, %v1158
        %v1163 = vpack.c.b16 %v1161, %v1160
        %v1166 = vsel %vm1096, %v1153, 0
        %v1169 = vsel %vm1100, %v1163, 0
        %1171 = vmatpush.bf16.msra.mxu0 0
        %1172 = vmatpush.bf16.msra.mxu0 0
        %1173 = vmatpush.bf16.msra.mxu0 0
        %1174 = vmatpush.bf16.msra.mxu0 0
        %1175 = vmatpush.bf16.msra.mxu0 0
        %1176 = vmatpush.bf16.msra.mxu0 0
        %1177 = vmatpush.bf16.msra.mxu0 %v1169
        %1178 = vmatpush.bf16.msra.mxu0 %v1162
        %1179 = vmatmul.bf16.gmra.mxu0 %v1166
        %v1180 = vpop.f32.mrf.mxu0
        %v1181 = vadd.f32 0.0, %v1180
        %v1182 = vpop.f32.mrf.mxu0
        %v1183 = vadd.f32 0.0, %v1182
        %1184 = vdwg.mxu0
        %v1189 = vunpack.c.l.b16 %v1118
        %v1190 = vunpack.c.l.b16 %v1119
        %v1191 = vunpack.c.l.b16 %v1120
        %v1192 = vunpack.c.l.b16 %v1121
        %v1193 = vpack.c.b16 %v1190, %v1189
        %v1194 = vpack.c.b16 %v1192, %v1191
        %v1197 = vsel %vm1096, %v1122, 0
        %v1200 = vsel %vm1100, %v1194, 0
        %1202 = vmatpush.bf16.msra.mxu0 0
        %1203 = vmatpush.bf16.msra.mxu0 0
        %1204 = vmatpush.bf16.msra.mxu0 0
        %1205 = vmatpush.bf16.msra.mxu0 0
        %1206 = vmatpush.bf16.msra.mxu0 0
        %1207 = vmatpush.bf16.msra.mxu0 0
        %1208 = vmatpush.bf16.msra.mxu0 %v1200
        %1209 = vmatpush.bf16.msra.mxu0 %v1193
        %1210 = vmatmul.bf16.gmra.mxu0 %v1197
        %v1211 = vpop.f32.mrf.mxu0
        %v1212 = vadd.f32 %v1181, %v1211
        %v1213 = vpop.f32.mrf.mxu0
        %v1214 = vadd.f32 %v1183, %v1213
        %1215 = vdwg.mxu0
        %s1216 = scalar_lea.vmem %s5, 16
        %v1217 = vld [vmem:[%s1216] sm:$0xf]
        %v1218 = vld [vmem:[%s1216 + $0x4] sm:$0x7]
        %v1221 = vunpack.c.l.b16 %v1217
        %v1222 = vunpack.c.l.b16 %v1218
        %v1223 = vpack.c.b16 %v1222, %v1221
        %v1225 = vsel %vm1096, %v1223, 0
        %1227 = vmatpush.bf16.msra.mxu0 0
        %1228 = vmatpush.bf16.msra.mxu0 0
        %1229 = vmatpush.bf16.msra.mxu0 0
        %1230 = vmatpush.bf16.msra.mxu0 0
        %1231 = vmatpush.bf16.msra.mxu0 0
        %1232 = vmatpush.bf16.msra.mxu0 0
        %1233 = vmatpush.bf16.msra.mxu0 %v1102
        %1234 = vmatpush.bf16.msra.mxu0 %v1087
        %1235 = vmatmul.bf16.gmra.mxu0 %v1225
        %v1236 = vpop.f32.mrf.mxu0
        %v1237 = vadd.f32 0.0, %v1236
        %v1238 = vpop.f32.mrf.mxu0
        %v1239 = vadd.f32 0.0, %v1238
        %1240 = vdwg.mxu0
        %s1241 = scalar_lea.vmem %s7, 32
        %v1242 = vld [vmem:[%s1241] sm:$0xf]
        %v1243 = vld [vmem:[%s1241 + $0x4] sm:$0xf]
        %v1244 = vld [vmem:[%s1241 + $0x8] sm:$0xf]
        %v1245 = vld [vmem:[%s1241 + $0xc] sm:$0x3]
        %v1246 = vpack.c.bf16 %v1239, %v1237
        %v1251 = vunpack.c.l.b16 %v1242
        %v1252 = vunpack.c.l.b16 %v1243
        %v1253 = vunpack.c.l.b16 %v1244
        %v1254 = vunpack.c.l.b16 %v1245
        %v1255 = vpack.c.b16 %v1252, %v1251
        %v1256 = vpack.c.b16 %v1254, %v1253
        %v1259 = vsel %vm1096, %v1246, 0
        %v1262 = vsel %vm1100, %v1256, 0
        %1264 = vmatpush.bf16.msra.mxu0 0
        %1265 = vmatpush.bf16.msra.mxu0 0
        %1266 = vmatpush.bf16.msra.mxu0 0
        %1267 = vmatpush.bf16.msra.mxu0 0
        %1268 = vmatpush.bf16.msra.mxu0 0
        %1269 = vmatpush.bf16.msra.mxu0 0
        %1270 = vmatpush.bf16.msra.mxu0 %v1262
        %1271 = vmatpush.bf16.msra.mxu0 %v1255
        %1272 = vmatmul.bf16.gmra.mxu0 %v1259
        %v1273 = vpop.f32.mrf.mxu0
        %v1274 = vadd.f32 0.0, %v1273
        %v1275 = vpop.f32.mrf.mxu0
        %v1276 = vadd.f32 0.0, %v1275
        %1277 = vdwg.mxu0
        %v1278 = vadd.f32 %v1212, %v1274
        %v1279 = vadd.f32 %v1214, %v1276
        %s1280 = scalar_lea.vmem %s5, 24
        %v1281 = vld [vmem:[%s1280] sm:$0xf]
        %v1282 = vld [vmem:[%s1280 + $0x4] sm:$0x7]
        %v1285 = vunpack.c.l.b16 %v1281
        %v1286 = vunpack.c.l.b16 %v1282
        %v1287 = vpack.c.b16 %v1286, %v1285
        %v1289 = vsel %vm1096, %v1287, 0
        %1291 = vmatpush.bf16.msra.mxu0 0
        %1292 = vmatpush.bf16.msra.mxu0 0
        %1293 = vmatpush.bf16.msra.mxu0 0
        %1294 = vmatpush.bf16.msra.mxu0 0
        %1295 = vmatpush.bf16.msra.mxu0 0
        %1296 = vmatpush.bf16.msra.mxu0 0
        %1297 = vmatpush.bf16.msra.mxu0 %v1102
        %1298 = vmatpush.bf16.msra.mxu0 %v1087
        %1299 = vmatmul.bf16.gmra.mxu0 %v1289
        %v1300 = vpop.f32.mrf.mxu0
        %v1301 = vadd.f32 0.0, %v1300
        %v1302 = vpop.f32.mrf.mxu0
        %v1303 = vadd.f32 0.0, %v1302
        %1304 = vdwg.mxu0
        %s1305 = scalar_lea.vmem %s7, 48
        %v1306 = vld [vmem:[%s1305] sm:$0xf]
        %v1307 = vld [vmem:[%s1305 + $0x4] sm:$0xf]
        %v1308 = vld [vmem:[%s1305 + $0x8] sm:$0xf]
        %v1309 = vld [vmem:[%s1305 + $0xc] sm:$0x3]
        %v1310 = vpack.c.bf16 %v1303, %v1301
        %v1315 = vunpack.c.l.b16 %v1306
        %v1316 = vunpack.c.l.b16 %v1307
        %v1317 = vunpack.c.l.b16 %v1308
        %v1318 = vunpack.c.l.b16 %v1309
        %v1319 = vpack.c.b16 %v1316, %v1315
        %v1320 = vpack.c.b16 %v1318, %v1317
        %v1323 = vsel %vm1096, %v1310, 0
        %v1326 = vsel %vm1100, %v1320, 0
        %1328 = vmatpush.bf16.msra.mxu0 0
        %1329 = vmatpush.bf16.msra.mxu0 0
        %1330 = vmatpush.bf16.msra.mxu0 0
        %1331 = vmatpush.bf16.msra.mxu0 0
        %1332 = vmatpush.bf16.msra.mxu0 0
        %1333 = vmatpush.bf16.msra.mxu0 0
        %1334 = vmatpush.bf16.msra.mxu0 %v1326
        %1335 = vmatpush.bf16.msra.mxu0 %v1319
        %1336 = vmatmul.bf16.gmra.mxu0 %v1323
        %v1337 = vpop.f32.mrf.mxu0
        %v1338 = vadd.f32 0.0, %v1337
        %v1339 = vpop.f32.mrf.mxu0
        %v1340 = vadd.f32 0.0, %v1339
        %1341 = vdwg.mxu0
        %v1342 = vadd.f32 %v1278, %v1338
        %v1343 = vadd.f32 %v1279, %v1340
        %s1344 = scalar_lea.vmem %s5, 32
        %v1345 = vld [vmem:[%s1344] sm:$0xf]
        %v1346 = vld [vmem:[%s1344 + $0x4] sm:$0x7]
        %v1349 = vunpack.c.l.b16 %v1345
        %v1350 = vunpack.c.l.b16 %v1346
        %v1351 = vpack.c.b16 %v1350, %v1349
        %v1353 = vsel %vm1096, %v1351, 0
        %1355 = vmatpush.bf16.msra.mxu0 0
        %1356 = vmatpush.bf16.msra.mxu0 0
        %1357 = vmatpush.bf16.msra.mxu0 0
        %1358 = vmatpush.bf16.msra.mxu0 0
        %1359 = vmatpush.bf16.msra.mxu0 0
        %1360 = vmatpush.bf16.msra.mxu0 0
        %1361 = vmatpush.bf16.msra.mxu0 %v1102
        %1362 = vmatpush.bf16.msra.mxu0 %v1087
        %1363 = vmatmul.bf16.gmra.mxu0 %v1353
        %v1364 = vpop.f32.mrf.mxu0
        %v1365 = vadd.f32 0.0, %v1364
        %v1366 = vpop.f32.mrf.mxu0
        %v1367 = vadd.f32 0.0, %v1366
        %1368 = vdwg.mxu0
        %s1369 = scalar_lea.vmem %s7, 64
        %v1370 = vld [vmem:[%s1369] sm:$0xf]
        %v1371 = vld [vmem:[%s1369 + $0x4] sm:$0xf]
        %v1372 = vld [vmem:[%s1369 + $0x8] sm:$0xf]
        %v1373 = vld [vmem:[%s1369 + $0xc] sm:$0x3]
        %v1374 = vpack.c.bf16 %v1367, %v1365
        %v1379 = vunpack.c.l.b16 %v1370
        %v1380 = vunpack.c.l.b16 %v1371
        %v1381 = vunpack.c.l.b16 %v1372
        %v1382 = vunpack.c.l.b16 %v1373
        %v1383 = vpack.c.b16 %v1380, %v1379
        %v1384 = vpack.c.b16 %v1382, %v1381
        %v1387 = vsel %vm1096, %v1374, 0
        %v1390 = vsel %vm1100, %v1384, 0
        %1392 = vmatpush.bf16.msra.mxu0 0
        %1393 = vmatpush.bf16.msra.mxu0 0
        %1394 = vmatpush.bf16.msra.mxu0 0
        %1395 = vmatpush.bf16.msra.mxu0 0
        %1396 = vmatpush.bf16.msra.mxu0 0
        %1397 = vmatpush.bf16.msra.mxu0 0
        %1398 = vmatpush.bf16.msra.mxu0 %v1390
        %1399 = vmatpush.bf16.msra.mxu0 %v1383
        %1400 = vmatmul.bf16.gmra.mxu0 %v1387
        %v1401 = vpop.f32.mrf.mxu0
        %v1402 = vadd.f32 0.0, %v1401
        %v1403 = vpop.f32.mrf.mxu0
        %v1404 = vadd.f32 0.0, %v1403
        %1405 = vdwg.mxu0
        %v1406 = vadd.f32 %v1342, %v1402
        %v1407 = vadd.f32 %v1343, %v1404
        %s1408 = scalar_lea.vmem %s5, 40
        %v1409 = vld [vmem:[%s1408] sm:$0xf]
        %v1410 = vld [vmem:[%s1408 + $0x4] sm:$0x7]
        %v1413 = vunpack.c.l.b16 %v1409
        %v1414 = vunpack.c.l.b16 %v1410
        %v1415 = vpack.c.b16 %v1414, %v1413
        %v1417 = vsel %vm1096, %v1415, 0
        %1419 = vmatpush.bf16.msra.mxu0 0
        %1420 = vmatpush.bf16.msra.mxu0 0
        %1421 = vmatpush.bf16.msra.mxu0 0
        %1422 = vmatpush.bf16.msra.mxu0 0
        %1423 = vmatpush.bf16.msra.mxu0 0
        %1424 = vmatpush.bf16.msra.mxu0 0
        %1425 = vmatpush.bf16.msra.mxu0 %v1102
        %1426 = vmatpush.bf16.msra.mxu0 %v1087
        %1427 = vmatmul.bf16.gmra.mxu0 %v1417
        %v1428 = vpop.f32.mrf.mxu0
        %v1429 = vadd.f32 0.0, %v1428
        %v1430 = vpop.f32.mrf.mxu0
        %v1431 = vadd.f32 0.0, %v1430
        %1432 = vdwg.mxu0
        %s1433 = scalar_lea.vmem %s7, 80
        %v1434 = vld [vmem:[%s1433] sm:$0xf]
        %v1435 = vld [vmem:[%s1433 + $0x4] sm:$0xf]
        %v1436 = vld [vmem:[%s1433 + $0x8] sm:$0xf]
        %v1437 = vld [vmem:[%s1433 + $0xc] sm:$0x3]
        %v1438 = vpack.c.bf16 %v1431, %v1429
        %v1443 = vunpack.c.l.b16 %v1434
        %v1444 = vunpack.c.l.b16 %v1435
        %v1445 = vunpack.c.l.b16 %v1436
        %v1446 = vunpack.c.l.b16 %v1437
        %v1447 = vpack.c.b16 %v1444, %v1443
        %v1448 = vpack.c.b16 %v1446, %v1445
        %v1451 = vsel %vm1096, %v1438, 0
        %v1454 = vsel %vm1100, %v1448, 0
        %1456 = vmatpush.bf16.msra.mxu0 0
        %1457 = vmatpush.bf16.msra.mxu0 0
        %1458 = vmatpush.bf16.msra.mxu0 0
        %1459 = vmatpush.bf16.msra.mxu0 0
        %1460 = vmatpush.bf16.msra.mxu0 0
        %1461 = vmatpush.bf16.msra.mxu0 0
        %1462 = vmatpush.bf16.msra.mxu0 %v1454
        %1463 = vmatpush.bf16.msra.mxu0 %v1447
        %1464 = vmatmul.bf16.gmra.mxu0 %v1451
        %v1465 = vpop.f32.mrf.mxu0
        %v1466 = vadd.f32 0.0, %v1465
        %v1467 = vpop.f32.mrf.mxu0
        %v1468 = vadd.f32 0.0, %v1467
        %1469 = vdwg.mxu0
        %v1470 = vadd.f32 %v1406, %v1466
        %v1471 = vadd.f32 %v1407, %v1468
        %s1472 = scalar_lea.vmem %s5, 48
        %v1473 = vld [vmem:[%s1472] sm:$0xf]
        %v1474 = vld [vmem:[%s1472 + $0x4] sm:$0x7]
        %v1477 = vunpack.c.l.b16 %v1473
        %v1478 = vunpack.c.l.b16 %v1474
        %v1479 = vpack.c.b16 %v1478, %v1477
        %v1481 = vsel %vm1096, %v1479, 0
        %1483 = vmatpush.bf16.msra.mxu0 0
        %1484 = vmatpush.bf16.msra.mxu0 0
        %1485 = vmatpush.bf16.msra.mxu0 0
        %1486 = vmatpush.bf16.msra.mxu0 0
        %1487 = vmatpush.bf16.msra.mxu0 0
        %1488 = vmatpush.bf16.msra.mxu0 0
        %1489 = vmatpush.bf16.msra.mxu0 %v1102
        %1490 = vmatpush.bf16.msra.mxu0 %v1087
        %1491 = vmatmul.bf16.gmra.mxu0 %v1481
        %v1492 = vpop.f32.mrf.mxu0
        %v1493 = vadd.f32 0.0, %v1492
        %v1494 = vpop.f32.mrf.mxu0
        %v1495 = vadd.f32 0.0, %v1494
        %1496 = vdwg.mxu0
        %s1497 = scalar_lea.vmem %s7, 96
        %v1498 = vld [vmem:[%s1497] sm:$0xf]
        %v1499 = vld [vmem:[%s1497 + $0x4] sm:$0xf]
        %v1500 = vld [vmem:[%s1497 + $0x8] sm:$0xf]
        %v1501 = vld [vmem:[%s1497 + $0xc] sm:$0x3]
        %v1502 = vpack.c.bf16 %v1495, %v1493
        %v1507 = vunpack.c.l.b16 %v1498
        %v1508 = vunpack.c.l.b16 %v1499
        %v1509 = vunpack.c.l.b16 %v1500
        %v1510 = vunpack.c.l.b16 %v1501
        %v1511 = vpack.c.b16 %v1508, %v1507
        %v1512 = vpack.c.b16 %v1510, %v1509
        %v1515 = vsel %vm1096, %v1502, 0
        %v1518 = vsel %vm1100, %v1512, 0
        %1520 = vmatpush.bf16.msra.mxu0 0
        %1521 = vmatpush.bf16.msra.mxu0 0
        %1522 = vmatpush.bf16.msra.mxu0 0
        %1523 = vmatpush.bf16.msra.mxu0 0
        %1524 = vmatpush.bf16.msra.mxu0 0
        %1525 = vmatpush.bf16.msra.mxu0 0
        %1526 = vmatpush.bf16.msra.mxu0 %v1518
        %1527 = vmatpush.bf16.msra.mxu0 %v1511
        %1528 = vmatmul.bf16.gmra.mxu0 %v1515
        %v1529 = vpop.f32.mrf.mxu0
        %v1530 = vadd.f32 0.0, %v1529
        %v1531 = vpop.f32.mrf.mxu0
        %v1532 = vadd.f32 0.0, %v1531
        %1533 = vdwg.mxu0
        %v1534 = vadd.f32 %v1470, %v1530
        %v1535 = vadd.f32 %v1471, %v1532
        %s1536 = scalar_lea.vmem %s5, 56
        %v1537 = vld [vmem:[%s1536] sm:$0xf]
        %v1538 = vld [vmem:[%s1536 + $0x4] sm:$0x7]
        %v1541 = vunpack.c.l.b16 %v1537
        %v1542 = vunpack.c.l.b16 %v1538
        %v1543 = vpack.c.b16 %v1542, %v1541
        %v1545 = vsel %vm1096, %v1543, 0
        %1547 = vmatpush.bf16.msra.mxu0 0
        %1548 = vmatpush.bf16.msra.mxu0 0
        %1549 = vmatpush.bf16.msra.mxu0 0
        %1550 = vmatpush.bf16.msra.mxu0 0
        %1551 = vmatpush.bf16.msra.mxu0 0
        %1552 = vmatpush.bf16.msra.mxu0 0
        %1553 = vmatpush.bf16.msra.mxu0 %v1102
        %1554 = vmatpush.bf16.msra.mxu0 %v1087
        %1555 = vmatmul.bf16.gmra.mxu0 %v1545
        %v1556 = vpop.f32.mrf.mxu0
        %v1557 = vadd.f32 0.0, %v1556
        %v1558 = vpop.f32.mrf.mxu0
        %v1559 = vadd.f32 0.0, %v1558
        %1560 = vdwg.mxu0
        %s1561 = scalar_lea.vmem %s7, 112
        %v1562 = vld [vmem:[%s1561] sm:$0xf]
        %v1563 = vld [vmem:[%s1561 + $0x4] sm:$0xf]
        %v1564 = vld [vmem:[%s1561 + $0x8] sm:$0xf]
        %v1565 = vld [vmem:[%s1561 + $0xc] sm:$0x3]
        %v1566 = vpack.c.bf16 %v1559, %v1557
        %v1571 = vunpack.c.l.b16 %v1562
        %v1572 = vunpack.c.l.b16 %v1563
        %v1573 = vunpack.c.l.b16 %v1564
        %v1574 = vunpack.c.l.b16 %v1565
        %v1575 = vpack.c.b16 %v1572, %v1571
        %v1576 = vpack.c.b16 %v1574, %v1573
        %v1579 = vsel %vm1096, %v1566, 0
        %v1582 = vsel %vm1100, %v1576, 0
        %1584 = vmatpush.bf16.msra.mxu0 0
        %1585 = vmatpush.bf16.msra.mxu0 0
        %1586 = vmatpush.bf16.msra.mxu0 0
        %1587 = vmatpush.bf16.msra.mxu0 0
        %1588 = vmatpush.bf16.msra.mxu0 0
        %1589 = vmatpush.bf16.msra.mxu0 0
        %1590 = vmatpush.bf16.msra.mxu0 %v1582
        %1591 = vmatpush.bf16.msra.mxu0 %v1575
        %1592 = vmatmul.bf16.gmra.mxu0 %v1579
        %v1593 = vpop.f32.mrf.mxu0
        %v1594 = vadd.f32 0.0, %v1593
        %v1595 = vpop.f32.mrf.mxu0
        %v1596 = vadd.f32 0.0, %v1595
        %1597 = vdwg.mxu0
        %v1598 = vadd.f32 %v1534, %v1594
        %v1599 = vadd.f32 %v1535, %v1596
        %s1600 = scalar_lea.vmem %s5, 64
        %v1601 = vld [vmem:[%s1600] sm:$0xf]
        %v1602 = vld [vmem:[%s1600 + $0x4] sm:$0x7]
        %v1605 = vunpack.c.l.b16 %v1601
        %v1606 = vunpack.c.l.b16 %v1602
        %v1607 = vpack.c.b16 %v1606, %v1605
        %v1609 = vsel %vm1096, %v1607, 0
        %1611 = vmatpush.bf16.msra.mxu0 0
        %1612 = vmatpush.bf16.msra.mxu0 0
        %1613 = vmatpush.bf16.msra.mxu0 0
        %1614 = vmatpush.bf16.msra.mxu0 0
        %1615 = vmatpush.bf16.msra.mxu0 0
        %1616 = vmatpush.bf16.msra.mxu0 0
        %1617 = vmatpush.bf16.msra.mxu0 %v1102
        %1618 = vmatpush.bf16.msra.mxu0 %v1087
        %1619 = vmatmul.bf16.gmra.mxu0 %v1609
        %v1620 = vpop.f32.mrf.mxu0
        %v1621 = vadd.f32 0.0, %v1620
        %v1622 = vpop.f32.mrf.mxu0
        %v1623 = vadd.f32 0.0, %v1622
        %1624 = vdwg.mxu0
        %s1625 = scalar_lea.vmem %s7, 128
        %v1626 = vld [vmem:[%s1625] sm:$0xf]
        %v1627 = vld [vmem:[%s1625 + $0x4] sm:$0xf]
        %v1628 = vld [vmem:[%s1625 + $0x8] sm:$0xf]
        %v1629 = vld [vmem:[%s1625 + $0xc] sm:$0x3]
        %v1630 = vpack.c.bf16 %v1623, %v1621
        %v1635 = vunpack.c.l.b16 %v1626
        %v1636 = vunpack.c.l.b16 %v1627
        %v1637 = vunpack.c.l.b16 %v1628
        %v1638 = vunpack.c.l.b16 %v1629
        %v1639 = vpack.c.b16 %v1636, %v1635
        %v1640 = vpack.c.b16 %v1638, %v1637
        %v1643 = vsel %vm1096, %v1630, 0
        %v1646 = vsel %vm1100, %v1640, 0
        %1648 = vmatpush.bf16.msra.mxu0 0
        %1649 = vmatpush.bf16.msra.mxu0 0
        %1650 = vmatpush.bf16.msra.mxu0 0
        %1651 = vmatpush.bf16.msra.mxu0 0
        %1652 = vmatpush.bf16.msra.mxu0 0
        %1653 = vmatpush.bf16.msra.mxu0 0
        %1654 = vmatpush.bf16.msra.mxu0 %v1646
        %1655 = vmatpush.bf16.msra.mxu0 %v1639
        %1656 = vmatmul.bf16.gmra.mxu0 %v1643
        %v1657 = vpop.f32.mrf.mxu0
        %v1658 = vadd.f32 0.0, %v1657
        %v1659 = vpop.f32.mrf.mxu0
        %v1660 = vadd.f32 0.0, %v1659
        %1661 = vdwg.mxu0
        %v1662 = vadd.f32 %v1598, %v1658
        %v1663 = vadd.f32 %v1599, %v1660
        %v1664 = vld [vmem:[%s9] sm:$0x1]
        %v1666 = vperm.slane %v1664, 0
        %v1668 = vadd.f32 %v1662, %v1666
        %v1669 = vadd.f32 %v1663, %v1666
        %v1670 = vmax.f32 %v1668, 0.0
        %v1671 = vmax.f32 %v1669, 0.0
        %v1672 = vpack.c.bf16 %v1671, %v1670
        %v1673 = vld [vmem:[#allocation2] sm:$0xf]
        %vm1674 = vcmask 113664
        %v1676 = vsel %vm1674, %v1673, 0
        %vm1678 = vcmask 1046528
        %v1680 = vsel %vm1678, %v1672, 0
        %1682 = vmatpush.bf16.msra.mxu0 0
        %1683 = vmatpush.bf16.msra.mxu0 0
        %1684 = vmatpush.bf16.msra.mxu0 0
        %1685 = vmatpush.bf16.msra.mxu0 0
        %1686 = vmatpush.bf16.msra.mxu0 0
        %1687 = vmatpush.bf16.msra.mxu0 0
        %1688 = vmatpush.bf16.msra.mxu0 0
        %1689 = vmatpush.bf16.msra.mxu0 %v1680
        %1690 = vmatmul.bf16.gmra.mxu0 %v1676
        %v1691 = vpop.f32.mrf.mxu0
        %v1692 = vadd.f32 0.0, %v1691
        %v1693 = vpop.f32.mrf.mxu0
        %1694 = vdwg.mxu0
        %v1695 = vld [vmem:[%s13] sm:$0xf]
        %v1696 = vld [vmem:[%s13 + $0x4] sm:$0xf]
        %v1697 = vld [vmem:[%s13 + $0x8] sm:$0xf]
        %v1698 = vld [vmem:[%s13 + $0xc] sm:$0xf]
        %v1699 = vld [vmem:[%s13 + $0x10] sm:$0xf]
        %v1700 = vld [vmem:[%s13 + $0x14] sm:$0xf]
        %v1701 = vld [vmem:[%s13 + $0x18] sm:$0xf]
        %v1702 = vld [vmem:[%s13 + $0x1c] sm:$0xf]
        %v1703 = vld [vmem:[%s13 + $0x20] sm:$0xf]
        %v1704 = vld [vmem:[%s13 + $0x24] sm:$0xf]
        %v1705 = vld [vmem:[%s13 + $0x28] sm:$0xf]
        %v1706 = vld [vmem:[%s13 + $0x2c] sm:$0xf]
        %v1707 = vld [vmem:[%s13 + $0x30] sm:$0xf]
        %v1708 = vld [vmem:[%s13 + $0x34] sm:$0xf]
        %v1709 = vpack.c.bf16 %v1692, %v1692
        %s1710 = scalar_lea.vmem [#allocation2], 4
        %v1711 = vld [vmem:[%s1710] sm:$0xf]
        %v1713 = vsel %vm1674, %v1711, 0
        %1715 = vmatpush.bf16.msra.mxu0 0
        %1716 = vmatpush.bf16.msra.mxu0 0
        %1717 = vmatpush.bf16.msra.mxu0 0
        %1718 = vmatpush.bf16.msra.mxu0 0
        %1719 = vmatpush.bf16.msra.mxu0 0
        %1720 = vmatpush.bf16.msra.mxu0 0
        %1721 = vmatpush.bf16.msra.mxu0 0
        %1722 = vmatpush.bf16.msra.mxu0 %v1680
        %1723 = vmatmul.bf16.gmra.mxu0 %v1713
        %v1724 = vpop.f32.mrf.mxu0
        %v1725 = vadd.f32 0.0, %v1724
        %v1726 = vpop.f32.mrf.mxu0
        %1727 = vdwg.mxu0
        %s1728 = scalar_lea.vmem %s13, 56
        %v1729 = vld [vmem:[%s1728] sm:$0xf]
        %v1730 = vld [vmem:[%s1728 + $0x4] sm:$0xf]
        %v1731 = vld [vmem:[%s1728 + $0x8] sm:$0xf]
        %v1732 = vld [vmem:[%s1728 + $0xc] sm:$0xf]
        %v1733 = vld [vmem:[%s1728 + $0x10] sm:$0xf]
        %v1734 = vld [vmem:[%s1728 + $0x14] sm:$0xf]
        %v1735 = vld [vmem:[%s1728 + $0x18] sm:$0xf]
        %v1736 = vld [vmem:[%s1728 + $0x1c] sm:$0xf]
        %v1737 = vld [vmem:[%s1728 + $0x20] sm:$0xf]
        %v1738 = vld [vmem:[%s1728 + $0x24] sm:$0xf]
        %v1739 = vld [vmem:[%s1728 + $0x28] sm:$0xf]
        %v1740 = vld [vmem:[%s1728 + $0x2c] sm:$0xf]
        %v1741 = vld [vmem:[%s1728 + $0x30] sm:$0xf]
        %v1742 = vld [vmem:[%s1728 + $0x34] sm:$0xf]
        %v1743 = vpack.c.bf16 %v1725, %v1725
        %v1758 = vunpack.c.l.b16 %v1729
        %v1759 = vunpack.c.l.b16 %v1730
        %v1760 = vunpack.c.l.b16 %v1731
        %v1761 = vunpack.c.l.b16 %v1732
        %v1762 = vunpack.c.l.b16 %v1733
        %v1763 = vunpack.c.l.b16 %v1734
        %v1764 = vunpack.c.l.b16 %v1735
        %v1765 = vunpack.c.l.b16 %v1736
        %v1766 = vunpack.c.l.b16 %v1737
        %v1767 = vunpack.c.l.b16 %v1738
        %v1768 = vunpack.c.l.b16 %v1739
        %v1769 = vunpack.c.l.b16 %v1740
        %v1770 = vunpack.c.l.b16 %v1741
        %v1771 = vunpack.c.l.b16 %v1742
        %v1772 = vpack.c.b16 %v1759, %v1758
        %v1773 = vpack.c.b16 %v1761, %v1760
        %v1774 = vpack.c.b16 %v1763, %v1762
        %v1775 = vpack.c.b16 %v1765, %v1764
        %v1776 = vpack.c.b16 %v1767, %v1766
        %v1777 = vpack.c.b16 %v1769, %v1768
        %v1778 = vpack.c.b16 %v1771, %v1770
        %vm1786 = vcmask 916480
        %v1788 = vsel %vm1786, %v1743, 0
        %1790 = vmatpush.bf16.msra.mxu0 0
        %1791 = vmatpush.bf16.msra.mxu0 %v1778
        %1792 = vmatpush.bf16.msra.mxu0 %v1777
        %1793 = vmatpush.bf16.msra.mxu0 %v1776
        %1794 = vmatpush.bf16.msra.mxu0 %v1775
        %1795 = vmatpush.bf16.msra.mxu0 %v1774
        %1796 = vmatpush.bf16.msra.mxu0 %v1773
        %1797 = vmatpush.bf16.msra.mxu0 %v1772
        %1798 = vmatmul.bf16.gmra.mxu0 %v1788
        %v1799 = vpop.f32.mrf.mxu0
        %v1800 = vadd.f32 0.0, %v1799
        %v1801 = vpop.f32.mrf.mxu0
        %1802 = vdwg.mxu0
        %v1817 = vunpack.c.l.b16 %v1695
        %v1818 = vunpack.c.l.b16 %v1696
        %v1819 = vunpack.c.l.b16 %v1697
        %v1820 = vunpack.c.l.b16 %v1698
        %v1821 = vunpack.c.l.b16 %v1699
        %v1822 = vunpack.c.l.b16 %v1700
        %v1823 = vunpack.c.l.b16 %v1701
        %v1824 = vunpack.c.l.b16 %v1702
        %v1825 = vunpack.c.l.b16 %v1703
        %v1826 = vunpack.c.l.b16 %v1704
        %v1827 = vunpack.c.l.b16 %v1705
        %v1828 = vunpack.c.l.b16 %v1706
        %v1829 = vunpack.c.l.b16 %v1707
        %v1830 = vunpack.c.l.b16 %v1708
        %v1831 = vpack.c.b16 %v1818, %v1817
        %v1832 = vpack.c.b16 %v1820, %v1819
        %v1833 = vpack.c.b16 %v1822, %v1821
        %v1834 = vpack.c.b16 %v1824, %v1823
        %v1835 = vpack.c.b16 %v1826, %v1825
        %v1836 = vpack.c.b16 %v1828, %v1827
        %v1837 = vpack.c.b16 %v1830, %v1829
        %v1846 = vsel %vm1786, %v1709, 0
        %1848 = vmatpush.bf16.msra.mxu0 0
        %1849 = vmatpush.bf16.msra.mxu0 %v1837
        %1850 = vmatpush.bf16.msra.mxu0 %v1836
        %1851 = vmatpush.bf16.msra.mxu0 %v1835
        %1852 = vmatpush.bf16.msra.mxu0 %v1834
        %1853 = vmatpush.bf16.msra.mxu0 %v1833
        %1854 = vmatpush.bf16.msra.mxu0 %v1832
        %1855 = vmatpush.bf16.msra.mxu0 %v1831
        %1856 = vmatmul.bf16.gmra.mxu0 %v1846
        %v1857 = vpop.f32.mrf.mxu0
        %v1858 = vadd.f32 %v1800, %v1857
        %v1859 = vpop.f32.mrf.mxu0
        %1860 = vdwg.mxu0
        %s1861 = scalar_lea.vmem [#allocation2], 8
        %v1862 = vld [vmem:[%s1861] sm:$0xf]
        %v1864 = vsel %vm1674, %v1862, 0
        %1866 = vmatpush.bf16.msra.mxu0 0
        %1867 = vmatpush.bf16.msra.mxu0 0
        %1868 = vmatpush.bf16.msra.mxu0 0
        %1869 = vmatpush.bf16.msra.mxu0 0
        %1870 = vmatpush.bf16.msra.mxu0 0
        %1871 = vmatpush.bf16.msra.mxu0 0
        %1872 = vmatpush.bf16.msra.mxu0 0
        %1873 = vmatpush.bf16.msra.mxu0 %v1680
        %1874 = vmatmul.bf16.gmra.mxu0 %v1864
        %v1875 = vpop.f32.mrf.mxu0
        %v1876 = vadd.f32 0.0, %v1875
        %v1877 = vpop.f32.mrf.mxu0
        %1878 = vdwg.mxu0
        %s1879 = scalar_lea.vmem %s13, 112
        %v1880 = vld [vmem:[%s1879] sm:$0xf]
        %v1881 = vld [vmem:[%s1879 + $0x4] sm:$0xf]
        %v1882 = vld [vmem:[%s1879 + $0x8] sm:$0xf]
        %v1883 = vld [vmem:[%s1879 + $0xc] sm:$0xf]
        %v1884 = vld [vmem:[%s1879 + $0x10] sm:$0xf]
        %v1885 = vld [vmem:[%s1879 + $0x14] sm:$0xf]
        %v1886 = vld [vmem:[%s1879 + $0x18] sm:$0xf]
        %v1887 = vld [vmem:[%s1879 + $0x1c] sm:$0xf]
        %v1888 = vld [vmem:[%s1879 + $0x20] sm:$0xf]
        %v1889 = vld [vmem:[%s1879 + $0x24] sm:$0xf]
        %v1890 = vld [vmem:[%s1879 + $0x28] sm:$0xf]
        %v1891 = vld [vmem:[%s1879 + $0x2c] sm:$0xf]
        %v1892 = vld [vmem:[%s1879 + $0x30] sm:$0xf]
        %v1893 = vld [vmem:[%s1879 + $0x34] sm:$0xf]
        %v1894 = vpack.c.bf16 %v1876, %v1876
        %v1909 = vunpack.c.l.b16 %v1880
        %v1910 = vunpack.c.l.b16 %v1881
        %v1911 = vunpack.c.l.b16 %v1882
        %v1912 = vunpack.c.l.b16 %v1883
        %v1913 = vunpack.c.l.b16 %v1884
        %v1914 = vunpack.c.l.b16 %v1885
        %v1915 = vunpack.c.l.b16 %v1886
        %v1916 = vunpack.c.l.b16 %v1887
        %v1917 = vunpack.c.l.b16 %v1888
        %v1918 = vunpack.c.l.b16 %v1889
        %v1919 = vunpack.c.l.b16 %v1890
        %v1920 = vunpack.c.l.b16 %v1891
        %v1921 = vunpack.c.l.b16 %v1892
        %v1922 = vunpack.c.l.b16 %v1893
        %v1923 = vpack.c.b16 %v1910, %v1909
        %v1924 = vpack.c.b16 %v1912, %v1911
        %v1925 = vpack.c.b16 %v1914, %v1913
        %v1926 = vpack.c.b16 %v1916, %v1915
        %v1927 = vpack.c.b16 %v1918, %v1917
        %v1928 = vpack.c.b16 %v1920, %v1919
        %v1929 = vpack.c.b16 %v1922, %v1921
        %v1938 = vsel %vm1786, %v1894, 0
        %1940 = vmatpush.bf16.msra.mxu0 0
        %1941 = vmatpush.bf16.msra.mxu0 %v1929
        %1942 = vmatpush.bf16.msra.mxu0 %v1928
        %1943 = vmatpush.bf16.msra.mxu0 %v1927
        %1944 = vmatpush.bf16.msra.mxu0 %v1926
        %1945 = vmatpush.bf16.msra.mxu0 %v1925
        %1946 = vmatpush.bf16.msra.mxu0 %v1924
        %1947 = vmatpush.bf16.msra.mxu0 %v1923
        %1948 = vmatmul.bf16.gmra.mxu0 %v1938
        %v1949 = vpop.f32.mrf.mxu0
        %v1950 = vadd.f32 0.0, %v1949
        %v1951 = vpop.f32.mrf.mxu0
        %1952 = vdwg.mxu0
        %v1953 = vadd.f32 %v1858, %v1950
        %s1954 = scalar_lea.vmem [#allocation2], 12
        %v1955 = vld [vmem:[%s1954] sm:$0xf]
        %v1957 = vsel %vm1674, %v1955, 0
        %1959 = vmatpush.bf16.msra.mxu0 0
        %1960 = vmatpush.bf16.msra.mxu0 0
        %1961 = vmatpush.bf16.msra.mxu0 0
        %1962 = vmatpush.bf16.msra.mxu0 0
        %1963 = vmatpush.bf16.msra.mxu0 0
        %1964 = vmatpush.bf16.msra.mxu0 0
        %1965 = vmatpush.bf16.msra.mxu0 0
        %1966 = vmatpush.bf16.msra.mxu0 %v1680
        %1967 = vmatmul.bf16.gmra.mxu0 %v1957
        %v1968 = vpop.f32.mrf.mxu0
        %v1969 = vadd.f32 0.0, %v1968
        %v1970 = vpop.f32.mrf.mxu0
        %1971 = vdwg.mxu0
        %s1972 = scalar_lea.vmem %s13, 168
        %v1973 = vld [vmem:[%s1972] sm:$0xf]
        %v1974 = vld [vmem:[%s1972 + $0x4] sm:$0xf]
        %v1975 = vld [vmem:[%s1972 + $0x8] sm:$0xf]
        %v1976 = vld [vmem:[%s1972 + $0xc] sm:$0xf]
        %v1977 = vld [vmem:[%s1972 + $0x10] sm:$0xf]
        %v1978 = vld [vmem:[%s1972 + $0x14] sm:$0xf]
        %v1979 = vld [vmem:[%s1972 + $0x18] sm:$0xf]
        %v1980 = vld [vmem:[%s1972 + $0x1c] sm:$0xf]
        %v1981 = vld [vmem:[%s1972 + $0x20] sm:$0xf]
        %v1982 = vld [vmem:[%s1972 + $0x24] sm:$0xf]
        %v1983 = vld [vmem:[%s1972 + $0x28] sm:$0xf]
        %v1984 = vld [vmem:[%s1972 + $0x2c] sm:$0xf]
        %v1985 = vld [vmem:[%s1972 + $0x30] sm:$0xf]
        %v1986 = vld [vmem:[%s1972 + $0x34] sm:$0xf]
        %v1987 = vpack.c.bf16 %v1969, %v1969
        %v2002 = vunpack.c.l.b16 %v1973
        %v2003 = vunpack.c.l.b16 %v1974
        %v2004 = vunpack.c.l.b16 %v1975
        %v2005 = vunpack.c.l.b16 %v1976
        %v2006 = vunpack.c.l.b16 %v1977
        %v2007 = vunpack.c.l.b16 %v1978
        %v2008 = vunpack.c.l.b16 %v1979
        %v2009 = vunpack.c.l.b16 %v1980
        %v2010 = vunpack.c.l.b16 %v1981
        %v2011 = vunpack.c.l.b16 %v1982
        %v2012 = vunpack.c.l.b16 %v1983
        %v2013 = vunpack.c.l.b16 %v1984
        %v2014 = vunpack.c.l.b16 %v1985
        %v2015 = vunpack.c.l.b16 %v1986
        %v2016 = vpack.c.b16 %v2003, %v2002
        %v2017 = vpack.c.b16 %v2005, %v2004
        %v2018 = vpack.c.b16 %v2007, %v2006
        %v2019 = vpack.c.b16 %v2009, %v2008
        %v2020 = vpack.c.b16 %v2011, %v2010
        %v2021 = vpack.c.b16 %v2013, %v2012
        %v2022 = vpack.c.b16 %v2015, %v2014
        %v2031 = vsel %vm1786, %v1987, 0
        %2033 = vmatpush.bf16.msra.mxu0 0
        %2034 = vmatpush.bf16.msra.mxu0 %v2022
        %2035 = vmatpush.bf16.msra.mxu0 %v2021
        %2036 = vmatpush.bf16.msra.mxu0 %v2020
        %2037 = vmatpush.bf16.msra.mxu0 %v2019
        %2038 = vmatpush.bf16.msra.mxu0 %v2018
        %2039 = vmatpush.bf16.msra.mxu0 %v2017
        %2040 = vmatpush.bf16.msra.mxu0 %v2016
        %2041 = vmatmul.bf16.gmra.mxu0 %v2031
        %v2042 = vpop.f32.mrf.mxu0
        %v2043 = vadd.f32 0.0, %v2042
        %v2044 = vpop.f32.mrf.mxu0
        %2045 = vdwg.mxu0
        %v2046 = vadd.f32 %v1953, %v2043
        %s2047 = scalar_lea.vmem [#allocation2], 16
        %v2048 = vld [vmem:[%s2047] sm:$0xf]
        %v2050 = vsel %vm1674, %v2048, 0
        %2052 = vmatpush.bf16.msra.mxu0 0
        %2053 = vmatpush.bf16.msra.mxu0 0
        %2054 = vmatpush.bf16.msra.mxu0 0
        %2055 = vmatpush.bf16.msra.mxu0 0
        %2056 = vmatpush.bf16.msra.mxu0 0
        %2057 = vmatpush.bf16.msra.mxu0 0
        %2058 = vmatpush.bf16.msra.mxu0 0
        %2059 = vmatpush.bf16.msra.mxu0 %v1680
        %2060 = vmatmul.bf16.gmra.mxu0 %v2050
        %v2061 = vpop.f32.mrf.mxu0
        %v2062 = vadd.f32 0.0, %v2061
        %v2063 = vpop.f32.mrf.mxu0
        %2064 = vdwg.mxu0
        %s2065 = scalar_lea.vmem %s13, 224
        %v2066 = vld [vmem:[%s2065] sm:$0xf]
        %v2067 = vld [vmem:[%s2065 + $0x4] sm:$0xf]
        %v2068 = vld [vmem:[%s2065 + $0x8] sm:$0xf]
        %v2069 = vld [vmem:[%s2065 + $0xc] sm:$0xf]
        %v2070 = vld [vmem:[%s2065 + $0x10] sm:$0xf]
        %v2071 = vld [vmem:[%s2065 + $0x14] sm:$0xf]
        %v2072 = vld [vmem:[%s2065 + $0x18] sm:$0xf]
        %v2073 = vld [vmem:[%s2065 + $0x1c] sm:$0xf]
        %v2074 = vld [vmem:[%s2065 + $0x20] sm:$0xf]
        %v2075 = vld [vmem:[%s2065 + $0x24] sm:$0xf]
        %v2076 = vld [vmem:[%s2065 + $0x28] sm:$0xf]
        %v2077 = vld [vmem:[%s2065 + $0x2c] sm:$0xf]
        %v2078 = vld [vmem:[%s2065 + $0x30] sm:$0xf]
        %v2079 = vld [vmem:[%s2065 + $0x34] sm:$0xf]
        %v2080 = vpack.c.bf16 %v2062, %v2062
        %v2095 = vunpack.c.l.b16 %v2066
        %v2096 = vunpack.c.l.b16 %v2067
        %v2097 = vunpack.c.l.b16 %v2068
        %v2098 = vunpack.c.l.b16 %v2069
        %v2099 = vunpack.c.l.b16 %v2070
        %v2100 = vunpack.c.l.b16 %v2071
        %v2101 = vunpack.c.l.b16 %v2072
        %v2102 = vunpack.c.l.b16 %v2073
        %v2103 = vunpack.c.l.b16 %v2074
        %v2104 = vunpack.c.l.b16 %v2075
        %v2105 = vunpack.c.l.b16 %v2076
        %v2106 = vunpack.c.l.b16 %v2077
        %v2107 = vunpack.c.l.b16 %v2078
        %v2108 = vunpack.c.l.b16 %v2079
        %v2109 = vpack.c.b16 %v2096, %v2095
        %v2110 = vpack.c.b16 %v2098, %v2097
        %v2111 = vpack.c.b16 %v2100, %v2099
        %v2112 = vpack.c.b16 %v2102, %v2101
        %v2113 = vpack.c.b16 %v2104, %v2103
        %v2114 = vpack.c.b16 %v2106, %v2105
        %v2115 = vpack.c.b16 %v2108, %v2107
        %v2124 = vsel %vm1786, %v2080, 0
        %2126 = vmatpush.bf16.msra.mxu0 0
        %2127 = vmatpush.bf16.msra.mxu0 %v2115
        %2128 = vmatpush.bf16.msra.mxu0 %v2114
        %2129 = vmatpush.bf16.msra.mxu0 %v2113
        %2130 = vmatpush.bf16.msra.mxu0 %v2112
        %2131 = vmatpush.bf16.msra.mxu0 %v2111
        %2132 = vmatpush.bf16.msra.mxu0 %v2110
        %2133 = vmatpush.bf16.msra.mxu0 %v2109
        %2134 = vmatmul.bf16.gmra.mxu0 %v2124
        %v2135 = vpop.f32.mrf.mxu0
        %v2136 = vadd.f32 0.0, %v2135
        %v2137 = vpop.f32.mrf.mxu0
        %2138 = vdwg.mxu0
        %v2139 = vadd.f32 %v2046, %v2136
        %s2140 = scalar_lea.vmem [#allocation2], 20
        %v2141 = vld [vmem:[%s2140] sm:$0xf]
        %v2143 = vsel %vm1674, %v2141, 0
        %2145 = vmatpush.bf16.msra.mxu0 0
        %2146 = vmatpush.bf16.msra.mxu0 0
        %2147 = vmatpush.bf16.msra.mxu0 0
        %2148 = vmatpush.bf16.msra.mxu0 0
        %2149 = vmatpush.bf16.msra.mxu0 0
        %2150 = vmatpush.bf16.msra.mxu0 0
        %2151 = vmatpush.bf16.msra.mxu0 0
        %2152 = vmatpush.bf16.msra.mxu0 %v1680
        %2153 = vmatmul.bf16.gmra.mxu0 %v2143
        %v2154 = vpop.f32.mrf.mxu0
        %v2155 = vadd.f32 0.0, %v2154
        %v2156 = vpop.f32.mrf.mxu0
        %2157 = vdwg.mxu0
        %s2158 = scalar_lea.vmem %s13, 280
        %v2159 = vld [vmem:[%s2158] sm:$0xf]
        %v2160 = vld [vmem:[%s2158 + $0x4] sm:$0xf]
        %v2161 = vld [vmem:[%s2158 + $0x8] sm:$0xf]
        %v2162 = vld [vmem:[%s2158 + $0xc] sm:$0xf]
        %v2163 = vld [vmem:[%s2158 + $0x10] sm:$0xf]
        %v2164 = vld [vmem:[%s2158 + $0x14] sm:$0xf]
        %v2165 = vld [vmem:[%s2158 + $0x18] sm:$0xf]
        %v2166 = vld [vmem:[%s2158 + $0x1c] sm:$0xf]
        %v2167 = vld [vmem:[%s2158 + $0x20] sm:$0xf]
        %v2168 = vld [vmem:[%s2158 + $0x24] sm:$0xf]
        %v2169 = vld [vmem:[%s2158 + $0x28] sm:$0xf]
        %v2170 = vld [vmem:[%s2158 + $0x2c] sm:$0xf]
        %v2171 = vld [vmem:[%s2158 + $0x30] sm:$0xf]
        %v2172 = vld [vmem:[%s2158 + $0x34] sm:$0xf]
        %v2173 = vpack.c.bf16 %v2155, %v2155
        %v2188 = vunpack.c.l.b16 %v2159
        %v2189 = vunpack.c.l.b16 %v2160
        %v2190 = vunpack.c.l.b16 %v2161
        %v2191 = vunpack.c.l.b16 %v2162
        %v2192 = vunpack.c.l.b16 %v2163
        %v2193 = vunpack.c.l.b16 %v2164
        %v2194 = vunpack.c.l.b16 %v2165
        %v2195 = vunpack.c.l.b16 %v2166
        %v2196 = vunpack.c.l.b16 %v2167
        %v2197 = vunpack.c.l.b16 %v2168
        %v2198 = vunpack.c.l.b16 %v2169
        %v2199 = vunpack.c.l.b16 %v2170
        %v2200 = vunpack.c.l.b16 %v2171
        %v2201 = vunpack.c.l.b16 %v2172
        %v2202 = vpack.c.b16 %v2189, %v2188
        %v2203 = vpack.c.b16 %v2191, %v2190
        %v2204 = vpack.c.b16 %v2193, %v2192
        %v2205 = vpack.c.b16 %v2195, %v2194
        %v2206 = vpack.c.b16 %v2197, %v2196
        %v2207 = vpack.c.b16 %v2199, %v2198
        %v2208 = vpack.c.b16 %v2201, %v2200
        %v2217 = vsel %vm1786, %v2173, 0
        %2219 = vmatpush.bf16.msra.mxu0 0
        %2220 = vmatpush.bf16.msra.mxu0 %v2208
        %2221 = vmatpush.bf16.msra.mxu0 %v2207
        %2222 = vmatpush.bf16.msra.mxu0 %v2206
        %2223 = vmatpush.bf16.msra.mxu0 %v2205
        %2224 = vmatpush.bf16.msra.mxu0 %v2204
        %2225 = vmatpush.bf16.msra.mxu0 %v2203
        %2226 = vmatpush.bf16.msra.mxu0 %v2202
        %2227 = vmatmul.bf16.gmra.mxu0 %v2217
        %v2228 = vpop.f32.mrf.mxu0
        %v2229 = vadd.f32 0.0, %v2228
        %v2230 = vpop.f32.mrf.mxu0
        %2231 = vdwg.mxu0
        %v2232 = vadd.f32 %v2139, %v2229
        %s2233 = scalar_lea.vmem [#allocation2], 24
        %v2234 = vld [vmem:[%s2233] sm:$0xf]
        %v2236 = vsel %vm1674, %v2234, 0
        %2238 = vmatpush.bf16.msra.mxu0 0
        %2239 = vmatpush.bf16.msra.mxu0 0
        %2240 = vmatpush.bf16.msra.mxu0 0
        %2241 = vmatpush.bf16.msra.mxu0 0
        %2242 = vmatpush.bf16.msra.mxu0 0
        %2243 = vmatpush.bf16.msra.mxu0 0
        %2244 = vmatpush.bf16.msra.mxu0 0
        %2245 = vmatpush.bf16.msra.mxu0 %v1680
        %2246 = vmatmul.bf16.gmra.mxu0 %v2236
        %v2247 = vpop.f32.mrf.mxu0
        %v2248 = vadd.f32 0.0, %v2247
        %v2249 = vpop.f32.mrf.mxu0
        %2250 = vdwg.mxu0
        %s2251 = scalar_lea.vmem %s13, 336
        %v2252 = vld [vmem:[%s2251] sm:$0xf]
        %v2253 = vld [vmem:[%s2251 + $0x4] sm:$0xf]
        %v2254 = vld [vmem:[%s2251 + $0x8] sm:$0xf]
        %v2255 = vld [vmem:[%s2251 + $0xc] sm:$0xf]
        %v2256 = vld [vmem:[%s2251 + $0x10] sm:$0xf]
        %v2257 = vld [vmem:[%s2251 + $0x14] sm:$0xf]
        %v2258 = vld [vmem:[%s2251 + $0x18] sm:$0xf]
        %v2259 = vld [vmem:[%s2251 + $0x1c] sm:$0xf]
        %v2260 = vld [vmem:[%s2251 + $0x20] sm:$0xf]
        %v2261 = vld [vmem:[%s2251 + $0x24] sm:$0xf]
        %v2262 = vld [vmem:[%s2251 + $0x28] sm:$0xf]
        %v2263 = vld [vmem:[%s2251 + $0x2c] sm:$0xf]
        %v2264 = vld [vmem:[%s2251 + $0x30] sm:$0xf]
        %v2265 = vld [vmem:[%s2251 + $0x34] sm:$0xf]
        %v2266 = vpack.c.bf16 %v2248, %v2248
        %v2281 = vunpack.c.l.b16 %v2252
        %v2282 = vunpack.c.l.b16 %v2253
        %v2283 = vunpack.c.l.b16 %v2254
        %v2284 = vunpack.c.l.b16 %v2255
        %v2285 = vunpack.c.l.b16 %v2256
        %v2286 = vunpack.c.l.b16 %v2257
        %v2287 = vunpack.c.l.b16 %v2258
        %v2288 = vunpack.c.l.b16 %v2259
        %v2289 = vunpack.c.l.b16 %v2260
        %v2290 = vunpack.c.l.b16 %v2261
        %v2291 = vunpack.c.l.b16 %v2262
        %v2292 = vunpack.c.l.b16 %v2263
        %v2293 = vunpack.c.l.b16 %v2264
        %v2294 = vunpack.c.l.b16 %v2265
        %v2295 = vpack.c.b16 %v2282, %v2281
        %v2296 = vpack.c.b16 %v2284, %v2283
        %v2297 = vpack.c.b16 %v2286, %v2285
        %v2298 = vpack.c.b16 %v2288, %v2287
        %v2299 = vpack.c.b16 %v2290, %v2289
        %v2300 = vpack.c.b16 %v2292, %v2291
        %v2301 = vpack.c.b16 %v2294, %v2293
        %v2310 = vsel %vm1786, %v2266, 0
        %2312 = vmatpush.bf16.msra.mxu0 0
        %2313 = vmatpush.bf16.msra.mxu0 %v2301
        %2314 = vmatpush.bf16.msra.mxu0 %v2300
        %2315 = vmatpush.bf16.msra.mxu0 %v2299
        %2316 = vmatpush.bf16.msra.mxu0 %v2298
        %2317 = vmatpush.bf16.msra.mxu0 %v2297
        %2318 = vmatpush.bf16.msra.mxu0 %v2296
        %2319 = vmatpush.bf16.msra.mxu0 %v2295
        %2320 = vmatmul.bf16.gmra.mxu0 %v2310
        %v2321 = vpop.f32.mrf.mxu0
        %v2322 = vadd.f32 0.0, %v2321
        %v2323 = vpop.f32.mrf.mxu0
        %2324 = vdwg.mxu0
        %v2325 = vadd.f32 %v2232, %v2322
        %s2326 = scalar_lea.vmem [#allocation2], 28
        %v2327 = vld [vmem:[%s2326] sm:$0xf]
        %v2329 = vsel %vm1674, %v2327, 0
        %2331 = vmatpush.bf16.msra.mxu0 0
        %2332 = vmatpush.bf16.msra.mxu0 0
        %2333 = vmatpush.bf16.msra.mxu0 0
        %2334 = vmatpush.bf16.msra.mxu0 0
        %2335 = vmatpush.bf16.msra.mxu0 0
        %2336 = vmatpush.bf16.msra.mxu0 0
        %2337 = vmatpush.bf16.msra.mxu0 0
        %2338 = vmatpush.bf16.msra.mxu0 %v1680
        %2339 = vmatmul.bf16.gmra.mxu0 %v2329
        %v2340 = vpop.f32.mrf.mxu0
        %v2341 = vadd.f32 0.0, %v2340
        %v2342 = vpop.f32.mrf.mxu0
        %2343 = vdwg.mxu0
        %s2344 = scalar_lea.vmem %s13, 392
        %v2345 = vld [vmem:[%s2344] sm:$0xf]
        %v2346 = vld [vmem:[%s2344 + $0x4] sm:$0xf]
        %v2347 = vld [vmem:[%s2344 + $0x8] sm:$0xf]
        %v2348 = vld [vmem:[%s2344 + $0xc] sm:$0xf]
        %v2349 = vld [vmem:[%s2344 + $0x10] sm:$0xf]
        %v2350 = vld [vmem:[%s2344 + $0x14] sm:$0xf]
        %v2351 = vld [vmem:[%s2344 + $0x18] sm:$0xf]
        %v2352 = vld [vmem:[%s2344 + $0x1c] sm:$0xf]
        %v2353 = vld [vmem:[%s2344 + $0x20] sm:$0xf]
        %v2354 = vld [vmem:[%s2344 + $0x24] sm:$0xf]
        %v2355 = vld [vmem:[%s2344 + $0x28] sm:$0xf]
        %v2356 = vld [vmem:[%s2344 + $0x2c] sm:$0xf]
        %v2357 = vld [vmem:[%s2344 + $0x30] sm:$0xf]
        %v2358 = vld [vmem:[%s2344 + $0x34] sm:$0xf]
        %v2359 = vpack.c.bf16 %v2341, %v2341
        %v2374 = vunpack.c.l.b16 %v2345
        %v2375 = vunpack.c.l.b16 %v2346
        %v2376 = vunpack.c.l.b16 %v2347
        %v2377 = vunpack.c.l.b16 %v2348
        %v2378 = vunpack.c.l.b16 %v2349
        %v2379 = vunpack.c.l.b16 %v2350
        %v2380 = vunpack.c.l.b16 %v2351
        %v2381 = vunpack.c.l.b16 %v2352
        %v2382 = vunpack.c.l.b16 %v2353
        %v2383 = vunpack.c.l.b16 %v2354
        %v2384 = vunpack.c.l.b16 %v2355
        %v2385 = vunpack.c.l.b16 %v2356
        %v2386 = vunpack.c.l.b16 %v2357
        %v2387 = vunpack.c.l.b16 %v2358
        %v2388 = vpack.c.b16 %v2375, %v2374
        %v2389 = vpack.c.b16 %v2377, %v2376
        %v2390 = vpack.c.b16 %v2379, %v2378
        %v2391 = vpack.c.b16 %v2381, %v2380
        %v2392 = vpack.c.b16 %v2383, %v2382
        %v2393 = vpack.c.b16 %v2385, %v2384
        %v2394 = vpack.c.b16 %v2387, %v2386
        %v2403 = vsel %vm1786, %v2359, 0
        %2405 = vmatpush.bf16.msra.mxu0 0
        %2406 = vmatpush.bf16.msra.mxu0 %v2394
        %2407 = vmatpush.bf16.msra.mxu0 %v2393
        %2408 = vmatpush.bf16.msra.mxu0 %v2392
        %2409 = vmatpush.bf16.msra.mxu0 %v2391
        %2410 = vmatpush.bf16.msra.mxu0 %v2390
        %2411 = vmatpush.bf16.msra.mxu0 %v2389
        %2412 = vmatpush.bf16.msra.mxu0 %v2388
        %2413 = vmatmul.bf16.gmra.mxu0 %v2403
        %v2414 = vpop.f32.mrf.mxu0
        %v2415 = vadd.f32 0.0, %v2414
        %v2416 = vpop.f32.mrf.mxu0
        %2417 = vdwg.mxu0
        %v2418 = vadd.f32 %v2325, %v2415
        %s2419 = scalar_lea.vmem [#allocation2], 32
        %v2420 = vld [vmem:[%s2419] sm:$0xf]
        %v2422 = vsel %vm1674, %v2420, 0
        %2424 = vmatpush.bf16.msra.mxu0 0
        %2425 = vmatpush.bf16.msra.mxu0 0
        %2426 = vmatpush.bf16.msra.mxu0 0
        %2427 = vmatpush.bf16.msra.mxu0 0
        %2428 = vmatpush.bf16.msra.mxu0 0
        %2429 = vmatpush.bf16.msra.mxu0 0
        %2430 = vmatpush.bf16.msra.mxu0 0
        %2431 = vmatpush.bf16.msra.mxu0 %v1680
        %2432 = vmatmul.bf16.gmra.mxu0 %v2422
        %v2433 = vpop.f32.mrf.mxu0
        %v2434 = vadd.f32 0.0, %v2433
        %v2435 = vpop.f32.mrf.mxu0
        %2436 = vdwg.mxu0
        %s2437 = scalar_lea.vmem %s13, 448
        %v2438 = vld [vmem:[%s2437] sm:$0xf]
        %v2439 = vld [vmem:[%s2437 + $0x4] sm:$0xf]
        %v2440 = vld [vmem:[%s2437 + $0x8] sm:$0xf]
        %v2441 = vld [vmem:[%s2437 + $0xc] sm:$0xf]
        %v2442 = vld [vmem:[%s2437 + $0x10] sm:$0xf]
        %v2443 = vld [vmem:[%s2437 + $0x14] sm:$0xf]
        %v2444 = vld [vmem:[%s2437 + $0x18] sm:$0xf]
        %v2445 = vld [vmem:[%s2437 + $0x1c] sm:$0xf]
        %v2446 = vld [vmem:[%s2437 + $0x20] sm:$0xf]
        %v2447 = vld [vmem:[%s2437 + $0x24] sm:$0xf]
        %v2448 = vld [vmem:[%s2437 + $0x28] sm:$0xf]
        %v2449 = vld [vmem:[%s2437 + $0x2c] sm:$0xf]
        %v2450 = vld [vmem:[%s2437 + $0x30] sm:$0xf]
        %v2451 = vld [vmem:[%s2437 + $0x34] sm:$0xf]
        %v2452 = vpack.c.bf16 %v2434, %v2434
        %v2467 = vunpack.c.l.b16 %v2438
        %v2468 = vunpack.c.l.b16 %v2439
        %v2469 = vunpack.c.l.b16 %v2440
        %v2470 = vunpack.c.l.b16 %v2441
        %v2471 = vunpack.c.l.b16 %v2442
        %v2472 = vunpack.c.l.b16 %v2443
        %v2473 = vunpack.c.l.b16 %v2444
        %v2474 = vunpack.c.l.b16 %v2445
        %v2475 = vunpack.c.l.b16 %v2446
        %v2476 = vunpack.c.l.b16 %v2447
        %v2477 = vunpack.c.l.b16 %v2448
        %v2478 = vunpack.c.l.b16 %v2449
        %v2479 = vunpack.c.l.b16 %v2450
        %v2480 = vunpack.c.l.b16 %v2451
        %v2481 = vpack.c.b16 %v2468, %v2467
        %v2482 = vpack.c.b16 %v2470, %v2469
        %v2483 = vpack.c.b16 %v2472, %v2471
        %v2484 = vpack.c.b16 %v2474, %v2473
        %v2485 = vpack.c.b16 %v2476, %v2475
        %v2486 = vpack.c.b16 %v2478, %v2477
        %v2487 = vpack.c.b16 %v2480, %v2479
        %v2496 = vsel %vm1786, %v2452, 0
        %2498 = vmatpush.bf16.msra.mxu0 0
        %2499 = vmatpush.bf16.msra.mxu0 %v2487
        %2500 = vmatpush.bf16.msra.mxu0 %v2486
        %2501 = vmatpush.bf16.msra.mxu0 %v2485
        %2502 = vmatpush.bf16.msra.mxu0 %v2484
        %2503 = vmatpush.bf16.msra.mxu0 %v2483
        %2504 = vmatpush.bf16.msra.mxu0 %v2482
        %2505 = vmatpush.bf16.msra.mxu0 %v2481
        %2506 = vmatmul.bf16.gmra.mxu0 %v2496
        %v2507 = vpop.f32.mrf.mxu0
        %v2508 = vadd.f32 0.0, %v2507
        %v2509 = vpop.f32.mrf.mxu0
        %2510 = vdwg.mxu0
        %v2511 = vadd.f32 %v2418, %v2508
        %v2512 = vld [vmem:[%s15] sm:$0x1]
        %v2514 = vperm.slane %v2512, 0
        %v2516 = vadd.f32 %v2511, %v2514
        %v2517 = vmax.f32 %v2516, 0.0
        %v2518 = vpack.c.bf16 %v2517, %v2517
        %v2519 = vld [vmem:[%s17] sm:$0x3]
        %vm2520 = vcmask 56320
        %v2522 = vsel %vm2520, %v2519, 0
        %vm2524 = vcmask 1042432
        %vm2525 = vcmask 1043456
        %v2526 = vsel %vm2524, 4294967295, 65535
        %v2527 = vsel %vm2525, %v2526, 0
        %v2529 = vand.u32 %v2518, %v2527
        %2531 = vmatpush.bf16.msra.mxu0 0
        %2532 = vmatpush.bf16.msra.mxu0 0
        %2533 = vmatpush.bf16.msra.mxu0 0
        %2534 = vmatpush.bf16.msra.mxu0 0
        %2535 = vmatpush.bf16.msra.mxu0 0
        %2536 = vmatpush.bf16.msra.mxu0 0
        %2537 = vmatpush.bf16.msra.mxu0 0
        %2538 = vmatpush.bf16.msra.mxu0 %v2529
        %2539 = vmatmul.bf16.gmra.mxu0 %v2522
        %v2540 = vpop.f32.mrf.mxu0
        %v2541 = vadd.f32 0.0, %v2540
        %v2542 = vpop.f32.mrf.mxu0
        %2543 = vdwg.mxu0
        %v2544 = vld [vmem:[%s19] sm:$0xf]
        %v2545 = vld [vmem:[%s19 + $0x4] sm:$0xf]
        %v2546 = vld [vmem:[%s19 + $0x8] sm:$0xf]
        %v2547 = vld [vmem:[%s19 + $0xc] sm:$0xf]
        %v2548 = vld [vmem:[%s19 + $0x10] sm:$0xf]
        %v2549 = vld [vmem:[%s19 + $0x14] sm:$0xf]
        %v2550 = vld [vmem:[%s19 + $0x18] sm:$0xf]
        %v2551 = vld [vmem:[%s19 + $0x1c] sm:$0xf]
        %v2552 = vld [vmem:[%s19 + $0x20] sm:$0xf]
        %v2553 = vld [vmem:[%s19 + $0x24] sm:$0xf]
        %v2554 = vld [vmem:[%s19 + $0x28] sm:$0xf]
        %v2555 = vld [vmem:[%s19 + $0x2c] sm:$0xf]
        %v2556 = vld [vmem:[%s19 + $0x30] sm:$0xf]
        %v2557 = vld [vmem:[%s19 + $0x34] sm:$0xf]
        %v2558 = vpack.c.bf16 %v2541, %v2541
        %s2559 = scalar_lea.vmem %s17, 2
        %v2560 = vld [vmem:[%s2559] sm:$0x3]
        %v2562 = vsel %vm2520, %v2560, 0
        %2564 = vmatpush.bf16.msra.mxu0 0
        %2565 = vmatpush.bf16.msra.mxu0 0
        %2566 = vmatpush.bf16.msra.mxu0 0
        %2567 = vmatpush.bf16.msra.mxu0 0
        %2568 = vmatpush.bf16.msra.mxu0 0
        %2569 = vmatpush.bf16.msra.mxu0 0
        %2570 = vmatpush.bf16.msra.mxu0 0
        %2571 = vmatpush.bf16.msra.mxu0 %v2529
        %2572 = vmatmul.bf16.gmra.mxu0 %v2562
        %v2573 = vpop.f32.mrf.mxu0
        %v2574 = vadd.f32 0.0, %v2573
        %v2575 = vpop.f32.mrf.mxu0
        %2576 = vdwg.mxu0
        %s2577 = scalar_lea.vmem %s19, 56
        %v2578 = vld [vmem:[%s2577] sm:$0xf]
        %v2579 = vld [vmem:[%s2577 + $0x4] sm:$0xf]
        %v2580 = vld [vmem:[%s2577 + $0x8] sm:$0xf]
        %v2581 = vld [vmem:[%s2577 + $0xc] sm:$0xf]
        %v2582 = vld [vmem:[%s2577 + $0x10] sm:$0xf]
        %v2583 = vld [vmem:[%s2577 + $0x14] sm:$0xf]
        %v2584 = vld [vmem:[%s2577 + $0x18] sm:$0xf]
        %v2585 = vld [vmem:[%s2577 + $0x1c] sm:$0xf]
        %v2586 = vld [vmem:[%s2577 + $0x20] sm:$0xf]
        %v2587 = vld [vmem:[%s2577 + $0x24] sm:$0xf]
        %v2588 = vld [vmem:[%s2577 + $0x28] sm:$0xf]
        %v2589 = vld [vmem:[%s2577 + $0x2c] sm:$0xf]
        %v2590 = vld [vmem:[%s2577 + $0x30] sm:$0xf]
        %v2591 = vld [vmem:[%s2577 + $0x34] sm:$0xf]
        %v2592 = vpack.c.bf16 %v2574, %v2574
        %v2607 = vunpack.c.l.b16 %v2578
        %v2608 = vunpack.c.l.b16 %v2579
        %v2609 = vunpack.c.l.b16 %v2580
        %v2610 = vunpack.c.l.b16 %v2581
        %v2611 = vunpack.c.l.b16 %v2582
        %v2612 = vunpack.c.l.b16 %v2583
        %v2613 = vunpack.c.l.b16 %v2584
        %v2614 = vunpack.c.l.b16 %v2585
        %v2615 = vunpack.c.l.b16 %v2586
        %v2616 = vunpack.c.l.b16 %v2587
        %v2617 = vunpack.c.l.b16 %v2588
        %v2618 = vunpack.c.l.b16 %v2589
        %v2619 = vunpack.c.l.b16 %v2590
        %v2620 = vunpack.c.l.b16 %v2591
        %v2621 = vpack.c.b16 %v2608, %v2607
        %v2622 = vpack.c.b16 %v2610, %v2609
        %v2623 = vpack.c.b16 %v2612, %v2611
        %v2624 = vpack.c.b16 %v2614, %v2613
        %v2625 = vpack.c.b16 %v2616, %v2615
        %v2626 = vpack.c.b16 %v2618, %v2617
        %v2627 = vpack.c.b16 %v2620, %v2619
        %v2636 = vsel %vm1786, %v2592, 0
        %2638 = vmatpush.bf16.msra.mxu0 0
        %2639 = vmatpush.bf16.msra.mxu0 %v2627
        %2640 = vmatpush.bf16.msra.mxu0 %v2626
        %2641 = vmatpush.bf16.msra.mxu0 %v2625
        %2642 = vmatpush.bf16.msra.mxu0 %v2624
        %2643 = vmatpush.bf16.msra.mxu0 %v2623
        %2644 = vmatpush.bf16.msra.mxu0 %v2622
        %2645 = vmatpush.bf16.msra.mxu0 %v2621
        %2646 = vmatmul.bf16.gmra.mxu0 %v2636
        %v2647 = vpop.f32.mrf.mxu0
        %v2648 = vadd.f32 0.0, %v2647
        %v2649 = vpop.f32.mrf.mxu0
        %2650 = vdwg.mxu0
        %v2665 = vunpack.c.l.b16 %v2544
        %v2666 = vunpack.c.l.b16 %v2545
        %v2667 = vunpack.c.l.b16 %v2546
        %v2668 = vunpack.c.l.b16 %v2547
        %v2669 = vunpack.c.l.b16 %v2548
        %v2670 = vunpack.c.l.b16 %v2549
        %v2671 = vunpack.c.l.b16 %v2550
        %v2672 = vunpack.c.l.b16 %v2551
        %v2673 = vunpack.c.l.b16 %v2552
        %v2674 = vunpack.c.l.b16 %v2553
        %v2675 = vunpack.c.l.b16 %v2554
        %v2676 = vunpack.c.l.b16 %v2555
        %v2677 = vunpack.c.l.b16 %v2556
        %v2678 = vunpack.c.l.b16 %v2557
        %v2679 = vpack.c.b16 %v2666, %v2665
        %v2680 = vpack.c.b16 %v2668, %v2667
        %v2681 = vpack.c.b16 %v2670, %v2669
        %v2682 = vpack.c.b16 %v2672, %v2671
        %v2683 = vpack.c.b16 %v2674, %v2673
        %v2684 = vpack.c.b16 %v2676, %v2675
        %v2685 = vpack.c.b16 %v2678, %v2677
        %v2694 = vsel %vm1786, %v2558, 0
        %2696 = vmatpush.bf16.msra.mxu0 0
        %2697 = vmatpush.bf16.msra.mxu0 %v2685
        %2698 = vmatpush.bf16.msra.mxu0 %v2684
        %2699 = vmatpush.bf16.msra.mxu0 %v2683
        %2700 = vmatpush.bf16.msra.mxu0 %v2682
        %2701 = vmatpush.bf16.msra.mxu0 %v2681
        %2702 = vmatpush.bf16.msra.mxu0 %v2680
        %2703 = vmatpush.bf16.msra.mxu0 %v2679
        %2704 = vmatmul.bf16.gmra.mxu0 %v2694
        %v2705 = vpop.f32.mrf.mxu0
        %v2706 = vadd.f32 %v2648, %v2705
        %v2707 = vpop.f32.mrf.mxu0
        %2708 = vdwg.mxu0
        %s2709 = scalar_lea.vmem %s17, 4
        %v2710 = vld [vmem:[%s2709] sm:$0x3]
        %v2712 = vsel %vm2520, %v2710, 0
        %2714 = vmatpush.bf16.msra.mxu0 0
        %2715 = vmatpush.bf16.msra.mxu0 0
        %2716 = vmatpush.bf16.msra.mxu0 0
        %2717 = vmatpush.bf16.msra.mxu0 0
        %2718 = vmatpush.bf16.msra.mxu0 0
        %2719 = vmatpush.bf16.msra.mxu0 0
        %2720 = vmatpush.bf16.msra.mxu0 0
        %2721 = vmatpush.bf16.msra.mxu0 %v2529
        %2722 = vmatmul.bf16.gmra.mxu0 %v2712
        %v2723 = vpop.f32.mrf.mxu0
        %v2724 = vadd.f32 0.0, %v2723
        %v2725 = vpop.f32.mrf.mxu0
        %2726 = vdwg.mxu0
        %s2727 = scalar_lea.vmem %s19, 112
        %v2728 = vld [vmem:[%s2727] sm:$0xf]
        %v2729 = vld [vmem:[%s2727 + $0x4] sm:$0xf]
        %v2730 = vld [vmem:[%s2727 + $0x8] sm:$0xf]
        %v2731 = vld [vmem:[%s2727 + $0xc] sm:$0xf]
        %v2732 = vld [vmem:[%s2727 + $0x10] sm:$0xf]
        %v2733 = vld [vmem:[%s2727 + $0x14] sm:$0xf]
        %v2734 = vld [vmem:[%s2727 + $0x18] sm:$0xf]
        %v2735 = vld [vmem:[%s2727 + $0x1c] sm:$0xf]
        %v2736 = vld [vmem:[%s2727 + $0x20] sm:$0xf]
        %v2737 = vld [vmem:[%s2727 + $0x24] sm:$0xf]
        %v2738 = vld [vmem:[%s2727 + $0x28] sm:$0xf]
        %v2739 = vld [vmem:[%s2727 + $0x2c] sm:$0xf]
        %v2740 = vld [vmem:[%s2727 + $0x30] sm:$0xf]
        %v2741 = vld [vmem:[%s2727 + $0x34] sm:$0xf]
        %v2742 = vpack.c.bf16 %v2724, %v2724
        %v2757 = vunpack.c.l.b16 %v2728
        %v2758 = vunpack.c.l.b16 %v2729
        %v2759 = vunpack.c.l.b16 %v2730
        %v2760 = vunpack.c.l.b16 %v2731
        %v2761 = vunpack.c.l.b16 %v2732
        %v2762 = vunpack.c.l.b16 %v2733
        %v2763 = vunpack.c.l.b16 %v2734
        %v2764 = vunpack.c.l.b16 %v2735
        %v2765 = vunpack.c.l.b16 %v2736
        %v2766 = vunpack.c.l.b16 %v2737
        %v2767 = vunpack.c.l.b16 %v2738
        %v2768 = vunpack.c.l.b16 %v2739
        %v2769 = vunpack.c.l.b16 %v2740
        %v2770 = vunpack.c.l.b16 %v2741
        %v2771 = vpack.c.b16 %v2758, %v2757
        %v2772 = vpack.c.b16 %v2760, %v2759
        %v2773 = vpack.c.b16 %v2762, %v2761
        %v2774 = vpack.c.b16 %v2764, %v2763
        %v2775 = vpack.c.b16 %v2766, %v2765
        %v2776 = vpack.c.b16 %v2768, %v2767
        %v2777 = vpack.c.b16 %v2770, %v2769
        %v2786 = vsel %vm1786, %v2742, 0
        %2788 = vmatpush.bf16.msra.mxu0 0
        %2789 = vmatpush.bf16.msra.mxu0 %v2777
        %2790 = vmatpush.bf16.msra.mxu0 %v2776
        %2791 = vmatpush.bf16.msra.mxu0 %v2775
        %2792 = vmatpush.bf16.msra.mxu0 %v2774
        %2793 = vmatpush.bf16.msra.mxu0 %v2773
        %2794 = vmatpush.bf16.msra.mxu0 %v2772
        %2795 = vmatpush.bf16.msra.mxu0 %v2771
        %2796 = vmatmul.bf16.gmra.mxu0 %v2786
        %v2797 = vpop.f32.mrf.mxu0
        %v2798 = vadd.f32 0.0, %v2797
        %v2799 = vpop.f32.mrf.mxu0
        %2800 = vdwg.mxu0
        %v2801 = vadd.f32 %v2706, %v2798
        %s2802 = scalar_lea.vmem %s17, 6
        %v2803 = vld [vmem:[%s2802] sm:$0x3]
        %v2805 = vsel %vm2520, %v2803, 0
        %2807 = vmatpush.bf16.msra.mxu0 0
        %2808 = vmatpush.bf16.msra.mxu0 0
        %2809 = vmatpush.bf16.msra.mxu0 0
        %2810 = vmatpush.bf16.msra.mxu0 0
        %2811 = vmatpush.bf16.msra.mxu0 0
        %2812 = vmatpush.bf16.msra.mxu0 0
        %2813 = vmatpush.bf16.msra.mxu0 0
        %2814 = vmatpush.bf16.msra.mxu0 %v2529
        %2815 = vmatmul.bf16.gmra.mxu0 %v2805
        %v2816 = vpop.f32.mrf.mxu0
        %v2817 = vadd.f32 0.0, %v2816
        %v2818 = vpop.f32.mrf.mxu0
        %2819 = vdwg.mxu0
        %s2820 = scalar_lea.vmem %s19, 168
        %v2821 = vld [vmem:[%s2820] sm:$0xf]
        %v2822 = vld [vmem:[%s2820 + $0x4] sm:$0xf]
        %v2823 = vld [vmem:[%s2820 + $0x8] sm:$0xf]
        %v2824 = vld [vmem:[%s2820 + $0xc] sm:$0xf]
        %v2825 = vld [vmem:[%s2820 + $0x10] sm:$0xf]
        %v2826 = vld [vmem:[%s2820 + $0x14] sm:$0xf]
        %v2827 = vld [vmem:[%s2820 + $0x18] sm:$0xf]
        %v2828 = vld [vmem:[%s2820 + $0x1c] sm:$0xf]
        %v2829 = vld [vmem:[%s2820 + $0x20] sm:$0xf]
        %v2830 = vld [vmem:[%s2820 + $0x24] sm:$0xf]
        %v2831 = vld [vmem:[%s2820 + $0x28] sm:$0xf]
        %v2832 = vld [vmem:[%s2820 + $0x2c] sm:$0xf]
        %v2833 = vld [vmem:[%s2820 + $0x30] sm:$0xf]
        %v2834 = vld [vmem:[%s2820 + $0x34] sm:$0xf]
        %v2835 = vpack.c.bf16 %v2817, %v2817
        %v2850 = vunpack.c.l.b16 %v2821
        %v2851 = vunpack.c.l.b16 %v2822
        %v2852 = vunpack.c.l.b16 %v2823
        %v2853 = vunpack.c.l.b16 %v2824
        %v2854 = vunpack.c.l.b16 %v2825
        %v2855 = vunpack.c.l.b16 %v2826
        %v2856 = vunpack.c.l.b16 %v2827
        %v2857 = vunpack.c.l.b16 %v2828
        %v2858 = vunpack.c.l.b16 %v2829
        %v2859 = vunpack.c.l.b16 %v2830
        %v2860 = vunpack.c.l.b16 %v2831
        %v2861 = vunpack.c.l.b16 %v2832
        %v2862 = vunpack.c.l.b16 %v2833
        %v2863 = vunpack.c.l.b16 %v2834
        %v2864 = vpack.c.b16 %v2851, %v2850
        %v2865 = vpack.c.b16 %v2853, %v2852
        %v2866 = vpack.c.b16 %v2855, %v2854
        %v2867 = vpack.c.b16 %v2857, %v2856
        %v2868 = vpack.c.b16 %v2859, %v2858
        %v2869 = vpack.c.b16 %v2861, %v2860
        %v2870 = vpack.c.b16 %v2863, %v2862
        %v2879 = vsel %vm1786, %v2835, 0
        %2881 = vmatpush.bf16.msra.mxu0 0
        %2882 = vmatpush.bf16.msra.mxu0 %v2870
        %2883 = vmatpush.bf16.msra.mxu0 %v2869
        %2884 = vmatpush.bf16.msra.mxu0 %v2868
        %2885 = vmatpush.bf16.msra.mxu0 %v2867
        %2886 = vmatpush.bf16.msra.mxu0 %v2866
        %2887 = vmatpush.bf16.msra.mxu0 %v2865
        %2888 = vmatpush.bf16.msra.mxu0 %v2864
        %2889 = vmatmul.bf16.gmra.mxu0 %v2879
        %v2890 = vpop.f32.mrf.mxu0
        %v2891 = vadd.f32 0.0, %v2890
        %v2892 = vpop.f32.mrf.mxu0
        %2893 = vdwg.mxu0
        %v2894 = vadd.f32 %v2801, %v2891
        %s2895 = scalar_lea.vmem %s17, 8
        %v2896 = vld [vmem:[%s2895] sm:$0x3]
        %v2898 = vsel %vm2520, %v2896, 0
        %2900 = vmatpush.bf16.msra.mxu0 0
        %2901 = vmatpush.bf16.msra.mxu0 0
        %2902 = vmatpush.bf16.msra.mxu0 0
        %2903 = vmatpush.bf16.msra.mxu0 0
        %2904 = vmatpush.bf16.msra.mxu0 0
        %2905 = vmatpush.bf16.msra.mxu0 0
        %2906 = vmatpush.bf16.msra.mxu0 0
        %2907 = vmatpush.bf16.msra.mxu0 %v2529
        %2908 = vmatmul.bf16.gmra.mxu0 %v2898
        %v2909 = vpop.f32.mrf.mxu0
        %v2910 = vadd.f32 0.0, %v2909
        %v2911 = vpop.f32.mrf.mxu0
        %2912 = vdwg.mxu0
        %s2913 = scalar_lea.vmem %s19, 224
        %v2914 = vld [vmem:[%s2913] sm:$0xf]
        %v2915 = vld [vmem:[%s2913 + $0x4] sm:$0xf]
        %v2916 = vld [vmem:[%s2913 + $0x8] sm:$0xf]
        %v2917 = vld [vmem:[%s2913 + $0xc] sm:$0xf]
        %v2918 = vld [vmem:[%s2913 + $0x10] sm:$0xf]
        %v2919 = vld [vmem:[%s2913 + $0x14] sm:$0xf]
        %v2920 = vld [vmem:[%s2913 + $0x18] sm:$0xf]
        %v2921 = vld [vmem:[%s2913 + $0x1c] sm:$0xf]
        %v2922 = vld [vmem:[%s2913 + $0x20] sm:$0xf]
        %v2923 = vld [vmem:[%s2913 + $0x24] sm:$0xf]
        %v2924 = vld [vmem:[%s2913 + $0x28] sm:$0xf]
        %v2925 = vld [vmem:[%s2913 + $0x2c] sm:$0xf]
        %v2926 = vld [vmem:[%s2913 + $0x30] sm:$0xf]
        %v2927 = vld [vmem:[%s2913 + $0x34] sm:$0xf]
        %v2928 = vpack.c.bf16 %v2910, %v2910
        %v2943 = vunpack.c.l.b16 %v2914
        %v2944 = vunpack.c.l.b16 %v2915
        %v2945 = vunpack.c.l.b16 %v2916
        %v2946 = vunpack.c.l.b16 %v2917
        %v2947 = vunpack.c.l.b16 %v2918
        %v2948 = vunpack.c.l.b16 %v2919
        %v2949 = vunpack.c.l.b16 %v2920
        %v2950 = vunpack.c.l.b16 %v2921
        %v2951 = vunpack.c.l.b16 %v2922
        %v2952 = vunpack.c.l.b16 %v2923
        %v2953 = vunpack.c.l.b16 %v2924
        %v2954 = vunpack.c.l.b16 %v2925
        %v2955 = vunpack.c.l.b16 %v2926
        %v2956 = vunpack.c.l.b16 %v2927
        %v2957 = vpack.c.b16 %v2944, %v2943
        %v2958 = vpack.c.b16 %v2946, %v2945
        %v2959 = vpack.c.b16 %v2948, %v2947
        %v2960 = vpack.c.b16 %v2950, %v2949
        %v2961 = vpack.c.b16 %v2952, %v2951
        %v2962 = vpack.c.b16 %v2954, %v2953
        %v2963 = vpack.c.b16 %v2956, %v2955
        %v2972 = vsel %vm1786, %v2928, 0
        %2974 = vmatpush.bf16.msra.mxu0 0
        %2975 = vmatpush.bf16.msra.mxu0 %v2963
        %2976 = vmatpush.bf16.msra.mxu0 %v2962
        %2977 = vmatpush.bf16.msra.mxu0 %v2961
        %2978 = vmatpush.bf16.msra.mxu0 %v2960
        %2979 = vmatpush.bf16.msra.mxu0 %v2959
        %2980 = vmatpush.bf16.msra.mxu0 %v2958
        %2981 = vmatpush.bf16.msra.mxu0 %v2957
        %2982 = vmatmul.bf16.gmra.mxu0 %v2972
        %v2983 = vpop.f32.mrf.mxu0
        %v2984 = vadd.f32 0.0, %v2983
        %v2985 = vpop.f32.mrf.mxu0
        %2986 = vdwg.mxu0
        %v2987 = vadd.f32 %v2894, %v2984
        %s2988 = scalar_lea.vmem %s17, 10
        %v2989 = vld [vmem:[%s2988] sm:$0x3]
        %v2991 = vsel %vm2520, %v2989, 0
        %2993 = vmatpush.bf16.msra.mxu0 0
        %2994 = vmatpush.bf16.msra.mxu0 0
        %2995 = vmatpush.bf16.msra.mxu0 0
        %2996 = vmatpush.bf16.msra.mxu0 0
        %2997 = vmatpush.bf16.msra.mxu0 0
        %2998 = vmatpush.bf16.msra.mxu0 0
        %2999 = vmatpush.bf16.msra.mxu0 0
        %3000 = vmatpush.bf16.msra.mxu0 %v2529
        %3001 = vmatmul.bf16.gmra.mxu0 %v2991
        %v3002 = vpop.f32.mrf.mxu0
        %v3003 = vadd.f32 0.0, %v3002
        %v3004 = vpop.f32.mrf.mxu0
        %3005 = vdwg.mxu0
        %s3006 = scalar_lea.vmem %s19, 280
        %v3007 = vld [vmem:[%s3006] sm:$0xf]
        %v3008 = vld [vmem:[%s3006 + $0x4] sm:$0xf]
        %v3009 = vld [vmem:[%s3006 + $0x8] sm:$0xf]
        %v3010 = vld [vmem:[%s3006 + $0xc] sm:$0xf]
        %v3011 = vld [vmem:[%s3006 + $0x10] sm:$0xf]
        %v3012 = vld [vmem:[%s3006 + $0x14] sm:$0xf]
        %v3013 = vld [vmem:[%s3006 + $0x18] sm:$0xf]
        %v3014 = vld [vmem:[%s3006 + $0x1c] sm:$0xf]
        %v3015 = vld [vmem:[%s3006 + $0x20] sm:$0xf]
        %v3016 = vld [vmem:[%s3006 + $0x24] sm:$0xf]
        %v3017 = vld [vmem:[%s3006 + $0x28] sm:$0xf]
        %v3018 = vld [vmem:[%s3006 + $0x2c] sm:$0xf]
        %v3019 = vld [vmem:[%s3006 + $0x30] sm:$0xf]
        %v3020 = vld [vmem:[%s3006 + $0x34] sm:$0xf]
        %v3021 = vpack.c.bf16 %v3003, %v3003
        %v3036 = vunpack.c.l.b16 %v3007
        %v3037 = vunpack.c.l.b16 %v3008
        %v3038 = vunpack.c.l.b16 %v3009
        %v3039 = vunpack.c.l.b16 %v3010
        %v3040 = vunpack.c.l.b16 %v3011
        %v3041 = vunpack.c.l.b16 %v3012
        %v3042 = vunpack.c.l.b16 %v3013
        %v3043 = vunpack.c.l.b16 %v3014
        %v3044 = vunpack.c.l.b16 %v3015
        %v3045 = vunpack.c.l.b16 %v3016
        %v3046 = vunpack.c.l.b16 %v3017
        %v3047 = vunpack.c.l.b16 %v3018
        %v3048 = vunpack.c.l.b16 %v3019
        %v3049 = vunpack.c.l.b16 %v3020
        %v3050 = vpack.c.b16 %v3037, %v3036
        %v3051 = vpack.c.b16 %v3039, %v3038
        %v3052 = vpack.c.b16 %v3041, %v3040
        %v3053 = vpack.c.b16 %v3043, %v3042
        %v3054 = vpack.c.b16 %v3045, %v3044
        %v3055 = vpack.c.b16 %v3047, %v3046
        %v3056 = vpack.c.b16 %v3049, %v3048
        %v3065 = vsel %vm1786, %v3021, 0
        %3067 = vmatpush.bf16.msra.mxu0 0
        %3068 = vmatpush.bf16.msra.mxu0 %v3056
        %3069 = vmatpush.bf16.msra.mxu0 %v3055
        %3070 = vmatpush.bf16.msra.mxu0 %v3054
        %3071 = vmatpush.bf16.msra.mxu0 %v3053
        %3072 = vmatpush.bf16.msra.mxu0 %v3052
        %3073 = vmatpush.bf16.msra.mxu0 %v3051
        %3074 = vmatpush.bf16.msra.mxu0 %v3050
        %3075 = vmatmul.bf16.gmra.mxu0 %v3065
        %v3076 = vpop.f32.mrf.mxu0
        %v3077 = vadd.f32 0.0, %v3076
        %v3078 = vpop.f32.mrf.mxu0
        %3079 = vdwg.mxu0
        %v3080 = vadd.f32 %v2987, %v3077
        %s3081 = scalar_lea.vmem %s17, 12
        %v3082 = vld [vmem:[%s3081] sm:$0x3]
        %v3084 = vsel %vm2520, %v3082, 0
        %3086 = vmatpush.bf16.msra.mxu0 0
        %3087 = vmatpush.bf16.msra.mxu0 0
        %3088 = vmatpush.bf16.msra.mxu0 0
        %3089 = vmatpush.bf16.msra.mxu0 0
        %3090 = vmatpush.bf16.msra.mxu0 0
        %3091 = vmatpush.bf16.msra.mxu0 0
        %3092 = vmatpush.bf16.msra.mxu0 0
        %3093 = vmatpush.bf16.msra.mxu0 %v2529
        %3094 = vmatmul.bf16.gmra.mxu0 %v3084
        %v3095 = vpop.f32.mrf.mxu0
        %v3096 = vadd.f32 0.0, %v3095
        %v3097 = vpop.f32.mrf.mxu0
        %3098 = vdwg.mxu0
        %s3099 = scalar_lea.vmem %s19, 336
        %v3100 = vld [vmem:[%s3099] sm:$0xf]
        %v3101 = vld [vmem:[%s3099 + $0x4] sm:$0xf]
        %v3102 = vld [vmem:[%s3099 + $0x8] sm:$0xf]
        %v3103 = vld [vmem:[%s3099 + $0xc] sm:$0xf]
        %v3104 = vld [vmem:[%s3099 + $0x10] sm:$0xf]
        %v3105 = vld [vmem:[%s3099 + $0x14] sm:$0xf]
        %v3106 = vld [vmem:[%s3099 + $0x18] sm:$0xf]
        %v3107 = vld [vmem:[%s3099 + $0x1c] sm:$0xf]
        %v3108 = vld [vmem:[%s3099 + $0x20] sm:$0xf]
        %v3109 = vld [vmem:[%s3099 + $0x24] sm:$0xf]
        %v3110 = vld [vmem:[%s3099 + $0x28] sm:$0xf]
        %v3111 = vld [vmem:[%s3099 + $0x2c] sm:$0xf]
        %v3112 = vld [vmem:[%s3099 + $0x30] sm:$0xf]
        %v3113 = vld [vmem:[%s3099 + $0x34] sm:$0xf]
        %v3114 = vpack.c.bf16 %v3096, %v3096
        %v3129 = vunpack.c.l.b16 %v3100
        %v3130 = vunpack.c.l.b16 %v3101
        %v3131 = vunpack.c.l.b16 %v3102
        %v3132 = vunpack.c.l.b16 %v3103
        %v3133 = vunpack.c.l.b16 %v3104
        %v3134 = vunpack.c.l.b16 %v3105
        %v3135 = vunpack.c.l.b16 %v3106
        %v3136 = vunpack.c.l.b16 %v3107
        %v3137 = vunpack.c.l.b16 %v3108
        %v3138 = vunpack.c.l.b16 %v3109
        %v3139 = vunpack.c.l.b16 %v3110
        %v3140 = vunpack.c.l.b16 %v3111
        %v3141 = vunpack.c.l.b16 %v3112
        %v3142 = vunpack.c.l.b16 %v3113
        %v3143 = vpack.c.b16 %v3130, %v3129
        %v3144 = vpack.c.b16 %v3132, %v3131
        %v3145 = vpack.c.b16 %v3134, %v3133
        %v3146 = vpack.c.b16 %v3136, %v3135
        %v3147 = vpack.c.b16 %v3138, %v3137
        %v3148 = vpack.c.b16 %v3140, %v3139
        %v3149 = vpack.c.b16 %v3142, %v3141
        %v3158 = vsel %vm1786, %v3114, 0
        %3160 = vmatpush.bf16.msra.mxu0 0
        %3161 = vmatpush.bf16.msra.mxu0 %v3149
        %3162 = vmatpush.bf16.msra.mxu0 %v3148
        %3163 = vmatpush.bf16.msra.mxu0 %v3147
        %3164 = vmatpush.bf16.msra.mxu0 %v3146
        %3165 = vmatpush.bf16.msra.mxu0 %v3145
        %3166 = vmatpush.bf16.msra.mxu0 %v3144
        %3167 = vmatpush.bf16.msra.mxu0 %v3143
        %3168 = vmatmul.bf16.gmra.mxu0 %v3158
        %v3169 = vpop.f32.mrf.mxu0
        %v3170 = vadd.f32 0.0, %v3169
        %v3171 = vpop.f32.mrf.mxu0
        %3172 = vdwg.mxu0
        %v3173 = vadd.f32 %v3080, %v3170
        %s3174 = scalar_lea.vmem %s17, 14
        %v3175 = vld [vmem:[%s3174] sm:$0x3]
        %v3177 = vsel %vm2520, %v3175, 0
        %3179 = vmatpush.bf16.msra.mxu0 0
        %3180 = vmatpush.bf16.msra.mxu0 0
        %3181 = vmatpush.bf16.msra.mxu0 0
        %3182 = vmatpush.bf16.msra.mxu0 0
        %3183 = vmatpush.bf16.msra.mxu0 0
        %3184 = vmatpush.bf16.msra.mxu0 0
        %3185 = vmatpush.bf16.msra.mxu0 0
        %3186 = vmatpush.bf16.msra.mxu0 %v2529
        %3187 = vmatmul.bf16.gmra.mxu0 %v3177
        %v3188 = vpop.f32.mrf.mxu0
        %v3189 = vadd.f32 0.0, %v3188
        %v3190 = vpop.f32.mrf.mxu0
        %3191 = vdwg.mxu0
        %s3192 = scalar_lea.vmem %s19, 392
        %v3193 = vld [vmem:[%s3192] sm:$0xf]
        %v3194 = vld [vmem:[%s3192 + $0x4] sm:$0xf]
        %v3195 = vld [vmem:[%s3192 + $0x8] sm:$0xf]
        %v3196 = vld [vmem:[%s3192 + $0xc] sm:$0xf]
        %v3197 = vld [vmem:[%s3192 + $0x10] sm:$0xf]
        %v3198 = vld [vmem:[%s3192 + $0x14] sm:$0xf]
        %v3199 = vld [vmem:[%s3192 + $0x18] sm:$0xf]
        %v3200 = vld [vmem:[%s3192 + $0x1c] sm:$0xf]
        %v3201 = vld [vmem:[%s3192 + $0x20] sm:$0xf]
        %v3202 = vld [vmem:[%s3192 + $0x24] sm:$0xf]
        %v3203 = vld [vmem:[%s3192 + $0x28] sm:$0xf]
        %v3204 = vld [vmem:[%s3192 + $0x2c] sm:$0xf]
        %v3205 = vld [vmem:[%s3192 + $0x30] sm:$0xf]
        %v3206 = vld [vmem:[%s3192 + $0x34] sm:$0xf]
        %v3207 = vpack.c.bf16 %v3189, %v3189
        %v3222 = vunpack.c.l.b16 %v3193
        %v3223 = vunpack.c.l.b16 %v3194
        %v3224 = vunpack.c.l.b16 %v3195
        %v3225 = vunpack.c.l.b16 %v3196
        %v3226 = vunpack.c.l.b16 %v3197
        %v3227 = vunpack.c.l.b16 %v3198
        %v3228 = vunpack.c.l.b16 %v3199
        %v3229 = vunpack.c.l.b16 %v3200
        %v3230 = vunpack.c.l.b16 %v3201
        %v3231 = vunpack.c.l.b16 %v3202
        %v3232 = vunpack.c.l.b16 %v3203
        %v3233 = vunpack.c.l.b16 %v3204
        %v3234 = vunpack.c.l.b16 %v3205
        %v3235 = vunpack.c.l.b16 %v3206
        %v3236 = vpack.c.b16 %v3223, %v3222
        %v3237 = vpack.c.b16 %v3225, %v3224
        %v3238 = vpack.c.b16 %v3227, %v3226
        %v3239 = vpack.c.b16 %v3229, %v3228
        %v3240 = vpack.c.b16 %v3231, %v3230
        %v3241 = vpack.c.b16 %v3233, %v3232
        %v3242 = vpack.c.b16 %v3235, %v3234
        %v3251 = vsel %vm1786, %v3207, 0
        %3253 = vmatpush.bf16.msra.mxu0 0
        %3254 = vmatpush.bf16.msra.mxu0 %v3242
        %3255 = vmatpush.bf16.msra.mxu0 %v3241
        %3256 = vmatpush.bf16.msra.mxu0 %v3240
        %3257 = vmatpush.bf16.msra.mxu0 %v3239
        %3258 = vmatpush.bf16.msra.mxu0 %v3238
        %3259 = vmatpush.bf16.msra.mxu0 %v3237
        %3260 = vmatpush.bf16.msra.mxu0 %v3236
        %3261 = vmatmul.bf16.gmra.mxu0 %v3251
        %v3262 = vpop.f32.mrf.mxu0
        %v3263 = vadd.f32 0.0, %v3262
        %v3264 = vpop.f32.mrf.mxu0
        %3265 = vdwg.mxu0
        %v3266 = vadd.f32 %v3173, %v3263
        %s3267 = scalar_lea.vmem %s17, 16
        %v3268 = vld [vmem:[%s3267] sm:$0x3]
        %v3270 = vsel %vm2520, %v3268, 0
        %3272 = vmatpush.bf16.msra.mxu0 0
        %3273 = vmatpush.bf16.msra.mxu0 0
        %3274 = vmatpush.bf16.msra.mxu0 0
        %3275 = vmatpush.bf16.msra.mxu0 0
        %3276 = vmatpush.bf16.msra.mxu0 0
        %3277 = vmatpush.bf16.msra.mxu0 0
        %3278 = vmatpush.bf16.msra.mxu0 0
        %3279 = vmatpush.bf16.msra.mxu0 %v2529
        %3280 = vmatmul.bf16.gmra.mxu0 %v3270
        %v3281 = vpop.f32.mrf.mxu0
        %v3282 = vadd.f32 0.0, %v3281
        %v3283 = vpop.f32.mrf.mxu0
        %3284 = vdwg.mxu0
        %s3285 = scalar_lea.vmem %s19, 448
        %v3286 = vld [vmem:[%s3285] sm:$0xf]
        %v3287 = vld [vmem:[%s3285 + $0x4] sm:$0xf]
        %v3288 = vld [vmem:[%s3285 + $0x8] sm:$0xf]
        %v3289 = vld [vmem:[%s3285 + $0xc] sm:$0xf]
        %v3290 = vld [vmem:[%s3285 + $0x10] sm:$0xf]
        %v3291 = vld [vmem:[%s3285 + $0x14] sm:$0xf]
        %v3292 = vld [vmem:[%s3285 + $0x18] sm:$0xf]
        %v3293 = vld [vmem:[%s3285 + $0x1c] sm:$0xf]
        %v3294 = vld [vmem:[%s3285 + $0x20] sm:$0xf]
        %v3295 = vld [vmem:[%s3285 + $0x24] sm:$0xf]
        %v3296 = vld [vmem:[%s3285 + $0x28] sm:$0xf]
        %v3297 = vld [vmem:[%s3285 + $0x2c] sm:$0xf]
        %v3298 = vld [vmem:[%s3285 + $0x30] sm:$0xf]
        %v3299 = vld [vmem:[%s3285 + $0x34] sm:$0xf]
        %v3300 = vpack.c.bf16 %v3282, %v3282
        %v3315 = vunpack.c.l.b16 %v3286
        %v3316 = vunpack.c.l.b16 %v3287
        %v3317 = vunpack.c.l.b16 %v3288
        %v3318 = vunpack.c.l.b16 %v3289
        %v3319 = vunpack.c.l.b16 %v3290
        %v3320 = vunpack.c.l.b16 %v3291
        %v3321 = vunpack.c.l.b16 %v3292
        %v3322 = vunpack.c.l.b16 %v3293
        %v3323 = vunpack.c.l.b16 %v3294
        %v3324 = vunpack.c.l.b16 %v3295
        %v3325 = vunpack.c.l.b16 %v3296
        %v3326 = vunpack.c.l.b16 %v3297
        %v3327 = vunpack.c.l.b16 %v3298
        %v3328 = vunpack.c.l.b16 %v3299
        %v3329 = vpack.c.b16 %v3316, %v3315
        %v3330 = vpack.c.b16 %v3318, %v3317
        %v3331 = vpack.c.b16 %v3320, %v3319
        %v3332 = vpack.c.b16 %v3322, %v3321
        %v3333 = vpack.c.b16 %v3324, %v3323
        %v3334 = vpack.c.b16 %v3326, %v3325
        %v3335 = vpack.c.b16 %v3328, %v3327
        %v3344 = vsel %vm1786, %v3300, 0
        %3346 = vmatpush.bf16.msra.mxu0 0
        %3347 = vmatpush.bf16.msra.mxu0 %v3335
        %3348 = vmatpush.bf16.msra.mxu0 %v3334
        %3349 = vmatpush.bf16.msra.mxu0 %v3333
        %3350 = vmatpush.bf16.msra.mxu0 %v3332
        %3351 = vmatpush.bf16.msra.mxu0 %v3331
        %3352 = vmatpush.bf16.msra.mxu0 %v3330
        %3353 = vmatpush.bf16.msra.mxu0 %v3329
        %3354 = vmatmul.bf16.gmra.mxu0 %v3344
        %v3355 = vpop.f32.mrf.mxu0
        %v3356 = vadd.f32 0.0, %v3355
        %v3357 = vpop.f32.mrf.mxu0
        %3358 = vdwg.mxu0
        %v3359 = vadd.f32 %v3266, %v3356
        %v3360 = vld [vmem:[%s21] sm:$0x1]
        %v3362 = vperm.slane %v3360, 0
        %v3364 = vadd.f32 %v3359, %v3362
        %v3365 = vmax.f32 %v3364, 0.0
        %v3366 = vpack.c.bf16 %v3365, %v3365
        %v3367 = vld [vmem:[#allocation4] sm:$0xf]
        %v3368 = vld [vmem:[#allocation4 + $0x4] sm:$0xf]
        %v3369 = vld [vmem:[#allocation4 + $0x8] sm:$0xf]
        %v3370 = vld [vmem:[#allocation4 + $0xc] sm:$0xf]
        %v3371 = vld [vmem:[#allocation4 + $0x10] sm:$0xf]
        %v3372 = vld [vmem:[#allocation4 + $0x14] sm:$0xf]
        %v3373 = vld [vmem:[#allocation4 + $0x18] sm:$0xf]
        %v3374 = vld [vmem:[#allocation4 + $0x1c] sm:$0xf]
        %v3375 = vld [vmem:[#allocation4 + $0x20] sm:$0xf]
        %v3376 = vld [vmem:[#allocation4 + $0x24] sm:$0xf]
        %v3377 = vld [vmem:[#allocation4 + $0x28] sm:$0xf]
        %v3378 = vld [vmem:[#allocation4 + $0x2c] sm:$0xf]
        %s3379 = scalar_lea.vmem [#allocation4], 48
        %v3380 = vld [vmem:[%s3379] sm:$0xf]
        %v3381 = vld [vmem:[%s3379 + $0x4] sm:$0xf]
        %v3382 = vld [vmem:[%s3379 + $0x8] sm:$0xf]
        %v3383 = vld [vmem:[%s3379 + $0xc] sm:$0xf]
        %v3384 = vld [vmem:[%s3379 + $0x10] sm:$0xf]
        %v3385 = vld [vmem:[%s3379 + $0x14] sm:$0xf]
        %v3386 = vld [vmem:[%s3379 + $0x18] sm:$0xf]
        %v3387 = vld [vmem:[%s3379 + $0x1c] sm:$0xf]
        %v3388 = vld [vmem:[%s3379 + $0x20] sm:$0xf]
        %v3389 = vld [vmem:[%s3379 + $0x24] sm:$0xf]
        %v3390 = vld [vmem:[%s3379 + $0x28] sm:$0xf]
        %v3391 = vld [vmem:[%s3379 + $0x2c] sm:$0xf]
        %v3393 = vunpack.c.l.b16 %v3366
        %v3394 = vpack.c.b16 %v3393, %v3393
        %v3396 = vshrl.u32 %v3394, 16
        %v3410 = vunpack.c.l.b16 %v3380
        %v3411 = vunpack.c.l.b16 %v3381
        %v3412 = vunpack.c.l.b16 %v3382
        %v3413 = vunpack.c.l.b16 %v3383
        %v3414 = vunpack.c.l.b16 %v3384
        %v3415 = vunpack.c.l.b16 %v3385
        %v3416 = vunpack.c.l.b16 %v3386
        %v3417 = vunpack.c.l.b16 %v3387
        %v3418 = vunpack.c.l.b16 %v3388
        %v3419 = vunpack.c.l.b16 %v3389
        %v3420 = vunpack.c.l.b16 %v3390
        %v3421 = vunpack.c.l.b16 %v3391
        %v3422 = vpack.c.b16 %v3411, %v3410
        %v3423 = vpack.c.b16 %v3413, %v3412
        %v3424 = vpack.c.b16 %v3415, %v3414
        %v3425 = vpack.c.b16 %v3417, %v3416
        %v3426 = vpack.c.b16 %v3419, %v3418
        %v3427 = vpack.c.b16 %v3421, %v3420
        %vm3434 = vcmask 785408
        %v3436 = vsel %vm3434, %v3396, 0
        %3438 = vmatpush.bf16.msra.mxu0 0
        %3439 = vmatpush.bf16.msra.mxu0 0
        %3440 = vmatpush.bf16.msra.mxu0 %v3427
        %3441 = vmatpush.bf16.msra.mxu0 %v3426
        %3442 = vmatpush.bf16.msra.mxu0 %v3425
        %3443 = vmatpush.bf16.msra.mxu0 %v3424
        %3444 = vmatpush.bf16.msra.mxu0 %v3423
        %3445 = vmatpush.bf16.msra.mxu0 %v3422
        %3446 = vmatmul.bf16.gmra.mxu0 %v3436
        %v3447 = vpop.f32.mrf.mxu0
        %v3448 = vadd.f32 0.0, %v3447
        %v3449 = vpop.f32.mrf.mxu0
        %3450 = vdwg.mxu0
        %v3463 = vunpack.c.l.b16 %v3367
        %v3464 = vunpack.c.l.b16 %v3368
        %v3465 = vunpack.c.l.b16 %v3369
        %v3466 = vunpack.c.l.b16 %v3370
        %v3467 = vunpack.c.l.b16 %v3371
        %v3468 = vunpack.c.l.b16 %v3372
        %v3469 = vunpack.c.l.b16 %v3373
        %v3470 = vunpack.c.l.b16 %v3374
        %v3471 = vunpack.c.l.b16 %v3375
        %v3472 = vunpack.c.l.b16 %v3376
        %v3473 = vunpack.c.l.b16 %v3377
        %v3474 = vunpack.c.l.b16 %v3378
        %v3475 = vpack.c.b16 %v3464, %v3463
        %v3476 = vpack.c.b16 %v3466, %v3465
        %v3477 = vpack.c.b16 %v3468, %v3467
        %v3478 = vpack.c.b16 %v3470, %v3469
        %v3479 = vpack.c.b16 %v3472, %v3471
        %v3480 = vpack.c.b16 %v3474, %v3473
        %v3488 = vsel %vm3434, %v3366, 0
        %3490 = vmatpush.bf16.msra.mxu0 0
        %3491 = vmatpush.bf16.msra.mxu0 0
        %3492 = vmatpush.bf16.msra.mxu0 %v3480
        %3493 = vmatpush.bf16.msra.mxu0 %v3479
        %3494 = vmatpush.bf16.msra.mxu0 %v3478
        %3495 = vmatpush.bf16.msra.mxu0 %v3477
        %3496 = vmatpush.bf16.msra.mxu0 %v3476
        %3497 = vmatpush.bf16.msra.mxu0 %v3475
        %3498 = vmatmul.bf16.gmra.mxu0 %v3488
        %v3499 = vpop.f32.mrf.mxu0
        %v3500 = vadd.f32 %v3448, %v3499
        %v3501 = vpop.f32.mrf.mxu0
        %3502 = vdwg.mxu0
        %s3503 = scalar_lea.vmem [#allocation4], 96
        %v3504 = vld [vmem:[%s3503] sm:$0xf]
        %v3505 = vld [vmem:[%s3503 + $0x4] sm:$0xf]
        %v3506 = vld [vmem:[%s3503 + $0x8] sm:$0xf]
        %v3507 = vld [vmem:[%s3503 + $0xc] sm:$0xf]
        %v3508 = vld [vmem:[%s3503 + $0x10] sm:$0xf]
        %v3509 = vld [vmem:[%s3503 + $0x14] sm:$0xf]
        %v3510 = vld [vmem:[%s3503 + $0x18] sm:$0xf]
        %v3511 = vld [vmem:[%s3503 + $0x1c] sm:$0xf]
        %v3512 = vld [vmem:[%s3503 + $0x20] sm:$0xf]
        %v3513 = vld [vmem:[%s3503 + $0x24] sm:$0xf]
        %v3514 = vld [vmem:[%s3503 + $0x28] sm:$0xf]
        %v3515 = vld [vmem:[%s3503 + $0x2c] sm:$0xf]
        %v3516 = vrot.slane %v3394, 1
        %v3529 = vunpack.c.l.b16 %v3504
        %v3530 = vunpack.c.l.b16 %v3505
        %v3531 = vunpack.c.l.b16 %v3506
        %v3532 = vunpack.c.l.b16 %v3507
        %v3533 = vunpack.c.l.b16 %v3508
        %v3534 = vunpack.c.l.b16 %v3509
        %v3535 = vunpack.c.l.b16 %v3510
        %v3536 = vunpack.c.l.b16 %v3511
        %v3537 = vunpack.c.l.b16 %v3512
        %v3538 = vunpack.c.l.b16 %v3513
        %v3539 = vunpack.c.l.b16 %v3514
        %v3540 = vunpack.c.l.b16 %v3515
        %v3541 = vpack.c.b16 %v3530, %v3529
        %v3542 = vpack.c.b16 %v3532, %v3531
        %v3543 = vpack.c.b16 %v3534, %v3533
        %v3544 = vpack.c.b16 %v3536, %v3535
        %v3545 = vpack.c.b16 %v3538, %v3537
        %v3546 = vpack.c.b16 %v3540, %v3539
        %v3554 = vsel %vm3434, %v3516, 0
        %3556 = vmatpush.bf16.msra.mxu0 0
        %3557 = vmatpush.bf16.msra.mxu0 0
        %3558 = vmatpush.bf16.msra.mxu0 %v3546
        %3559 = vmatpush.bf16.msra.mxu0 %v3545
        %3560 = vmatpush.bf16.msra.mxu0 %v3544
        %3561 = vmatpush.bf16.msra.mxu0 %v3543
        %3562 = vmatpush.bf16.msra.mxu0 %v3542
        %3563 = vmatpush.bf16.msra.mxu0 %v3541
        %3564 = vmatmul.bf16.gmra.mxu0 %v3554
        %v3565 = vpop.f32.mrf.mxu0
        %v3566 = vadd.f32 0.0, %v3565
        %v3567 = vpop.f32.mrf.mxu0
        %3568 = vdwg.mxu0
        %v3569 = vadd.f32 %v3500, %v3566
        %v3570 = vld [vmem:[%s25] sm:$0x1]
        %v3571 = vadd.f32 %v3569, %v3570
        %v3572 = vmax.f32 %v3571, 0.0
        %v3573 = vld [vmem:[%s27] sm:$0xf]
        %v3574 = vld [vmem:[%s27 + $0x4] sm:$0xf]
        %v3575 = vld [vmem:[%s27 + $0x8] sm:$0xf]
        %v3576 = vld [vmem:[%s27 + $0xc] sm:$0xf]
        %v3577 = vld [vmem:[%s27 + $0x10] sm:$0xf]
        %v3578 = vld [vmem:[%s27 + $0x14] sm:$0xf]
        %v3579 = vld [vmem:[%s27 + $0x18] sm:$0xf]
        %v3580 = vld [vmem:[%s27 + $0x1c] sm:$0xf]
        %v3581 = vld [vmem:[%s27 + $0x20] sm:$0xf]
        %v3582 = vld [vmem:[%s27 + $0x24] sm:$0xf]
        %v3583 = vld [vmem:[%s27 + $0x28] sm:$0xf]
        %v3584 = vld [vmem:[%s27 + $0x2c] sm:$0xf]
        %v3585 = vld [vmem:[%s27 + $0x30] sm:$0xf]
        %v3586 = vld [vmem:[%s27 + $0x34] sm:$0xf]
        %v3587 = vld [vmem:[%s27 + $0x38] sm:$0xf]
        %v3588 = vld [vmem:[%s27 + $0x3c] sm:$0xf]
        %v3589 = vpack.c.bf16 %v3572, %v3572
        %v3590 = vld [vmem:[#allocation6] sm:$0x1]
        %v3607 = vunpack.c.l.b16 %v3573
        %v3608 = vunpack.c.l.b16 %v3574
        %v3609 = vunpack.c.l.b16 %v3575
        %v3610 = vunpack.c.l.b16 %v3576
        %v3611 = vunpack.c.l.b16 %v3577
        %v3612 = vunpack.c.l.b16 %v3578
        %v3613 = vunpack.c.l.b16 %v3579
        %v3614 = vunpack.c.l.b16 %v3580
        %v3615 = vunpack.c.l.b16 %v3581
        %v3616 = vunpack.c.l.b16 %v3582
        %v3617 = vunpack.c.l.b16 %v3583
        %v3618 = vunpack.c.l.b16 %v3584
        %v3619 = vunpack.c.l.b16 %v3585
        %v3620 = vunpack.c.l.b16 %v3586
        %v3621 = vunpack.c.l.b16 %v3587
        %v3622 = vunpack.c.l.b16 %v3588
        %v3623 = vpack.c.b16 %v3608, %v3607
        %v3624 = vpack.c.b16 %v3610, %v3609
        %v3625 = vpack.c.b16 %v3612, %v3611
        %v3626 = vpack.c.b16 %v3614, %v3613
        %v3627 = vpack.c.b16 %v3616, %v3615
        %v3628 = vpack.c.b16 %v3618, %v3617
        %v3629 = vpack.c.b16 %v3620, %v3619
        %v3630 = vpack.c.b16 %v3622, %v3621
        %3639 = vmatpush.bf16.msra.mxu0 %v3630
        %3640 = vmatpush.bf16.msra.mxu0 %v3629
        %3641 = vmatpush.bf16.msra.mxu0 %v3628
        %3642 = vmatpush.bf16.msra.mxu0 %v3627
        %3643 = vmatpush.bf16.msra.mxu0 %v3626
        %3644 = vmatpush.bf16.msra.mxu0 %v3625
        %3645 = vmatpush.bf16.msra.mxu0 %v3624
        %3646 = vmatpush.bf16.msra.mxu0 %v3623
        %3647 = vmatmul.bf16.gmra.mxu0 %v3589
        %v3648 = vpop.f32.mrf.mxu0
        %v3649 = vadd.f32 %v3590, %v3648
        %v3650 = vpop.f32.mrf.mxu0
        %3651 = vdwg.mxu0
        %v3652 = vld [vmem:[%s31] sm:$0xf]
        %v3653 = vld [vmem:[%s31 + $0x4] sm:$0xf]
        %v3654 = vld [vmem:[%s31 + $0x8] sm:$0xf]
        %v3655 = vld [vmem:[%s31 + $0xc] sm:$0xf]
        %v3656 = vld [vmem:[%s31 + $0x10] sm:$0xf]
        %v3657 = vld [vmem:[%s31 + $0x14] sm:$0xf]
        %v3658 = vld [vmem:[%s31 + $0x18] sm:$0xf]
        %v3659 = vld [vmem:[%s31 + $0x1c] sm:$0xf]
        %v3660 = vld [vmem:[%s31 + $0x20] sm:$0xf]
        %v3661 = vld [vmem:[%s31 + $0x24] sm:$0xf]
        %v3662 = vld [vmem:[%s31 + $0x28] sm:$0xf]
        %v3663 = vld [vmem:[%s31 + $0x2c] sm:$0xf]
        %v3664 = vld [vmem:[%s31 + $0x30] sm:$0xf]
        %v3665 = vld [vmem:[%s31 + $0x34] sm:$0xf]
        %v3666 = vld [vmem:[%s31 + $0x38] sm:$0xf]
        %v3667 = vld [vmem:[%s31 + $0x3c] sm:$0xf]
        %v3668 = vld [vmem:[#allocation7] sm:$0x1]
        %v3685 = vunpack.c.l.b16 %v3652
        %v3686 = vunpack.c.l.b16 %v3653
        %v3687 = vunpack.c.l.b16 %v3654
        %v3688 = vunpack.c.l.b16 %v3655
        %v3689 = vunpack.c.l.b16 %v3656
        %v3690 = vunpack.c.l.b16 %v3657
        %v3691 = vunpack.c.l.b16 %v3658
        %v3692 = vunpack.c.l.b16 %v3659
        %v3693 = vunpack.c.l.b16 %v3660
        %v3694 = vunpack.c.l.b16 %v3661
        %v3695 = vunpack.c.l.b16 %v3662
        %v3696 = vunpack.c.l.b16 %v3663
        %v3697 = vunpack.c.l.b16 %v3664
        %v3698 = vunpack.c.l.b16 %v3665
        %v3699 = vunpack.c.l.b16 %v3666
        %v3700 = vunpack.c.l.b16 %v3667
        %v3701 = vpack.c.b16 %v3686, %v3685
        %v3702 = vpack.c.b16 %v3688, %v3687
        %v3703 = vpack.c.b16 %v3690, %v3689
        %v3704 = vpack.c.b16 %v3692, %v3691
        %v3705 = vpack.c.b16 %v3694, %v3693
        %v3706 = vpack.c.b16 %v3696, %v3695
        %v3707 = vpack.c.b16 %v3698, %v3697
        %v3708 = vpack.c.b16 %v3700, %v3699
        %3717 = vmatpush.bf16.msra.mxu0 %v3708
        %3718 = vmatpush.bf16.msra.mxu0 %v3707
        %3719 = vmatpush.bf16.msra.mxu0 %v3706
        %3720 = vmatpush.bf16.msra.mxu0 %v3705
        %3721 = vmatpush.bf16.msra.mxu0 %v3704
        %3722 = vmatpush.bf16.msra.mxu0 %v3703
        %3723 = vmatpush.bf16.msra.mxu0 %v3702
        %3724 = vmatpush.bf16.msra.mxu0 %v3701
        %3725 = vmatmul.bf16.gmra.mxu0 %v3589
        %v3726 = vpop.f32.mrf.mxu0
        %v3727 = vadd.f32 %v3668, %v3726
        %v3728 = vpop.f32.mrf.mxu0
        %3729 = vdwg.mxu0
        %v3730 = vld [vmem:[%s1076] sm:$0x1]
        %v3731 = vmul.f32 %v3727, 0.5
        %v3732 = vmul.f32 %v3731, 1.442695
        %v3733 = vpow.pop %v3732
        %v3734 = vmul.f32 %v3730, %v3733
        %v3735 = vadd.f32 %v3649, %v3734
        %v3736 = vld [vmem:[%s35] sm:$0xf]
        %v3737 = vpack.c.bf16 %v3735, %v3735
        %v3738 = vld [vmem:[#allocation9] sm:$0x1]
        %vm3739 = vcmask 64512
        %v3741 = vsel %vm3739, %v3737, 0
        %v3744 = vsel %vm2525, %v3736, 0
        %3746 = vmatpush.bf16.msra.mxu0 0
        %3747 = vmatpush.bf16.msra.mxu0 0
        %3748 = vmatpush.bf16.msra.mxu0 0
        %3749 = vmatpush.bf16.msra.mxu0 0
        %3750 = vmatpush.bf16.msra.mxu0 0
        %3751 = vmatpush.bf16.msra.mxu0 0
        %3752 = vmatpush.bf16.msra.mxu0 0
        %3753 = vmatpush.bf16.msra.mxu0 %v3744
        %3754 = vmatmul.bf16.gmra.mxu0 %v3741
        %v3755 = vpop.f32.mrf.mxu0
        %v3756 = vadd.f32 %v3738, %v3755
        %v3757 = vpop.f32.mrf.mxu0
        %3758 = vdwg.mxu0
        %v3759 = vmax.f32 %v3756, 0.0
        %v3760 = vpack.c.bf16 %v3759, %v3759
        %v3761 = vlaneseq
        %v3762 = vshrl.u32 %v3761, 7
        %v3763 = vld [vmem:[#allocation10] sm:$0xf]
        %v3764 = vld [vmem:[#allocation10 + $0x4] sm:$0xf]
        %v3765 = vld [vmem:[#allocation10 + $0x8] sm:$0xf]
        %v3766 = vld [vmem:[#allocation10 + $0xc] sm:$0xf]
        %v3767 = vld [vmem:[#allocation10 + $0x10] sm:$0xf]
        %v3768 = vld [vmem:[#allocation10 + $0x14] sm:$0xf]
        %v3769 = vld [vmem:[#allocation10 + $0x18] sm:$0xf]
        %v3770 = vld [vmem:[#allocation10 + $0x1c] sm:$0xf]
        %v3771 = vld [vmem:[%s41] sm:$0x1]
        %v3780 = vunpack.c.l.b16 %v3763
        %v3781 = vunpack.c.l.b16 %v3764
        %v3782 = vunpack.c.l.b16 %v3765
        %v3783 = vunpack.c.l.b16 %v3766
        %v3784 = vunpack.c.l.b16 %v3767
        %v3785 = vunpack.c.l.b16 %v3768
        %v3786 = vunpack.c.l.b16 %v3769
        %v3787 = vunpack.c.l.b16 %v3770
        %v3788 = vpack.c.b16 %v3781, %v3780
        %v3789 = vpack.c.b16 %v3783, %v3782
        %v3790 = vpack.c.b16 %v3785, %v3784
        %v3791 = vpack.c.b16 %v3787, %v3786
        %vm3796 = vcmask 523264
        %v3798 = vsel %vm3796, %v3760, 0
        %3800 = vmatpush.bf16.msra.mxu0 0
        %3801 = vmatpush.bf16.msra.mxu0 0
        %3802 = vmatpush.bf16.msra.mxu0 0
        %3803 = vmatpush.bf16.msra.mxu0 0
        %3804 = vmatpush.bf16.msra.mxu0 %v3791
        %3805 = vmatpush.bf16.msra.mxu0 %v3790
        %3806 = vmatpush.bf16.msra.mxu0 %v3789
        %3807 = vmatpush.bf16.msra.mxu0 %v3788
        %3808 = vmatmul.bf16.gmra.mxu0 %v3798
        %v3809 = vpop.f32.mrf.mxu0
        %v3810 = vadd.f32 %v3771, %v3809
        %v3811 = vpop.f32.mrf.mxu0
        %3812 = vdwg.mxu0
        %v3813 = vmax.f32 %v3810, 0.0
        %vm3814 = vcmp.eq.s32.totalorder %v3762, 0
        %v3815 = vsel %vm3814, 1, 0
        %v3816 = vcvt.s32.f32 %v3815
        %v3817 = vperm.slane %v3813, 0
        %v3818 = vmul.f32 %v3817, %v3816
        %v3819 = vadd.f32 %v3818, 0.0
        %s3820 = scalar_lea.vmem [#allocation10], 32
        %v3821 = vld [vmem:[%s3820] sm:$0xf]
        %v3822 = vld [vmem:[%s3820 + $0x4] sm:$0xf]
        %v3823 = vld [vmem:[%s3820 + $0x8] sm:$0xf]
        %v3824 = vld [vmem:[%s3820 + $0xc] sm:$0xf]
        %v3825 = vld [vmem:[%s3820 + $0x10] sm:$0xf]
        %v3826 = vld [vmem:[%s3820 + $0x14] sm:$0xf]
        %v3827 = vld [vmem:[%s3820 + $0x18] sm:$0xf]
        %v3828 = vld [vmem:[%s3820 + $0x1c] sm:$0xf]
        %s3829 = scalar_lea.vmem %s41, 1
        %v3830 = vld [vmem:[%s3829] sm:$0x1]
        %v3839 = vunpack.c.l.b16 %v3821
        %v3840 = vunpack.c.l.b16 %v3822
        %v3841 = vunpack.c.l.b16 %v3823
        %v3842 = vunpack.c.l.b16 %v3824
        %v3843 = vunpack.c.l.b16 %v3825
        %v3844 = vunpack.c.l.b16 %v3826
        %v3845 = vunpack.c.l.b16 %v3827
        %v3846 = vunpack.c.l.b16 %v3828
        %v3847 = vpack.c.b16 %v3840, %v3839
        %v3848 = vpack.c.b16 %v3842, %v3841
        %v3849 = vpack.c.b16 %v3844, %v3843
        %v3850 = vpack.c.b16 %v3846, %v3845
        %3855 = vmatpush.bf16.msra.mxu0 0
        %3856 = vmatpush.bf16.msra.mxu0 0
        %3857 = vmatpush.bf16.msra.mxu0 0
        %3858 = vmatpush.bf16.msra.mxu0 0
        %3859 = vmatpush.bf16.msra.mxu0 %v3850
        %3860 = vmatpush.bf16.msra.mxu0 %v3849
        %3861 = vmatpush.bf16.msra.mxu0 %v3848
        %3862 = vmatpush.bf16.msra.mxu0 %v3847
        %3863 = vmatmul.bf16.gmra.mxu0 %v3798
        %v3864 = vpop.f32.mrf.mxu0
        %v3865 = vadd.f32 %v3830, %v3864
        %v3866 = vpop.f32.mrf.mxu0
        %3867 = vdwg.mxu0
        %v3868 = vmax.f32 %v3865, 0.0
        %vm3869 = vcmp.eq.s32.totalorder %v3762, 1
        %v3870 = vsel %vm3869, 1, 0
        %v3871 = vcvt.s32.f32 %v3870
        %v3872 = vperm.slane %v3868, 0
        %v3873 = vmul.f32 %v3872, %v3871
        %v3874 = vadd.f32 %v3819, %v3873
        %s3875 = scalar_lea.vmem [#allocation10], 64
        %v3876 = vld [vmem:[%s3875] sm:$0xf]
        %v3877 = vld [vmem:[%s3875 + $0x4] sm:$0xf]
        %v3878 = vld [vmem:[%s3875 + $0x8] sm:$0xf]
        %v3879 = vld [vmem:[%s3875 + $0xc] sm:$0xf]
        %v3880 = vld [vmem:[%s3875 + $0x10] sm:$0xf]
        %v3881 = vld [vmem:[%s3875 + $0x14] sm:$0xf]
        %v3882 = vld [vmem:[%s3875 + $0x18] sm:$0xf]
        %v3883 = vld [vmem:[%s3875 + $0x1c] sm:$0xf]
        %s3884 = scalar_lea.vmem %s41, 2
        %v3885 = vld [vmem:[%s3884] sm:$0x1]
        %v3894 = vunpack.c.l.b16 %v3876
        %v3895 = vunpack.c.l.b16 %v3877
        %v3896 = vunpack.c.l.b16 %v3878
        %v3897 = vunpack.c.l.b16 %v3879
        %v3898 = vunpack.c.l.b16 %v3880
        %v3899 = vunpack.c.l.b16 %v3881
        %v3900 = vunpack.c.l.b16 %v3882
        %v3901 = vunpack.c.l.b16 %v3883
        %v3902 = vpack.c.b16 %v3895, %v3894
        %v3903 = vpack.c.b16 %v3897, %v3896
        %v3904 = vpack.c.b16 %v3899, %v3898
        %v3905 = vpack.c.b16 %v3901, %v3900
        %3910 = vmatpush.bf16.msra.mxu0 0
        %3911 = vmatpush.bf16.msra.mxu0 0
        %3912 = vmatpush.bf16.msra.mxu0 0
        %3913 = vmatpush.bf16.msra.mxu0 0
        %3914 = vmatpush.bf16.msra.mxu0 %v3905
        %3915 = vmatpush.bf16.msra.mxu0 %v3904
        %3916 = vmatpush.bf16.msra.mxu0 %v3903
        %3917 = vmatpush.bf16.msra.mxu0 %v3902
        %3918 = vmatmul.bf16.gmra.mxu0 %v3798
        %v3919 = vpop.f32.mrf.mxu0
        %v3920 = vadd.f32 %v3885, %v3919
        %v3921 = vpop.f32.mrf.mxu0
        %3922 = vdwg.mxu0
        %v3923 = vmax.f32 %v3920, 0.0
        %vm3924 = vcmp.eq.s32.totalorder %v3762, 2
        %v3925 = vsel %vm3924, 1, 0
        %v3926 = vcvt.s32.f32 %v3925
        %v3927 = vperm.slane %v3923, 0
        %v3928 = vmul.f32 %v3927, %v3926
        %v3929 = vadd.f32 %v3874, %v3928
        %v3930 = vpack.c.bf16 %v3929, %v3929
        %v3931 = vld [vmem:[%s43] sm:$0xf]
        %vm3932 = vcmask 23552
        %v3934 = vsel %vm3932, %v3931, 0
        %vm3936 = vcmask 1040384
        %vm3937 = vcmask 1041408
        %v3938 = vsel %vm3936, 4294967295, 65535
        %v3939 = vsel %vm3937, %v3938, 0
        %v3941 = vand.u32 %v3930, %v3939
        %3943 = vmatpush.bf16.msra.mxu0 0
        %3944 = vmatpush.bf16.msra.mxu0 0
        %3945 = vmatpush.bf16.msra.mxu0 0
        %3946 = vmatpush.bf16.msra.mxu0 0
        %3947 = vmatpush.bf16.msra.mxu0 0
        %3948 = vmatpush.bf16.msra.mxu0 0
        %3949 = vmatpush.bf16.msra.mxu0 0
        %3950 = vmatpush.bf16.msra.mxu0 %v3941
        %3951 = vmatmul.bf16.gmra.mxu0 %v3934
        %v3952 = vpop.f32.mrf.mxu0
        %v3953 = vadd.f32 0.0, %v3952
        %v3954 = vpop.f32.mrf.mxu0
        %3955 = vdwg.mxu0
        %v3956 = vld [vmem:[%s45] sm:$0xf]
        %v3957 = vld [vmem:[%s45 + $0x4] sm:$0xf]
        %v3958 = vld [vmem:[%s45 + $0x8] sm:$0xf]
        %v3959 = vld [vmem:[%s45 + $0xc] sm:$0xf]
        %v3960 = vld [vmem:[%s45 + $0x10] sm:$0xf]
        %v3961 = vld [vmem:[%s45 + $0x14] sm:$0xf]
        %v3962 = vld [vmem:[%s45 + $0x18] sm:$0xf]
        %v3963 = vld [vmem:[%s45 + $0x1c] sm:$0xf]
        %v3964 = vld [vmem:[%s45 + $0x20] sm:$0xf]
        %v3965 = vld [vmem:[%s45 + $0x24] sm:$0xf]
        %v3966 = vld [vmem:[%s45 + $0x28] sm:$0xf]
        %v3967 = vld [vmem:[%s45 + $0x2c] sm:$0xf]
        %v3968 = vpack.c.bf16 %v3953, %v3953
        %s3969 = scalar_lea.vmem %s43, 4
        %v3970 = vld [vmem:[%s3969] sm:$0xf]
        %v3972 = vsel %vm3932, %v3970, 0
        %3974 = vmatpush.bf16.msra.mxu0 0
        %3975 = vmatpush.bf16.msra.mxu0 0
        %3976 = vmatpush.bf16.msra.mxu0 0
        %3977 = vmatpush.bf16.msra.mxu0 0
        %3978 = vmatpush.bf16.msra.mxu0 0
        %3979 = vmatpush.bf16.msra.mxu0 0
        %3980 = vmatpush.bf16.msra.mxu0 0
        %3981 = vmatpush.bf16.msra.mxu0 %v3941
        %3982 = vmatmul.bf16.gmra.mxu0 %v3972
        %v3983 = vpop.f32.mrf.mxu0
        %v3984 = vadd.f32 0.0, %v3983
        %v3985 = vpop.f32.mrf.mxu0
        %3986 = vdwg.mxu0
        %s3987 = scalar_lea.vmem %s45, 48
        %v3988 = vld [vmem:[%s3987] sm:$0xf]
        %v3989 = vld [vmem:[%s3987 + $0x4] sm:$0xf]
        %v3990 = vld [vmem:[%s3987 + $0x8] sm:$0xf]
        %v3991 = vld [vmem:[%s3987 + $0xc] sm:$0xf]
        %v3992 = vld [vmem:[%s3987 + $0x10] sm:$0xf]
        %v3993 = vld [vmem:[%s3987 + $0x14] sm:$0xf]
        %v3994 = vld [vmem:[%s3987 + $0x18] sm:$0xf]
        %v3995 = vld [vmem:[%s3987 + $0x1c] sm:$0xf]
        %v3996 = vld [vmem:[%s3987 + $0x20] sm:$0xf]
        %v3997 = vld [vmem:[%s3987 + $0x24] sm:$0xf]
        %v3998 = vld [vmem:[%s3987 + $0x28] sm:$0xf]
        %v3999 = vld [vmem:[%s3987 + $0x2c] sm:$0xf]
        %v4000 = vpack.c.bf16 %v3984, %v3984
        %v4013 = vunpack.c.l.b16 %v3988
        %v4014 = vunpack.c.l.b16 %v3989
        %v4015 = vunpack.c.l.b16 %v3990
        %v4016 = vunpack.c.l.b16 %v3991
        %v4017 = vunpack.c.l.b16 %v3992
        %v4018 = vunpack.c.l.b16 %v3993
        %v4019 = vunpack.c.l.b16 %v3994
        %v4020 = vunpack.c.l.b16 %v3995
        %v4021 = vunpack.c.l.b16 %v3996
        %v4022 = vunpack.c.l.b16 %v3997
        %v4023 = vunpack.c.l.b16 %v3998
        %v4024 = vunpack.c.l.b16 %v3999
        %v4025 = vpack.c.b16 %v4014, %v4013
        %v4026 = vpack.c.b16 %v4016, %v4015
        %v4027 = vpack.c.b16 %v4018, %v4017
        %v4028 = vpack.c.b16 %v4020, %v4019
        %v4029 = vpack.c.b16 %v4022, %v4021
        %v4030 = vpack.c.b16 %v4024, %v4023
        %v4038 = vsel %vm3434, %v4000, 0
        %4040 = vmatpush.bf16.msra.mxu0 0
        %4041 = vmatpush.bf16.msra.mxu0 0
        %4042 = vmatpush.bf16.msra.mxu0 %v4030
        %4043 = vmatpush.bf16.msra.mxu0 %v4029
        %4044 = vmatpush.bf16.msra.mxu0 %v4028
        %4045 = vmatpush.bf16.msra.mxu0 %v4027
        %4046 = vmatpush.bf16.msra.mxu0 %v4026
        %4047 = vmatpush.bf16.msra.mxu0 %v4025
        %4048 = vmatmul.bf16.gmra.mxu0 %v4038
        %v4049 = vpop.f32.mrf.mxu0
        %v4050 = vadd.f32 0.0, %v4049
        %v4051 = vpop.f32.mrf.mxu0
        %4052 = vdwg.mxu0
        %v4065 = vunpack.c.l.b16 %v3956
        %v4066 = vunpack.c.l.b16 %v3957
        %v4067 = vunpack.c.l.b16 %v3958
        %v4068 = vunpack.c.l.b16 %v3959
        %v4069 = vunpack.c.l.b16 %v3960
        %v4070 = vunpack.c.l.b16 %v3961
        %v4071 = vunpack.c.l.b16 %v3962
        %v4072 = vunpack.c.l.b16 %v3963
        %v4073 = vunpack.c.l.b16 %v3964
        %v4074 = vunpack.c.l.b16 %v3965
        %v4075 = vunpack.c.l.b16 %v3966
        %v4076 = vunpack.c.l.b16 %v3967
        %v4077 = vpack.c.b16 %v4066, %v4065
        %v4078 = vpack.c.b16 %v4068, %v4067
        %v4079 = vpack.c.b16 %v4070, %v4069
        %v4080 = vpack.c.b16 %v4072, %v4071
        %v4081 = vpack.c.b16 %v4074, %v4073
        %v4082 = vpack.c.b16 %v4076, %v4075
        %v4090 = vsel %vm3434, %v3968, 0
        %4092 = vmatpush.bf16.msra.mxu0 0
        %4093 = vmatpush.bf16.msra.mxu0 0
        %4094 = vmatpush.bf16.msra.mxu0 %v4082
        %4095 = vmatpush.bf16.msra.mxu0 %v4081
        %4096 = vmatpush.bf16.msra.mxu0 %v4080
        %4097 = vmatpush.bf16.msra.mxu0 %v4079
        %4098 = vmatpush.bf16.msra.mxu0 %v4078
        %4099 = vmatpush.bf16.msra.mxu0 %v4077
        %4100 = vmatmul.bf16.gmra.mxu0 %v4090
        %v4101 = vpop.f32.mrf.mxu0
        %v4102 = vadd.f32 %v4050, %v4101
        %v4103 = vpop.f32.mrf.mxu0
        %4104 = vdwg.mxu0
        %s4105 = scalar_lea.vmem %s43, 8
        %v4106 = vld [vmem:[%s4105] sm:$0xf]
        %v4108 = vsel %vm3932, %v4106, 0
        %4110 = vmatpush.bf16.msra.mxu0 0
        %4111 = vmatpush.bf16.msra.mxu0 0
        %4112 = vmatpush.bf16.msra.mxu0 0
        %4113 = vmatpush.bf16.msra.mxu0 0
        %4114 = vmatpush.bf16.msra.mxu0 0
        %4115 = vmatpush.bf16.msra.mxu0 0
        %4116 = vmatpush.bf16.msra.mxu0 0
        %4117 = vmatpush.bf16.msra.mxu0 %v3941
        %4118 = vmatmul.bf16.gmra.mxu0 %v4108
        %v4119 = vpop.f32.mrf.mxu0
        %v4120 = vadd.f32 0.0, %v4119
        %v4121 = vpop.f32.mrf.mxu0
        %4122 = vdwg.mxu0
        %s4123 = scalar_lea.vmem %s45, 96
        %v4124 = vld [vmem:[%s4123] sm:$0xf]
        %v4125 = vld [vmem:[%s4123 + $0x4] sm:$0xf]
        %v4126 = vld [vmem:[%s4123 + $0x8] sm:$0xf]
        %v4127 = vld [vmem:[%s4123 + $0xc] sm:$0xf]
        %v4128 = vld [vmem:[%s4123 + $0x10] sm:$0xf]
        %v4129 = vld [vmem:[%s4123 + $0x14] sm:$0xf]
        %v4130 = vld [vmem:[%s4123 + $0x18] sm:$0xf]
        %v4131 = vld [vmem:[%s4123 + $0x1c] sm:$0xf]
        %v4132 = vld [vmem:[%s4123 + $0x20] sm:$0xf]
        %v4133 = vld [vmem:[%s4123 + $0x24] sm:$0xf]
        %v4134 = vld [vmem:[%s4123 + $0x28] sm:$0xf]
        %v4135 = vld [vmem:[%s4123 + $0x2c] sm:$0xf]
        %v4136 = vpack.c.bf16 %v4120, %v4120
        %v4149 = vunpack.c.l.b16 %v4124
        %v4150 = vunpack.c.l.b16 %v4125
        %v4151 = vunpack.c.l.b16 %v4126
        %v4152 = vunpack.c.l.b16 %v4127
        %v4153 = vunpack.c.l.b16 %v4128
        %v4154 = vunpack.c.l.b16 %v4129
        %v4155 = vunpack.c.l.b16 %v4130
        %v4156 = vunpack.c.l.b16 %v4131
        %v4157 = vunpack.c.l.b16 %v4132
        %v4158 = vunpack.c.l.b16 %v4133
        %v4159 = vunpack.c.l.b16 %v4134
        %v4160 = vunpack.c.l.b16 %v4135
        %v4161 = vpack.c.b16 %v4150, %v4149
        %v4162 = vpack.c.b16 %v4152, %v4151
        %v4163 = vpack.c.b16 %v4154, %v4153
        %v4164 = vpack.c.b16 %v4156, %v4155
        %v4165 = vpack.c.b16 %v4158, %v4157
        %v4166 = vpack.c.b16 %v4160, %v4159
        %v4174 = vsel %vm3434, %v4136, 0
        %4176 = vmatpush.bf16.msra.mxu0 0
        %4177 = vmatpush.bf16.msra.mxu0 0
        %4178 = vmatpush.bf16.msra.mxu0 %v4166
        %4179 = vmatpush.bf16.msra.mxu0 %v4165
        %4180 = vmatpush.bf16.msra.mxu0 %v4164
        %4181 = vmatpush.bf16.msra.mxu0 %v4163
        %4182 = vmatpush.bf16.msra.mxu0 %v4162
        %4183 = vmatpush.bf16.msra.mxu0 %v4161
        %4184 = vmatmul.bf16.gmra.mxu0 %v4174
        %v4185 = vpop.f32.mrf.mxu0
        %v4186 = vadd.f32 0.0, %v4185
        %v4187 = vpop.f32.mrf.mxu0
        %4188 = vdwg.mxu0
        %v4189 = vadd.f32 %v4102, %v4186
        %s4190 = scalar_lea.vmem %s43, 12
        %v4191 = vld [vmem:[%s4190] sm:$0xf]
        %v4193 = vsel %vm3932, %v4191, 0
        %4195 = vmatpush.bf16.msra.mxu0 0
        %4196 = vmatpush.bf16.msra.mxu0 0
        %4197 = vmatpush.bf16.msra.mxu0 0
        %4198 = vmatpush.bf16.msra.mxu0 0
        %4199 = vmatpush.bf16.msra.mxu0 0
        %4200 = vmatpush.bf16.msra.mxu0 0
        %4201 = vmatpush.bf16.msra.mxu0 0
        %4202 = vmatpush.bf16.msra.mxu0 %v3941
        %4203 = vmatmul.bf16.gmra.mxu0 %v4193
        %v4204 = vpop.f32.mrf.mxu0
        %v4205 = vadd.f32 0.0, %v4204
        %v4206 = vpop.f32.mrf.mxu0
        %4207 = vdwg.mxu0
        %s4208 = scalar_lea.vmem %s45, 144
        %v4209 = vld [vmem:[%s4208] sm:$0xf]
        %v4210 = vld [vmem:[%s4208 + $0x4] sm:$0xf]
        %v4211 = vld [vmem:[%s4208 + $0x8] sm:$0xf]
        %v4212 = vld [vmem:[%s4208 + $0xc] sm:$0xf]
        %v4213 = vld [vmem:[%s4208 + $0x10] sm:$0xf]
        %v4214 = vld [vmem:[%s4208 + $0x14] sm:$0xf]
        %v4215 = vld [vmem:[%s4208 + $0x18] sm:$0xf]
        %v4216 = vld [vmem:[%s4208 + $0x1c] sm:$0xf]
        %v4217 = vld [vmem:[%s4208 + $0x20] sm:$0xf]
        %v4218 = vld [vmem:[%s4208 + $0x24] sm:$0xf]
        %v4219 = vld [vmem:[%s4208 + $0x28] sm:$0xf]
        %v4220 = vld [vmem:[%s4208 + $0x2c] sm:$0xf]
        %v4221 = vpack.c.bf16 %v4205, %v4205
        %v4234 = vunpack.c.l.b16 %v4209
        %v4235 = vunpack.c.l.b16 %v4210
        %v4236 = vunpack.c.l.b16 %v4211
        %v4237 = vunpack.c.l.b16 %v4212
        %v4238 = vunpack.c.l.b16 %v4213
        %v4239 = vunpack.c.l.b16 %v4214
        %v4240 = vunpack.c.l.b16 %v4215
        %v4241 = vunpack.c.l.b16 %v4216
        %v4242 = vunpack.c.l.b16 %v4217
        %v4243 = vunpack.c.l.b16 %v4218
        %v4244 = vunpack.c.l.b16 %v4219
        %v4245 = vunpack.c.l.b16 %v4220
        %v4246 = vpack.c.b16 %v4235, %v4234
        %v4247 = vpack.c.b16 %v4237, %v4236
        %v4248 = vpack.c.b16 %v4239, %v4238
        %v4249 = vpack.c.b16 %v4241, %v4240
        %v4250 = vpack.c.b16 %v4243, %v4242
        %v4251 = vpack.c.b16 %v4245, %v4244
        %v4259 = vsel %vm3434, %v4221, 0
        %4261 = vmatpush.bf16.msra.mxu0 0
        %4262 = vmatpush.bf16.msra.mxu0 0
        %4263 = vmatpush.bf16.msra.mxu0 %v4251
        %4264 = vmatpush.bf16.msra.mxu0 %v4250
        %4265 = vmatpush.bf16.msra.mxu0 %v4249
        %4266 = vmatpush.bf16.msra.mxu0 %v4248
        %4267 = vmatpush.bf16.msra.mxu0 %v4247
        %4268 = vmatpush.bf16.msra.mxu0 %v4246
        %4269 = vmatmul.bf16.gmra.mxu0 %v4259
        %v4270 = vpop.f32.mrf.mxu0
        %v4271 = vadd.f32 0.0, %v4270
        %v4272 = vpop.f32.mrf.mxu0
        %4273 = vdwg.mxu0
        %v4274 = vadd.f32 %v4189, %v4271
        %s4275 = scalar_lea.vmem %s43, 16
        %v4276 = vld [vmem:[%s4275] sm:$0xf]
        %v4278 = vsel %vm3932, %v4276, 0
        %4280 = vmatpush.bf16.msra.mxu0 0
        %4281 = vmatpush.bf16.msra.mxu0 0
        %4282 = vmatpush.bf16.msra.mxu0 0
        %4283 = vmatpush.bf16.msra.mxu0 0
        %4284 = vmatpush.bf16.msra.mxu0 0
        %4285 = vmatpush.bf16.msra.mxu0 0
        %4286 = vmatpush.bf16.msra.mxu0 0
        %4287 = vmatpush.bf16.msra.mxu0 %v3941
        %4288 = vmatmul.bf16.gmra.mxu0 %v4278
        %v4289 = vpop.f32.mrf.mxu0
        %v4290 = vadd.f32 0.0, %v4289
        %v4291 = vpop.f32.mrf.mxu0
        %4292 = vdwg.mxu0
        %s4293 = scalar_lea.vmem %s45, 192
        %v4294 = vld [vmem:[%s4293] sm:$0xf]
        %v4295 = vld [vmem:[%s4293 + $0x4] sm:$0xf]
        %v4296 = vld [vmem:[%s4293 + $0x8] sm:$0xf]
        %v4297 = vld [vmem:[%s4293 + $0xc] sm:$0xf]
        %v4298 = vld [vmem:[%s4293 + $0x10] sm:$0xf]
        %v4299 = vld [vmem:[%s4293 + $0x14] sm:$0xf]
        %v4300 = vld [vmem:[%s4293 + $0x18] sm:$0xf]
        %v4301 = vld [vmem:[%s4293 + $0x1c] sm:$0xf]
        %v4302 = vld [vmem:[%s4293 + $0x20] sm:$0xf]
        %v4303 = vld [vmem:[%s4293 + $0x24] sm:$0xf]
        %v4304 = vld [vmem:[%s4293 + $0x28] sm:$0xf]
        %v4305 = vld [vmem:[%s4293 + $0x2c] sm:$0xf]
        %v4306 = vpack.c.bf16 %v4290, %v4290
        %v4319 = vunpack.c.l.b16 %v4294
        %v4320 = vunpack.c.l.b16 %v4295
        %v4321 = vunpack.c.l.b16 %v4296
        %v4322 = vunpack.c.l.b16 %v4297
        %v4323 = vunpack.c.l.b16 %v4298
        %v4324 = vunpack.c.l.b16 %v4299
        %v4325 = vunpack.c.l.b16 %v4300
        %v4326 = vunpack.c.l.b16 %v4301
        %v4327 = vunpack.c.l.b16 %v4302
        %v4328 = vunpack.c.l.b16 %v4303
        %v4329 = vunpack.c.l.b16 %v4304
        %v4330 = vunpack.c.l.b16 %v4305
        %v4331 = vpack.c.b16 %v4320, %v4319
        %v4332 = vpack.c.b16 %v4322, %v4321
        %v4333 = vpack.c.b16 %v4324, %v4323
        %v4334 = vpack.c.b16 %v4326, %v4325
        %v4335 = vpack.c.b16 %v4328, %v4327
        %v4336 = vpack.c.b16 %v4330, %v4329
        %v4344 = vsel %vm3434, %v4306, 0
        %4346 = vmatpush.bf16.msra.mxu0 0
        %4347 = vmatpush.bf16.msra.mxu0 0
        %4348 = vmatpush.bf16.msra.mxu0 %v4336
        %4349 = vmatpush.bf16.msra.mxu0 %v4335
        %4350 = vmatpush.bf16.msra.mxu0 %v4334
        %4351 = vmatpush.bf16.msra.mxu0 %v4333
        %4352 = vmatpush.bf16.msra.mxu0 %v4332
        %4353 = vmatpush.bf16.msra.mxu0 %v4331
        %4354 = vmatmul.bf16.gmra.mxu0 %v4344
        %v4355 = vpop.f32.mrf.mxu0
        %v4356 = vadd.f32 0.0, %v4355
        %v4357 = vpop.f32.mrf.mxu0
        %4358 = vdwg.mxu0
        %v4359 = vadd.f32 %v4274, %v4356
        %s4360 = scalar_lea.vmem %s43, 20
        %v4361 = vld [vmem:[%s4360] sm:$0xf]
        %v4363 = vsel %vm3932, %v4361, 0
        %4365 = vmatpush.bf16.msra.mxu0 0
        %4366 = vmatpush.bf16.msra.mxu0 0
        %4367 = vmatpush.bf16.msra.mxu0 0
        %4368 = vmatpush.bf16.msra.mxu0 0
        %4369 = vmatpush.bf16.msra.mxu0 0
        %4370 = vmatpush.bf16.msra.mxu0 0
        %4371 = vmatpush.bf16.msra.mxu0 0
        %4372 = vmatpush.bf16.msra.mxu0 %v3941
        %4373 = vmatmul.bf16.gmra.mxu0 %v4363
        %v4374 = vpop.f32.mrf.mxu0
        %v4375 = vadd.f32 0.0, %v4374
        %v4376 = vpop.f32.mrf.mxu0
        %4377 = vdwg.mxu0
        %s4378 = scalar_lea.vmem %s45, 240
        %v4379 = vld [vmem:[%s4378] sm:$0xf]
        %v4380 = vld [vmem:[%s4378 + $0x4] sm:$0xf]
        %v4381 = vld [vmem:[%s4378 + $0x8] sm:$0xf]
        %v4382 = vld [vmem:[%s4378 + $0xc] sm:$0xf]
        %v4383 = vld [vmem:[%s4378 + $0x10] sm:$0xf]
        %v4384 = vld [vmem:[%s4378 + $0x14] sm:$0xf]
        %v4385 = vld [vmem:[%s4378 + $0x18] sm:$0xf]
        %v4386 = vld [vmem:[%s4378 + $0x1c] sm:$0xf]
        %v4387 = vld [vmem:[%s4378 + $0x20] sm:$0xf]
        %v4388 = vld [vmem:[%s4378 + $0x24] sm:$0xf]
        %v4389 = vld [vmem:[%s4378 + $0x28] sm:$0xf]
        %v4390 = vld [vmem:[%s4378 + $0x2c] sm:$0xf]
        %v4391 = vpack.c.bf16 %v4375, %v4375
        %v4404 = vunpack.c.l.b16 %v4379
        %v4405 = vunpack.c.l.b16 %v4380
        %v4406 = vunpack.c.l.b16 %v4381
        %v4407 = vunpack.c.l.b16 %v4382
        %v4408 = vunpack.c.l.b16 %v4383
        %v4409 = vunpack.c.l.b16 %v4384
        %v4410 = vunpack.c.l.b16 %v4385
        %v4411 = vunpack.c.l.b16 %v4386
        %v4412 = vunpack.c.l.b16 %v4387
        %v4413 = vunpack.c.l.b16 %v4388
        %v4414 = vunpack.c.l.b16 %v4389
        %v4415 = vunpack.c.l.b16 %v4390
        %v4416 = vpack.c.b16 %v4405, %v4404
        %v4417 = vpack.c.b16 %v4407, %v4406
        %v4418 = vpack.c.b16 %v4409, %v4408
        %v4419 = vpack.c.b16 %v4411, %v4410
        %v4420 = vpack.c.b16 %v4413, %v4412
        %v4421 = vpack.c.b16 %v4415, %v4414
        %v4429 = vsel %vm3434, %v4391, 0
        %4431 = vmatpush.bf16.msra.mxu0 0
        %4432 = vmatpush.bf16.msra.mxu0 0
        %4433 = vmatpush.bf16.msra.mxu0 %v4421
        %4434 = vmatpush.bf16.msra.mxu0 %v4420
        %4435 = vmatpush.bf16.msra.mxu0 %v4419
        %4436 = vmatpush.bf16.msra.mxu0 %v4418
        %4437 = vmatpush.bf16.msra.mxu0 %v4417
        %4438 = vmatpush.bf16.msra.mxu0 %v4416
        %4439 = vmatmul.bf16.gmra.mxu0 %v4429
        %v4440 = vpop.f32.mrf.mxu0
        %v4441 = vadd.f32 0.0, %v4440
        %v4442 = vpop.f32.mrf.mxu0
        %4443 = vdwg.mxu0
        %v4444 = vadd.f32 %v4359, %v4441
        %s4445 = scalar_lea.vmem %s43, 24
        %v4446 = vld [vmem:[%s4445] sm:$0xf]
        %v4448 = vsel %vm3932, %v4446, 0
        %4450 = vmatpush.bf16.msra.mxu0 0
        %4451 = vmatpush.bf16.msra.mxu0 0
        %4452 = vmatpush.bf16.msra.mxu0 0
        %4453 = vmatpush.bf16.msra.mxu0 0
        %4454 = vmatpush.bf16.msra.mxu0 0
        %4455 = vmatpush.bf16.msra.mxu0 0
        %4456 = vmatpush.bf16.msra.mxu0 0
        %4457 = vmatpush.bf16.msra.mxu0 %v3941
        %4458 = vmatmul.bf16.gmra.mxu0 %v4448
        %v4459 = vpop.f32.mrf.mxu0
        %v4460 = vadd.f32 0.0, %v4459
        %v4461 = vpop.f32.mrf.mxu0
        %4462 = vdwg.mxu0
        %s4463 = scalar_lea.vmem %s45, 288
        %v4464 = vld [vmem:[%s4463] sm:$0xf]
        %v4465 = vld [vmem:[%s4463 + $0x4] sm:$0xf]
        %v4466 = vld [vmem:[%s4463 + $0x8] sm:$0xf]
        %v4467 = vld [vmem:[%s4463 + $0xc] sm:$0xf]
        %v4468 = vld [vmem:[%s4463 + $0x10] sm:$0xf]
        %v4469 = vld [vmem:[%s4463 + $0x14] sm:$0xf]
        %v4470 = vld [vmem:[%s4463 + $0x18] sm:$0xf]
        %v4471 = vld [vmem:[%s4463 + $0x1c] sm:$0xf]
        %v4472 = vld [vmem:[%s4463 + $0x20] sm:$0xf]
        %v4473 = vld [vmem:[%s4463 + $0x24] sm:$0xf]
        %v4474 = vld [vmem:[%s4463 + $0x28] sm:$0xf]
        %v4475 = vld [vmem:[%s4463 + $0x2c] sm:$0xf]
        %v4476 = vpack.c.bf16 %v4460, %v4460
        %v4489 = vunpack.c.l.b16 %v4464
        %v4490 = vunpack.c.l.b16 %v4465
        %v4491 = vunpack.c.l.b16 %v4466
        %v4492 = vunpack.c.l.b16 %v4467
        %v4493 = vunpack.c.l.b16 %v4468
        %v4494 = vunpack.c.l.b16 %v4469
        %v4495 = vunpack.c.l.b16 %v4470
        %v4496 = vunpack.c.l.b16 %v4471
        %v4497 = vunpack.c.l.b16 %v4472
        %v4498 = vunpack.c.l.b16 %v4473
        %v4499 = vunpack.c.l.b16 %v4474
        %v4500 = vunpack.c.l.b16 %v4475
        %v4501 = vpack.c.b16 %v4490, %v4489
        %v4502 = vpack.c.b16 %v4492, %v4491
        %v4503 = vpack.c.b16 %v4494, %v4493
        %v4504 = vpack.c.b16 %v4496, %v4495
        %v4505 = vpack.c.b16 %v4498, %v4497
        %v4506 = vpack.c.b16 %v4500, %v4499
        %v4514 = vsel %vm3434, %v4476, 0
        %4516 = vmatpush.bf16.msra.mxu0 0
        %4517 = vmatpush.bf16.msra.mxu0 0
        %4518 = vmatpush.bf16.msra.mxu0 %v4506
        %4519 = vmatpush.bf16.msra.mxu0 %v4505
        %4520 = vmatpush.bf16.msra.mxu0 %v4504
        %4521 = vmatpush.bf16.msra.mxu0 %v4503
        %4522 = vmatpush.bf16.msra.mxu0 %v4502
        %4523 = vmatpush.bf16.msra.mxu0 %v4501
        %4524 = vmatmul.bf16.gmra.mxu0 %v4514
        %v4525 = vpop.f32.mrf.mxu0
        %v4526 = vadd.f32 0.0, %v4525
        %v4527 = vpop.f32.mrf.mxu0
        %4528 = vdwg.mxu0
        %v4529 = vadd.f32 %v4444, %v4526
        %s4530 = scalar_lea.vmem %s43, 28
        %v4531 = vld [vmem:[%s4530] sm:$0xf]
        %v4533 = vsel %vm3932, %v4531, 0
        %4535 = vmatpush.bf16.msra.mxu0 0
        %4536 = vmatpush.bf16.msra.mxu0 0
        %4537 = vmatpush.bf16.msra.mxu0 0
        %4538 = vmatpush.bf16.msra.mxu0 0
        %4539 = vmatpush.bf16.msra.mxu0 0
        %4540 = vmatpush.bf16.msra.mxu0 0
        %4541 = vmatpush.bf16.msra.mxu0 0
        %4542 = vmatpush.bf16.msra.mxu0 %v3941
        %4543 = vmatmul.bf16.gmra.mxu0 %v4533
        %v4544 = vpop.f32.mrf.mxu0
        %v4545 = vadd.f32 0.0, %v4544
        %v4546 = vpop.f32.mrf.mxu0
        %4547 = vdwg.mxu0
        %s4548 = scalar_lea.vmem %s45, 336
        %v4549 = vld [vmem:[%s4548] sm:$0xf]
        %v4550 = vld [vmem:[%s4548 + $0x4] sm:$0xf]
        %v4551 = vld [vmem:[%s4548 + $0x8] sm:$0xf]
        %v4552 = vld [vmem:[%s4548 + $0xc] sm:$0xf]
        %v4553 = vld [vmem:[%s4548 + $0x10] sm:$0xf]
        %v4554 = vld [vmem:[%s4548 + $0x14] sm:$0xf]
        %v4555 = vld [vmem:[%s4548 + $0x18] sm:$0xf]
        %v4556 = vld [vmem:[%s4548 + $0x1c] sm:$0xf]
        %v4557 = vld [vmem:[%s4548 + $0x20] sm:$0xf]
        %v4558 = vld [vmem:[%s4548 + $0x24] sm:$0xf]
        %v4559 = vld [vmem:[%s4548 + $0x28] sm:$0xf]
        %v4560 = vld [vmem:[%s4548 + $0x2c] sm:$0xf]
        %v4561 = vpack.c.bf16 %v4545, %v4545
        %v4574 = vunpack.c.l.b16 %v4549
        %v4575 = vunpack.c.l.b16 %v4550
        %v4576 = vunpack.c.l.b16 %v4551
        %v4577 = vunpack.c.l.b16 %v4552
        %v4578 = vunpack.c.l.b16 %v4553
        %v4579 = vunpack.c.l.b16 %v4554
        %v4580 = vunpack.c.l.b16 %v4555
        %v4581 = vunpack.c.l.b16 %v4556
        %v4582 = vunpack.c.l.b16 %v4557
        %v4583 = vunpack.c.l.b16 %v4558
        %v4584 = vunpack.c.l.b16 %v4559
        %v4585 = vunpack.c.l.b16 %v4560
        %v4586 = vpack.c.b16 %v4575, %v4574
        %v4587 = vpack.c.b16 %v4577, %v4576
        %v4588 = vpack.c.b16 %v4579, %v4578
        %v4589 = vpack.c.b16 %v4581, %v4580
        %v4590 = vpack.c.b16 %v4583, %v4582
        %v4591 = vpack.c.b16 %v4585, %v4584
        %v4599 = vsel %vm3434, %v4561, 0
        %4601 = vmatpush.bf16.msra.mxu0 0
        %4602 = vmatpush.bf16.msra.mxu0 0
        %4603 = vmatpush.bf16.msra.mxu0 %v4591
        %4604 = vmatpush.bf16.msra.mxu0 %v4590
        %4605 = vmatpush.bf16.msra.mxu0 %v4589
        %4606 = vmatpush.bf16.msra.mxu0 %v4588
        %4607 = vmatpush.bf16.msra.mxu0 %v4587
        %4608 = vmatpush.bf16.msra.mxu0 %v4586
        %4609 = vmatmul.bf16.gmra.mxu0 %v4599
        %v4610 = vpop.f32.mrf.mxu0
        %v4611 = vadd.f32 0.0, %v4610
        %v4612 = vpop.f32.mrf.mxu0
        %4613 = vdwg.mxu0
        %v4614 = vadd.f32 %v4529, %v4611
        %s4615 = scalar_lea.vmem %s43, 32
        %v4616 = vld [vmem:[%s4615] sm:$0xf]
        %v4618 = vsel %vm3932, %v4616, 0
        %4620 = vmatpush.bf16.msra.mxu0 0
        %4621 = vmatpush.bf16.msra.mxu0 0
        %4622 = vmatpush.bf16.msra.mxu0 0
        %4623 = vmatpush.bf16.msra.mxu0 0
        %4624 = vmatpush.bf16.msra.mxu0 0
        %4625 = vmatpush.bf16.msra.mxu0 0
        %4626 = vmatpush.bf16.msra.mxu0 0
        %4627 = vmatpush.bf16.msra.mxu0 %v3941
        %4628 = vmatmul.bf16.gmra.mxu0 %v4618
        %v4629 = vpop.f32.mrf.mxu0
        %v4630 = vadd.f32 0.0, %v4629
        %v4631 = vpop.f32.mrf.mxu0
        %4632 = vdwg.mxu0
        %s4633 = scalar_lea.vmem %s45, 384
        %v4634 = vld [vmem:[%s4633] sm:$0xf]
        %v4635 = vld [vmem:[%s4633 + $0x4] sm:$0xf]
        %v4636 = vld [vmem:[%s4633 + $0x8] sm:$0xf]
        %v4637 = vld [vmem:[%s4633 + $0xc] sm:$0xf]
        %v4638 = vld [vmem:[%s4633 + $0x10] sm:$0xf]
        %v4639 = vld [vmem:[%s4633 + $0x14] sm:$0xf]
        %v4640 = vld [vmem:[%s4633 + $0x18] sm:$0xf]
        %v4641 = vld [vmem:[%s4633 + $0x1c] sm:$0xf]
        %v4642 = vld [vmem:[%s4633 + $0x20] sm:$0xf]
        %v4643 = vld [vmem:[%s4633 + $0x24] sm:$0xf]
        %v4644 = vld [vmem:[%s4633 + $0x28] sm:$0xf]
        %v4645 = vld [vmem:[%s4633 + $0x2c] sm:$0xf]
        %v4646 = vpack.c.bf16 %v4630, %v4630
        %v4659 = vunpack.c.l.b16 %v4634
        %v4660 = vunpack.c.l.b16 %v4635
        %v4661 = vunpack.c.l.b16 %v4636
        %v4662 = vunpack.c.l.b16 %v4637
        %v4663 = vunpack.c.l.b16 %v4638
        %v4664 = vunpack.c.l.b16 %v4639
        %v4665 = vunpack.c.l.b16 %v4640
        %v4666 = vunpack.c.l.b16 %v4641
        %v4667 = vunpack.c.l.b16 %v4642
        %v4668 = vunpack.c.l.b16 %v4643
        %v4669 = vunpack.c.l.b16 %v4644
        %v4670 = vunpack.c.l.b16 %v4645
        %v4671 = vpack.c.b16 %v4660, %v4659
        %v4672 = vpack.c.b16 %v4662, %v4661
        %v4673 = vpack.c.b16 %v4664, %v4663
        %v4674 = vpack.c.b16 %v4666, %v4665
        %v4675 = vpack.c.b16 %v4668, %v4667
        %v4676 = vpack.c.b16 %v4670, %v4669
        %v4684 = vsel %vm3434, %v4646, 0
        %4686 = vmatpush.bf16.msra.mxu0 0
        %4687 = vmatpush.bf16.msra.mxu0 0
        %4688 = vmatpush.bf16.msra.mxu0 %v4676
        %4689 = vmatpush.bf16.msra.mxu0 %v4675
        %4690 = vmatpush.bf16.msra.mxu0 %v4674
        %4691 = vmatpush.bf16.msra.mxu0 %v4673
        %4692 = vmatpush.bf16.msra.mxu0 %v4672
        %4693 = vmatpush.bf16.msra.mxu0 %v4671
        %4694 = vmatmul.bf16.gmra.mxu0 %v4684
        %v4695 = vpop.f32.mrf.mxu0
        %v4696 = vadd.f32 0.0, %v4695
        %v4697 = vpop.f32.mrf.mxu0
        %4698 = vdwg.mxu0
        %v4699 = vadd.f32 %v4614, %v4696
        %v4700 = vld [vmem:[#allocation12] sm:$0x1]
        %v4702 = vperm.slane %v4700, 0
        %v4704 = vadd.f32 %v4699, %v4702
        %v4705 = vmax.f32 %v4704, 0.0
        %v4706 = vpack.c.bf16 %v4705, %v4705
        %v4707 = vld [vmem:[%s49] sm:$0xf]
        %v4708 = vld [vmem:[%s49 + $0x4] sm:$0x7]
        %v4711 = vunpack.c.l.b16 %v4707
        %v4712 = vunpack.c.l.b16 %v4708
        %v4713 = vpack.c.b16 %v4712, %v4711
        %v4715 = vsel %vm2520, %v4713, 0
        %v4718 = vand.u32 %v4706, %v2527
        %4720 = vmatpush.bf16.msra.mxu0 0
        %4721 = vmatpush.bf16.msra.mxu0 0
        %4722 = vmatpush.bf16.msra.mxu0 0
        %4723 = vmatpush.bf16.msra.mxu0 0
        %4724 = vmatpush.bf16.msra.mxu0 0
        %4725 = vmatpush.bf16.msra.mxu0 0
        %4726 = vmatpush.bf16.msra.mxu0 0
        %4727 = vmatpush.bf16.msra.mxu0 %v4718
        %4728 = vmatmul.bf16.gmra.mxu0 %v4715
        %v4729 = vpop.f32.mrf.mxu0
        %v4730 = vadd.f32 0.0, %v4729
        %v4731 = vpop.f32.mrf.mxu0
        %v4732 = vadd.f32 0.0, %v4731
        %4733 = vdwg.mxu0
        %v4734 = vld [vmem:[%s51] sm:$0xf]
        %v4735 = vld [vmem:[%s51 + $0x4] sm:$0xf]
        %v4736 = vld [vmem:[%s51 + $0x8] sm:$0xf]
        %v4737 = vld [vmem:[%s51 + $0xc] sm:$0xf]
        %v4738 = vld [vmem:[%s51 + $0x10] sm:$0xf]
        %v4739 = vld [vmem:[%s51 + $0x14] sm:$0xf]
        %v4740 = vld [vmem:[%s51 + $0x18] sm:$0xf]
        %v4741 = vld [vmem:[%s51 + $0x1c] sm:$0xf]
        %v4742 = vld [vmem:[%s51 + $0x20] sm:$0xf]
        %v4743 = vld [vmem:[%s51 + $0x24] sm:$0xf]
        %v4744 = vld [vmem:[%s51 + $0x28] sm:$0xf]
        %v4745 = vld [vmem:[%s51 + $0x2c] sm:$0xf]
        %v4746 = vld [vmem:[%s51 + $0x30] sm:$0xf]
        %v4747 = vld [vmem:[%s51 + $0x34] sm:$0xf]
        %v4748 = vpack.c.bf16 %v4732, %v4730
        %s4749 = scalar_lea.vmem %s49, 8
        %v4750 = vld [vmem:[%s4749] sm:$0xf]
        %v4751 = vld [vmem:[%s4749 + $0x4] sm:$0x7]
        %v4754 = vunpack.c.l.b16 %v4750
        %v4755 = vunpack.c.l.b16 %v4751
        %v4756 = vpack.c.b16 %v4755, %v4754
        %v4758 = vsel %vm2520, %v4756, 0
        %4760 = vmatpush.bf16.msra.mxu0 0
        %4761 = vmatpush.bf16.msra.mxu0 0
        %4762 = vmatpush.bf16.msra.mxu0 0
        %4763 = vmatpush.bf16.msra.mxu0 0
        %4764 = vmatpush.bf16.msra.mxu0 0
        %4765 = vmatpush.bf16.msra.mxu0 0
        %4766 = vmatpush.bf16.msra.mxu0 0
        %4767 = vmatpush.bf16.msra.mxu0 %v4718
        %4768 = vmatmul.bf16.gmra.mxu0 %v4758
        %v4769 = vpop.f32.mrf.mxu0
        %v4770 = vadd.f32 0.0, %v4769
        %v4771 = vpop.f32.mrf.mxu0
        %v4772 = vadd.f32 0.0, %v4771
        %4773 = vdwg.mxu0
        %s4774 = scalar_lea.vmem %s51, 56
        %v4775 = vld [vmem:[%s4774] sm:$0xf]
        %v4776 = vld [vmem:[%s4774 + $0x4] sm:$0xf]
        %v4777 = vld [vmem:[%s4774 + $0x8] sm:$0xf]
        %v4778 = vld [vmem:[%s4774 + $0xc] sm:$0xf]
        %v4779 = vld [vmem:[%s4774 + $0x10] sm:$0xf]
        %v4780 = vld [vmem:[%s4774 + $0x14] sm:$0xf]
        %v4781 = vld [vmem:[%s4774 + $0x18] sm:$0xf]
        %v4782 = vld [vmem:[%s4774 + $0x1c] sm:$0xf]
        %v4783 = vld [vmem:[%s4774 + $0x20] sm:$0xf]
        %v4784 = vld [vmem:[%s4774 + $0x24] sm:$0xf]
        %v4785 = vld [vmem:[%s4774 + $0x28] sm:$0xf]
        %v4786 = vld [vmem:[%s4774 + $0x2c] sm:$0xf]
        %v4787 = vld [vmem:[%s4774 + $0x30] sm:$0xf]
        %v4788 = vld [vmem:[%s4774 + $0x34] sm:$0xf]
        %v4789 = vpack.c.bf16 %v4772, %v4770
        %v4804 = vunpack.c.l.b16 %v4775
        %v4805 = vunpack.c.l.b16 %v4776
        %v4806 = vunpack.c.l.b16 %v4777
        %v4807 = vunpack.c.l.b16 %v4778
        %v4808 = vunpack.c.l.b16 %v4779
        %v4809 = vunpack.c.l.b16 %v4780
        %v4810 = vunpack.c.l.b16 %v4781
        %v4811 = vunpack.c.l.b16 %v4782
        %v4812 = vunpack.c.l.b16 %v4783
        %v4813 = vunpack.c.l.b16 %v4784
        %v4814 = vunpack.c.l.b16 %v4785
        %v4815 = vunpack.c.l.b16 %v4786
        %v4816 = vunpack.c.l.b16 %v4787
        %v4817 = vunpack.c.l.b16 %v4788
        %v4818 = vpack.c.b16 %v4805, %v4804
        %v4819 = vpack.c.b16 %v4807, %v4806
        %v4820 = vpack.c.b16 %v4809, %v4808
        %v4821 = vpack.c.b16 %v4811, %v4810
        %v4822 = vpack.c.b16 %v4813, %v4812
        %v4823 = vpack.c.b16 %v4815, %v4814
        %v4824 = vpack.c.b16 %v4817, %v4816
        %v4833 = vsel %vm1786, %v4789, 0
        %4835 = vmatpush.bf16.msra.mxu0 0
        %4836 = vmatpush.bf16.msra.mxu0 %v4824
        %4837 = vmatpush.bf16.msra.mxu0 %v4823
        %4838 = vmatpush.bf16.msra.mxu0 %v4822
        %4839 = vmatpush.bf16.msra.mxu0 %v4821
        %4840 = vmatpush.bf16.msra.mxu0 %v4820
        %4841 = vmatpush.bf16.msra.mxu0 %v4819
        %4842 = vmatpush.bf16.msra.mxu0 %v4818
        %4843 = vmatmul.bf16.gmra.mxu0 %v4833
        %v4844 = vpop.f32.mrf.mxu0
        %v4845 = vadd.f32 0.0, %v4844
        %v4846 = vpop.f32.mrf.mxu0
        %v4847 = vadd.f32 0.0, %v4846
        %4848 = vdwg.mxu0
        %v4863 = vunpack.c.l.b16 %v4734
        %v4864 = vunpack.c.l.b16 %v4735
        %v4865 = vunpack.c.l.b16 %v4736
        %v4866 = vunpack.c.l.b16 %v4737
        %v4867 = vunpack.c.l.b16 %v4738
        %v4868 = vunpack.c.l.b16 %v4739
        %v4869 = vunpack.c.l.b16 %v4740
        %v4870 = vunpack.c.l.b16 %v4741
        %v4871 = vunpack.c.l.b16 %v4742
        %v4872 = vunpack.c.l.b16 %v4743
        %v4873 = vunpack.c.l.b16 %v4744
        %v4874 = vunpack.c.l.b16 %v4745
        %v4875 = vunpack.c.l.b16 %v4746
        %v4876 = vunpack.c.l.b16 %v4747
        %v4877 = vpack.c.b16 %v4864, %v4863
        %v4878 = vpack.c.b16 %v4866, %v4865
        %v4879 = vpack.c.b16 %v4868, %v4867
        %v4880 = vpack.c.b16 %v4870, %v4869
        %v4881 = vpack.c.b16 %v4872, %v4871
        %v4882 = vpack.c.b16 %v4874, %v4873
        %v4883 = vpack.c.b16 %v4876, %v4875
        %v4892 = vsel %vm1786, %v4748, 0
        %4894 = vmatpush.bf16.msra.mxu0 0
        %4895 = vmatpush.bf16.msra.mxu0 %v4883
        %4896 = vmatpush.bf16.msra.mxu0 %v4882
        %4897 = vmatpush.bf16.msra.mxu0 %v4881
        %4898 = vmatpush.bf16.msra.mxu0 %v4880
        %4899 = vmatpush.bf16.msra.mxu0 %v4879
        %4900 = vmatpush.bf16.msra.mxu0 %v4878
        %4901 = vmatpush.bf16.msra.mxu0 %v4877
        %4902 = vmatmul.bf16.gmra.mxu0 %v4892
        %v4903 = vpop.f32.mrf.mxu0
        %v4904 = vadd.f32 %v4845, %v4903
        %v4905 = vpop.f32.mrf.mxu0
        %v4906 = vadd.f32 %v4847, %v4905
        %4907 = vdwg.mxu0
        %s4908 = scalar_lea.vmem %s49, 16
        %v4909 = vld [vmem:[%s4908] sm:$0xf]
        %v4910 = vld [vmem:[%s4908 + $0x4] sm:$0x7]
        %v4913 = vunpack.c.l.b16 %v4909
        %v4914 = vunpack.c.l.b16 %v4910
        %v4915 = vpack.c.b16 %v4914, %v4913
        %v4917 = vsel %vm2520, %v4915, 0
        %4919 = vmatpush.bf16.msra.mxu0 0
        %4920 = vmatpush.bf16.msra.mxu0 0
        %4921 = vmatpush.bf16.msra.mxu0 0
        %4922 = vmatpush.bf16.msra.mxu0 0
        %4923 = vmatpush.bf16.msra.mxu0 0
        %4924 = vmatpush.bf16.msra.mxu0 0
        %4925 = vmatpush.bf16.msra.mxu0 0
        %4926 = vmatpush.bf16.msra.mxu0 %v4718
        %4927 = vmatmul.bf16.gmra.mxu0 %v4917
        %v4928 = vpop.f32.mrf.mxu0
        %v4929 = vadd.f32 0.0, %v4928
        %v4930 = vpop.f32.mrf.mxu0
        %v4931 = vadd.f32 0.0, %v4930
        %4932 = vdwg.mxu0
        %s4933 = scalar_lea.vmem %s51, 112
        %v4934 = vld [vmem:[%s4933] sm:$0xf]
        %v4935 = vld [vmem:[%s4933 + $0x4] sm:$0xf]
        %v4936 = vld [vmem:[%s4933 + $0x8] sm:$0xf]
        %v4937 = vld [vmem:[%s4933 + $0xc] sm:$0xf]
        %v4938 = vld [vmem:[%s4933 + $0x10] sm:$0xf]
        %v4939 = vld [vmem:[%s4933 + $0x14] sm:$0xf]
        %v4940 = vld [vmem:[%s4933 + $0x18] sm:$0xf]
        %v4941 = vld [vmem:[%s4933 + $0x1c] sm:$0xf]
        %v4942 = vld [vmem:[%s4933 + $0x20] sm:$0xf]
        %v4943 = vld [vmem:[%s4933 + $0x24] sm:$0xf]
        %v4944 = vld [vmem:[%s4933 + $0x28] sm:$0xf]
        %v4945 = vld [vmem:[%s4933 + $0x2c] sm:$0xf]
        %v4946 = vld [vmem:[%s4933 + $0x30] sm:$0xf]
        %v4947 = vld [vmem:[%s4933 + $0x34] sm:$0xf]
        %v4948 = vpack.c.bf16 %v4931, %v4929
        %v4963 = vunpack.c.l.b16 %v4934
        %v4964 = vunpack.c.l.b16 %v4935
        %v4965 = vunpack.c.l.b16 %v4936
        %v4966 = vunpack.c.l.b16 %v4937
        %v4967 = vunpack.c.l.b16 %v4938
        %v4968 = vunpack.c.l.b16 %v4939
        %v4969 = vunpack.c.l.b16 %v4940
        %v4970 = vunpack.c.l.b16 %v4941
        %v4971 = vunpack.c.l.b16 %v4942
        %v4972 = vunpack.c.l.b16 %v4943
        %v4973 = vunpack.c.l.b16 %v4944
        %v4974 = vunpack.c.l.b16 %v4945
        %v4975 = vunpack.c.l.b16 %v4946
        %v4976 = vunpack.c.l.b16 %v4947
        %v4977 = vpack.c.b16 %v4964, %v4963
        %v4978 = vpack.c.b16 %v4966, %v4965
        %v4979 = vpack.c.b16 %v4968, %v4967
        %v4980 = vpack.c.b16 %v4970, %v4969
        %v4981 = vpack.c.b16 %v4972, %v4971
        %v4982 = vpack.c.b16 %v4974, %v4973
        %v4983 = vpack.c.b16 %v4976, %v4975
        %v4992 = vsel %vm1786, %v4948, 0
        %4994 = vmatpush.bf16.msra.mxu0 0
        %4995 = vmatpush.bf16.msra.mxu0 %v4983
        %4996 = vmatpush.bf16.msra.mxu0 %v4982
        %4997 = vmatpush.bf16.msra.mxu0 %v4981
        %4998 = vmatpush.bf16.msra.mxu0 %v4980
        %4999 = vmatpush.bf16.msra.mxu0 %v4979
        %5000 = vmatpush.bf16.msra.mxu0 %v4978
        %5001 = vmatpush.bf16.msra.mxu0 %v4977
        %5002 = vmatmul.bf16.gmra.mxu0 %v4992
        %v5003 = vpop.f32.mrf.mxu0
        %v5004 = vadd.f32 0.0, %v5003
        %v5005 = vpop.f32.mrf.mxu0
        %v5006 = vadd.f32 0.0, %v5005
        %5007 = vdwg.mxu0
        %v5008 = vadd.f32 %v4904, %v5004
        %v5009 = vadd.f32 %v4906, %v5006
        %s5010 = scalar_lea.vmem %s49, 24
        %v5011 = vld [vmem:[%s5010] sm:$0xf]
        %v5012 = vld [vmem:[%s5010 + $0x4] sm:$0x7]
        %v5015 = vunpack.c.l.b16 %v5011
        %v5016 = vunpack.c.l.b16 %v5012
        %v5017 = vpack.c.b16 %v5016, %v5015
        %v5019 = vsel %vm2520, %v5017, 0
        %5021 = vmatpush.bf16.msra.mxu0 0
        %5022 = vmatpush.bf16.msra.mxu0 0
        %5023 = vmatpush.bf16.msra.mxu0 0
        %5024 = vmatpush.bf16.msra.mxu0 0
        %5025 = vmatpush.bf16.msra.mxu0 0
        %5026 = vmatpush.bf16.msra.mxu0 0
        %5027 = vmatpush.bf16.msra.mxu0 0
        %5028 = vmatpush.bf16.msra.mxu0 %v4718
        %5029 = vmatmul.bf16.gmra.mxu0 %v5019
        %v5030 = vpop.f32.mrf.mxu0
        %v5031 = vadd.f32 0.0, %v5030
        %v5032 = vpop.f32.mrf.mxu0
        %v5033 = vadd.f32 0.0, %v5032
        %5034 = vdwg.mxu0
        %s5035 = scalar_lea.vmem %s51, 168
        %v5036 = vld [vmem:[%s5035] sm:$0xf]
        %v5037 = vld [vmem:[%s5035 + $0x4] sm:$0xf]
        %v5038 = vld [vmem:[%s5035 + $0x8] sm:$0xf]
        %v5039 = vld [vmem:[%s5035 + $0xc] sm:$0xf]
        %v5040 = vld [vmem:[%s5035 + $0x10] sm:$0xf]
        %v5041 = vld [vmem:[%s5035 + $0x14] sm:$0xf]
        %v5042 = vld [vmem:[%s5035 + $0x18] sm:$0xf]
        %v5043 = vld [vmem:[%s5035 + $0x1c] sm:$0xf]
        %v5044 = vld [vmem:[%s5035 + $0x20] sm:$0xf]
        %v5045 = vld [vmem:[%s5035 + $0x24] sm:$0xf]
        %v5046 = vld [vmem:[%s5035 + $0x28] sm:$0xf]
        %v5047 = vld [vmem:[%s5035 + $0x2c] sm:$0xf]
        %v5048 = vld [vmem:[%s5035 + $0x30] sm:$0xf]
        %v5049 = vld [vmem:[%s5035 + $0x34] sm:$0xf]
        %v5050 = vpack.c.bf16 %v5033, %v5031
        %v5065 = vunpack.c.l.b16 %v5036
        %v5066 = vunpack.c.l.b16 %v5037
        %v5067 = vunpack.c.l.b16 %v5038
        %v5068 = vunpack.c.l.b16 %v5039
        %v5069 = vunpack.c.l.b16 %v5040
        %v5070 = vunpack.c.l.b16 %v5041
        %v5071 = vunpack.c.l.b16 %v5042
        %v5072 = vunpack.c.l.b16 %v5043
        %v5073 = vunpack.c.l.b16 %v5044
        %v5074 = vunpack.c.l.b16 %v5045
        %v5075 = vunpack.c.l.b16 %v5046
        %v5076 = vunpack.c.l.b16 %v5047
        %v5077 = vunpack.c.l.b16 %v5048
        %v5078 = vunpack.c.l.b16 %v5049
        %v5079 = vpack.c.b16 %v5066, %v5065
        %v5080 = vpack.c.b16 %v5068, %v5067
        %v5081 = vpack.c.b16 %v5070, %v5069
        %v5082 = vpack.c.b16 %v5072, %v5071
        %v5083 = vpack.c.b16 %v5074, %v5073
        %v5084 = vpack.c.b16 %v5076, %v5075
        %v5085 = vpack.c.b16 %v5078, %v5077
        %v5094 = vsel %vm1786, %v5050, 0
        %5096 = vmatpush.bf16.msra.mxu0 0
        %5097 = vmatpush.bf16.msra.mxu0 %v5085
        %5098 = vmatpush.bf16.msra.mxu0 %v5084
        %5099 = vmatpush.bf16.msra.mxu0 %v5083
        %5100 = vmatpush.bf16.msra.mxu0 %v5082
        %5101 = vmatpush.bf16.msra.mxu0 %v5081
        %5102 = vmatpush.bf16.msra.mxu0 %v5080
        %5103 = vmatpush.bf16.msra.mxu0 %v5079
        %5104 = vmatmul.bf16.gmra.mxu0 %v5094
        %v5105 = vpop.f32.mrf.mxu0
        %v5106 = vadd.f32 0.0, %v5105
        %v5107 = vpop.f32.mrf.mxu0
        %v5108 = vadd.f32 0.0, %v5107
        %5109 = vdwg.mxu0
        %v5110 = vadd.f32 %v5008, %v5106
        %v5111 = vadd.f32 %v5009, %v5108
        %s5112 = scalar_lea.vmem %s49, 32
        %v5113 = vld [vmem:[%s5112] sm:$0xf]
        %v5114 = vld [vmem:[%s5112 + $0x4] sm:$0x7]
        %v5117 = vunpack.c.l.b16 %v5113
        %v5118 = vunpack.c.l.b16 %v5114
        %v5119 = vpack.c.b16 %v5118, %v5117
        %v5121 = vsel %vm2520, %v5119, 0
        %5123 = vmatpush.bf16.msra.mxu0 0
        %5124 = vmatpush.bf16.msra.mxu0 0
        %5125 = vmatpush.bf16.msra.mxu0 0
        %5126 = vmatpush.bf16.msra.mxu0 0
        %5127 = vmatpush.bf16.msra.mxu0 0
        %5128 = vmatpush.bf16.msra.mxu0 0
        %5129 = vmatpush.bf16.msra.mxu0 0
        %5130 = vmatpush.bf16.msra.mxu0 %v4718
        %5131 = vmatmul.bf16.gmra.mxu0 %v5121
        %v5132 = vpop.f32.mrf.mxu0
        %v5133 = vadd.f32 0.0, %v5132
        %v5134 = vpop.f32.mrf.mxu0
        %v5135 = vadd.f32 0.0, %v5134
        %5136 = vdwg.mxu0
        %s5137 = scalar_lea.vmem %s51, 224
        %v5138 = vld [vmem:[%s5137] sm:$0xf]
        %v5139 = vld [vmem:[%s5137 + $0x4] sm:$0xf]
        %v5140 = vld [vmem:[%s5137 + $0x8] sm:$0xf]
        %v5141 = vld [vmem:[%s5137 + $0xc] sm:$0xf]
        %v5142 = vld [vmem:[%s5137 + $0x10] sm:$0xf]
        %v5143 = vld [vmem:[%s5137 + $0x14] sm:$0xf]
        %v5144 = vld [vmem:[%s5137 + $0x18] sm:$0xf]
        %v5145 = vld [vmem:[%s5137 + $0x1c] sm:$0xf]
        %v5146 = vld [vmem:[%s5137 + $0x20] sm:$0xf]
        %v5147 = vld [vmem:[%s5137 + $0x24] sm:$0xf]
        %v5148 = vld [vmem:[%s5137 + $0x28] sm:$0xf]
        %v5149 = vld [vmem:[%s5137 + $0x2c] sm:$0xf]
        %v5150 = vld [vmem:[%s5137 + $0x30] sm:$0xf]
        %v5151 = vld [vmem:[%s5137 + $0x34] sm:$0xf]
        %v5152 = vpack.c.bf16 %v5135, %v5133
        %v5167 = vunpack.c.l.b16 %v5138
        %v5168 = vunpack.c.l.b16 %v5139
        %v5169 = vunpack.c.l.b16 %v5140
        %v5170 = vunpack.c.l.b16 %v5141
        %v5171 = vunpack.c.l.b16 %v5142
        %v5172 = vunpack.c.l.b16 %v5143
        %v5173 = vunpack.c.l.b16 %v5144
        %v5174 = vunpack.c.l.b16 %v5145
        %v5175 = vunpack.c.l.b16 %v5146
        %v5176 = vunpack.c.l.b16 %v5147
        %v5177 = vunpack.c.l.b16 %v5148
        %v5178 = vunpack.c.l.b16 %v5149
        %v5179 = vunpack.c.l.b16 %v5150
        %v5180 = vunpack.c.l.b16 %v5151
        %v5181 = vpack.c.b16 %v5168, %v5167
        %v5182 = vpack.c.b16 %v5170, %v5169
        %v5183 = vpack.c.b16 %v5172, %v5171
        %v5184 = vpack.c.b16 %v5174, %v5173
        %v5185 = vpack.c.b16 %v5176, %v5175
        %v5186 = vpack.c.b16 %v5178, %v5177
        %v5187 = vpack.c.b16 %v5180, %v5179
        %v5196 = vsel %vm1786, %v5152, 0
        %5198 = vmatpush.bf16.msra.mxu0 0
        %5199 = vmatpush.bf16.msra.mxu0 %v5187
        %5200 = vmatpush.bf16.msra.mxu0 %v5186
        %5201 = vmatpush.bf16.msra.mxu0 %v5185
        %5202 = vmatpush.bf16.msra.mxu0 %v5184
        %5203 = vmatpush.bf16.msra.mxu0 %v5183
        %5204 = vmatpush.bf16.msra.mxu0 %v5182
        %5205 = vmatpush.bf16.msra.mxu0 %v5181
        %5206 = vmatmul.bf16.gmra.mxu0 %v5196
        %v5207 = vpop.f32.mrf.mxu0
        %v5208 = vadd.f32 0.0, %v5207
        %v5209 = vpop.f32.mrf.mxu0
        %v5210 = vadd.f32 0.0, %v5209
        %5211 = vdwg.mxu0
        %v5212 = vadd.f32 %v5110, %v5208
        %v5213 = vadd.f32 %v5111, %v5210
        %s5214 = scalar_lea.vmem %s49, 40
        %v5215 = vld [vmem:[%s5214] sm:$0xf]
        %v5216 = vld [vmem:[%s5214 + $0x4] sm:$0x7]
        %v5219 = vunpack.c.l.b16 %v5215
        %v5220 = vunpack.c.l.b16 %v5216
        %v5221 = vpack.c.b16 %v5220, %v5219
        %v5223 = vsel %vm2520, %v5221, 0
        %5225 = vmatpush.bf16.msra.mxu0 0
        %5226 = vmatpush.bf16.msra.mxu0 0
        %5227 = vmatpush.bf16.msra.mxu0 0
        %5228 = vmatpush.bf16.msra.mxu0 0
        %5229 = vmatpush.bf16.msra.mxu0 0
        %5230 = vmatpush.bf16.msra.mxu0 0
        %5231 = vmatpush.bf16.msra.mxu0 0
        %5232 = vmatpush.bf16.msra.mxu0 %v4718
        %5233 = vmatmul.bf16.gmra.mxu0 %v5223
        %v5234 = vpop.f32.mrf.mxu0
        %v5235 = vadd.f32 0.0, %v5234
        %v5236 = vpop.f32.mrf.mxu0
        %v5237 = vadd.f32 0.0, %v5236
        %5238 = vdwg.mxu0
        %s5239 = scalar_lea.vmem %s51, 280
        %v5240 = vld [vmem:[%s5239] sm:$0xf]
        %v5241 = vld [vmem:[%s5239 + $0x4] sm:$0xf]
        %v5242 = vld [vmem:[%s5239 + $0x8] sm:$0xf]
        %v5243 = vld [vmem:[%s5239 + $0xc] sm:$0xf]
        %v5244 = vld [vmem:[%s5239 + $0x10] sm:$0xf]
        %v5245 = vld [vmem:[%s5239 + $0x14] sm:$0xf]
        %v5246 = vld [vmem:[%s5239 + $0x18] sm:$0xf]
        %v5247 = vld [vmem:[%s5239 + $0x1c] sm:$0xf]
        %v5248 = vld [vmem:[%s5239 + $0x20] sm:$0xf]
        %v5249 = vld [vmem:[%s5239 + $0x24] sm:$0xf]
        %v5250 = vld [vmem:[%s5239 + $0x28] sm:$0xf]
        %v5251 = vld [vmem:[%s5239 + $0x2c] sm:$0xf]
        %v5252 = vld [vmem:[%s5239 + $0x30] sm:$0xf]
        %v5253 = vld [vmem:[%s5239 + $0x34] sm:$0xf]
        %v5254 = vpack.c.bf16 %v5237, %v5235
        %v5269 = vunpack.c.l.b16 %v5240
        %v5270 = vunpack.c.l.b16 %v5241
        %v5271 = vunpack.c.l.b16 %v5242
        %v5272 = vunpack.c.l.b16 %v5243
        %v5273 = vunpack.c.l.b16 %v5244
        %v5274 = vunpack.c.l.b16 %v5245
        %v5275 = vunpack.c.l.b16 %v5246
        %v5276 = vunpack.c.l.b16 %v5247
        %v5277 = vunpack.c.l.b16 %v5248
        %v5278 = vunpack.c.l.b16 %v5249
        %v5279 = vunpack.c.l.b16 %v5250
        %v5280 = vunpack.c.l.b16 %v5251
        %v5281 = vunpack.c.l.b16 %v5252
        %v5282 = vunpack.c.l.b16 %v5253
        %v5283 = vpack.c.b16 %v5270, %v5269
        %v5284 = vpack.c.b16 %v5272, %v5271
        %v5285 = vpack.c.b16 %v5274, %v5273
        %v5286 = vpack.c.b16 %v5276, %v5275
        %v5287 = vpack.c.b16 %v5278, %v5277
        %v5288 = vpack.c.b16 %v5280, %v5279
        %v5289 = vpack.c.b16 %v5282, %v5281
        %v5298 = vsel %vm1786, %v5254, 0
        %5300 = vmatpush.bf16.msra.mxu0 0
        %5301 = vmatpush.bf16.msra.mxu0 %v5289
        %5302 = vmatpush.bf16.msra.mxu0 %v5288
        %5303 = vmatpush.bf16.msra.mxu0 %v5287
        %5304 = vmatpush.bf16.msra.mxu0 %v5286
        %5305 = vmatpush.bf16.msra.mxu0 %v5285
        %5306 = vmatpush.bf16.msra.mxu0 %v5284
        %5307 = vmatpush.bf16.msra.mxu0 %v5283
        %5308 = vmatmul.bf16.gmra.mxu0 %v5298
        %v5309 = vpop.f32.mrf.mxu0
        %v5310 = vadd.f32 0.0, %v5309
        %v5311 = vpop.f32.mrf.mxu0
        %v5312 = vadd.f32 0.0, %v5311
        %5313 = vdwg.mxu0
        %v5314 = vadd.f32 %v5212, %v5310
        %v5315 = vadd.f32 %v5213, %v5312
        %s5316 = scalar_lea.vmem %s49, 48
        %v5317 = vld [vmem:[%s5316] sm:$0xf]
        %v5318 = vld [vmem:[%s5316 + $0x4] sm:$0x7]
        %v5321 = vunpack.c.l.b16 %v5317
        %v5322 = vunpack.c.l.b16 %v5318
        %v5323 = vpack.c.b16 %v5322, %v5321
        %v5325 = vsel %vm2520, %v5323, 0
        %5327 = vmatpush.bf16.msra.mxu0 0
        %5328 = vmatpush.bf16.msra.mxu0 0
        %5329 = vmatpush.bf16.msra.mxu0 0
        %5330 = vmatpush.bf16.msra.mxu0 0
        %5331 = vmatpush.bf16.msra.mxu0 0
        %5332 = vmatpush.bf16.msra.mxu0 0
        %5333 = vmatpush.bf16.msra.mxu0 0
        %5334 = vmatpush.bf16.msra.mxu0 %v4718
        %5335 = vmatmul.bf16.gmra.mxu0 %v5325
        %v5336 = vpop.f32.mrf.mxu0
        %v5337 = vadd.f32 0.0, %v5336
        %v5338 = vpop.f32.mrf.mxu0
        %v5339 = vadd.f32 0.0, %v5338
        %5340 = vdwg.mxu0
        %s5341 = scalar_lea.vmem %s51, 336
        %v5342 = vld [vmem:[%s5341] sm:$0xf]
        %v5343 = vld [vmem:[%s5341 + $0x4] sm:$0xf]
        %v5344 = vld [vmem:[%s5341 + $0x8] sm:$0xf]
        %v5345 = vld [vmem:[%s5341 + $0xc] sm:$0xf]
        %v5346 = vld [vmem:[%s5341 + $0x10] sm:$0xf]
        %v5347 = vld [vmem:[%s5341 + $0x14] sm:$0xf]
        %v5348 = vld [vmem:[%s5341 + $0x18] sm:$0xf]
        %v5349 = vld [vmem:[%s5341 + $0x1c] sm:$0xf]
        %v5350 = vld [vmem:[%s5341 + $0x20] sm:$0xf]
        %v5351 = vld [vmem:[%s5341 + $0x24] sm:$0xf]
        %v5352 = vld [vmem:[%s5341 + $0x28] sm:$0xf]
        %v5353 = vld [vmem:[%s5341 + $0x2c] sm:$0xf]
        %v5354 = vld [vmem:[%s5341 + $0x30] sm:$0xf]
        %v5355 = vld [vmem:[%s5341 + $0x34] sm:$0xf]
        %v5356 = vpack.c.bf16 %v5339, %v5337
        %v5371 = vunpack.c.l.b16 %v5342
        %v5372 = vunpack.c.l.b16 %v5343
        %v5373 = vunpack.c.l.b16 %v5344
        %v5374 = vunpack.c.l.b16 %v5345
        %v5375 = vunpack.c.l.b16 %v5346
        %v5376 = vunpack.c.l.b16 %v5347
        %v5377 = vunpack.c.l.b16 %v5348
        %v5378 = vunpack.c.l.b16 %v5349
        %v5379 = vunpack.c.l.b16 %v5350
        %v5380 = vunpack.c.l.b16 %v5351
        %v5381 = vunpack.c.l.b16 %v5352
        %v5382 = vunpack.c.l.b16 %v5353
        %v5383 = vunpack.c.l.b16 %v5354
        %v5384 = vunpack.c.l.b16 %v5355
        %v5385 = vpack.c.b16 %v5372, %v5371
        %v5386 = vpack.c.b16 %v5374, %v5373
        %v5387 = vpack.c.b16 %v5376, %v5375
        %v5388 = vpack.c.b16 %v5378, %v5377
        %v5389 = vpack.c.b16 %v5380, %v5379
        %v5390 = vpack.c.b16 %v5382, %v5381
        %v5391 = vpack.c.b16 %v5384, %v5383
        %v5400 = vsel %vm1786, %v5356, 0
        %5402 = vmatpush.bf16.msra.mxu0 0
        %5403 = vmatpush.bf16.msra.mxu0 %v5391
        %5404 = vmatpush.bf16.msra.mxu0 %v5390
        %5405 = vmatpush.bf16.msra.mxu0 %v5389
        %5406 = vmatpush.bf16.msra.mxu0 %v5388
        %5407 = vmatpush.bf16.msra.mxu0 %v5387
        %5408 = vmatpush.bf16.msra.mxu0 %v5386
        %5409 = vmatpush.bf16.msra.mxu0 %v5385
        %5410 = vmatmul.bf16.gmra.mxu0 %v5400
        %v5411 = vpop.f32.mrf.mxu0
        %v5412 = vadd.f32 0.0, %v5411
        %v5413 = vpop.f32.mrf.mxu0
        %v5414 = vadd.f32 0.0, %v5413
        %5415 = vdwg.mxu0
        %v5416 = vadd.f32 %v5314, %v5412
        %v5417 = vadd.f32 %v5315, %v5414
        %s5418 = scalar_lea.vmem %s49, 56
        %v5419 = vld [vmem:[%s5418] sm:$0xf]
        %v5420 = vld [vmem:[%s5418 + $0x4] sm:$0x7]
        %v5423 = vunpack.c.l.b16 %v5419
        %v5424 = vunpack.c.l.b16 %v5420
        %v5425 = vpack.c.b16 %v5424, %v5423
        %v5427 = vsel %vm2520, %v5425, 0
        %5429 = vmatpush.bf16.msra.mxu0 0
        %5430 = vmatpush.bf16.msra.mxu0 0
        %5431 = vmatpush.bf16.msra.mxu0 0
        %5432 = vmatpush.bf16.msra.mxu0 0
        %5433 = vmatpush.bf16.msra.mxu0 0
        %5434 = vmatpush.bf16.msra.mxu0 0
        %5435 = vmatpush.bf16.msra.mxu0 0
        %5436 = vmatpush.bf16.msra.mxu0 %v4718
        %5437 = vmatmul.bf16.gmra.mxu0 %v5427
        %v5438 = vpop.f32.mrf.mxu0
        %v5439 = vadd.f32 0.0, %v5438
        %v5440 = vpop.f32.mrf.mxu0
        %v5441 = vadd.f32 0.0, %v5440
        %5442 = vdwg.mxu0
        %s5443 = scalar_lea.vmem %s51, 392
        %v5444 = vld [vmem:[%s5443] sm:$0xf]
        %v5445 = vld [vmem:[%s5443 + $0x4] sm:$0xf]
        %v5446 = vld [vmem:[%s5443 + $0x8] sm:$0xf]
        %v5447 = vld [vmem:[%s5443 + $0xc] sm:$0xf]
        %v5448 = vld [vmem:[%s5443 + $0x10] sm:$0xf]
        %v5449 = vld [vmem:[%s5443 + $0x14] sm:$0xf]
        %v5450 = vld [vmem:[%s5443 + $0x18] sm:$0xf]
        %v5451 = vld [vmem:[%s5443 + $0x1c] sm:$0xf]
        %v5452 = vld [vmem:[%s5443 + $0x20] sm:$0xf]
        %v5453 = vld [vmem:[%s5443 + $0x24] sm:$0xf]
        %v5454 = vld [vmem:[%s5443 + $0x28] sm:$0xf]
        %v5455 = vld [vmem:[%s5443 + $0x2c] sm:$0xf]
        %v5456 = vld [vmem:[%s5443 + $0x30] sm:$0xf]
        %v5457 = vld [vmem:[%s5443 + $0x34] sm:$0xf]
        %v5458 = vpack.c.bf16 %v5441, %v5439
        %v5473 = vunpack.c.l.b16 %v5444
        %v5474 = vunpack.c.l.b16 %v5445
        %v5475 = vunpack.c.l.b16 %v5446
        %v5476 = vunpack.c.l.b16 %v5447
        %v5477 = vunpack.c.l.b16 %v5448
        %v5478 = vunpack.c.l.b16 %v5449
        %v5479 = vunpack.c.l.b16 %v5450
        %v5480 = vunpack.c.l.b16 %v5451
        %v5481 = vunpack.c.l.b16 %v5452
        %v5482 = vunpack.c.l.b16 %v5453
        %v5483 = vunpack.c.l.b16 %v5454
        %v5484 = vunpack.c.l.b16 %v5455
        %v5485 = vunpack.c.l.b16 %v5456
        %v5486 = vunpack.c.l.b16 %v5457
        %v5487 = vpack.c.b16 %v5474, %v5473
        %v5488 = vpack.c.b16 %v5476, %v5475
        %v5489 = vpack.c.b16 %v5478, %v5477
        %v5490 = vpack.c.b16 %v5480, %v5479
        %v5491 = vpack.c.b16 %v5482, %v5481
        %v5492 = vpack.c.b16 %v5484, %v5483
        %v5493 = vpack.c.b16 %v5486, %v5485
        %v5502 = vsel %vm1786, %v5458, 0
        %5504 = vmatpush.bf16.msra.mxu0 0
        %5505 = vmatpush.bf16.msra.mxu0 %v5493
        %5506 = vmatpush.bf16.msra.mxu0 %v5492
        %5507 = vmatpush.bf16.msra.mxu0 %v5491
        %5508 = vmatpush.bf16.msra.mxu0 %v5490
        %5509 = vmatpush.bf16.msra.mxu0 %v5489
        %5510 = vmatpush.bf16.msra.mxu0 %v5488
        %5511 = vmatpush.bf16.msra.mxu0 %v5487
        %5512 = vmatmul.bf16.gmra.mxu0 %v5502
        %v5513 = vpop.f32.mrf.mxu0
        %v5514 = vadd.f32 0.0, %v5513
        %v5515 = vpop.f32.mrf.mxu0
        %v5516 = vadd.f32 0.0, %v5515
        %5517 = vdwg.mxu0
        %v5518 = vadd.f32 %v5416, %v5514
        %v5519 = vadd.f32 %v5417, %v5516
        %s5520 = scalar_lea.vmem %s49, 64
        %v5521 = vld [vmem:[%s5520] sm:$0xf]
        %v5522 = vld [vmem:[%s5520 + $0x4] sm:$0x7]
        %v5525 = vunpack.c.l.b16 %v5521
        %v5526 = vunpack.c.l.b16 %v5522
        %v5527 = vpack.c.b16 %v5526, %v5525
        %v5529 = vsel %vm2520, %v5527, 0
        %5531 = vmatpush.bf16.msra.mxu0 0
        %5532 = vmatpush.bf16.msra.mxu0 0
        %5533 = vmatpush.bf16.msra.mxu0 0
        %5534 = vmatpush.bf16.msra.mxu0 0
        %5535 = vmatpush.bf16.msra.mxu0 0
        %5536 = vmatpush.bf16.msra.mxu0 0
        %5537 = vmatpush.bf16.msra.mxu0 0
        %5538 = vmatpush.bf16.msra.mxu0 %v4718
        %5539 = vmatmul.bf16.gmra.mxu0 %v5529
        %v5540 = vpop.f32.mrf.mxu0
        %v5541 = vadd.f32 0.0, %v5540
        %v5542 = vpop.f32.mrf.mxu0
        %v5543 = vadd.f32 0.0, %v5542
        %5544 = vdwg.mxu0
        %s5545 = scalar_lea.vmem %s51, 448
        %v5546 = vld [vmem:[%s5545] sm:$0xf]
        %v5547 = vld [vmem:[%s5545 + $0x4] sm:$0xf]
        %v5548 = vld [vmem:[%s5545 + $0x8] sm:$0xf]
        %v5549 = vld [vmem:[%s5545 + $0xc] sm:$0xf]
        %v5550 = vld [vmem:[%s5545 + $0x10] sm:$0xf]
        %v5551 = vld [vmem:[%s5545 + $0x14] sm:$0xf]
        %v5552 = vld [vmem:[%s5545 + $0x18] sm:$0xf]
        %v5553 = vld [vmem:[%s5545 + $0x1c] sm:$0xf]
        %v5554 = vld [vmem:[%s5545 + $0x20] sm:$0xf]
        %v5555 = vld [vmem:[%s5545 + $0x24] sm:$0xf]
        %v5556 = vld [vmem:[%s5545 + $0x28] sm:$0xf]
        %v5557 = vld [vmem:[%s5545 + $0x2c] sm:$0xf]
        %v5558 = vld [vmem:[%s5545 + $0x30] sm:$0xf]
        %v5559 = vld [vmem:[%s5545 + $0x34] sm:$0xf]
        %v5560 = vpack.c.bf16 %v5543, %v5541
        %v5575 = vunpack.c.l.b16 %v5546
        %v5576 = vunpack.c.l.b16 %v5547
        %v5577 = vunpack.c.l.b16 %v5548
        %v5578 = vunpack.c.l.b16 %v5549
        %v5579 = vunpack.c.l.b16 %v5550
        %v5580 = vunpack.c.l.b16 %v5551
        %v5581 = vunpack.c.l.b16 %v5552
        %v5582 = vunpack.c.l.b16 %v5553
        %v5583 = vunpack.c.l.b16 %v5554
        %v5584 = vunpack.c.l.b16 %v5555
        %v5585 = vunpack.c.l.b16 %v5556
        %v5586 = vunpack.c.l.b16 %v5557
        %v5587 = vunpack.c.l.b16 %v5558
        %v5588 = vunpack.c.l.b16 %v5559
        %v5589 = vpack.c.b16 %v5576, %v5575
        %v5590 = vpack.c.b16 %v5578, %v5577
        %v5591 = vpack.c.b16 %v5580, %v5579
        %v5592 = vpack.c.b16 %v5582, %v5581
        %v5593 = vpack.c.b16 %v5584, %v5583
        %v5594 = vpack.c.b16 %v5586, %v5585
        %v5595 = vpack.c.b16 %v5588, %v5587
        %v5604 = vsel %vm1786, %v5560, 0
        %5606 = vmatpush.bf16.msra.mxu0 0
        %5607 = vmatpush.bf16.msra.mxu0 %v5595
        %5608 = vmatpush.bf16.msra.mxu0 %v5594
        %5609 = vmatpush.bf16.msra.mxu0 %v5593
        %5610 = vmatpush.bf16.msra.mxu0 %v5592
        %5611 = vmatpush.bf16.msra.mxu0 %v5591
        %5612 = vmatpush.bf16.msra.mxu0 %v5590
        %5613 = vmatpush.bf16.msra.mxu0 %v5589
        %5614 = vmatmul.bf16.gmra.mxu0 %v5604
        %v5615 = vpop.f32.mrf.mxu0
        %v5616 = vadd.f32 0.0, %v5615
        %v5617 = vpop.f32.mrf.mxu0
        %v5618 = vadd.f32 0.0, %v5617
        %5619 = vdwg.mxu0
        %v5620 = vadd.f32 %v5518, %v5616
        %v5621 = vadd.f32 %v5519, %v5618
        %v5622 = vld [vmem:[#allocation13] sm:$0x1]
        %v5624 = vperm.slane %v5622, 0
        %v5626 = vadd.f32 %v5620, %v5624
        %v5627 = vadd.f32 %v5621, %v5624
        %v5628 = vmax.f32 %v5626, 0.0
        %v5629 = vmax.f32 %v5627, 0.0
        %v5630 = vpack.c.bf16 %v5629, %v5628
        %v5631 = vld [vmem:[%s55] sm:$0xf]
        %v5632 = vld [vmem:[%s55 + $0x4] sm:$0xf]
        %v5633 = vld [vmem:[%s55 + $0x8] sm:$0xf]
        %v5634 = vld [vmem:[%s55 + $0xc] sm:$0x3]
        %v5639 = vunpack.c.l.b16 %v5631
        %v5640 = vunpack.c.l.b16 %v5632
        %v5641 = vunpack.c.l.b16 %v5633
        %v5642 = vunpack.c.l.b16 %v5634
        %v5643 = vpack.c.b16 %v5640, %v5639
        %v5644 = vpack.c.b16 %v5642, %v5641
        %v5646 = vsel %vm1674, %v5643, 0
        %v5649 = vsel %vm1674, %v5644, 0
        %v5652 = vsel %vm1678, %v5630, 0
        %5654 = vmatpush.bf16.msra.mxu0 0
        %5655 = vmatpush.bf16.msra.mxu0 0
        %5656 = vmatpush.bf16.msra.mxu0 0
        %5657 = vmatpush.bf16.msra.mxu0 0
        %5658 = vmatpush.bf16.msra.mxu0 0
        %5659 = vmatpush.bf16.msra.mxu0 0
        %5660 = vmatpush.bf16.msra.mxu0 0
        %5661 = vmatpush.bf16.msra.mxu0 %v5652
        %5662 = vmatmul.bf16.gmra.mxu0 %v5646
        %v5663 = vpop.f32.mrf.mxu0
        %v5664 = vadd.f32 0.0, %v5663
        %v5665 = vpop.f32.mrf.mxu0
        %v5666 = vadd.f32 0.0, %v5665
        %5667 = vmatmul.bf16.gmra.mxu0 %v5649
        %v5668 = vpop.f32.mrf.mxu0
        %v5669 = vadd.f32 0.0, %v5668
        %v5670 = vpop.f32.mrf.mxu0
        %v5671 = vadd.f32 0.0, %v5670
        %5672 = vdwg.mxu0
        %v5673 = vld [vmem:[%s57] sm:$0xf]
        %v5674 = vld [vmem:[%s57 + $0x4] sm:$0xf]
        %v5675 = vld [vmem:[%s57 + $0x8] sm:$0xf]
        %v5676 = vld [vmem:[%s57 + $0xc] sm:$0xf]
        %v5677 = vld [vmem:[%s57 + $0x10] sm:$0xf]
        %v5678 = vld [vmem:[%s57 + $0x14] sm:$0xf]
        %v5679 = vld [vmem:[%s57 + $0x18] sm:$0xf]
        %v5680 = vld [vmem:[%s57 + $0x1c] sm:$0xf]
        %v5681 = vld [vmem:[%s57 + $0x20] sm:$0xf]
        %v5682 = vld [vmem:[%s57 + $0x24] sm:$0xf]
        %v5683 = vld [vmem:[%s57 + $0x28] sm:$0xf]
        %v5684 = vld [vmem:[%s57 + $0x2c] sm:$0xf]
        %v5685 = vld [vmem:[%s57 + $0x30] sm:$0xf]
        %v5686 = vld [vmem:[%s57 + $0x34] sm:$0xf]
        %v5687 = vpack.c.bf16 %v5666, %v5664
        %v5688 = vpack.c.bf16 %v5671, %v5669
        %s5689 = scalar_lea.vmem %s55, 16
        %v5690 = vld [vmem:[%s5689] sm:$0xf]
        %v5691 = vld [vmem:[%s5689 + $0x4] sm:$0xf]
        %v5692 = vld [vmem:[%s5689 + $0x8] sm:$0xf]
        %v5693 = vld [vmem:[%s5689 + $0xc] sm:$0x3]
        %v5698 = vunpack.c.l.b16 %v5690
        %v5699 = vunpack.c.l.b16 %v5691
        %v5700 = vunpack.c.l.b16 %v5692
        %v5701 = vunpack.c.l.b16 %v5693
        %v5702 = vpack.c.b16 %v5699, %v5698
        %v5703 = vpack.c.b16 %v5701, %v5700
        %v5705 = vsel %vm1674, %v5702, 0
        %v5708 = vsel %vm1674, %v5703, 0
        %5710 = vmatpush.bf16.msra.mxu0 0
        %5711 = vmatpush.bf16.msra.mxu0 0
        %5712 = vmatpush.bf16.msra.mxu0 0
        %5713 = vmatpush.bf16.msra.mxu0 0
        %5714 = vmatpush.bf16.msra.mxu0 0
        %5715 = vmatpush.bf16.msra.mxu0 0
        %5716 = vmatpush.bf16.msra.mxu0 0
        %5717 = vmatpush.bf16.msra.mxu0 %v5652
        %5718 = vmatmul.bf16.gmra.mxu0 %v5705
        %v5719 = vpop.f32.mrf.mxu0
        %v5720 = vadd.f32 0.0, %v5719
        %v5721 = vpop.f32.mrf.mxu0
        %v5722 = vadd.f32 0.0, %v5721
        %5723 = vmatmul.bf16.gmra.mxu0 %v5708
        %v5724 = vpop.f32.mrf.mxu0
        %v5725 = vadd.f32 0.0, %v5724
        %v5726 = vpop.f32.mrf.mxu0
        %v5727 = vadd.f32 0.0, %v5726
        %5728 = vdwg.mxu0
        %s5729 = scalar_lea.vmem %s57, 56
        %v5730 = vld [vmem:[%s5729] sm:$0xf]
        %v5731 = vld [vmem:[%s5729 + $0x4] sm:$0xf]
        %v5732 = vld [vmem:[%s5729 + $0x8] sm:$0xf]
        %v5733 = vld [vmem:[%s5729 + $0xc] sm:$0xf]
        %v5734 = vld [vmem:[%s5729 + $0x10] sm:$0xf]
        %v5735 = vld [vmem:[%s5729 + $0x14] sm:$0xf]
        %v5736 = vld [vmem:[%s5729 + $0x18] sm:$0xf]
        %v5737 = vld [vmem:[%s5729 + $0x1c] sm:$0xf]
        %v5738 = vld [vmem:[%s5729 + $0x20] sm:$0xf]
        %v5739 = vld [vmem:[%s5729 + $0x24] sm:$0xf]
        %v5740 = vld [vmem:[%s5729 + $0x28] sm:$0xf]
        %v5741 = vld [vmem:[%s5729 + $0x2c] sm:$0xf]
        %v5742 = vld [vmem:[%s5729 + $0x30] sm:$0xf]
        %v5743 = vld [vmem:[%s5729 + $0x34] sm:$0xf]
        %v5744 = vpack.c.bf16 %v5722, %v5720
        %v5745 = vpack.c.bf16 %v5727, %v5725
        %v5760 = vunpack.c.l.b16 %v5730
        %v5761 = vunpack.c.l.b16 %v5731
        %v5762 = vunpack.c.l.b16 %v5732
        %v5763 = vunpack.c.l.b16 %v5733
        %v5764 = vunpack.c.l.b16 %v5734
        %v5765 = vunpack.c.l.b16 %v5735
        %v5766 = vunpack.c.l.b16 %v5736
        %v5767 = vunpack.c.l.b16 %v5737
        %v5768 = vunpack.c.l.b16 %v5738
        %v5769 = vunpack.c.l.b16 %v5739
        %v5770 = vunpack.c.l.b16 %v5740
        %v5771 = vunpack.c.l.b16 %v5741
        %v5772 = vunpack.c.l.b16 %v5742
        %v5773 = vunpack.c.l.b16 %v5743
        %v5774 = vpack.c.b16 %v5761, %v5760
        %v5775 = vpack.c.b16 %v5763, %v5762
        %v5776 = vpack.c.b16 %v5765, %v5764
        %v5777 = vpack.c.b16 %v5767, %v5766
        %v5778 = vpack.c.b16 %v5769, %v5768
        %v5779 = vpack.c.b16 %v5771, %v5770
        %v5780 = vpack.c.b16 %v5773, %v5772
        %v5789 = vsel %vm1786, %v5744, 0
        %v5792 = vsel %vm1786, %v5745, 0
        %5794 = vmatpush.bf16.msra.mxu0 0
        %5795 = vmatpush.bf16.msra.mxu0 %v5780
        %5796 = vmatpush.bf16.msra.mxu0 %v5779
        %5797 = vmatpush.bf16.msra.mxu0 %v5778
        %5798 = vmatpush.bf16.msra.mxu0 %v5777
        %5799 = vmatpush.bf16.msra.mxu0 %v5776
        %5800 = vmatpush.bf16.msra.mxu0 %v5775
        %5801 = vmatpush.bf16.msra.mxu0 %v5774
        %5802 = vmatmul.bf16.gmra.mxu0 %v5789
        %v5803 = vpop.f32.mrf.mxu0
        %v5804 = vadd.f32 0.0, %v5803
        %v5805 = vpop.f32.mrf.mxu0
        %v5806 = vadd.f32 0.0, %v5805
        %5807 = vmatmul.bf16.gmra.mxu0 %v5792
        %v5808 = vpop.f32.mrf.mxu0
        %v5809 = vadd.f32 0.0, %v5808
        %v5810 = vpop.f32.mrf.mxu0
        %v5811 = vadd.f32 0.0, %v5810
        %5812 = vdwg.mxu0
        %v5827 = vunpack.c.l.b16 %v5673
        %v5828 = vunpack.c.l.b16 %v5674
        %v5829 = vunpack.c.l.b16 %v5675
        %v5830 = vunpack.c.l.b16 %v5676
        %v5831 = vunpack.c.l.b16 %v5677
        %v5832 = vunpack.c.l.b16 %v5678
        %v5833 = vunpack.c.l.b16 %v5679
        %v5834 = vunpack.c.l.b16 %v5680
        %v5835 = vunpack.c.l.b16 %v5681
        %v5836 = vunpack.c.l.b16 %v5682
        %v5837 = vunpack.c.l.b16 %v5683
        %v5838 = vunpack.c.l.b16 %v5684
        %v5839 = vunpack.c.l.b16 %v5685
        %v5840 = vunpack.c.l.b16 %v5686
        %v5841 = vpack.c.b16 %v5828, %v5827
        %v5842 = vpack.c.b16 %v5830, %v5829
        %v5843 = vpack.c.b16 %v5832, %v5831
        %v5844 = vpack.c.b16 %v5834, %v5833
        %v5845 = vpack.c.b16 %v5836, %v5835
        %v5846 = vpack.c.b16 %v5838, %v5837
        %v5847 = vpack.c.b16 %v5840, %v5839
        %v5856 = vsel %vm1786, %v5687, 0
        %v5859 = vsel %vm1786, %v5688, 0
        %5861 = vmatpush.bf16.msra.mxu0 0
        %5862 = vmatpush.bf16.msra.mxu0 %v5847
        %5863 = vmatpush.bf16.msra.mxu0 %v5846
        %5864 = vmatpush.bf16.msra.mxu0 %v5845
        %5865 = vmatpush.bf16.msra.mxu0 %v5844
        %5866 = vmatpush.bf16.msra.mxu0 %v5843
        %5867 = vmatpush.bf16.msra.mxu0 %v5842
        %5868 = vmatpush.bf16.msra.mxu0 %v5841
        %5869 = vmatmul.bf16.gmra.mxu0 %v5856
        %v5870 = vpop.f32.mrf.mxu0
        %v5871 = vadd.f32 %v5804, %v5870
        %v5872 = vpop.f32.mrf.mxu0
        %v5873 = vadd.f32 %v5806, %v5872
        %5874 = vmatmul.bf16.gmra.mxu0 %v5859
        %v5875 = vpop.f32.mrf.mxu0
        %v5876 = vadd.f32 %v5809, %v5875
        %v5877 = vpop.f32.mrf.mxu0
        %v5878 = vadd.f32 %v5811, %v5877
        %5879 = vdwg.mxu0
        %s5880 = scalar_lea.vmem %s55, 32
        %v5881 = vld [vmem:[%s5880] sm:$0xf]
        %v5882 = vld [vmem:[%s5880 + $0x4] sm:$0xf]
        %v5883 = vld [vmem:[%s5880 + $0x8] sm:$0xf]
        %v5884 = vld [vmem:[%s5880 + $0xc] sm:$0x3]
        %v5889 = vunpack.c.l.b16 %v5881
        %v5890 = vunpack.c.l.b16 %v5882
        %v5891 = vunpack.c.l.b16 %v5883
        %v5892 = vunpack.c.l.b16 %v5884
        %v5893 = vpack.c.b16 %v5890, %v5889
        %v5894 = vpack.c.b16 %v5892, %v5891
        %v5896 = vsel %vm1674, %v5893, 0
        %v5899 = vsel %vm1674, %v5894, 0
        %5901 = vmatpush.bf16.msra.mxu0 0
        %5902 = vmatpush.bf16.msra.mxu0 0
        %5903 = vmatpush.bf16.msra.mxu0 0
        %5904 = vmatpush.bf16.msra.mxu0 0
        %5905 = vmatpush.bf16.msra.mxu0 0
        %5906 = vmatpush.bf16.msra.mxu0 0
        %5907 = vmatpush.bf16.msra.mxu0 0
        %5908 = vmatpush.bf16.msra.mxu0 %v5652
        %5909 = vmatmul.bf16.gmra.mxu0 %v5896
        %v5910 = vpop.f32.mrf.mxu0
        %v5911 = vadd.f32 0.0, %v5910
        %v5912 = vpop.f32.mrf.mxu0
        %v5913 = vadd.f32 0.0, %v5912
        %5914 = vmatmul.bf16.gmra.mxu0 %v5899
        %v5915 = vpop.f32.mrf.mxu0
        %v5916 = vadd.f32 0.0, %v5915
        %v5917 = vpop.f32.mrf.mxu0
        %v5918 = vadd.f32 0.0, %v5917
        %5919 = vdwg.mxu0
        %s5920 = scalar_lea.vmem %s57, 112
        %v5921 = vld [vmem:[%s5920] sm:$0xf]
        %v5922 = vld [vmem:[%s5920 + $0x4] sm:$0xf]
        %v5923 = vld [vmem:[%s5920 + $0x8] sm:$0xf]
        %v5924 = vld [vmem:[%s5920 + $0xc] sm:$0xf]
        %v5925 = vld [vmem:[%s5920 + $0x10] sm:$0xf]
        %v5926 = vld [vmem:[%s5920 + $0x14] sm:$0xf]
        %v5927 = vld [vmem:[%s5920 + $0x18] sm:$0xf]
        %v5928 = vld [vmem:[%s5920 + $0x1c] sm:$0xf]
        %v5929 = vld [vmem:[%s5920 + $0x20] sm:$0xf]
        %v5930 = vld [vmem:[%s5920 + $0x24] sm:$0xf]
        %v5931 = vld [vmem:[%s5920 + $0x28] sm:$0xf]
        %v5932 = vld [vmem:[%s5920 + $0x2c] sm:$0xf]
        %v5933 = vld [vmem:[%s5920 + $0x30] sm:$0xf]
        %v5934 = vld [vmem:[%s5920 + $0x34] sm:$0xf]
        %v5935 = vpack.c.bf16 %v5913, %v5911
        %v5936 = vpack.c.bf16 %v5918, %v5916
        %v5951 = vunpack.c.l.b16 %v5921
        %v5952 = vunpack.c.l.b16 %v5922
        %v5953 = vunpack.c.l.b16 %v5923
        %v5954 = vunpack.c.l.b16 %v5924
        %v5955 = vunpack.c.l.b16 %v5925
        %v5956 = vunpack.c.l.b16 %v5926
        %v5957 = vunpack.c.l.b16 %v5927
        %v5958 = vunpack.c.l.b16 %v5928
        %v5959 = vunpack.c.l.b16 %v5929
        %v5960 = vunpack.c.l.b16 %v5930
        %v5961 = vunpack.c.l.b16 %v5931
        %v5962 = vunpack.c.l.b16 %v5932
        %v5963 = vunpack.c.l.b16 %v5933
        %v5964 = vunpack.c.l.b16 %v5934
        %v5965 = vpack.c.b16 %v5952, %v5951
        %v5966 = vpack.c.b16 %v5954, %v5953
        %v5967 = vpack.c.b16 %v5956, %v5955
        %v5968 = vpack.c.b16 %v5958, %v5957
        %v5969 = vpack.c.b16 %v5960, %v5959
        %v5970 = vpack.c.b16 %v5962, %v5961
        %v5971 = vpack.c.b16 %v5964, %v5963
        %v5980 = vsel %vm1786, %v5935, 0
        %v5983 = vsel %vm1786, %v5936, 0
        %5985 = vmatpush.bf16.msra.mxu0 0
        %5986 = vmatpush.bf16.msra.mxu0 %v5971
        %5987 = vmatpush.bf16.msra.mxu0 %v5970
        %5988 = vmatpush.bf16.msra.mxu0 %v5969
        %5989 = vmatpush.bf16.msra.mxu0 %v5968
        %5990 = vmatpush.bf16.msra.mxu0 %v5967
        %5991 = vmatpush.bf16.msra.mxu0 %v5966
        %5992 = vmatpush.bf16.msra.mxu0 %v5965
        %5993 = vmatmul.bf16.gmra.mxu0 %v5980
        %v5994 = vpop.f32.mrf.mxu0
        %v5995 = vadd.f32 0.0, %v5994
        %v5996 = vpop.f32.mrf.mxu0
        %v5997 = vadd.f32 0.0, %v5996
        %5998 = vmatmul.bf16.gmra.mxu0 %v5983
        %v5999 = vpop.f32.mrf.mxu0
        %v6000 = vadd.f32 0.0, %v5999
        %v6001 = vpop.f32.mrf.mxu0
        %v6002 = vadd.f32 0.0, %v6001
        %6003 = vdwg.mxu0
        %v6004 = vadd.f32 %v5871, %v5995
        %v6005 = vadd.f32 %v5873, %v5997
        %v6006 = vadd.f32 %v5876, %v6000
        %v6007 = vadd.f32 %v5878, %v6002
        %s6008 = scalar_lea.vmem %s55, 48
        %v6009 = vld [vmem:[%s6008] sm:$0xf]
        %v6010 = vld [vmem:[%s6008 + $0x4] sm:$0xf]
        %v6011 = vld [vmem:[%s6008 + $0x8] sm:$0xf]
        %v6012 = vld [vmem:[%s6008 + $0xc] sm:$0x3]
        %v6017 = vunpack.c.l.b16 %v6009
        %v6018 = vunpack.c.l.b16 %v6010
        %v6019 = vunpack.c.l.b16 %v6011
        %v6020 = vunpack.c.l.b16 %v6012
        %v6021 = vpack.c.b16 %v6018, %v6017
        %v6022 = vpack.c.b16 %v6020, %v6019
        %v6024 = vsel %vm1674, %v6021, 0
        %v6027 = vsel %vm1674, %v6022, 0
        %6029 = vmatpush.bf16.msra.mxu0 0
        %6030 = vmatpush.bf16.msra.mxu0 0
        %6031 = vmatpush.bf16.msra.mxu0 0
        %6032 = vmatpush.bf16.msra.mxu0 0
        %6033 = vmatpush.bf16.msra.mxu0 0
        %6034 = vmatpush.bf16.msra.mxu0 0
        %6035 = vmatpush.bf16.msra.mxu0 0
        %6036 = vmatpush.bf16.msra.mxu0 %v5652
        %6037 = vmatmul.bf16.gmra.mxu0 %v6024
        %v6038 = vpop.f32.mrf.mxu0
        %v6039 = vadd.f32 0.0, %v6038
        %v6040 = vpop.f32.mrf.mxu0
        %v6041 = vadd.f32 0.0, %v6040
        %6042 = vmatmul.bf16.gmra.mxu0 %v6027
        %v6043 = vpop.f32.mrf.mxu0
        %v6044 = vadd.f32 0.0, %v6043
        %v6045 = vpop.f32.mrf.mxu0
        %v6046 = vadd.f32 0.0, %v6045
        %6047 = vdwg.mxu0
        %s6048 = scalar_lea.vmem %s57, 168
        %v6049 = vld [vmem:[%s6048] sm:$0xf]
        %v6050 = vld [vmem:[%s6048 + $0x4] sm:$0xf]
        %v6051 = vld [vmem:[%s6048 + $0x8] sm:$0xf]
        %v6052 = vld [vmem:[%s6048 + $0xc] sm:$0xf]
        %v6053 = vld [vmem:[%s6048 + $0x10] sm:$0xf]
        %v6054 = vld [vmem:[%s6048 + $0x14] sm:$0xf]
        %v6055 = vld [vmem:[%s6048 + $0x18] sm:$0xf]
        %v6056 = vld [vmem:[%s6048 + $0x1c] sm:$0xf]
        %v6057 = vld [vmem:[%s6048 + $0x20] sm:$0xf]
        %v6058 = vld [vmem:[%s6048 + $0x24] sm:$0xf]
        %v6059 = vld [vmem:[%s6048 + $0x28] sm:$0xf]
        %v6060 = vld [vmem:[%s6048 + $0x2c] sm:$0xf]
        %v6061 = vld [vmem:[%s6048 + $0x30] sm:$0xf]
        %v6062 = vld [vmem:[%s6048 + $0x34] sm:$0xf]
        %v6063 = vpack.c.bf16 %v6041, %v6039
        %v6064 = vpack.c.bf16 %v6046, %v6044
        %v6079 = vunpack.c.l.b16 %v6049
        %v6080 = vunpack.c.l.b16 %v6050
        %v6081 = vunpack.c.l.b16 %v6051
        %v6082 = vunpack.c.l.b16 %v6052
        %v6083 = vunpack.c.l.b16 %v6053
        %v6084 = vunpack.c.l.b16 %v6054
        %v6085 = vunpack.c.l.b16 %v6055
        %v6086 = vunpack.c.l.b16 %v6056
        %v6087 = vunpack.c.l.b16 %v6057
        %v6088 = vunpack.c.l.b16 %v6058
        %v6089 = vunpack.c.l.b16 %v6059
        %v6090 = vunpack.c.l.b16 %v6060
        %v6091 = vunpack.c.l.b16 %v6061
        %v6092 = vunpack.c.l.b16 %v6062
        %v6093 = vpack.c.b16 %v6080, %v6079
        %v6094 = vpack.c.b16 %v6082, %v6081
        %v6095 = vpack.c.b16 %v6084, %v6083
        %v6096 = vpack.c.b16 %v6086, %v6085
        %v6097 = vpack.c.b16 %v6088, %v6087
        %v6098 = vpack.c.b16 %v6090, %v6089
        %v6099 = vpack.c.b16 %v6092, %v6091
        %v6108 = vsel %vm1786, %v6063, 0
        %v6111 = vsel %vm1786, %v6064, 0
        %6113 = vmatpush.bf16.msra.mxu0 0
        %6114 = vmatpush.bf16.msra.mxu0 %v6099
        %6115 = vmatpush.bf16.msra.mxu0 %v6098
        %6116 = vmatpush.bf16.msra.mxu0 %v6097
        %6117 = vmatpush.bf16.msra.mxu0 %v6096
        %6118 = vmatpush.bf16.msra.mxu0 %v6095
        %6119 = vmatpush.bf16.msra.mxu0 %v6094
        %6120 = vmatpush.bf16.msra.mxu0 %v6093
        %6121 = vmatmul.bf16.gmra.mxu0 %v6108
        %v6122 = vpop.f32.mrf.mxu0
        %v6123 = vadd.f32 0.0, %v6122
        %v6124 = vpop.f32.mrf.mxu0
        %v6125 = vadd.f32 0.0, %v6124
        %6126 = vmatmul.bf16.gmra.mxu0 %v6111
        %v6127 = vpop.f32.mrf.mxu0
        %v6128 = vadd.f32 0.0, %v6127
        %v6129 = vpop.f32.mrf.mxu0
        %v6130 = vadd.f32 0.0, %v6129
        %6131 = vdwg.mxu0
        %v6132 = vadd.f32 %v6004, %v6123
        %v6133 = vadd.f32 %v6005, %v6125
        %v6134 = vadd.f32 %v6006, %v6128
        %v6135 = vadd.f32 %v6007, %v6130
        %s6136 = scalar_lea.vmem %s55, 64
        %v6137 = vld [vmem:[%s6136] sm:$0xf]
        %v6138 = vld [vmem:[%s6136 + $0x4] sm:$0xf]
        %v6139 = vld [vmem:[%s6136 + $0x8] sm:$0xf]
        %v6140 = vld [vmem:[%s6136 + $0xc] sm:$0x3]
        %v6145 = vunpack.c.l.b16 %v6137
        %v6146 = vunpack.c.l.b16 %v6138
        %v6147 = vunpack.c.l.b16 %v6139
        %v6148 = vunpack.c.l.b16 %v6140
        %v6149 = vpack.c.b16 %v6146, %v6145
        %v6150 = vpack.c.b16 %v6148, %v6147
        %v6152 = vsel %vm1674, %v6149, 0
        %v6155 = vsel %vm1674, %v6150, 0
        %6157 = vmatpush.bf16.msra.mxu0 0
        %6158 = vmatpush.bf16.msra.mxu0 0
        %6159 = vmatpush.bf16.msra.mxu0 0
        %6160 = vmatpush.bf16.msra.mxu0 0
        %6161 = vmatpush.bf16.msra.mxu0 0
        %6162 = vmatpush.bf16.msra.mxu0 0
        %6163 = vmatpush.bf16.msra.mxu0 0
        %6164 = vmatpush.bf16.msra.mxu0 %v5652
        %6165 = vmatmul.bf16.gmra.mxu0 %v6152
        %v6166 = vpop.f32.mrf.mxu0
        %v6167 = vadd.f32 0.0, %v6166
        %v6168 = vpop.f32.mrf.mxu0
        %v6169 = vadd.f32 0.0, %v6168
        %6170 = vmatmul.bf16.gmra.mxu0 %v6155
        %v6171 = vpop.f32.mrf.mxu0
        %v6172 = vadd.f32 0.0, %v6171
        %v6173 = vpop.f32.mrf.mxu0
        %v6174 = vadd.f32 0.0, %v6173
        %6175 = vdwg.mxu0
        %s6176 = scalar_lea.vmem %s57, 224
        %v6177 = vld [vmem:[%s6176] sm:$0xf]
        %v6178 = vld [vmem:[%s6176 + $0x4] sm:$0xf]
        %v6179 = vld [vmem:[%s6176 + $0x8] sm:$0xf]
        %v6180 = vld [vmem:[%s6176 + $0xc] sm:$0xf]
        %v6181 = vld [vmem:[%s6176 + $0x10] sm:$0xf]
        %v6182 = vld [vmem:[%s6176 + $0x14] sm:$0xf]
        %v6183 = vld [vmem:[%s6176 + $0x18] sm:$0xf]
        %v6184 = vld [vmem:[%s6176 + $0x1c] sm:$0xf]
        %v6185 = vld [vmem:[%s6176 + $0x20] sm:$0xf]
        %v6186 = vld [vmem:[%s6176 + $0x24] sm:$0xf]
        %v6187 = vld [vmem:[%s6176 + $0x28] sm:$0xf]
        %v6188 = vld [vmem:[%s6176 + $0x2c] sm:$0xf]
        %v6189 = vld [vmem:[%s6176 + $0x30] sm:$0xf]
        %v6190 = vld [vmem:[%s6176 + $0x34] sm:$0xf]
        %v6191 = vpack.c.bf16 %v6169, %v6167
        %v6192 = vpack.c.bf16 %v6174, %v6172
        %v6207 = vunpack.c.l.b16 %v6177
        %v6208 = vunpack.c.l.b16 %v6178
        %v6209 = vunpack.c.l.b16 %v6179
        %v6210 = vunpack.c.l.b16 %v6180
        %v6211 = vunpack.c.l.b16 %v6181
        %v6212 = vunpack.c.l.b16 %v6182
        %v6213 = vunpack.c.l.b16 %v6183
        %v6214 = vunpack.c.l.b16 %v6184
        %v6215 = vunpack.c.l.b16 %v6185
        %v6216 = vunpack.c.l.b16 %v6186
        %v6217 = vunpack.c.l.b16 %v6187
        %v6218 = vunpack.c.l.b16 %v6188
        %v6219 = vunpack.c.l.b16 %v6189
        %v6220 = vunpack.c.l.b16 %v6190
        %v6221 = vpack.c.b16 %v6208, %v6207
        %v6222 = vpack.c.b16 %v6210, %v6209
        %v6223 = vpack.c.b16 %v6212, %v6211
        %v6224 = vpack.c.b16 %v6214, %v6213
        %v6225 = vpack.c.b16 %v6216, %v6215
        %v6226 = vpack.c.b16 %v6218, %v6217
        %v6227 = vpack.c.b16 %v6220, %v6219
        %v6236 = vsel %vm1786, %v6191, 0
        %v6239 = vsel %vm1786, %v6192, 0
        %6241 = vmatpush.bf16.msra.mxu0 0
        %6242 = vmatpush.bf16.msra.mxu0 %v6227
        %6243 = vmatpush.bf16.msra.mxu0 %v6226
        %6244 = vmatpush.bf16.msra.mxu0 %v6225
        %6245 = vmatpush.bf16.msra.mxu0 %v6224
        %6246 = vmatpush.bf16.msra.mxu0 %v6223
        %6247 = vmatpush.bf16.msra.mxu0 %v6222
        %6248 = vmatpush.bf16.msra.mxu0 %v6221
        %6249 = vmatmul.bf16.gmra.mxu0 %v6236
        %v6250 = vpop.f32.mrf.mxu0
        %v6251 = vadd.f32 0.0, %v6250
        %v6252 = vpop.f32.mrf.mxu0
        %v6253 = vadd.f32 0.0, %v6252
        %6254 = vmatmul.bf16.gmra.mxu0 %v6239
        %v6255 = vpop.f32.mrf.mxu0
        %v6256 = vadd.f32 0.0, %v6255
        %v6257 = vpop.f32.mrf.mxu0
        %v6258 = vadd.f32 0.0, %v6257
        %6259 = vdwg.mxu0
        %v6260 = vadd.f32 %v6132, %v6251
        %v6261 = vadd.f32 %v6133, %v6253
        %v6262 = vadd.f32 %v6134, %v6256
        %v6263 = vadd.f32 %v6135, %v6258
        %s6264 = scalar_lea.vmem %s55, 80
        %v6265 = vld [vmem:[%s6264] sm:$0xf]
        %v6266 = vld [vmem:[%s6264 + $0x4] sm:$0xf]
        %v6267 = vld [vmem:[%s6264 + $0x8] sm:$0xf]
        %v6268 = vld [vmem:[%s6264 + $0xc] sm:$0x3]
        %v6273 = vunpack.c.l.b16 %v6265
        %v6274 = vunpack.c.l.b16 %v6266
        %v6275 = vunpack.c.l.b16 %v6267
        %v6276 = vunpack.c.l.b16 %v6268
        %v6277 = vpack.c.b16 %v6274, %v6273
        %v6278 = vpack.c.b16 %v6276, %v6275
        %v6280 = vsel %vm1674, %v6277, 0
        %v6283 = vsel %vm1674, %v6278, 0
        %6285 = vmatpush.bf16.msra.mxu0 0
        %6286 = vmatpush.bf16.msra.mxu0 0
        %6287 = vmatpush.bf16.msra.mxu0 0
        %6288 = vmatpush.bf16.msra.mxu0 0
        %6289 = vmatpush.bf16.msra.mxu0 0
        %6290 = vmatpush.bf16.msra.mxu0 0
        %6291 = vmatpush.bf16.msra.mxu0 0
        %6292 = vmatpush.bf16.msra.mxu0 %v5652
        %6293 = vmatmul.bf16.gmra.mxu0 %v6280
        %v6294 = vpop.f32.mrf.mxu0
        %v6295 = vadd.f32 0.0, %v6294
        %v6296 = vpop.f32.mrf.mxu0
        %v6297 = vadd.f32 0.0, %v6296
        %6298 = vmatmul.bf16.gmra.mxu0 %v6283
        %v6299 = vpop.f32.mrf.mxu0
        %v6300 = vadd.f32 0.0, %v6299
        %v6301 = vpop.f32.mrf.mxu0
        %v6302 = vadd.f32 0.0, %v6301
        %6303 = vdwg.mxu0
        %s6304 = scalar_lea.vmem %s57, 280
        %v6305 = vld [vmem:[%s6304] sm:$0xf]
        %v6306 = vld [vmem:[%s6304 + $0x4] sm:$0xf]
        %v6307 = vld [vmem:[%s6304 + $0x8] sm:$0xf]
        %v6308 = vld [vmem:[%s6304 + $0xc] sm:$0xf]
        %v6309 = vld [vmem:[%s6304 + $0x10] sm:$0xf]
        %v6310 = vld [vmem:[%s6304 + $0x14] sm:$0xf]
        %v6311 = vld [vmem:[%s6304 + $0x18] sm:$0xf]
        %v6312 = vld [vmem:[%s6304 + $0x1c] sm:$0xf]
        %v6313 = vld [vmem:[%s6304 + $0x20] sm:$0xf]
        %v6314 = vld [vmem:[%s6304 + $0x24] sm:$0xf]
        %v6315 = vld [vmem:[%s6304 + $0x28] sm:$0xf]
        %v6316 = vld [vmem:[%s6304 + $0x2c] sm:$0xf]
        %v6317 = vld [vmem:[%s6304 + $0x30] sm:$0xf]
        %v6318 = vld [vmem:[%s6304 + $0x34] sm:$0xf]
        %v6319 = vpack.c.bf16 %v6297, %v6295
        %v6320 = vpack.c.bf16 %v6302, %v6300
        %v6335 = vunpack.c.l.b16 %v6305
        %v6336 = vunpack.c.l.b16 %v6306
        %v6337 = vunpack.c.l.b16 %v6307
        %v6338 = vunpack.c.l.b16 %v6308
        %v6339 = vunpack.c.l.b16 %v6309
        %v6340 = vunpack.c.l.b16 %v6310
        %v6341 = vunpack.c.l.b16 %v6311
        %v6342 = vunpack.c.l.b16 %v6312
        %v6343 = vunpack.c.l.b16 %v6313
        %v6344 = vunpack.c.l.b16 %v6314
        %v6345 = vunpack.c.l.b16 %v6315
        %v6346 = vunpack.c.l.b16 %v6316
        %v6347 = vunpack.c.l.b16 %v6317
        %v6348 = vunpack.c.l.b16 %v6318
        %v6349 = vpack.c.b16 %v6336, %v6335
        %v6350 = vpack.c.b16 %v6338, %v6337
        %v6351 = vpack.c.b16 %v6340, %v6339
        %v6352 = vpack.c.b16 %v6342, %v6341
        %v6353 = vpack.c.b16 %v6344, %v6343
        %v6354 = vpack.c.b16 %v6346, %v6345
        %v6355 = vpack.c.b16 %v6348, %v6347
        %v6364 = vsel %vm1786, %v6319, 0
        %v6367 = vsel %vm1786, %v6320, 0
        %6369 = vmatpush.bf16.msra.mxu0 0
        %6370 = vmatpush.bf16.msra.mxu0 %v6355
        %6371 = vmatpush.bf16.msra.mxu0 %v6354
        %6372 = vmatpush.bf16.msra.mxu0 %v6353
        %6373 = vmatpush.bf16.msra.mxu0 %v6352
        %6374 = vmatpush.bf16.msra.mxu0 %v6351
        %6375 = vmatpush.bf16.msra.mxu0 %v6350
        %6376 = vmatpush.bf16.msra.mxu0 %v6349
        %6377 = vmatmul.bf16.gmra.mxu0 %v6364
        %v6378 = vpop.f32.mrf.mxu0
        %v6379 = vadd.f32 0.0, %v6378
        %v6380 = vpop.f32.mrf.mxu0
        %v6381 = vadd.f32 0.0, %v6380
        %6382 = vmatmul.bf16.gmra.mxu0 %v6367
        %v6383 = vpop.f32.mrf.mxu0
        %v6384 = vadd.f32 0.0, %v6383
        %v6385 = vpop.f32.mrf.mxu0
        %v6386 = vadd.f32 0.0, %v6385
        %6387 = vdwg.mxu0
        %v6388 = vadd.f32 %v6260, %v6379
        %v6389 = vadd.f32 %v6261, %v6381
        %v6390 = vadd.f32 %v6262, %v6384
        %v6391 = vadd.f32 %v6263, %v6386
        %s6392 = scalar_lea.vmem %s55, 96
        %v6393 = vld [vmem:[%s6392] sm:$0xf]
        %v6394 = vld [vmem:[%s6392 + $0x4] sm:$0xf]
        %v6395 = vld [vmem:[%s6392 + $0x8] sm:$0xf]
        %v6396 = vld [vmem:[%s6392 + $0xc] sm:$0x3]
        %v6401 = vunpack.c.l.b16 %v6393
        %v6402 = vunpack.c.l.b16 %v6394
        %v6403 = vunpack.c.l.b16 %v6395
        %v6404 = vunpack.c.l.b16 %v6396
        %v6405 = vpack.c.b16 %v6402, %v6401
        %v6406 = vpack.c.b16 %v6404, %v6403
        %v6408 = vsel %vm1674, %v6405, 0
        %v6411 = vsel %vm1674, %v6406, 0
        %6413 = vmatpush.bf16.msra.mxu0 0
        %6414 = vmatpush.bf16.msra.mxu0 0
        %6415 = vmatpush.bf16.msra.mxu0 0
        %6416 = vmatpush.bf16.msra.mxu0 0
        %6417 = vmatpush.bf16.msra.mxu0 0
        %6418 = vmatpush.bf16.msra.mxu0 0
        %6419 = vmatpush.bf16.msra.mxu0 0
        %6420 = vmatpush.bf16.msra.mxu0 %v5652
        %6421 = vmatmul.bf16.gmra.mxu0 %v6408
        %v6422 = vpop.f32.mrf.mxu0
        %v6423 = vadd.f32 0.0, %v6422
        %v6424 = vpop.f32.mrf.mxu0
        %v6425 = vadd.f32 0.0, %v6424
        %6426 = vmatmul.bf16.gmra.mxu0 %v6411
        %v6427 = vpop.f32.mrf.mxu0
        %v6428 = vadd.f32 0.0, %v6427
        %v6429 = vpop.f32.mrf.mxu0
        %v6430 = vadd.f32 0.0, %v6429
        %6431 = vdwg.mxu0
        %s6432 = scalar_lea.vmem %s57, 336
        %v6433 = vld [vmem:[%s6432] sm:$0xf]
        %v6434 = vld [vmem:[%s6432 + $0x4] sm:$0xf]
        %v6435 = vld [vmem:[%s6432 + $0x8] sm:$0xf]
        %v6436 = vld [vmem:[%s6432 + $0xc] sm:$0xf]
        %v6437 = vld [vmem:[%s6432 + $0x10] sm:$0xf]
        %v6438 = vld [vmem:[%s6432 + $0x14] sm:$0xf]
        %v6439 = vld [vmem:[%s6432 + $0x18] sm:$0xf]
        %v6440 = vld [vmem:[%s6432 + $0x1c] sm:$0xf]
        %v6441 = vld [vmem:[%s6432 + $0x20] sm:$0xf]
        %v6442 = vld [vmem:[%s6432 + $0x24] sm:$0xf]
        %v6443 = vld [vmem:[%s6432 + $0x28] sm:$0xf]
        %v6444 = vld [vmem:[%s6432 + $0x2c] sm:$0xf]
        %v6445 = vld [vmem:[%s6432 + $0x30] sm:$0xf]
        %v6446 = vld [vmem:[%s6432 + $0x34] sm:$0xf]
        %v6447 = vpack.c.bf16 %v6425, %v6423
        %v6448 = vpack.c.bf16 %v6430, %v6428
        %v6463 = vunpack.c.l.b16 %v6433
        %v6464 = vunpack.c.l.b16 %v6434
        %v6465 = vunpack.c.l.b16 %v6435
        %v6466 = vunpack.c.l.b16 %v6436
        %v6467 = vunpack.c.l.b16 %v6437
        %v6468 = vunpack.c.l.b16 %v6438
        %v6469 = vunpack.c.l.b16 %v6439
        %v6470 = vunpack.c.l.b16 %v6440
        %v6471 = vunpack.c.l.b16 %v6441
        %v6472 = vunpack.c.l.b16 %v6442
        %v6473 = vunpack.c.l.b16 %v6443
        %v6474 = vunpack.c.l.b16 %v6444
        %v6475 = vunpack.c.l.b16 %v6445
        %v6476 = vunpack.c.l.b16 %v6446
        %v6477 = vpack.c.b16 %v6464, %v6463
        %v6478 = vpack.c.b16 %v6466, %v6465
        %v6479 = vpack.c.b16 %v6468, %v6467
        %v6480 = vpack.c.b16 %v6470, %v6469
        %v6481 = vpack.c.b16 %v6472, %v6471
        %v6482 = vpack.c.b16 %v6474, %v6473
        %v6483 = vpack.c.b16 %v6476, %v6475
        %v6492 = vsel %vm1786, %v6447, 0
        %v6495 = vsel %vm1786, %v6448, 0
        %6497 = vmatpush.bf16.msra.mxu0 0
        %6498 = vmatpush.bf16.msra.mxu0 %v6483
        %6499 = vmatpush.bf16.msra.mxu0 %v6482
        %6500 = vmatpush.bf16.msra.mxu0 %v6481
        %6501 = vmatpush.bf16.msra.mxu0 %v6480
        %6502 = vmatpush.bf16.msra.mxu0 %v6479
        %6503 = vmatpush.bf16.msra.mxu0 %v6478
        %6504 = vmatpush.bf16.msra.mxu0 %v6477
        %6505 = vmatmul.bf16.gmra.mxu0 %v6492
        %v6506 = vpop.f32.mrf.mxu0
        %v6507 = vadd.f32 0.0, %v6506
        %v6508 = vpop.f32.mrf.mxu0
        %v6509 = vadd.f32 0.0, %v6508
        %6510 = vmatmul.bf16.gmra.mxu0 %v6495
        %v6511 = vpop.f32.mrf.mxu0
        %v6512 = vadd.f32 0.0, %v6511
        %v6513 = vpop.f32.mrf.mxu0
        %v6514 = vadd.f32 0.0, %v6513
        %6515 = vdwg.mxu0
        %v6516 = vadd.f32 %v6388, %v6507
        %v6517 = vadd.f32 %v6389, %v6509
        %v6518 = vadd.f32 %v6390, %v6512
        %v6519 = vadd.f32 %v6391, %v6514
        %s6520 = scalar_lea.vmem %s55, 112
        %v6521 = vld [vmem:[%s6520] sm:$0xf]
        %v6522 = vld [vmem:[%s6520 + $0x4] sm:$0xf]
        %v6523 = vld [vmem:[%s6520 + $0x8] sm:$0xf]
        %v6524 = vld [vmem:[%s6520 + $0xc] sm:$0x3]
        %v6529 = vunpack.c.l.b16 %v6521
        %v6530 = vunpack.c.l.b16 %v6522
        %v6531 = vunpack.c.l.b16 %v6523
        %v6532 = vunpack.c.l.b16 %v6524
        %v6533 = vpack.c.b16 %v6530, %v6529
        %v6534 = vpack.c.b16 %v6532, %v6531
        %v6536 = vsel %vm1674, %v6533, 0
        %v6539 = vsel %vm1674, %v6534, 0
        %6541 = vmatpush.bf16.msra.mxu0 0
        %6542 = vmatpush.bf16.msra.mxu0 0
        %6543 = vmatpush.bf16.msra.mxu0 0
        %6544 = vmatpush.bf16.msra.mxu0 0
        %6545 = vmatpush.bf16.msra.mxu0 0
        %6546 = vmatpush.bf16.msra.mxu0 0
        %6547 = vmatpush.bf16.msra.mxu0 0
        %6548 = vmatpush.bf16.msra.mxu0 %v5652
        %6549 = vmatmul.bf16.gmra.mxu0 %v6536
        %v6550 = vpop.f32.mrf.mxu0
        %v6551 = vadd.f32 0.0, %v6550
        %v6552 = vpop.f32.mrf.mxu0
        %v6553 = vadd.f32 0.0, %v6552
        %6554 = vmatmul.bf16.gmra.mxu0 %v6539
        %v6555 = vpop.f32.mrf.mxu0
        %v6556 = vadd.f32 0.0, %v6555
        %v6557 = vpop.f32.mrf.mxu0
        %v6558 = vadd.f32 0.0, %v6557
        %6559 = vdwg.mxu0
        %s6560 = scalar_lea.vmem %s57, 392
        %v6561 = vld [vmem:[%s6560] sm:$0xf]
        %v6562 = vld [vmem:[%s6560 + $0x4] sm:$0xf]
        %v6563 = vld [vmem:[%s6560 + $0x8] sm:$0xf]
        %v6564 = vld [vmem:[%s6560 + $0xc] sm:$0xf]
        %v6565 = vld [vmem:[%s6560 + $0x10] sm:$0xf]
        %v6566 = vld [vmem:[%s6560 + $0x14] sm:$0xf]
        %v6567 = vld [vmem:[%s6560 + $0x18] sm:$0xf]
        %v6568 = vld [vmem:[%s6560 + $0x1c] sm:$0xf]
        %v6569 = vld [vmem:[%s6560 + $0x20] sm:$0xf]
        %v6570 = vld [vmem:[%s6560 + $0x24] sm:$0xf]
        %v6571 = vld [vmem:[%s6560 + $0x28] sm:$0xf]
        %v6572 = vld [vmem:[%s6560 + $0x2c] sm:$0xf]
        %v6573 = vld [vmem:[%s6560 + $0x30] sm:$0xf]
        %v6574 = vld [vmem:[%s6560 + $0x34] sm:$0xf]
        %v6575 = vpack.c.bf16 %v6553, %v6551
        %v6576 = vpack.c.bf16 %v6558, %v6556
        %v6591 = vunpack.c.l.b16 %v6561
        %v6592 = vunpack.c.l.b16 %v6562
        %v6593 = vunpack.c.l.b16 %v6563
        %v6594 = vunpack.c.l.b16 %v6564
        %v6595 = vunpack.c.l.b16 %v6565
        %v6596 = vunpack.c.l.b16 %v6566
        %v6597 = vunpack.c.l.b16 %v6567
        %v6598 = vunpack.c.l.b16 %v6568
        %v6599 = vunpack.c.l.b16 %v6569
        %v6600 = vunpack.c.l.b16 %v6570
        %v6601 = vunpack.c.l.b16 %v6571
        %v6602 = vunpack.c.l.b16 %v6572
        %v6603 = vunpack.c.l.b16 %v6573
        %v6604 = vunpack.c.l.b16 %v6574
        %v6605 = vpack.c.b16 %v6592, %v6591
        %v6606 = vpack.c.b16 %v6594, %v6593
        %v6607 = vpack.c.b16 %v6596, %v6595
        %v6608 = vpack.c.b16 %v6598, %v6597
        %v6609 = vpack.c.b16 %v6600, %v6599
        %v6610 = vpack.c.b16 %v6602, %v6601
        %v6611 = vpack.c.b16 %v6604, %v6603
        %v6620 = vsel %vm1786, %v6575, 0
        %v6623 = vsel %vm1786, %v6576, 0
        %6625 = vmatpush.bf16.msra.mxu0 0
        %6626 = vmatpush.bf16.msra.mxu0 %v6611
        %6627 = vmatpush.bf16.msra.mxu0 %v6610
        %6628 = vmatpush.bf16.msra.mxu0 %v6609
        %6629 = vmatpush.bf16.msra.mxu0 %v6608
        %6630 = vmatpush.bf16.msra.mxu0 %v6607
        %6631 = vmatpush.bf16.msra.mxu0 %v6606
        %6632 = vmatpush.bf16.msra.mxu0 %v6605
        %6633 = vmatmul.bf16.gmra.mxu0 %v6620
        %v6634 = vpop.f32.mrf.mxu0
        %v6635 = vadd.f32 0.0, %v6634
        %v6636 = vpop.f32.mrf.mxu0
        %v6637 = vadd.f32 0.0, %v6636
        %6638 = vmatmul.bf16.gmra.mxu0 %v6623
        %v6639 = vpop.f32.mrf.mxu0
        %v6640 = vadd.f32 0.0, %v6639
        %v6641 = vpop.f32.mrf.mxu0
        %v6642 = vadd.f32 0.0, %v6641
        %6643 = vdwg.mxu0
        %v6644 = vadd.f32 %v6516, %v6635
        %v6645 = vadd.f32 %v6517, %v6637
        %v6646 = vadd.f32 %v6518, %v6640
        %v6647 = vadd.f32 %v6519, %v6642
        %s6648 = scalar_lea.vmem %s55, 128
        %v6649 = vld [vmem:[%s6648] sm:$0xf]
        %v6650 = vld [vmem:[%s6648 + $0x4] sm:$0xf]
        %v6651 = vld [vmem:[%s6648 + $0x8] sm:$0xf]
        %v6652 = vld [vmem:[%s6648 + $0xc] sm:$0x3]
        %v6657 = vunpack.c.l.b16 %v6649
        %v6658 = vunpack.c.l.b16 %v6650
        %v6659 = vunpack.c.l.b16 %v6651
        %v6660 = vunpack.c.l.b16 %v6652
        %v6661 = vpack.c.b16 %v6658, %v6657
        %v6662 = vpack.c.b16 %v6660, %v6659
        %v6664 = vsel %vm1674, %v6661, 0
        %v6667 = vsel %vm1674, %v6662, 0
        %6669 = vmatpush.bf16.msra.mxu0 0
        %6670 = vmatpush.bf16.msra.mxu0 0
        %6671 = vmatpush.bf16.msra.mxu0 0
        %6672 = vmatpush.bf16.msra.mxu0 0
        %6673 = vmatpush.bf16.msra.mxu0 0
        %6674 = vmatpush.bf16.msra.mxu0 0
        %6675 = vmatpush.bf16.msra.mxu0 0
        %6676 = vmatpush.bf16.msra.mxu0 %v5652
        %6677 = vmatmul.bf16.gmra.mxu0 %v6664
        %v6678 = vpop.f32.mrf.mxu0
        %v6679 = vadd.f32 0.0, %v6678
        %v6680 = vpop.f32.mrf.mxu0
        %v6681 = vadd.f32 0.0, %v6680
        %6682 = vmatmul.bf16.gmra.mxu0 %v6667
        %v6683 = vpop.f32.mrf.mxu0
        %v6684 = vadd.f32 0.0, %v6683
        %v6685 = vpop.f32.mrf.mxu0
        %v6686 = vadd.f32 0.0, %v6685
        %6687 = vdwg.mxu0
        %s6688 = scalar_lea.vmem %s57, 448
        %v6689 = vld [vmem:[%s6688] sm:$0xf]
        %v6690 = vld [vmem:[%s6688 + $0x4] sm:$0xf]
        %v6691 = vld [vmem:[%s6688 + $0x8] sm:$0xf]
        %v6692 = vld [vmem:[%s6688 + $0xc] sm:$0xf]
        %v6693 = vld [vmem:[%s6688 + $0x10] sm:$0xf]
        %v6694 = vld [vmem:[%s6688 + $0x14] sm:$0xf]
        %v6695 = vld [vmem:[%s6688 + $0x18] sm:$0xf]
        %v6696 = vld [vmem:[%s6688 + $0x1c] sm:$0xf]
        %v6697 = vld [vmem:[%s6688 + $0x20] sm:$0xf]
        %v6698 = vld [vmem:[%s6688 + $0x24] sm:$0xf]
        %v6699 = vld [vmem:[%s6688 + $0x28] sm:$0xf]
        %v6700 = vld [vmem:[%s6688 + $0x2c] sm:$0xf]
        %v6701 = vld [vmem:[%s6688 + $0x30] sm:$0xf]
        %v6702 = vld [vmem:[%s6688 + $0x34] sm:$0xf]
        %v6703 = vpack.c.bf16 %v6681, %v6679
        %v6704 = vpack.c.bf16 %v6686, %v6684
        %v6719 = vunpack.c.l.b16 %v6689
        %v6720 = vunpack.c.l.b16 %v6690
        %v6721 = vunpack.c.l.b16 %v6691
        %v6722 = vunpack.c.l.b16 %v6692
        %v6723 = vunpack.c.l.b16 %v6693
        %v6724 = vunpack.c.l.b16 %v6694
        %v6725 = vunpack.c.l.b16 %v6695
        %v6726 = vunpack.c.l.b16 %v6696
        %v6727 = vunpack.c.l.b16 %v6697
        %v6728 = vunpack.c.l.b16 %v6698
        %v6729 = vunpack.c.l.b16 %v6699
        %v6730 = vunpack.c.l.b16 %v6700
        %v6731 = vunpack.c.l.b16 %v6701
        %v6732 = vunpack.c.l.b16 %v6702
        %v6733 = vpack.c.b16 %v6720, %v6719
        %v6734 = vpack.c.b16 %v6722, %v6721
        %v6735 = vpack.c.b16 %v6724, %v6723
        %v6736 = vpack.c.b16 %v6726, %v6725
        %v6737 = vpack.c.b16 %v6728, %v6727
        %v6738 = vpack.c.b16 %v6730, %v6729
        %v6739 = vpack.c.b16 %v6732, %v6731
        %v6748 = vsel %vm1786, %v6703, 0
        %v6751 = vsel %vm1786, %v6704, 0
        %6753 = vmatpush.bf16.msra.mxu0 0
        %6754 = vmatpush.bf16.msra.mxu0 %v6739
        %6755 = vmatpush.bf16.msra.mxu0 %v6738
        %6756 = vmatpush.bf16.msra.mxu0 %v6737
        %6757 = vmatpush.bf16.msra.mxu0 %v6736
        %6758 = vmatpush.bf16.msra.mxu0 %v6735
        %6759 = vmatpush.bf16.msra.mxu0 %v6734
        %6760 = vmatpush.bf16.msra.mxu0 %v6733
        %6761 = vmatmul.bf16.gmra.mxu0 %v6748
        %v6762 = vpop.f32.mrf.mxu0
        %v6763 = vadd.f32 0.0, %v6762
        %v6764 = vpop.f32.mrf.mxu0
        %v6765 = vadd.f32 0.0, %v6764
        %6766 = vmatmul.bf16.gmra.mxu0 %v6751
        %v6767 = vpop.f32.mrf.mxu0
        %v6768 = vadd.f32 0.0, %v6767
        %v6769 = vpop.f32.mrf.mxu0
        %v6770 = vadd.f32 0.0, %v6769
        %6771 = vdwg.mxu0
        %v6772 = vadd.f32 %v6644, %v6763
        %v6773 = vadd.f32 %v6645, %v6765
        %v6774 = vadd.f32 %v6646, %v6768
        %v6775 = vadd.f32 %v6647, %v6770
        %v6776 = vld [vmem:[#allocation15] sm:$0x1]
        %v6778 = vperm.slane %v6776, 0
        %v6780 = vadd.f32 %v6772, %v6778
        %v6781 = vadd.f32 %v6773, %v6778
        %v6782 = vadd.f32 %v6774, %v6778
        %v6783 = vadd.f32 %v6775, %v6778
        %v6784 = vxor.u32 %v6780, 2147483648
        %v6785 = vxor.u32 %v6781, 2147483648
        %v6786 = vxor.u32 %v6782, 2147483648
        %v6787 = vxor.u32 %v6783, 2147483648
        %v6788 = vmul.f32 %v6784, 1.442695
        %v6789 = vpow.pop %v6788
        %v6790 = vmul.f32 %v6785, 1.442695
        %v6791 = vpow.pop %v6790
        %v6792 = vmul.f32 %v6786, 1.442695
        %v6793 = vpow.pop %v6792
        %v6794 = vmul.f32 %v6787, 1.442695
        %v6795 = vpow.pop %v6794
        %v6796 = vadd.f32 %v6789, 1.0
        %v6797 = vadd.f32 %v6791, 1.0
        %v6798 = vadd.f32 %v6793, 1.0
        %v6799 = vadd.f32 %v6795, 1.0
        %v6800 = vrcp.pop %v6796
        %v6801 = vmul.f32 %v6796, %v6800
        %v6802 = vsub.f32 1.0, %v6801
        %v6803 = vmul.f32 %v6800, %v6802
        %v6804 = vadd.f32 %v6800, %v6803
        %vm6805 = vweird.f32 %v6796
        %vm6806 = vweird.f32 %v6800
        %vm6807 = vmor %vm6805, %vm6806
        %v6808 = vsel %vm6807, %v6800, %v6804
        %v6809 = vand.u32 2147483647, %v6796
        %vm6810 = vcmp.eq.f32.partialorder %v6809, 8.507059e+37
        %v6811 = vand.u32 %v6796, 2147483648
        %v6812 = vor.u32 1.1754944e-38, %v6811
        %v6813 = vsel %vm6810, %v6812, %v6808
        %v6814 = vmul.f32 1.0, %v6813
        %v6815 = vrcp.pop %v6797
        %v6816 = vmul.f32 %v6797, %v6815
        %v6817 = vsub.f32 1.0, %v6816
        %v6818 = vmul.f32 %v6815, %v6817
        %v6819 = vadd.f32 %v6815, %v6818
        %vm6820 = vweird.f32 %v6797
        %vm6821 = vweird.f32 %v6815
        %vm6822 = vmor %vm6820, %vm6821
        %v6823 = vsel %vm6822, %v6815, %v6819
        %v6824 = vand.u32 2147483647, %v6797
        %vm6825 = vcmp.eq.f32.partialorder %v6824, 8.507059e+37
        %v6826 = vand.u32 %v6797, 2147483648
        %v6827 = vor.u32 1.1754944e-38, %v6826
        %v6828 = vsel %vm6825, %v6827, %v6823
        %v6829 = vmul.f32 1.0, %v6828
        %v6830 = vrcp.pop %v6798
        %v6831 = vmul.f32 %v6798, %v6830
        %v6832 = vsub.f32 1.0, %v6831
        %v6833 = vmul.f32 %v6830, %v6832
        %v6834 = vadd.f32 %v6830, %v6833
        %vm6835 = vweird.f32 %v6798
        %vm6836 = vweird.f32 %v6830
        %vm6837 = vmor %vm6835, %vm6836
        %v6838 = vsel %vm6837, %v6830, %v6834
        %v6839 = vand.u32 2147483647, %v6798
        %vm6840 = vcmp.eq.f32.partialorder %v6839, 8.507059e+37
        %v6841 = vand.u32 %v6798, 2147483648
        %v6842 = vor.u32 1.1754944e-38, %v6841
        %v6843 = vsel %vm6840, %v6842, %v6838
        %v6844 = vmul.f32 1.0, %v6843
        %v6845 = vrcp.pop %v6799
        %v6846 = vmul.f32 %v6799, %v6845
        %v6847 = vsub.f32 1.0, %v6846
        %v6848 = vmul.f32 %v6845, %v6847
        %v6849 = vadd.f32 %v6845, %v6848
        %vm6850 = vweird.f32 %v6799
        %vm6851 = vweird.f32 %v6845
        %vm6852 = vmor %vm6850, %vm6851
        %v6853 = vsel %vm6852, %v6845, %v6849
        %v6854 = vand.u32 2147483647, %v6799
        %vm6855 = vcmp.eq.f32.partialorder %v6854, 8.507059e+37
        %v6856 = vand.u32 %v6799, 2147483648
        %v6857 = vor.u32 1.1754944e-38, %v6856
        %v6858 = vsel %vm6855, %v6857, %v6853
        %v6859 = vmul.f32 1.0, %v6858
        %6860 = vst.msk [vmem:[%s1081] sm:$0xff] %vm1096, %v6814
        %6861 = vst.msk [vmem:[%s1081 + $0x8] sm:$0xff] %vm1096, %v6829
        %6862 = vst.msk [vmem:[%s1081 + $0x10] sm:$0xff] %vm1096, %v6844
        %vm6863 = vcmask 224256
        %6864 = vst.msk [vmem:[%s1081 + $0x18] sm:$0xf] %vm6863, %v6859
        %p6865 = scmp.lt.s32.totalorder %s77, 1
        %s6866 = scalar_select %p6865, %s77, 1
        %s6867 = smul.addr %s6866, 4
        %s6868 = smul.addr %s6867, 8
        %s6869 = scalar_lea.vmem %s61, %s6868
        // Predicated region
        $region177: #{vae_forward.1} parent=139 // pred_check
          %p6870 = pneg %p735
        $region178: #{vae_forward.1} parent=139 // pred_check_branch
          %6872 = sbr.rel (%p6870) target = $region180
        $region179: #{vae_forward.1} parent=139 // pred_region
          _
        $region180: #{vae_forward.1} parent=139 // pred_fallthru
          _
      $region140: #{vae_forward.1} parent=5 // pred_fallthru
        _
      %p6873 = scmp.le.s32.totalorder 2, %s72
      // Predicated region
      $region181: #{vae_forward.1} parent=5 // pred_check
        %p6874 = pneg %p6873
      $region182: #{vae_forward.1} parent=5 // pred_check_branch
        %6876 = sbr.rel (%p6874) target = $region184
      $region183: #{vae_forward.1} parent=5 // pred_region
        %s6877 = ssub.s32 %s72, 2
        // Predicated region
        $region185: #{vae_forward.1} parent=183 // pred_check
          %p6878 = pneg %p741
        $region186: #{vae_forward.1} parent=183 // pred_check_branch
          %6880 = sbr.rel (%p6878) target = $region188
        $region187: #{vae_forward.1} parent=183 // pred_region
          %p6881 = scmp.lt.s32.totalorder %s78, 1
          %s6882 = scalar_select %p6881, %s78, 1
          %s6883 = smul.addr %s6882, 4
          %s6884 = smul.addr %s6883, 8
          %s6885 = scalar_lea.vmem %s61, %s6884
        $region188: #{vae_forward.1} parent=183 // pred_fallthru
          _
      $region184: #{vae_forward.1} parent=5 // pred_fallthru
        _
    $region6: #{vae_forward.1} parent=1 // loop_footer
      %s76 = sadd.s32 1, %s72
    $region7: #{vae_forward.1} parent=1 // loop_footer_branch
      %71 = sbr.rel target = $region3
    $region8: #{vae_forward.1} parent=1 // loop_exit
      _
    %6886 = vsyncpa [#allocation3], 1
    %s6887 = scalar_lea.sflag [#allocation3], 1
    %6888 = vsyncpa %s6887, 1
    %6889 = vsyncpa [#allocation5], 1
    %6890 = vsyncpa [#allocation8], 1
    %6891 = vsyncpa [#allocation11], 1
    %6892 = vsyncpa [#allocation14], 1

</llo_original>
